<compile_context>
chip_gen: v6e
topology: v6e:2x2x1
jax: 0.10.0
libtpu: 0.0.40
codegen_flags: <defaults>
</compile_context>

<pallas_src>
import jax
import jax.numpy as jnp
from jax.experimental import pallas as pl
from jax.experimental.pallas import tpu as pltpu


def _round_up(a: int, b: int) -> int:
    return (a + b - 1) // b * b


def pem_kernel(x_ref, w1_ref, b1_ref, w2_ref, b2_ref, o_ref):
    # fc1 on the MXU: bf16 operands, f32 accumulation. 0.1 is pre-folded into w1/b1.
    h = jnp.dot(
        x_ref[...].astype(jnp.bfloat16),      # (tm, feat) bf16 (no-op if x is bf16)
        w1_ref[...],                          # (feat, hidden) bf16 (prepped)
        preferred_element_type=jnp.float32,
    )                                         # (tm, hidden) f32
    h = jnp.maximum(h + b1_ref[...], 0.0)     # bias + ReLU in f32, (1,H) broadcast

    # fc2 (hidden -> 1) on VPU + XLU: elementwise multiply by the w2 row and
    # reduce across lanes. Result goes out as a lane-dense (1, tm) row.
    y = jnp.sum(h * w2_ref[...], axis=-1)     # (tm,)
    y = y[None, :] + b2_ref[...]              # (1, tm) + (1, 1)
    o_ref[...] = jax.nn.sigmoid(y)            # lane-dense store, (1, tm)


def prepare_pem_params(w1, b1, w2, b2):
    """One-time parameter prep: fold the 0.1 scales, set kernel layouts/dtypes.

    Inputs (math layout): w1 (feat, hidden), b1 (hidden,), w2 (hidden, 1), b2 (1,).
    Returns: w1s bf16 (feat, hidden), b1s f32 (1, hidden),
             w2s f32 (1, hidden) row, b2s f32 (1, 1).
    """
    w1s = (0.1 * w1).astype(jnp.bfloat16)
    b1s = (0.1 * b1).reshape(1, -1).astype(jnp.float32)
    w2s = (0.1 * w2).reshape(1, -1).astype(jnp.float32)
    b2s = (0.1 * b2).reshape(1, 1).astype(jnp.float32)
    return w1s, b1s, w2s, b2s


def _choose_tiling(n: int, tm_target: int):
    """Pick (tm, num_tiles, n_pad) so n_pad = tm*num_tiles is close to n."""
    tm_target = max(_round_up(tm_target, 128), 128)
    n_128 = _round_up(n, 128)                 # pad only to the sublane/lane quantum
    num_tiles = pl.cdiv(n_128, tm_target)
    # Megacore: give both v7x TensorCores work whenever there are >= 2 row blocks.
    if num_tiles == 1 and n_128 >= 256:
        num_tiles = 2
    tm = _round_up(pl.cdiv(n_128, num_tiles), 128)
    return tm, num_tiles, tm * num_tiles


def pem_forward(x, w1s, b1s, w2s, b2s, *, tm=2048):
    """x: (n, feat) f32 or bf16 — n is the folded video*proposal dimension.

    tm is a target row tile (multiple of 128). Default 2048 is safe on all
    generations; 4096 is a reasonable sweep point on v6e/v7x.
    """
    n, feat = x.shape
    hidden = w1s.shape[1]

    if n == 0:
        return jnp.zeros((0, 1), jnp.float32)

    tm, num_tiles, n_pad = _choose_tiling(n, tm)
    if n_pad != n:
        x = jnp.pad(x, ((0, n_pad - n), (0, 0)))

    cost = pl.CostEstimate(
        flops=2 * n_pad * feat * hidden + 2 * n_pad * hidden,
        transcendentals=n_pad,
        bytes_accessed=(n_pad * feat * x.dtype.itemsize   # x streamed from HBM
                        + feat * hidden * 2               # w1 (bf16)
                        + hidden * 4 * 2 + 4              # b1, w2 row, b2
                        + n_pad * 4),                     # output
    )

    out = pl.pallas_call(
        pem_kernel,
        out_shape=jax.ShapeDtypeStruct((1, n_pad), jnp.float32),
        grid=(num_tiles,),
        in_specs=[
            pl.BlockSpec((tm, feat), lambda i: (i, 0)),        # x streams by row tile
            pl.BlockSpec((feat, hidden), lambda i: (0, 0)),    # weights stay resident
            pl.BlockSpec((1, hidden), lambda i: (0, 0)),
            pl.BlockSpec((1, hidden), lambda i: (0, 0)),
            pl.BlockSpec((1, 1), lambda i: (0, 0)),
        ],
        out_specs=pl.BlockSpec((1, tm), lambda i: (0, i)),     # lane-dense output row
        compiler_params=pltpu.CompilerParams(
            dimension_semantics=("parallel",),        # shards rows on v7x's 2 TCs
            vmem_limit_bytes=48 * 1024 * 1024,        # >v5e's 16 MiB default, <v7x's 64 MiB/TC
        ),
        cost_estimate=cost,
    )(x, w1s, b1s, w2s, b2s)

    return out.reshape(n_pad, 1)[:n]


def pem_reference(x, w1, b1, w2, b2):
    h = jnp.maximum(0.1 * (x @ w1 + b1[None, :]), 0.0)
    return jax.nn.sigmoid(0.1 * (h @ w2 + b2[None, :]))


if __name__ == "__main__":
    # Shapes consistent with the module: pem_feat_dim=32, pem_hidden_dim=512,
    # output_dim=1; the proposal/video-batch dimension is folded into n.
    feat_dim = 32
    hidden_dim = 512
    output_dim = 1
    n_props = 1000          # many proposals per call -> exercises the row grid

    key = jax.random.PRNGKey(0)
    kx, k1, kb1, k2, kb2 = jax.random.split(key, 5)

    x = jax.random.normal(kx, (n_props, feat_dim), dtype=jnp.float32)

    # PyTorch-Linear-like uniform fan-in init (deterministic)
    lim1 = 1.0 / (feat_dim ** 0.5)
    w1 = jax.random.uniform(k1, (feat_dim, hidden_dim), jnp.float32, -lim1, lim1)
    b1 = jax.random.uniform(kb1, (hidden_dim,), jnp.float32, -lim1, lim1)
    lim2 = 1.0 / (hidden_dim ** 0.5)
    w2 = jax.random.uniform(k2, (hidden_dim, output_dim), jnp.float32, -lim2, lim2)
    b2 = jax.random.uniform(kb2, (output_dim,), jnp.float32, -lim2, lim2)

    params = prepare_pem_params(w1, b1, w2, b2)
    out = jax.block_until_ready(pem_forward(x, *params))

    ref = pem_reference(x, w1, b1, w2, b2)
    assert out.shape == (n_props, output_dim)
    max_err = float(jnp.max(jnp.abs(out - ref)))
    assert jnp.allclose(out, ref, atol=2e-3, rtol=0.0), f"max_err={max_err}"

    print("KERNEL_OK")
</pallas_src>

<mosaic_0001>
module attributes {stable_mosaic.version = 11 : i64} {
  func.func @pem_kernel(%arg0: i32, %arg1: memref<512x32xf32, #tpu.memory_space<vmem>>, %arg2: memref<32x512xbf16, #tpu.memory_space<vmem>>, %arg3: memref<1x512xf32, #tpu.memory_space<vmem>>, %arg4: memref<1x512xf32, #tpu.memory_space<vmem>>, %arg5: memref<1x1xf32, #tpu.memory_space<vmem>>, %arg6: memref<1x512xf32, #tpu.memory_space<vmem>>) attributes {dimension_semantics = [#tpu.dimension_semantics<parallel>], iteration_bounds = array<i64: 2>, scalar_prefetch = 0 : i64, scratch_operands = 0 : i64, tpu.core_type = #tpu.core_type<tc>, window_params = [{transform_indices = @transform_0, window_bounds = array<i64: 512, 32>}, {pipeline_mode = #tpu.pipeline_mode<synchronous>, transform_indices = @transform_1, window_bounds = array<i64: 32, 512>}, {pipeline_mode = #tpu.pipeline_mode<synchronous>, transform_indices = @transform_2, window_bounds = array<i64: 1, 512>}, {pipeline_mode = #tpu.pipeline_mode<synchronous>, transform_indices = @transform_3, window_bounds = array<i64: 1, 512>}, {pipeline_mode = #tpu.pipeline_mode<synchronous>, transform_indices = @transform_4, window_bounds = array<i64: 1, 1>}, {transform_indices = @transform_5, window_bounds = array<i64: 1, 512>}]} {
    %c0 = arith.constant 0 : index
    %c0_0 = arith.constant 0 : index
    %0 = vector.load %arg1[%c0, %c0_0] : memref<512x32xf32, #tpu.memory_space<vmem>>, vector<512x32xf32>
    %1 = arith.truncf %0 : vector<512x32xf32> to vector<512x32xbf16>
    %c0_1 = arith.constant 0 : index
    %c0_2 = arith.constant 0 : index
    %2 = vector.load %arg2[%c0_1, %c0_2] : memref<32x512xbf16, #tpu.memory_space<vmem>>, vector<32x512xbf16>
    %cst = arith.constant dense<0.000000e+00> : vector<512x512xf32>
    %3 = tpu.matmul %1, %2, %cst {dimension_numbers = #tpu.dot_dimension_numbers<[1], [0], [0], [1], [0, 0, 1, 1], [], []>} : vector<512x32xbf16>, vector<32x512xbf16>, vector<512x512xf32> -> vector<512x512xf32>
    %c0_3 = arith.constant 0 : index
    %c0_4 = arith.constant 0 : index
    %4 = vector.load %arg3[%c0_3, %c0_4] : memref<1x512xf32, #tpu.memory_space<vmem>>, vector<1x512xf32>
    %5 = vector.broadcast %4 : vector<1x512xf32> to vector<512x512xf32>
    %6 = arith.addf %3, %5 : vector<512x512xf32>
    %cst_5 = arith.constant 0.000000e+00 : f32
    %7 = vector.broadcast %cst_5 : f32 to vector<512x512xf32>
    %8 = arith.maximumf %6, %7 : vector<512x512xf32>
    %c0_6 = arith.constant 0 : index
    %c0_7 = arith.constant 0 : index
    %9 = vector.load %arg4[%c0_6, %c0_7] : memref<1x512xf32, #tpu.memory_space<vmem>>, vector<1x512xf32>
    %10 = vector.broadcast %9 : vector<1x512xf32> to vector<512x512xf32>
    %11 = arith.mulf %8, %10 : vector<512x512xf32>
    %cst_8 = arith.constant dense<0.000000e+00> : vector<512xf32>
    %12 = vector.multi_reduction <add>, %11, %cst_8 [1] : vector<512x512xf32> to vector<512xf32>
    %13 = vector.shape_cast %12 : vector<512xf32> to vector<1x512xf32>
    %c0_9 = arith.constant 0 : index
    %c0_10 = arith.constant 0 : index
    %14 = vector.load %arg5[%c0_9, %c0_10] : memref<1x1xf32, #tpu.memory_space<vmem>>, vector<1x1xf32>
    %15 = vector.broadcast %14 : vector<1x1xf32> to vector<1x512xf32>
    %16 = arith.addf %13, %15 : vector<1x512xf32>
    %17 = arith.negf %16 : vector<1x512xf32>
    %18 = math.exp %17 : vector<1x512xf32>
    %cst_11 = arith.constant 1.000000e+00 : f32
    %19 = vector.broadcast %cst_11 : f32 to vector<1x512xf32>
    %20 = arith.addf %19, %18 : vector<1x512xf32>
    %21 = arith.divf %19, %20 : vector<1x512xf32>
    %c0_12 = arith.constant 0 : index
    %c0_13 = arith.constant 0 : index
    %22 = vector.load %arg6[%c0_12, %c0_13] : memref<1x512xf32, #tpu.memory_space<vmem>>, vector<1x512xf32>
    tpu.vector_store %arg6[%c0_12, %c0_13], %21 {strides = array<i32>} : memref<1x512xf32, #tpu.memory_space<vmem>>, vector<1x512xf32>,
    return
  }
  func.func @transform_0(%arg0: i32) -> (i32, i32) {
    %c0_i32 = arith.constant 0 : i32
    %c0_i32_0 = arith.constant 0 : i32
    return %arg0, %c0_i32 : i32, i32
  }
  func.func @transform_1(%arg0: i32) -> (i32, i32) {
    %c0_i32 = arith.constant 0 : i32
    %c0_i32_0 = arith.constant 0 : i32
    %c0_i32_1 = arith.constant 0 : i32
    return %c0_i32, %c0_i32_0 : i32, i32
  }
  func.func @transform_2(%arg0: i32) -> (i32, i32) {
    %c0_i32 = arith.constant 0 : i32
    %c0_i32_0 = arith.constant 0 : i32
    %c0_i32_1 = arith.constant 0 : i32
    return %c0_i32, %c0_i32_0 : i32, i32
  }
  func.func @transform_3(%arg0: i32) -> (i32, i32) {
    %c0_i32 = arith.constant 0 : i32
    %c0_i32_0 = arith.constant 0 : i32
    %c0_i32_1 = arith.constant 0 : i32
    return %c0_i32, %c0_i32_0 : i32, i32
  }
  func.func @transform_4(%arg0: i32) -> (i32, i32) {
    %c0_i32 = arith.constant 0 : i32
    %c0_i32_0 = arith.constant 0 : i32
    %c0_i32_1 = arith.constant 0 : i32
    return %c0_i32, %c0_i32_0 : i32, i32
  }
  func.func @transform_5(%arg0: i32) -> (i32, i32) {
    %c0_i32 = arith.constant 0 : i32
    %c0_i32_0 = arith.constant 0 : i32
    return %c0_i32, %arg0 : i32, i32
  }
}

</mosaic_0001>

<llo_original>
// kernel: tpu_custom_call.1
$region0: #{tpu_custom_call.1}
  #allocation0 [shape = 'u32[]', space=smem, size = 0x4, offset = 0x4, fixed_abs, tag = 'smem constant byte address 0x4 - core index']
  #allocation1 [shape = 'u32[144,128]{1,0:T(1,128)}', space=vmem, size = 0x12000, scoped, tag = 'internal scratch']
  #allocation2 [shape = 'f32[1,1]{1,0:T(1,128)S(1)}', space=vmem, size = 0x200, scoped, tag = 'scoped memory for tpu_custom_call.1']
  %s0 = inlined_call_operand.vmem [shape: f32[1024,32], index: 0, kind: input, shape index: {}]
  %s1 = inlined_call_operand.vmem [shape: bf16[32,512], index: 1, kind: input, shape index: {}]
  %s2 = inlined_call_operand.vmem [shape: f32[1,512], index: 2, kind: input, shape index: {}]
  %s3 = inlined_call_operand.vmem [shape: f32[1,512], index: 3, kind: input, shape index: {}]
  %s4 = inlined_call_operand.<no memory space> [shape: f32[1,1], index: 4, kind: input, shape index: {}]
  %s5 = inlined_call_operand.hbm [shape: f32[1,1024], index: 5, kind: output, shape index: {}]
  %s6 = sld [smem:[#allocation0]]
  $region53: #{tpu_custom_call.1} parent=0
    _
  %s8 = ssub.s32 1, %s6
  %s9 = scalar_select 0, %s8, %s6
  %v10 = vstv %s4
  %11 = vst [vmem:[#allocation2] sm:$0x1] %v10
  $region1: #{tpu_custom_call.1} parent=0
    #allocation3 [shape = 'u8[4096]{0}', space=vmem, size = 0x1000, scoped, tag = 'output window, operand 0']
    #allocation4 [shape = 's32[2]{0}', space=sflag, size = 0x8, scoped, tag = 'scoped memory for tpu_custom_call.1']
    %12 = vsyncpa [#allocation4], 0
    %s13 = scalar_lea.sflag [#allocation4], 1
    %14 = vsyncpa %s13, 0
    loop: start=0, step=1, limit=4
    $region2: #{tpu_custom_call.1} parent=1 // loop_pre_header
      _
    $region3: #{tpu_custom_call.1} parent=1 // loop_header
      %s16 = sphi 0, %s20
      %p17 = scmp.ge.s32.totalorder %s16, 4
      %s26 = sphi 0, %s28
      %s29 = sphi 0, %s26
      %s30 = sphi 0, %s29
      %s46 = sphi 0, %s30
      %s50 = sphi 0, %s50
      %s52 = sphi 0, %s50
      %s53 = sphi 0, %s52
      %s67 = sphi 0, %s53
      %s71 = sphi 0, %s71
      %s73 = sphi 0, %s71
      %s74 = sphi 0, %s73
      %s88 = sphi 0, %s74
      %s92 = sphi 0, %s92
      %s94 = sphi 0, %s92
      %s95 = sphi 0, %s94
      %s109 = sphi 0, %s95
      %s113 = sphi 0, %s113
      %s115 = sphi 0, %s113
      %s116 = sphi 0, %s115
      %s130 = sphi 0, %s116
      %s136 = sphi 0, %s138
      %s139 = sphi 0, %s136
      %s140 = sphi 0, %s139
      %s156 = sphi 0, %s140
    $region4: #{tpu_custom_call.1} parent=1 // loop_header_branch
      %19 = sbr.rel (%p17) target = $region8
    $region5: #{tpu_custom_call.1} parent=1 // loop_body
      %s21 = ssub.s32 %s16, 1
      %s22 = ssub.s32 %s16, 2
      %s23 = sadd.s32 %s16, 1
      %s24 = ssub.s32 %s16, %s23
      %p25 = scmp.eq.s32.totalorder %s24, 0
      %s27 = sadd.s32 %s26, 1
      %s28 = scalar_select %p25, %s26, %s27
      %p31 = pneg %p25
      %p32 = scmp.eq.s32.totalorder %s16, 1
      %p33 = por %p31, %p32
      %p34 = scmp.ne.s32.totalorder %s26, %s29
      %p35 = scmp.eq.s32.totalorder %s16, 0
      %p36 = por %p34, %p35
      %p37 = scmp.ne.s32.totalorder %s26, %s29
      %p38 = scmp.eq.s32.totalorder %s21, 1
      %p39 = por %p37, %p38
      %p40 = scmp.ne.s32.totalorder %s29, %s30
      %p41 = scmp.eq.s32.totalorder %s21, 0
      %p42 = por %p40, %p41
      %p43 = scmp.ne.s32.totalorder %s29, %s30
      %p44 = scmp.eq.s32.totalorder %s22, 1
      %p45 = por %p43, %p44
      %p47 = scmp.ne.s32.totalorder %s30, %s46
      %p48 = scmp.eq.s32.totalorder %s22, 0
      %p49 = por %p47, %p48
      %s51 = sadd.s32 %s50, 1
      %p54 = scmp.eq.s32.totalorder %s16, 1
      %p55 = scmp.ne.s32.totalorder %s50, %s52
      %p56 = scmp.eq.s32.totalorder %s16, 0
      %p57 = por %p55, %p56
      %p58 = scmp.ne.s32.totalorder %s50, %s52
      %p59 = scmp.eq.s32.totalorder %s21, 1
      %p60 = por %p58, %p59
      %p61 = scmp.ne.s32.totalorder %s52, %s53
      %p62 = scmp.eq.s32.totalorder %s21, 0
      %p63 = por %p61, %p62
      %p64 = scmp.ne.s32.totalorder %s52, %s53
      %p65 = scmp.eq.s32.totalorder %s22, 1
      %p66 = por %p64, %p65
      %p68 = scmp.ne.s32.totalorder %s53, %s67
      %p69 = scmp.eq.s32.totalorder %s22, 0
      %p70 = por %p68, %p69
      %s72 = sadd.s32 %s71, 1
      %p75 = scmp.eq.s32.totalorder %s16, 1
      %p76 = scmp.ne.s32.totalorder %s71, %s73
      %p77 = scmp.eq.s32.totalorder %s16, 0
      %p78 = por %p76, %p77
      %p79 = scmp.ne.s32.totalorder %s71, %s73
      %p80 = scmp.eq.s32.totalorder %s21, 1
      %p81 = por %p79, %p80
      %p82 = scmp.ne.s32.totalorder %s73, %s74
      %p83 = scmp.eq.s32.totalorder %s21, 0
      %p84 = por %p82, %p83
      %p85 = scmp.ne.s32.totalorder %s73, %s74
      %p86 = scmp.eq.s32.totalorder %s22, 1
      %p87 = por %p85, %p86
      %p89 = scmp.ne.s32.totalorder %s74, %s88
      %p90 = scmp.eq.s32.totalorder %s22, 0
      %p91 = por %p89, %p90
      %s93 = sadd.s32 %s92, 1
      %p96 = scmp.eq.s32.totalorder %s16, 1
      %p97 = scmp.ne.s32.totalorder %s92, %s94
      %p98 = scmp.eq.s32.totalorder %s16, 0
      %p99 = por %p97, %p98
      %p100 = scmp.ne.s32.totalorder %s92, %s94
      %p101 = scmp.eq.s32.totalorder %s21, 1
      %p102 = por %p100, %p101
      %p103 = scmp.ne.s32.totalorder %s94, %s95
      %p104 = scmp.eq.s32.totalorder %s21, 0
      %p105 = por %p103, %p104
      %p106 = scmp.ne.s32.totalorder %s94, %s95
      %p107 = scmp.eq.s32.totalorder %s22, 1
      %p108 = por %p106, %p107
      %p110 = scmp.ne.s32.totalorder %s95, %s109
      %p111 = scmp.eq.s32.totalorder %s22, 0
      %p112 = por %p110, %p111
      %s114 = sadd.s32 %s113, 1
      %p117 = scmp.eq.s32.totalorder %s16, 1
      %p118 = scmp.ne.s32.totalorder %s113, %s115
      %p119 = scmp.eq.s32.totalorder %s16, 0
      %p120 = por %p118, %p119
      %p121 = scmp.ne.s32.totalorder %s113, %s115
      %p122 = scmp.eq.s32.totalorder %s21, 1
      %p123 = por %p121, %p122
      %p124 = scmp.ne.s32.totalorder %s115, %s116
      %p125 = scmp.eq.s32.totalorder %s21, 0
      %p126 = por %p124, %p125
      %p127 = scmp.ne.s32.totalorder %s115, %s116
      %p128 = scmp.eq.s32.totalorder %s22, 1
      %p129 = por %p127, %p128
      %p131 = scmp.ne.s32.totalorder %s116, %s130
      %p132 = scmp.eq.s32.totalorder %s22, 0
      %p133 = por %p131, %p132
      %s134 = ssub.s32 %s16, %s23
      %p135 = scmp.eq.s32.totalorder %s134, 0
      %s137 = sadd.s32 %s136, 1
      %s138 = scalar_select %p135, %s136, %s137
      %p141 = pneg %p135
      %p142 = scmp.eq.s32.totalorder %s16, 1
      %p143 = por %p141, %p142
      %p144 = scmp.ne.s32.totalorder %s136, %s139
      %p145 = scmp.eq.s32.totalorder %s16, 0
      %p146 = por %p144, %p145
      %p147 = scmp.ne.s32.totalorder %s136, %s139
      %p148 = scmp.eq.s32.totalorder %s21, 1
      %p149 = por %p147, %p148
      %p150 = scmp.ne.s32.totalorder %s139, %s140
      %p151 = scmp.eq.s32.totalorder %s21, 0
      %p152 = por %p150, %p151
      %p153 = scmp.ne.s32.totalorder %s139, %s140
      %p154 = scmp.eq.s32.totalorder %s22, 1
      %p155 = por %p153, %p154
      %p157 = scmp.ne.s32.totalorder %s140, %s156
      %p158 = scmp.eq.s32.totalorder %s22, 0
      %p159 = por %p157, %p158
      %p160 = scmp.le.s32.totalorder 1, %s16
      %p161 = scmp.lt.s32.totalorder %s16, 3
      %p162 = pnand %p160, %p161
      %p163 = pneg %p162
      // Predicated region
      $region9: #{tpu_custom_call.1} parent=5 // pred_check
        _
      $region10: #{tpu_custom_call.1} parent=5 // pred_check_branch
        %165 = sbr.rel (%p162) target = $region12
      $region11: #{tpu_custom_call.1} parent=5 // pred_region
        %s166 = ssub.s32 %s16, 1
        // Predicated region
        $region13: #{tpu_custom_call.1} parent=11 // pred_check
          %p167 = pneg %p63
        $region14: #{tpu_custom_call.1} parent=11 // pred_check_branch
          %169 = sbr.rel (%p167) target = $region16
        $region15: #{tpu_custom_call.1} parent=11 // pred_region
          _
        $region16: #{tpu_custom_call.1} parent=11 // pred_fallthru
          _
        // Predicated region
        $region17: #{tpu_custom_call.1} parent=11 // pred_check
          %p170 = pneg %p84
        $region18: #{tpu_custom_call.1} parent=11 // pred_check_branch
          %172 = sbr.rel (%p170) target = $region20
        $region19: #{tpu_custom_call.1} parent=11 // pred_region
          _
        $region20: #{tpu_custom_call.1} parent=11 // pred_fallthru
          _
        // Predicated region
        $region21: #{tpu_custom_call.1} parent=11 // pred_check
          %p173 = pneg %p105
        $region22: #{tpu_custom_call.1} parent=11 // pred_check_branch
          %175 = sbr.rel (%p173) target = $region24
        $region23: #{tpu_custom_call.1} parent=11 // pred_region
          _
        $region24: #{tpu_custom_call.1} parent=11 // pred_fallthru
          _
        // Predicated region
        $region25: #{tpu_custom_call.1} parent=11 // pred_check
          %p176 = pneg %p126
        $region26: #{tpu_custom_call.1} parent=11 // pred_check_branch
          %178 = sbr.rel (%p176) target = $region28
        $region27: #{tpu_custom_call.1} parent=11 // pred_region
          _
        $region28: #{tpu_custom_call.1} parent=11 // pred_fallthru
          _
      $region12: #{tpu_custom_call.1} parent=5 // pred_fallthru
        _
      %p179 = scmp.lt.s32.totalorder %s16, 2
      // Predicated region
      $region29: #{tpu_custom_call.1} parent=5 // pred_check
        %p180 = pneg %p179
      $region30: #{tpu_custom_call.1} parent=5 // pred_check_branch
        %182 = sbr.rel (%p180) target = $region32
      $region31: #{tpu_custom_call.1} parent=5 // pred_region
        // Predicated region
        $region33: #{tpu_custom_call.1} parent=31 // pred_check
          %p183 = pneg %p36
        $region34: #{tpu_custom_call.1} parent=31 // pred_check_branch
          %185 = sbr.rel (%p183) target = $region36
        $region35: #{tpu_custom_call.1} parent=31 // pred_region
          %s186 = smul.u32 64, %s16
          %p187 = scmp.lt.s32.totalorder %s186, 127
          %s188 = scalar_select %p187, %s186, 127
          %s189 = smul.addr %s188, 8
          %s190 = scalar_lea.vmem %s0, %s189
          %s191 = smul.u32 64, %s16
        $region36: #{tpu_custom_call.1} parent=31 // pred_fallthru
          _
      $region32: #{tpu_custom_call.1} parent=5 // pred_fallthru
        _
      %p192 = scmp.le.s32.totalorder 1, %s16
      %p193 = scmp.lt.s32.totalorder %s16, 3
      %p194 = pnand %p192, %p193
      %p195 = pneg %p194
      // Predicated region
      $region37: #{tpu_custom_call.1} parent=5 // pred_check
        _
      $region38: #{tpu_custom_call.1} parent=5 // pred_check_branch
        %197 = sbr.rel (%p194) target = $region40
      $region39: #{tpu_custom_call.1} parent=5 // pred_region
        %s198 = ssub.s32 %s16, 1
        %s199 = smul.u32 64, %s21
        %p200 = scmp.lt.s32.totalorder %s199, 127
        %s201 = scalar_select %p200, %s199, 127
        %s202 = smul.addr %s201, 8
        %s203 = scalar_lea.vmem %s0, %s202
        %p204 = pneg %p42
        %p205 = pneg %p39
        %p206 = pneg %p63
        %p207 = pneg %p60
        %p208 = pneg %p84
        %p209 = pneg %p81
        %p210 = pneg %p105
        %p211 = pneg %p102
        %p212 = pneg %p126
        %p213 = pneg %p123
        %p214 = pneg %p152
        %p215 = pneg %p149
        %s216 = sand.u32 %s139, 1
        %s217 = scalar_lea.sflag [#allocation4], %s216
        %s218 = sand.u32 %s139, 1
        %s219 = smul.addr %s218, 4
        %s220 = scalar_lea.vmem [#allocation3], %s219
        %s221 = smul.u32 64, %s21
        %p222 = scmp.lt.s32.totalorder %s221, 127
        %s223 = scalar_select %p222, %s221, 127
        %s224 = smul.addr %s223, 8
        %s225 = scalar_lea.vmem %s0, %s224
        %s226 = smul.u32 64, %s21
        %s227 = smul.u32 4, %s21
        %v229 = vld [vmem:[%s225] sm:$0xff]
        %v230 = vld [vmem:[%s225 + $0x8] sm:$0xff]
        %v231 = vld [vmem:[%s225 + $0x10] sm:$0xff]
        %v232 = vld [vmem:[%s225 + $0x18] sm:$0xff]
        %v233 = vld [vmem:[%s225 + $0x20] sm:$0xff]
        %v234 = vld [vmem:[%s225 + $0x28] sm:$0xff]
        %v235 = vld [vmem:[%s225 + $0x30] sm:$0xff]
        %v236 = vld [vmem:[%s225 + $0x38] sm:$0xff]
        %v237 = vld [vmem:[%s225 + $0x40] sm:$0xff]
        %v238 = vld [vmem:[%s225 + $0x48] sm:$0xff]
        %v239 = vld [vmem:[%s225 + $0x50] sm:$0xff]
        %v240 = vld [vmem:[%s225 + $0x58] sm:$0xff]
        %v241 = vld [vmem:[%s225 + $0x60] sm:$0xff]
        %v242 = vld [vmem:[%s225 + $0x68] sm:$0xff]
        %v243 = vld [vmem:[%s225 + $0x70] sm:$0xff]
        %v244 = vld [vmem:[%s225 + $0x78] sm:$0xff]
        %v245 = vld [vmem:[%s225 + $0x80] sm:$0xff]
        %v246 = vld [vmem:[%s225 + $0x88] sm:$0xff]
        %v247 = vld [vmem:[%s225 + $0x90] sm:$0xff]
        %v248 = vld [vmem:[%s225 + $0x98] sm:$0xff]
        %v249 = vld [vmem:[%s225 + $0xa0] sm:$0xff]
        %v250 = vld [vmem:[%s225 + $0xa8] sm:$0xff]
        %v251 = vld [vmem:[%s225 + $0xb0] sm:$0xff]
        %v252 = vld [vmem:[%s225 + $0xb8] sm:$0xff]
        %v253 = vld [vmem:[%s225 + $0xc0] sm:$0xff]
        %v254 = vld [vmem:[%s225 + $0xc8] sm:$0xff]
        %v255 = vld [vmem:[%s225 + $0xd0] sm:$0xff]
        %v256 = vld [vmem:[%s225 + $0xd8] sm:$0xff]
        %v257 = vld [vmem:[%s225 + $0xe0] sm:$0xff]
        %v258 = vld [vmem:[%s225 + $0xe8] sm:$0xff]
        %v259 = vld [vmem:[%s225 + $0xf0] sm:$0xff]
        %v260 = vld [vmem:[%s225 + $0xf8] sm:$0xff]
        %v261 = vld [vmem:[%s225 + $0x100] sm:$0xff]
        %v262 = vld [vmem:[%s225 + $0x108] sm:$0xff]
        %v263 = vld [vmem:[%s225 + $0x110] sm:$0xff]
        %v264 = vld [vmem:[%s225 + $0x118] sm:$0xff]
        %v265 = vld [vmem:[%s225 + $0x120] sm:$0xff]
        %v266 = vld [vmem:[%s225 + $0x128] sm:$0xff]
        %v267 = vld [vmem:[%s225 + $0x130] sm:$0xff]
        %v268 = vld [vmem:[%s225 + $0x138] sm:$0xff]
        %v269 = vld [vmem:[%s225 + $0x140] sm:$0xff]
        %v270 = vld [vmem:[%s225 + $0x148] sm:$0xff]
        %v271 = vld [vmem:[%s225 + $0x150] sm:$0xff]
        %v272 = vld [vmem:[%s225 + $0x158] sm:$0xff]
        %v273 = vld [vmem:[%s225 + $0x160] sm:$0xff]
        %v274 = vld [vmem:[%s225 + $0x168] sm:$0xff]
        %v275 = vld [vmem:[%s225 + $0x170] sm:$0xff]
        %v276 = vld [vmem:[%s225 + $0x178] sm:$0xff]
        %v277 = vld [vmem:[%s225 + $0x180] sm:$0xff]
        %v278 = vld [vmem:[%s225 + $0x188] sm:$0xff]
        %v279 = vld [vmem:[%s225 + $0x190] sm:$0xff]
        %v280 = vld [vmem:[%s225 + $0x198] sm:$0xff]
        %v281 = vld [vmem:[%s225 + $0x1a0] sm:$0xff]
        %v282 = vld [vmem:[%s225 + $0x1a8] sm:$0xff]
        %v283 = vld [vmem:[%s225 + $0x1b0] sm:$0xff]
        %v284 = vld [vmem:[%s225 + $0x1b8] sm:$0xff]
        %v285 = vld [vmem:[%s225 + $0x1c0] sm:$0xff]
        %v286 = vld [vmem:[%s225 + $0x1c8] sm:$0xff]
        %v287 = vld [vmem:[%s225 + $0x1d0] sm:$0xff]
        %v288 = vld [vmem:[%s225 + $0x1d8] sm:$0xff]
        %v289 = vld [vmem:[%s225 + $0x1e0] sm:$0xff]
        %v290 = vld [vmem:[%s225 + $0x1e8] sm:$0xff]
        %v291 = vld [vmem:[%s225 + $0x1f0] sm:$0xff]
        %v292 = vld [vmem:[%s225 + $0x1f8] sm:$0xff]
        %v293 = vpack.c.bf16 %v230, %v229
        %v294 = vpack.c.bf16 %v232, %v231
        %v295 = vpack.c.bf16 %v234, %v233
        %v296 = vpack.c.bf16 %v236, %v235
        %v297 = vpack.c.bf16 %v238, %v237
        %v298 = vpack.c.bf16 %v240, %v239
        %v299 = vpack.c.bf16 %v242, %v241
        %v300 = vpack.c.bf16 %v244, %v243
        %v301 = vpack.c.bf16 %v246, %v245
        %v302 = vpack.c.bf16 %v248, %v247
        %v303 = vpack.c.bf16 %v250, %v249
        %v304 = vpack.c.bf16 %v252, %v251
        %v305 = vpack.c.bf16 %v254, %v253
        %v306 = vpack.c.bf16 %v256, %v255
        %v307 = vpack.c.bf16 %v258, %v257
        %v308 = vpack.c.bf16 %v260, %v259
        %v309 = vpack.c.bf16 %v262, %v261
        %v310 = vpack.c.bf16 %v264, %v263
        %v311 = vpack.c.bf16 %v266, %v265
        %v312 = vpack.c.bf16 %v268, %v267
        %v313 = vpack.c.bf16 %v270, %v269
        %v314 = vpack.c.bf16 %v272, %v271
        %v315 = vpack.c.bf16 %v274, %v273
        %v316 = vpack.c.bf16 %v276, %v275
        %v317 = vpack.c.bf16 %v278, %v277
        %v318 = vpack.c.bf16 %v280, %v279
        %v319 = vpack.c.bf16 %v282, %v281
        %v320 = vpack.c.bf16 %v284, %v283
        %v321 = vpack.c.bf16 %v286, %v285
        %v322 = vpack.c.bf16 %v288, %v287
        %v323 = vpack.c.bf16 %v290, %v289
        %v324 = vpack.c.bf16 %v292, %v291
        %v325 = vld [vmem:[%s1] sm:$0xff]
        %v326 = vld [vmem:[%s1 + $0x8] sm:$0xff]
        %v327 = vld [vmem:[%s1 + $0x10] sm:$0xff]
        %v328 = vld [vmem:[%s1 + $0x18] sm:$0xff]
        %v329 = vld [vmem:[%s1 + $0x20] sm:$0xff]
        %v330 = vld [vmem:[%s1 + $0x28] sm:$0xff]
        %v331 = vld [vmem:[%s1 + $0x30] sm:$0xff]
        %v332 = vld [vmem:[%s1 + $0x38] sm:$0xff]
        %v333 = vld [vmem:[%s2] sm:$0xf]
        %v335 = vlaneseq
        %v336 = vshrl.u32 %v335, 7
        %v337 = vsub.s32 0, %v336
        %v338 = vrot.slane %v333, %v337
        %v339 = vlaneseq
        %v340 = vshrl.u32 %v339, 7
        %v341 = vsub.s32 1, %v340
        %v342 = vrot.slane %v333, %v341
        %v343 = vlaneseq
        %v344 = vshrl.u32 %v343, 7
        %v345 = vsub.s32 2, %v344
        %v346 = vrot.slane %v333, %v345
        %v347 = vlaneseq
        %v348 = vshrl.u32 %v347, 7
        %v349 = vsub.s32 3, %v348
        %v350 = vrot.slane %v333, %v349
        %v363 = vunpack.c.l.b16 %v325
        %v364 = vunpack.c.h.b16 %v325
        %v365 = vunpack.c.l.b16 %v326
        %v366 = vunpack.c.h.b16 %v326
        %v367 = vunpack.c.l.b16 %v327
        %v368 = vunpack.c.h.b16 %v327
        %v369 = vunpack.c.l.b16 %v328
        %v370 = vunpack.c.h.b16 %v328
        %v371 = vunpack.c.l.b16 %v329
        %v372 = vunpack.c.h.b16 %v329
        %v373 = vunpack.c.l.b16 %v330
        %v374 = vunpack.c.h.b16 %v330
        %v375 = vunpack.c.l.b16 %v331
        %v376 = vunpack.c.h.b16 %v331
        %v377 = vunpack.c.l.b16 %v332
        %v378 = vunpack.c.h.b16 %v332
        %v379 = vpack.c.b16 %v367, %v363
        %v380 = vpack.c.b16 %v368, %v364
        %v381 = vpack.c.b16 %v369, %v365
        %v382 = vpack.c.b16 %v370, %v366
        %v383 = vpack.c.b16 %v375, %v371
        %v384 = vpack.c.b16 %v376, %v372
        %v385 = vpack.c.b16 %v377, %v373
        %v386 = vpack.c.b16 %v378, %v374
        %vm395 = vcmask 261120
        %v397 = vsel %vm395, %v293, 0
        %v400 = vsel %vm395, %v294, 0
        %v403 = vsel %vm395, %v295, 0
        %v406 = vsel %vm395, %v296, 0
        %v409 = vsel %vm395, %v297, 0
        %v412 = vsel %vm395, %v298, 0
        %v415 = vsel %vm395, %v299, 0
        %v418 = vsel %vm395, %v300, 0
        %v421 = vsel %vm395, %v301, 0
        %v424 = vsel %vm395, %v302, 0
        %v427 = vsel %vm395, %v303, 0
        %v430 = vsel %vm395, %v304, 0
        %v433 = vsel %vm395, %v305, 0
        %v436 = vsel %vm395, %v306, 0
        %v439 = vsel %vm395, %v307, 0
        %v442 = vsel %vm395, %v308, 0
        %v445 = vsel %vm395, %v309, 0
        %v448 = vsel %vm395, %v310, 0
        %v451 = vsel %vm395, %v311, 0
        %v454 = vsel %vm395, %v312, 0
        %v457 = vsel %vm395, %v313, 0
        %v460 = vsel %vm395, %v314, 0
        %v463 = vsel %vm395, %v315, 0
        %v466 = vsel %vm395, %v316, 0
        %v469 = vsel %vm395, %v317, 0
        %v472 = vsel %vm395, %v318, 0
        %v475 = vsel %vm395, %v319, 0
        %v478 = vsel %vm395, %v320, 0
        %v481 = vsel %vm395, %v321, 0
        %v484 = vsel %vm395, %v322, 0
        %v487 = vsel %vm395, %v323, 0
        %v490 = vsel %vm395, %v324, 0
        %492 = vmatprep.subr.bf16.mxu0 0
        %493 = vmatpush1.bf16.msra.mxu0 0
        %494 = vmatprep.subr.bf16.mxu0 0
        %495 = vmatpush1.bf16.msra.mxu0 0
        %496 = vmatprep.subr.bf16.mxu0 0
        %497 = vmatpush1.bf16.msra.mxu0 0
        %498 = vmatprep.subr.bf16.mxu0 0
        %499 = vmatpush1.bf16.msra.mxu0 0
        %500 = vmatprep.subr.bf16.mxu0 0
        %501 = vmatpush1.bf16.msra.mxu0 0
        %502 = vmatprep.subr.bf16.mxu0 0
        %503 = vmatpush1.bf16.msra.mxu0 0
        %504 = vmatprep.subr.bf16.mxu0 %v384
        %505 = vmatpush1.bf16.msra.mxu0 %v383
        %506 = vmatprep.subr.bf16.mxu0 %v380
        %507 = vmatpush1.bf16.msra.mxu0 %v379
        %508 = vmatprep.subr.bf16.mxu0 0
        %509 = vmatpush2.bf16.msra.mxu0 0
        %510 = vmatprep.subr.bf16.mxu0 0
        %511 = vmatpush2.bf16.msra.mxu0 0
        %512 = vmatprep.subr.bf16.mxu0 0
        %513 = vmatpush2.bf16.msra.mxu0 0
        %514 = vmatprep.subr.bf16.mxu0 0
        %515 = vmatpush2.bf16.msra.mxu0 0
        %516 = vmatprep.subr.bf16.mxu0 0
        %517 = vmatpush2.bf16.msra.mxu0 0
        %518 = vmatprep.subr.bf16.mxu0 0
        %519 = vmatpush2.bf16.msra.mxu0 0
        %520 = vmatprep.subr.bf16.mxu0 0
        %521 = vmatpush2.bf16.msra.mxu0 0
        %522 = vmatprep.subr.bf16.mxu0 0
        %523 = vmatpush2.bf16.msra.mxu0 0
        %524 = vmatprep.mubr.bf16.mxu0 0
        %525 = vmatmul.mubr.bf16.gmra.mxu0 %v397
        %v526 = vpop.f32.mrf.mxu0
        %v527 = vadd.f32 %v338, %v526
        %v528 = vpop.f32.mrf.mxu0
        %v529 = vadd.f32 %v342, %v528
        %v530 = vpop.f32.mrf.mxu0
        %v531 = vadd.f32 %v338, %v530
        %v532 = vpop.f32.mrf.mxu0
        %v533 = vadd.f32 %v342, %v532
        %534 = vmatprep.mubr.bf16.mxu0 0
        %535 = vmatmul.mubr.bf16.gmra.mxu0 %v400
        %v536 = vpop.f32.mrf.mxu0
        %v537 = vadd.f32 %v338, %v536
        %v538 = vpop.f32.mrf.mxu0
        %v539 = vadd.f32 %v342, %v538
        %v540 = vpop.f32.mrf.mxu0
        %v541 = vadd.f32 %v338, %v540
        %v542 = vpop.f32.mrf.mxu0
        %v543 = vadd.f32 %v342, %v542
        %544 = vmatprep.mubr.bf16.mxu0 0
        %545 = vmatmul.mubr.bf16.gmra.mxu0 %v403
        %v546 = vpop.f32.mrf.mxu0
        %v547 = vadd.f32 %v338, %v546
        %v548 = vpop.f32.mrf.mxu0
        %v549 = vadd.f32 %v342, %v548
        %v550 = vpop.f32.mrf.mxu0
        %v551 = vadd.f32 %v338, %v550
        %v552 = vpop.f32.mrf.mxu0
        %v553 = vadd.f32 %v342, %v552
        %554 = vmatprep.mubr.bf16.mxu0 0
        %555 = vmatmul.mubr.bf16.gmra.mxu0 %v406
        %v556 = vpop.f32.mrf.mxu0
        %v557 = vadd.f32 %v338, %v556
        %v558 = vpop.f32.mrf.mxu0
        %v559 = vadd.f32 %v342, %v558
        %v560 = vpop.f32.mrf.mxu0
        %v561 = vadd.f32 %v338, %v560
        %v562 = vpop.f32.mrf.mxu0
        %v563 = vadd.f32 %v342, %v562
        %564 = vmatprep.mubr.bf16.mxu0 0
        %565 = vmatmul.mubr.bf16.gmra.mxu0 %v409
        %v566 = vpop.f32.mrf.mxu0
        %v567 = vadd.f32 %v338, %v566
        %v568 = vpop.f32.mrf.mxu0
        %v569 = vadd.f32 %v342, %v568
        %v570 = vpop.f32.mrf.mxu0
        %v571 = vadd.f32 %v338, %v570
        %v572 = vpop.f32.mrf.mxu0
        %v573 = vadd.f32 %v342, %v572
        %574 = vmatprep.mubr.bf16.mxu0 0
        %575 = vmatmul.mubr.bf16.gmra.mxu0 %v412
        %v576 = vpop.f32.mrf.mxu0
        %v577 = vadd.f32 %v338, %v576
        %v578 = vpop.f32.mrf.mxu0
        %v579 = vadd.f32 %v342, %v578
        %v580 = vpop.f32.mrf.mxu0
        %v581 = vadd.f32 %v338, %v580
        %v582 = vpop.f32.mrf.mxu0
        %v583 = vadd.f32 %v342, %v582
        %584 = vmatprep.mubr.bf16.mxu0 0
        %585 = vmatmul.mubr.bf16.gmra.mxu0 %v415
        %v586 = vpop.f32.mrf.mxu0
        %v587 = vadd.f32 %v338, %v586
        %v588 = vpop.f32.mrf.mxu0
        %v589 = vadd.f32 %v342, %v588
        %v590 = vpop.f32.mrf.mxu0
        %v591 = vadd.f32 %v338, %v590
        %v592 = vpop.f32.mrf.mxu0
        %v593 = vadd.f32 %v342, %v592
        %594 = vmatprep.mubr.bf16.mxu0 0
        %595 = vmatmul.mubr.bf16.gmra.mxu0 %v418
        %v596 = vpop.f32.mrf.mxu0
        %v597 = vadd.f32 %v338, %v596
        %v598 = vpop.f32.mrf.mxu0
        %v599 = vadd.f32 %v342, %v598
        %v600 = vpop.f32.mrf.mxu0
        %v601 = vadd.f32 %v338, %v600
        %v602 = vpop.f32.mrf.mxu0
        %v603 = vadd.f32 %v342, %v602
        %604 = vmatprep.mubr.bf16.mxu0 0
        %605 = vmatmul.mubr.bf16.gmra.mxu0 %v421
        %v606 = vpop.f32.mrf.mxu0
        %v607 = vadd.f32 %v338, %v606
        %v608 = vpop.f32.mrf.mxu0
        %v609 = vadd.f32 %v342, %v608
        %v610 = vpop.f32.mrf.mxu0
        %v611 = vadd.f32 %v338, %v610
        %v612 = vpop.f32.mrf.mxu0
        %v613 = vadd.f32 %v342, %v612
        %614 = vmatprep.mubr.bf16.mxu0 0
        %615 = vmatmul.mubr.bf16.gmra.mxu0 %v424
        %v616 = vpop.f32.mrf.mxu0
        %v617 = vadd.f32 %v338, %v616
        %v618 = vpop.f32.mrf.mxu0
        %v619 = vadd.f32 %v342, %v618
        %v620 = vpop.f32.mrf.mxu0
        %v621 = vadd.f32 %v338, %v620
        %v622 = vpop.f32.mrf.mxu0
        %v623 = vadd.f32 %v342, %v622
        %624 = vmatprep.mubr.bf16.mxu0 0
        %625 = vmatmul.mubr.bf16.gmra.mxu0 %v427
        %v626 = vpop.f32.mrf.mxu0
        %v627 = vadd.f32 %v338, %v626
        %v628 = vpop.f32.mrf.mxu0
        %v629 = vadd.f32 %v342, %v628
        %v630 = vpop.f32.mrf.mxu0
        %v631 = vadd.f32 %v338, %v630
        %v632 = vpop.f32.mrf.mxu0
        %v633 = vadd.f32 %v342, %v632
        %634 = vmatprep.mubr.bf16.mxu0 0
        %635 = vmatmul.mubr.bf16.gmra.mxu0 %v430
        %v636 = vpop.f32.mrf.mxu0
        %v637 = vadd.f32 %v338, %v636
        %v638 = vpop.f32.mrf.mxu0
        %v639 = vadd.f32 %v342, %v638
        %v640 = vpop.f32.mrf.mxu0
        %v641 = vadd.f32 %v338, %v640
        %v642 = vpop.f32.mrf.mxu0
        %v643 = vadd.f32 %v342, %v642
        %644 = vmatprep.mubr.bf16.mxu0 0
        %645 = vmatmul.mubr.bf16.gmra.mxu0 %v433
        %v646 = vpop.f32.mrf.mxu0
        %v647 = vadd.f32 %v338, %v646
        %v648 = vpop.f32.mrf.mxu0
        %v649 = vadd.f32 %v342, %v648
        %v650 = vpop.f32.mrf.mxu0
        %v651 = vadd.f32 %v338, %v650
        %v652 = vpop.f32.mrf.mxu0
        %v653 = vadd.f32 %v342, %v652
        %654 = vmatprep.mubr.bf16.mxu0 0
        %655 = vmatmul.mubr.bf16.gmra.mxu0 %v436
        %v656 = vpop.f32.mrf.mxu0
        %v657 = vadd.f32 %v338, %v656
        %v658 = vpop.f32.mrf.mxu0
        %v659 = vadd.f32 %v342, %v658
        %v660 = vpop.f32.mrf.mxu0
        %v661 = vadd.f32 %v338, %v660
        %v662 = vpop.f32.mrf.mxu0
        %v663 = vadd.f32 %v342, %v662
        %664 = vmatprep.mubr.bf16.mxu0 0
        %665 = vmatmul.mubr.bf16.gmra.mxu0 %v439
        %v666 = vpop.f32.mrf.mxu0
        %v667 = vadd.f32 %v338, %v666
        %v668 = vpop.f32.mrf.mxu0
        %v669 = vadd.f32 %v342, %v668
        %v670 = vpop.f32.mrf.mxu0
        %v671 = vadd.f32 %v338, %v670
        %v672 = vpop.f32.mrf.mxu0
        %v673 = vadd.f32 %v342, %v672
        %674 = vmatprep.mubr.bf16.mxu0 0
        %675 = vmatmul.mubr.bf16.gmra.mxu0 %v442
        %v676 = vpop.f32.mrf.mxu0
        %v677 = vadd.f32 %v338, %v676
        %v678 = vpop.f32.mrf.mxu0
        %v679 = vadd.f32 %v342, %v678
        %v680 = vpop.f32.mrf.mxu0
        %v681 = vadd.f32 %v338, %v680
        %v682 = vpop.f32.mrf.mxu0
        %v683 = vadd.f32 %v342, %v682
        %684 = vmatprep.mubr.bf16.mxu0 0
        %685 = vmatmul.mubr.bf16.gmra.mxu0 %v445
        %v686 = vpop.f32.mrf.mxu0
        %v687 = vadd.f32 %v338, %v686
        %v688 = vpop.f32.mrf.mxu0
        %v689 = vadd.f32 %v342, %v688
        %v690 = vpop.f32.mrf.mxu0
        %v691 = vadd.f32 %v338, %v690
        %v692 = vpop.f32.mrf.mxu0
        %v693 = vadd.f32 %v342, %v692
        %694 = vmatprep.mubr.bf16.mxu0 0
        %695 = vmatmul.mubr.bf16.gmra.mxu0 %v448
        %v696 = vpop.f32.mrf.mxu0
        %v697 = vadd.f32 %v338, %v696
        %v698 = vpop.f32.mrf.mxu0
        %v699 = vadd.f32 %v342, %v698
        %v700 = vpop.f32.mrf.mxu0
        %v701 = vadd.f32 %v338, %v700
        %v702 = vpop.f32.mrf.mxu0
        %v703 = vadd.f32 %v342, %v702
        %704 = vmatprep.mubr.bf16.mxu0 0
        %705 = vmatmul.mubr.bf16.gmra.mxu0 %v451
        %v706 = vpop.f32.mrf.mxu0
        %v707 = vadd.f32 %v338, %v706
        %v708 = vpop.f32.mrf.mxu0
        %v709 = vadd.f32 %v342, %v708
        %v710 = vpop.f32.mrf.mxu0
        %v711 = vadd.f32 %v338, %v710
        %v712 = vpop.f32.mrf.mxu0
        %v713 = vadd.f32 %v342, %v712
        %714 = vmatprep.mubr.bf16.mxu0 0
        %715 = vmatmul.mubr.bf16.gmra.mxu0 %v454
        %v716 = vpop.f32.mrf.mxu0
        %v717 = vadd.f32 %v338, %v716
        %v718 = vpop.f32.mrf.mxu0
        %v719 = vadd.f32 %v342, %v718
        %v720 = vpop.f32.mrf.mxu0
        %v721 = vadd.f32 %v338, %v720
        %v722 = vpop.f32.mrf.mxu0
        %v723 = vadd.f32 %v342, %v722
        %724 = vmatprep.mubr.bf16.mxu0 0
        %725 = vmatmul.mubr.bf16.gmra.mxu0 %v457
        %v726 = vpop.f32.mrf.mxu0
        %v727 = vadd.f32 %v338, %v726
        %v728 = vpop.f32.mrf.mxu0
        %v729 = vadd.f32 %v342, %v728
        %v730 = vpop.f32.mrf.mxu0
        %v731 = vadd.f32 %v338, %v730
        %v732 = vpop.f32.mrf.mxu0
        %v733 = vadd.f32 %v342, %v732
        %734 = vmatprep.mubr.bf16.mxu0 0
        %735 = vmatmul.mubr.bf16.gmra.mxu0 %v460
        %v736 = vpop.f32.mrf.mxu0
        %v737 = vadd.f32 %v338, %v736
        %v738 = vpop.f32.mrf.mxu0
        %v739 = vadd.f32 %v342, %v738
        %v740 = vpop.f32.mrf.mxu0
        %v741 = vadd.f32 %v338, %v740
        %v742 = vpop.f32.mrf.mxu0
        %v743 = vadd.f32 %v342, %v742
        %744 = vmatprep.mubr.bf16.mxu0 0
        %745 = vmatmul.mubr.bf16.gmra.mxu0 %v463
        %v746 = vpop.f32.mrf.mxu0
        %v747 = vadd.f32 %v338, %v746
        %v748 = vpop.f32.mrf.mxu0
        %v749 = vadd.f32 %v342, %v748
        %v750 = vpop.f32.mrf.mxu0
        %v751 = vadd.f32 %v338, %v750
        %v752 = vpop.f32.mrf.mxu0
        %v753 = vadd.f32 %v342, %v752
        %754 = vmatprep.mubr.bf16.mxu0 0
        %755 = vmatmul.mubr.bf16.gmra.mxu0 %v466
        %v756 = vpop.f32.mrf.mxu0
        %v757 = vadd.f32 %v338, %v756
        %v758 = vpop.f32.mrf.mxu0
        %v759 = vadd.f32 %v342, %v758
        %v760 = vpop.f32.mrf.mxu0
        %v761 = vadd.f32 %v338, %v760
        %v762 = vpop.f32.mrf.mxu0
        %v763 = vadd.f32 %v342, %v762
        %764 = vmatprep.mubr.bf16.mxu0 0
        %765 = vmatmul.mubr.bf16.gmra.mxu0 %v469
        %v766 = vpop.f32.mrf.mxu0
        %v767 = vadd.f32 %v338, %v766
        %v768 = vpop.f32.mrf.mxu0
        %v769 = vadd.f32 %v342, %v768
        %v770 = vpop.f32.mrf.mxu0
        %v771 = vadd.f32 %v338, %v770
        %v772 = vpop.f32.mrf.mxu0
        %v773 = vadd.f32 %v342, %v772
        %774 = vmatprep.mubr.bf16.mxu0 0
        %775 = vmatmul.mubr.bf16.gmra.mxu0 %v472
        %v776 = vpop.f32.mrf.mxu0
        %v777 = vadd.f32 %v338, %v776
        %v778 = vpop.f32.mrf.mxu0
        %v779 = vadd.f32 %v342, %v778
        %v780 = vpop.f32.mrf.mxu0
        %v781 = vadd.f32 %v338, %v780
        %v782 = vpop.f32.mrf.mxu0
        %v783 = vadd.f32 %v342, %v782
        %784 = vmatprep.mubr.bf16.mxu0 0
        %785 = vmatmul.mubr.bf16.gmra.mxu0 %v475
        %v786 = vpop.f32.mrf.mxu0
        %v787 = vadd.f32 %v338, %v786
        %v788 = vpop.f32.mrf.mxu0
        %v789 = vadd.f32 %v342, %v788
        %v790 = vpop.f32.mrf.mxu0
        %v791 = vadd.f32 %v338, %v790
        %v792 = vpop.f32.mrf.mxu0
        %v793 = vadd.f32 %v342, %v792
        %794 = vmatprep.mubr.bf16.mxu0 0
        %795 = vmatmul.mubr.bf16.gmra.mxu0 %v478
        %v796 = vpop.f32.mrf.mxu0
        %v797 = vadd.f32 %v338, %v796
        %v798 = vpop.f32.mrf.mxu0
        %v799 = vadd.f32 %v342, %v798
        %v800 = vpop.f32.mrf.mxu0
        %v801 = vadd.f32 %v338, %v800
        %v802 = vpop.f32.mrf.mxu0
        %v803 = vadd.f32 %v342, %v802
        %804 = vmatprep.mubr.bf16.mxu0 0
        %805 = vmatmul.mubr.bf16.gmra.mxu0 %v481
        %v806 = vpop.f32.mrf.mxu0
        %v807 = vadd.f32 %v338, %v806
        %v808 = vpop.f32.mrf.mxu0
        %v809 = vadd.f32 %v342, %v808
        %v810 = vpop.f32.mrf.mxu0
        %v811 = vadd.f32 %v338, %v810
        %v812 = vpop.f32.mrf.mxu0
        %v813 = vadd.f32 %v342, %v812
        %814 = vmatprep.mubr.bf16.mxu0 0
        %815 = vmatmul.mubr.bf16.gmra.mxu0 %v484
        %v816 = vpop.f32.mrf.mxu0
        %v817 = vadd.f32 %v338, %v816
        %v818 = vpop.f32.mrf.mxu0
        %v819 = vadd.f32 %v342, %v818
        %v820 = vpop.f32.mrf.mxu0
        %v821 = vadd.f32 %v338, %v820
        %v822 = vpop.f32.mrf.mxu0
        %v823 = vadd.f32 %v342, %v822
        %824 = vmatprep.mubr.bf16.mxu0 0
        %825 = vmatmul.mubr.bf16.gmra.mxu0 %v487
        %v826 = vpop.f32.mrf.mxu0
        %v827 = vadd.f32 %v338, %v826
        %v828 = vpop.f32.mrf.mxu0
        %v829 = vadd.f32 %v342, %v828
        %v830 = vpop.f32.mrf.mxu0
        %v831 = vadd.f32 %v338, %v830
        %v832 = vpop.f32.mrf.mxu0
        %v833 = vadd.f32 %v342, %v832
        %834 = vmatprep.mubr.bf16.mxu0 0
        %835 = vmatmul.mubr.bf16.gmra.mxu0 %v490
        %v836 = vpop.f32.mrf.mxu0
        %v837 = vadd.f32 %v338, %v836
        %v838 = vpop.f32.mrf.mxu0
        %v839 = vadd.f32 %v342, %v838
        %v840 = vpop.f32.mrf.mxu0
        %v841 = vadd.f32 %v338, %v840
        %v842 = vpop.f32.mrf.mxu0
        %v843 = vadd.f32 %v342, %v842
        %844 = vdwg.mxu0
        %845 = vmatprep.subr.bf16.mxu0 0
        %846 = vmatpush1.bf16.msra.mxu0 0
        %847 = vmatprep.subr.bf16.mxu0 0
        %848 = vmatpush1.bf16.msra.mxu0 0
        %849 = vmatprep.subr.bf16.mxu0 0
        %850 = vmatpush1.bf16.msra.mxu0 0
        %851 = vmatprep.subr.bf16.mxu0 0
        %852 = vmatpush1.bf16.msra.mxu0 0
        %853 = vmatprep.subr.bf16.mxu0 0
        %854 = vmatpush1.bf16.msra.mxu0 0
        %855 = vmatprep.subr.bf16.mxu0 0
        %856 = vmatpush1.bf16.msra.mxu0 0
        %857 = vmatprep.subr.bf16.mxu0 %v386
        %858 = vmatpush1.bf16.msra.mxu0 %v385
        %859 = vmatprep.subr.bf16.mxu0 %v382
        %860 = vmatpush1.bf16.msra.mxu0 %v381
        %861 = vmatprep.subr.bf16.mxu0 0
        %862 = vmatpush2.bf16.msra.mxu0 0
        %863 = vmatprep.subr.bf16.mxu0 0
        %864 = vmatpush2.bf16.msra.mxu0 0
        %865 = vmatprep.subr.bf16.mxu0 0
        %866 = vmatpush2.bf16.msra.mxu0 0
        %867 = vmatprep.subr.bf16.mxu0 0
        %868 = vmatpush2.bf16.msra.mxu0 0
        %869 = vmatprep.subr.bf16.mxu0 0
        %870 = vmatpush2.bf16.msra.mxu0 0
        %871 = vmatprep.subr.bf16.mxu0 0
        %872 = vmatpush2.bf16.msra.mxu0 0
        %873 = vmatprep.subr.bf16.mxu0 0
        %874 = vmatpush2.bf16.msra.mxu0 0
        %875 = vmatprep.subr.bf16.mxu0 0
        %876 = vmatpush2.bf16.msra.mxu0 0
        %877 = vmatprep.mubr.bf16.mxu0 0
        %878 = vmatmul.mubr.bf16.gmra.mxu0 %v397
        %v879 = vpop.f32.mrf.mxu0
        %v880 = vadd.f32 %v346, %v879
        %v881 = vpop.f32.mrf.mxu0
        %v882 = vadd.f32 %v350, %v881
        %v883 = vpop.f32.mrf.mxu0
        %v884 = vadd.f32 %v346, %v883
        %v885 = vpop.f32.mrf.mxu0
        %v886 = vadd.f32 %v350, %v885
        %887 = vmatprep.mubr.bf16.mxu0 0
        %888 = vmatmul.mubr.bf16.gmra.mxu0 %v400
        %v889 = vpop.f32.mrf.mxu0
        %v890 = vadd.f32 %v346, %v889
        %v891 = vpop.f32.mrf.mxu0
        %v892 = vadd.f32 %v350, %v891
        %v893 = vpop.f32.mrf.mxu0
        %v894 = vadd.f32 %v346, %v893
        %v895 = vpop.f32.mrf.mxu0
        %v896 = vadd.f32 %v350, %v895
        %897 = vmatprep.mubr.bf16.mxu0 0
        %898 = vmatmul.mubr.bf16.gmra.mxu0 %v403
        %v899 = vpop.f32.mrf.mxu0
        %v900 = vadd.f32 %v346, %v899
        %v901 = vpop.f32.mrf.mxu0
        %v902 = vadd.f32 %v350, %v901
        %v903 = vpop.f32.mrf.mxu0
        %v904 = vadd.f32 %v346, %v903
        %v905 = vpop.f32.mrf.mxu0
        %v906 = vadd.f32 %v350, %v905
        %907 = vmatprep.mubr.bf16.mxu0 0
        %908 = vmatmul.mubr.bf16.gmra.mxu0 %v406
        %v909 = vpop.f32.mrf.mxu0
        %v910 = vadd.f32 %v346, %v909
        %v911 = vpop.f32.mrf.mxu0
        %v912 = vadd.f32 %v350, %v911
        %v913 = vpop.f32.mrf.mxu0
        %v914 = vadd.f32 %v346, %v913
        %v915 = vpop.f32.mrf.mxu0
        %v916 = vadd.f32 %v350, %v915
        %917 = vmatprep.mubr.bf16.mxu0 0
        %918 = vmatmul.mubr.bf16.gmra.mxu0 %v409
        %v919 = vpop.f32.mrf.mxu0
        %v920 = vadd.f32 %v346, %v919
        %v921 = vpop.f32.mrf.mxu0
        %v922 = vadd.f32 %v350, %v921
        %v923 = vpop.f32.mrf.mxu0
        %v924 = vadd.f32 %v346, %v923
        %v925 = vpop.f32.mrf.mxu0
        %v926 = vadd.f32 %v350, %v925
        %927 = vmatprep.mubr.bf16.mxu0 0
        %928 = vmatmul.mubr.bf16.gmra.mxu0 %v412
        %v929 = vpop.f32.mrf.mxu0
        %v930 = vadd.f32 %v346, %v929
        %v931 = vpop.f32.mrf.mxu0
        %v932 = vadd.f32 %v350, %v931
        %v933 = vpop.f32.mrf.mxu0
        %v934 = vadd.f32 %v346, %v933
        %v935 = vpop.f32.mrf.mxu0
        %v936 = vadd.f32 %v350, %v935
        %937 = vmatprep.mubr.bf16.mxu0 0
        %938 = vmatmul.mubr.bf16.gmra.mxu0 %v415
        %v939 = vpop.f32.mrf.mxu0
        %v940 = vadd.f32 %v346, %v939
        %v941 = vpop.f32.mrf.mxu0
        %v942 = vadd.f32 %v350, %v941
        %v943 = vpop.f32.mrf.mxu0
        %v944 = vadd.f32 %v346, %v943
        %v945 = vpop.f32.mrf.mxu0
        %v946 = vadd.f32 %v350, %v945
        %947 = vmatprep.mubr.bf16.mxu0 0
        %948 = vmatmul.mubr.bf16.gmra.mxu0 %v418
        %v949 = vpop.f32.mrf.mxu0
        %v950 = vadd.f32 %v346, %v949
        %v951 = vpop.f32.mrf.mxu0
        %v952 = vadd.f32 %v350, %v951
        %v953 = vpop.f32.mrf.mxu0
        %v954 = vadd.f32 %v346, %v953
        %v955 = vpop.f32.mrf.mxu0
        %v956 = vadd.f32 %v350, %v955
        %957 = vmatprep.mubr.bf16.mxu0 0
        %958 = vmatmul.mubr.bf16.gmra.mxu0 %v421
        %v959 = vpop.f32.mrf.mxu0
        %v960 = vadd.f32 %v346, %v959
        %v961 = vpop.f32.mrf.mxu0
        %v962 = vadd.f32 %v350, %v961
        %v963 = vpop.f32.mrf.mxu0
        %v964 = vadd.f32 %v346, %v963
        %v965 = vpop.f32.mrf.mxu0
        %v966 = vadd.f32 %v350, %v965
        %967 = vmatprep.mubr.bf16.mxu0 0
        %968 = vmatmul.mubr.bf16.gmra.mxu0 %v424
        %v969 = vpop.f32.mrf.mxu0
        %v970 = vadd.f32 %v346, %v969
        %v971 = vpop.f32.mrf.mxu0
        %v972 = vadd.f32 %v350, %v971
        %v973 = vpop.f32.mrf.mxu0
        %v974 = vadd.f32 %v346, %v973
        %v975 = vpop.f32.mrf.mxu0
        %v976 = vadd.f32 %v350, %v975
        %977 = vmatprep.mubr.bf16.mxu0 0
        %978 = vmatmul.mubr.bf16.gmra.mxu0 %v427
        %v979 = vpop.f32.mrf.mxu0
        %v980 = vadd.f32 %v346, %v979
        %v981 = vpop.f32.mrf.mxu0
        %v982 = vadd.f32 %v350, %v981
        %v983 = vpop.f32.mrf.mxu0
        %v984 = vadd.f32 %v346, %v983
        %v985 = vpop.f32.mrf.mxu0
        %v986 = vadd.f32 %v350, %v985
        %987 = vmatprep.mubr.bf16.mxu0 0
        %988 = vmatmul.mubr.bf16.gmra.mxu0 %v430
        %v989 = vpop.f32.mrf.mxu0
        %v990 = vadd.f32 %v346, %v989
        %v991 = vpop.f32.mrf.mxu0
        %v992 = vadd.f32 %v350, %v991
        %v993 = vpop.f32.mrf.mxu0
        %v994 = vadd.f32 %v346, %v993
        %v995 = vpop.f32.mrf.mxu0
        %v996 = vadd.f32 %v350, %v995
        %997 = vmatprep.mubr.bf16.mxu0 0
        %998 = vmatmul.mubr.bf16.gmra.mxu0 %v433
        %v999 = vpop.f32.mrf.mxu0
        %v1000 = vadd.f32 %v346, %v999
        %v1001 = vpop.f32.mrf.mxu0
        %v1002 = vadd.f32 %v350, %v1001
        %v1003 = vpop.f32.mrf.mxu0
        %v1004 = vadd.f32 %v346, %v1003
        %v1005 = vpop.f32.mrf.mxu0
        %v1006 = vadd.f32 %v350, %v1005
        %1007 = vmatprep.mubr.bf16.mxu0 0
        %1008 = vmatmul.mubr.bf16.gmra.mxu0 %v436
        %v1009 = vpop.f32.mrf.mxu0
        %v1010 = vadd.f32 %v346, %v1009
        %v1011 = vpop.f32.mrf.mxu0
        %v1012 = vadd.f32 %v350, %v1011
        %v1013 = vpop.f32.mrf.mxu0
        %v1014 = vadd.f32 %v346, %v1013
        %v1015 = vpop.f32.mrf.mxu0
        %v1016 = vadd.f32 %v350, %v1015
        %1017 = vmatprep.mubr.bf16.mxu0 0
        %1018 = vmatmul.mubr.bf16.gmra.mxu0 %v439
        %v1019 = vpop.f32.mrf.mxu0
        %v1020 = vadd.f32 %v346, %v1019
        %v1021 = vpop.f32.mrf.mxu0
        %v1022 = vadd.f32 %v350, %v1021
        %v1023 = vpop.f32.mrf.mxu0
        %v1024 = vadd.f32 %v346, %v1023
        %v1025 = vpop.f32.mrf.mxu0
        %v1026 = vadd.f32 %v350, %v1025
        %1027 = vmatprep.mubr.bf16.mxu0 0
        %1028 = vmatmul.mubr.bf16.gmra.mxu0 %v442
        %v1029 = vpop.f32.mrf.mxu0
        %v1030 = vadd.f32 %v346, %v1029
        %v1031 = vpop.f32.mrf.mxu0
        %v1032 = vadd.f32 %v350, %v1031
        %v1033 = vpop.f32.mrf.mxu0
        %v1034 = vadd.f32 %v346, %v1033
        %v1035 = vpop.f32.mrf.mxu0
        %v1036 = vadd.f32 %v350, %v1035
        %1037 = vmatprep.mubr.bf16.mxu0 0
        %1038 = vmatmul.mubr.bf16.gmra.mxu0 %v445
        %v1039 = vpop.f32.mrf.mxu0
        %v1040 = vadd.f32 %v346, %v1039
        %v1041 = vpop.f32.mrf.mxu0
        %v1042 = vadd.f32 %v350, %v1041
        %v1043 = vpop.f32.mrf.mxu0
        %v1044 = vadd.f32 %v346, %v1043
        %v1045 = vpop.f32.mrf.mxu0
        %v1046 = vadd.f32 %v350, %v1045
        %1047 = vmatprep.mubr.bf16.mxu0 0
        %1048 = vmatmul.mubr.bf16.gmra.mxu0 %v448
        %v1049 = vpop.f32.mrf.mxu0
        %v1050 = vadd.f32 %v346, %v1049
        %v1051 = vpop.f32.mrf.mxu0
        %v1052 = vadd.f32 %v350, %v1051
        %v1053 = vpop.f32.mrf.mxu0
        %v1054 = vadd.f32 %v346, %v1053
        %v1055 = vpop.f32.mrf.mxu0
        %v1056 = vadd.f32 %v350, %v1055
        %1057 = vmatprep.mubr.bf16.mxu0 0
        %1058 = vmatmul.mubr.bf16.gmra.mxu0 %v451
        %v1059 = vpop.f32.mrf.mxu0
        %v1060 = vadd.f32 %v346, %v1059
        %v1061 = vpop.f32.mrf.mxu0
        %v1062 = vadd.f32 %v350, %v1061
        %v1063 = vpop.f32.mrf.mxu0
        %v1064 = vadd.f32 %v346, %v1063
        %v1065 = vpop.f32.mrf.mxu0
        %v1066 = vadd.f32 %v350, %v1065
        %1067 = vmatprep.mubr.bf16.mxu0 0
        %1068 = vmatmul.mubr.bf16.gmra.mxu0 %v454
        %v1069 = vpop.f32.mrf.mxu0
        %v1070 = vadd.f32 %v346, %v1069
        %v1071 = vpop.f32.mrf.mxu0
        %v1072 = vadd.f32 %v350, %v1071
        %v1073 = vpop.f32.mrf.mxu0
        %v1074 = vadd.f32 %v346, %v1073
        %v1075 = vpop.f32.mrf.mxu0
        %v1076 = vadd.f32 %v350, %v1075
        %1077 = vmatprep.mubr.bf16.mxu0 0
        %1078 = vmatmul.mubr.bf16.gmra.mxu0 %v457
        %v1079 = vpop.f32.mrf.mxu0
        %v1080 = vadd.f32 %v346, %v1079
        %v1081 = vpop.f32.mrf.mxu0
        %v1082 = vadd.f32 %v350, %v1081
        %v1083 = vpop.f32.mrf.mxu0
        %v1084 = vadd.f32 %v346, %v1083
        %v1085 = vpop.f32.mrf.mxu0
        %v1086 = vadd.f32 %v350, %v1085
        %1087 = vmatprep.mubr.bf16.mxu0 0
        %1088 = vmatmul.mubr.bf16.gmra.mxu0 %v460
        %v1089 = vpop.f32.mrf.mxu0
        %v1090 = vadd.f32 %v346, %v1089
        %v1091 = vpop.f32.mrf.mxu0
        %v1092 = vadd.f32 %v350, %v1091
        %v1093 = vpop.f32.mrf.mxu0
        %v1094 = vadd.f32 %v346, %v1093
        %v1095 = vpop.f32.mrf.mxu0
        %v1096 = vadd.f32 %v350, %v1095
        %1097 = vmatprep.mubr.bf16.mxu0 0
        %1098 = vmatmul.mubr.bf16.gmra.mxu0 %v463
        %v1099 = vpop.f32.mrf.mxu0
        %v1100 = vadd.f32 %v346, %v1099
        %v1101 = vpop.f32.mrf.mxu0
        %v1102 = vadd.f32 %v350, %v1101
        %v1103 = vpop.f32.mrf.mxu0
        %v1104 = vadd.f32 %v346, %v1103
        %v1105 = vpop.f32.mrf.mxu0
        %v1106 = vadd.f32 %v350, %v1105
        %1107 = vmatprep.mubr.bf16.mxu0 0
        %1108 = vmatmul.mubr.bf16.gmra.mxu0 %v466
        %v1109 = vpop.f32.mrf.mxu0
        %v1110 = vadd.f32 %v346, %v1109
        %v1111 = vpop.f32.mrf.mxu0
        %v1112 = vadd.f32 %v350, %v1111
        %v1113 = vpop.f32.mrf.mxu0
        %v1114 = vadd.f32 %v346, %v1113
        %v1115 = vpop.f32.mrf.mxu0
        %v1116 = vadd.f32 %v350, %v1115
        %1117 = vmatprep.mubr.bf16.mxu0 0
        %1118 = vmatmul.mubr.bf16.gmra.mxu0 %v469
        %v1119 = vpop.f32.mrf.mxu0
        %v1120 = vadd.f32 %v346, %v1119
        %v1121 = vpop.f32.mrf.mxu0
        %v1122 = vadd.f32 %v350, %v1121
        %v1123 = vpop.f32.mrf.mxu0
        %v1124 = vadd.f32 %v346, %v1123
        %v1125 = vpop.f32.mrf.mxu0
        %v1126 = vadd.f32 %v350, %v1125
        %1127 = vmatprep.mubr.bf16.mxu0 0
        %1128 = vmatmul.mubr.bf16.gmra.mxu0 %v472
        %v1129 = vpop.f32.mrf.mxu0
        %v1130 = vadd.f32 %v346, %v1129
        %v1131 = vpop.f32.mrf.mxu0
        %v1132 = vadd.f32 %v350, %v1131
        %v1133 = vpop.f32.mrf.mxu0
        %v1134 = vadd.f32 %v346, %v1133
        %v1135 = vpop.f32.mrf.mxu0
        %v1136 = vadd.f32 %v350, %v1135
        %1137 = vmatprep.mubr.bf16.mxu0 0
        %1138 = vmatmul.mubr.bf16.gmra.mxu0 %v475
        %v1139 = vpop.f32.mrf.mxu0
        %v1140 = vadd.f32 %v346, %v1139
        %v1141 = vpop.f32.mrf.mxu0
        %v1142 = vadd.f32 %v350, %v1141
        %v1143 = vpop.f32.mrf.mxu0
        %v1144 = vadd.f32 %v346, %v1143
        %v1145 = vpop.f32.mrf.mxu0
        %v1146 = vadd.f32 %v350, %v1145
        %1147 = vmatprep.mubr.bf16.mxu0 0
        %1148 = vmatmul.mubr.bf16.gmra.mxu0 %v478
        %v1149 = vpop.f32.mrf.mxu0
        %v1150 = vadd.f32 %v346, %v1149
        %v1151 = vpop.f32.mrf.mxu0
        %v1152 = vadd.f32 %v350, %v1151
        %v1153 = vpop.f32.mrf.mxu0
        %v1154 = vadd.f32 %v346, %v1153
        %v1155 = vpop.f32.mrf.mxu0
        %v1156 = vadd.f32 %v350, %v1155
        %1157 = vmatprep.mubr.bf16.mxu0 0
        %1158 = vmatmul.mubr.bf16.gmra.mxu0 %v481
        %v1159 = vpop.f32.mrf.mxu0
        %v1160 = vadd.f32 %v346, %v1159
        %v1161 = vpop.f32.mrf.mxu0
        %v1162 = vadd.f32 %v350, %v1161
        %v1163 = vpop.f32.mrf.mxu0
        %v1164 = vadd.f32 %v346, %v1163
        %v1165 = vpop.f32.mrf.mxu0
        %v1166 = vadd.f32 %v350, %v1165
        %1167 = vmatprep.mubr.bf16.mxu0 0
        %1168 = vmatmul.mubr.bf16.gmra.mxu0 %v484
        %v1169 = vpop.f32.mrf.mxu0
        %v1170 = vadd.f32 %v346, %v1169
        %v1171 = vpop.f32.mrf.mxu0
        %v1172 = vadd.f32 %v350, %v1171
        %v1173 = vpop.f32.mrf.mxu0
        %v1174 = vadd.f32 %v346, %v1173
        %v1175 = vpop.f32.mrf.mxu0
        %v1176 = vadd.f32 %v350, %v1175
        %1177 = vmatprep.mubr.bf16.mxu0 0
        %1178 = vmatmul.mubr.bf16.gmra.mxu0 %v487
        %v1179 = vpop.f32.mrf.mxu0
        %v1180 = vadd.f32 %v346, %v1179
        %v1181 = vpop.f32.mrf.mxu0
        %v1182 = vadd.f32 %v350, %v1181
        %v1183 = vpop.f32.mrf.mxu0
        %v1184 = vadd.f32 %v346, %v1183
        %v1185 = vpop.f32.mrf.mxu0
        %v1186 = vadd.f32 %v350, %v1185
        %1187 = vmatprep.mubr.bf16.mxu0 0
        %1188 = vmatmul.mubr.bf16.gmra.mxu0 %v490
        %v1189 = vpop.f32.mrf.mxu0
        %v1190 = vadd.f32 %v346, %v1189
        %v1191 = vpop.f32.mrf.mxu0
        %v1192 = vadd.f32 %v350, %v1191
        %v1193 = vpop.f32.mrf.mxu0
        %v1194 = vadd.f32 %v346, %v1193
        %v1195 = vpop.f32.mrf.mxu0
        %v1196 = vadd.f32 %v350, %v1195
        %1197 = vdwg.mxu0
        %v1198 = vmax.f32 %v527, 0.0
        %v1199 = vmax.f32 %v529, 0.0
        %v1200 = vmax.f32 %v880, 0.0
        %v1201 = vmax.f32 %v882, 0.0
        %v1202 = vmax.f32 %v531, 0.0
        %v1203 = vmax.f32 %v533, 0.0
        %v1204 = vmax.f32 %v884, 0.0
        %v1205 = vmax.f32 %v886, 0.0
        %v1206 = vmax.f32 %v537, 0.0
        %v1207 = vmax.f32 %v539, 0.0
        %v1208 = vmax.f32 %v890, 0.0
        %v1209 = vmax.f32 %v892, 0.0
        %v1210 = vmax.f32 %v541, 0.0
        %v1211 = vmax.f32 %v543, 0.0
        %v1212 = vmax.f32 %v894, 0.0
        %v1213 = vmax.f32 %v896, 0.0
        %v1214 = vmax.f32 %v547, 0.0
        %v1215 = vmax.f32 %v549, 0.0
        %v1216 = vmax.f32 %v900, 0.0
        %v1217 = vmax.f32 %v902, 0.0
        %v1218 = vmax.f32 %v551, 0.0
        %v1219 = vmax.f32 %v553, 0.0
        %v1220 = vmax.f32 %v904, 0.0
        %v1221 = vmax.f32 %v906, 0.0
        %v1222 = vmax.f32 %v557, 0.0
        %v1223 = vmax.f32 %v559, 0.0
        %v1224 = vmax.f32 %v910, 0.0
        %v1225 = vmax.f32 %v912, 0.0
        %v1226 = vmax.f32 %v561, 0.0
        %v1227 = vmax.f32 %v563, 0.0
        %v1228 = vmax.f32 %v914, 0.0
        %v1229 = vmax.f32 %v916, 0.0
        %v1230 = vmax.f32 %v567, 0.0
        %v1231 = vmax.f32 %v569, 0.0
        %v1232 = vmax.f32 %v920, 0.0
        %v1233 = vmax.f32 %v922, 0.0
        %v1234 = vmax.f32 %v571, 0.0
        %v1235 = vmax.f32 %v573, 0.0
        %v1236 = vmax.f32 %v924, 0.0
        %v1237 = vmax.f32 %v926, 0.0
        %v1238 = vmax.f32 %v577, 0.0
        %v1239 = vmax.f32 %v579, 0.0
        %v1240 = vmax.f32 %v930, 0.0
        %v1241 = vmax.f32 %v932, 0.0
        %v1242 = vmax.f32 %v581, 0.0
        %v1243 = vmax.f32 %v583, 0.0
        %v1244 = vmax.f32 %v934, 0.0
        %v1245 = vmax.f32 %v936, 0.0
        %v1246 = vmax.f32 %v587, 0.0
        %v1247 = vmax.f32 %v589, 0.0
        %v1248 = vmax.f32 %v940, 0.0
        %v1249 = vmax.f32 %v942, 0.0
        %v1250 = vmax.f32 %v591, 0.0
        %v1251 = vmax.f32 %v593, 0.0
        %v1252 = vmax.f32 %v944, 0.0
        %v1253 = vmax.f32 %v946, 0.0
        %v1254 = vmax.f32 %v597, 0.0
        %v1255 = vmax.f32 %v599, 0.0
        %v1256 = vmax.f32 %v950, 0.0
        %v1257 = vmax.f32 %v952, 0.0
        %v1258 = vmax.f32 %v601, 0.0
        %v1259 = vmax.f32 %v603, 0.0
        %v1260 = vmax.f32 %v954, 0.0
        %v1261 = vmax.f32 %v956, 0.0
        %v1262 = vmax.f32 %v607, 0.0
        %v1263 = vmax.f32 %v609, 0.0
        %v1264 = vmax.f32 %v960, 0.0
        %v1265 = vmax.f32 %v962, 0.0
        %v1266 = vmax.f32 %v611, 0.0
        %v1267 = vmax.f32 %v613, 0.0
        %v1268 = vmax.f32 %v964, 0.0
        %v1269 = vmax.f32 %v966, 0.0
        %v1270 = vmax.f32 %v617, 0.0
        %v1271 = vmax.f32 %v619, 0.0
        %v1272 = vmax.f32 %v970, 0.0
        %v1273 = vmax.f32 %v972, 0.0
        %v1274 = vmax.f32 %v621, 0.0
        %v1275 = vmax.f32 %v623, 0.0
        %v1276 = vmax.f32 %v974, 0.0
        %v1277 = vmax.f32 %v976, 0.0
        %v1278 = vmax.f32 %v627, 0.0
        %v1279 = vmax.f32 %v629, 0.0
        %v1280 = vmax.f32 %v980, 0.0
        %v1281 = vmax.f32 %v982, 0.0
        %v1282 = vmax.f32 %v631, 0.0
        %v1283 = vmax.f32 %v633, 0.0
        %v1284 = vmax.f32 %v984, 0.0
        %v1285 = vmax.f32 %v986, 0.0
        %v1286 = vmax.f32 %v637, 0.0
        %v1287 = vmax.f32 %v639, 0.0
        %v1288 = vmax.f32 %v990, 0.0
        %v1289 = vmax.f32 %v992, 0.0
        %v1290 = vmax.f32 %v641, 0.0
        %v1291 = vmax.f32 %v643, 0.0
        %v1292 = vmax.f32 %v994, 0.0
        %v1293 = vmax.f32 %v996, 0.0
        %v1294 = vmax.f32 %v647, 0.0
        %v1295 = vmax.f32 %v649, 0.0
        %v1296 = vmax.f32 %v1000, 0.0
        %v1297 = vmax.f32 %v1002, 0.0
        %v1298 = vmax.f32 %v651, 0.0
        %v1299 = vmax.f32 %v653, 0.0
        %v1300 = vmax.f32 %v1004, 0.0
        %v1301 = vmax.f32 %v1006, 0.0
        %v1302 = vmax.f32 %v657, 0.0
        %v1303 = vmax.f32 %v659, 0.0
        %v1304 = vmax.f32 %v1010, 0.0
        %v1305 = vmax.f32 %v1012, 0.0
        %v1306 = vmax.f32 %v661, 0.0
        %v1307 = vmax.f32 %v663, 0.0
        %v1308 = vmax.f32 %v1014, 0.0
        %v1309 = vmax.f32 %v1016, 0.0
        %v1310 = vmax.f32 %v667, 0.0
        %v1311 = vmax.f32 %v669, 0.0
        %v1312 = vmax.f32 %v1020, 0.0
        %v1313 = vmax.f32 %v1022, 0.0
        %v1314 = vmax.f32 %v671, 0.0
        %v1315 = vmax.f32 %v673, 0.0
        %v1316 = vmax.f32 %v1024, 0.0
        %v1317 = vmax.f32 %v1026, 0.0
        %v1318 = vmax.f32 %v677, 0.0
        %v1319 = vmax.f32 %v679, 0.0
        %v1320 = vmax.f32 %v1030, 0.0
        %v1321 = vmax.f32 %v1032, 0.0
        %v1322 = vmax.f32 %v681, 0.0
        %v1323 = vmax.f32 %v683, 0.0
        %v1324 = vmax.f32 %v1034, 0.0
        %v1325 = vmax.f32 %v1036, 0.0
        %v1326 = vmax.f32 %v687, 0.0
        %v1327 = vmax.f32 %v689, 0.0
        %v1328 = vmax.f32 %v1040, 0.0
        %v1329 = vmax.f32 %v1042, 0.0
        %v1330 = vmax.f32 %v691, 0.0
        %v1331 = vmax.f32 %v693, 0.0
        %v1332 = vmax.f32 %v1044, 0.0
        %v1333 = vmax.f32 %v1046, 0.0
        %v1334 = vmax.f32 %v697, 0.0
        %v1335 = vmax.f32 %v699, 0.0
        %v1336 = vmax.f32 %v1050, 0.0
        %v1337 = vmax.f32 %v1052, 0.0
        %v1338 = vmax.f32 %v701, 0.0
        %v1339 = vmax.f32 %v703, 0.0
        %v1340 = vmax.f32 %v1054, 0.0
        %v1341 = vmax.f32 %v1056, 0.0
        %v1342 = vmax.f32 %v707, 0.0
        %v1343 = vmax.f32 %v709, 0.0
        %v1344 = vmax.f32 %v1060, 0.0
        %v1345 = vmax.f32 %v1062, 0.0
        %v1346 = vmax.f32 %v711, 0.0
        %v1347 = vmax.f32 %v713, 0.0
        %v1348 = vmax.f32 %v1064, 0.0
        %v1349 = vmax.f32 %v1066, 0.0
        %v1350 = vmax.f32 %v717, 0.0
        %v1351 = vmax.f32 %v719, 0.0
        %v1352 = vmax.f32 %v1070, 0.0
        %v1353 = vmax.f32 %v1072, 0.0
        %v1354 = vmax.f32 %v721, 0.0
        %v1355 = vmax.f32 %v723, 0.0
        %v1356 = vmax.f32 %v1074, 0.0
        %v1357 = vmax.f32 %v1076, 0.0
        %v1358 = vmax.f32 %v727, 0.0
        %v1359 = vmax.f32 %v729, 0.0
        %v1360 = vmax.f32 %v1080, 0.0
        %v1361 = vmax.f32 %v1082, 0.0
        %v1362 = vmax.f32 %v731, 0.0
        %v1363 = vmax.f32 %v733, 0.0
        %v1364 = vmax.f32 %v1084, 0.0
        %v1365 = vmax.f32 %v1086, 0.0
        %v1366 = vmax.f32 %v737, 0.0
        %v1367 = vmax.f32 %v739, 0.0
        %v1368 = vmax.f32 %v1090, 0.0
        %v1369 = vmax.f32 %v1092, 0.0
        %v1370 = vmax.f32 %v741, 0.0
        %v1371 = vmax.f32 %v743, 0.0
        %v1372 = vmax.f32 %v1094, 0.0
        %v1373 = vmax.f32 %v1096, 0.0
        %v1374 = vmax.f32 %v747, 0.0
        %v1375 = vmax.f32 %v749, 0.0
        %v1376 = vmax.f32 %v1100, 0.0
        %v1377 = vmax.f32 %v1102, 0.0
        %v1378 = vmax.f32 %v751, 0.0
        %v1379 = vmax.f32 %v753, 0.0
        %v1380 = vmax.f32 %v1104, 0.0
        %v1381 = vmax.f32 %v1106, 0.0
        %v1382 = vmax.f32 %v757, 0.0
        %v1383 = vmax.f32 %v759, 0.0
        %v1384 = vmax.f32 %v1110, 0.0
        %v1385 = vmax.f32 %v1112, 0.0
        %v1386 = vmax.f32 %v761, 0.0
        %v1387 = vmax.f32 %v763, 0.0
        %v1388 = vmax.f32 %v1114, 0.0
        %v1389 = vmax.f32 %v1116, 0.0
        %v1390 = vmax.f32 %v767, 0.0
        %v1391 = vmax.f32 %v769, 0.0
        %v1392 = vmax.f32 %v1120, 0.0
        %v1393 = vmax.f32 %v1122, 0.0
        %v1394 = vmax.f32 %v771, 0.0
        %v1395 = vmax.f32 %v773, 0.0
        %v1396 = vmax.f32 %v1124, 0.0
        %v1397 = vmax.f32 %v1126, 0.0
        %v1398 = vmax.f32 %v777, 0.0
        %v1399 = vmax.f32 %v779, 0.0
        %v1400 = vmax.f32 %v1130, 0.0
        %v1401 = vmax.f32 %v1132, 0.0
        %v1402 = vmax.f32 %v781, 0.0
        %v1403 = vmax.f32 %v783, 0.0
        %v1404 = vmax.f32 %v1134, 0.0
        %v1405 = vmax.f32 %v1136, 0.0
        %v1406 = vmax.f32 %v787, 0.0
        %v1407 = vmax.f32 %v789, 0.0
        %v1408 = vmax.f32 %v1140, 0.0
        %v1409 = vmax.f32 %v1142, 0.0
        %v1410 = vmax.f32 %v791, 0.0
        %v1411 = vmax.f32 %v793, 0.0
        %v1412 = vmax.f32 %v1144, 0.0
        %v1413 = vmax.f32 %v1146, 0.0
        %v1414 = vmax.f32 %v797, 0.0
        %v1415 = vmax.f32 %v799, 0.0
        %v1416 = vmax.f32 %v1150, 0.0
        %v1417 = vmax.f32 %v1152, 0.0
        %v1418 = vmax.f32 %v801, 0.0
        %v1419 = vmax.f32 %v803, 0.0
        %v1420 = vmax.f32 %v1154, 0.0
        %v1421 = vmax.f32 %v1156, 0.0
        %v1422 = vmax.f32 %v807, 0.0
        %v1423 = vmax.f32 %v809, 0.0
        %v1424 = vmax.f32 %v1160, 0.0
        %v1425 = vmax.f32 %v1162, 0.0
        %v1426 = vmax.f32 %v811, 0.0
        %v1427 = vmax.f32 %v813, 0.0
        %v1428 = vmax.f32 %v1164, 0.0
        %v1429 = vmax.f32 %v1166, 0.0
        %v1430 = vmax.f32 %v817, 0.0
        %v1431 = vmax.f32 %v819, 0.0
        %v1432 = vmax.f32 %v1170, 0.0
        %v1433 = vmax.f32 %v1172, 0.0
        %v1434 = vmax.f32 %v821, 0.0
        %v1435 = vmax.f32 %v823, 0.0
        %v1436 = vmax.f32 %v1174, 0.0
        %v1437 = vmax.f32 %v1176, 0.0
        %v1438 = vmax.f32 %v827, 0.0
        %v1439 = vmax.f32 %v829, 0.0
        %v1440 = vmax.f32 %v1180, 0.0
        %v1441 = vmax.f32 %v1182, 0.0
        %v1442 = vmax.f32 %v831, 0.0
        %v1443 = vmax.f32 %v833, 0.0
        %v1444 = vmax.f32 %v1184, 0.0
        %v1445 = vmax.f32 %v1186, 0.0
        %v1446 = vmax.f32 %v837, 0.0
        %v1447 = vmax.f32 %v839, 0.0
        %v1448 = vmax.f32 %v1190, 0.0
        %v1449 = vmax.f32 %v1192, 0.0
        %v1450 = vmax.f32 %v841, 0.0
        %v1451 = vmax.f32 %v843, 0.0
        %v1452 = vmax.f32 %v1194, 0.0
        %v1453 = vmax.f32 %v1196, 0.0
        %v1454 = vld [vmem:[%s3] sm:$0xf]
        %v1456 = vlaneseq
        %v1457 = vshrl.u32 %v1456, 7
        %v1458 = vsub.s32 0, %v1457
        %v1459 = vrot.slane %v1454, %v1458
        %v1460 = vlaneseq
        %v1461 = vshrl.u32 %v1460, 7
        %v1462 = vsub.s32 1, %v1461
        %v1463 = vrot.slane %v1454, %v1462
        %v1464 = vlaneseq
        %v1465 = vshrl.u32 %v1464, 7
        %v1466 = vsub.s32 2, %v1465
        %v1467 = vrot.slane %v1454, %v1466
        %v1468 = vlaneseq
        %v1469 = vshrl.u32 %v1468, 7
        %v1470 = vsub.s32 3, %v1469
        %v1471 = vrot.slane %v1454, %v1470
        %v1476 = vmul.f32 %v1198, %v1459
        %v1477 = vmul.f32 %v1199, %v1463
        %v1478 = vmul.f32 %v1200, %v1467
        %v1479 = vmul.f32 %v1201, %v1471
        %v1480 = vmul.f32 %v1202, %v1459
        %v1481 = vmul.f32 %v1203, %v1463
        %v1482 = vmul.f32 %v1204, %v1467
        %v1483 = vmul.f32 %v1205, %v1471
        %v1484 = vmul.f32 %v1206, %v1459
        %v1485 = vmul.f32 %v1207, %v1463
        %v1486 = vmul.f32 %v1208, %v1467
        %v1487 = vmul.f32 %v1209, %v1471
        %v1488 = vmul.f32 %v1210, %v1459
        %v1489 = vmul.f32 %v1211, %v1463
        %v1490 = vmul.f32 %v1212, %v1467
        %v1491 = vmul.f32 %v1213, %v1471
        %v1492 = vmul.f32 %v1214, %v1459
        %v1493 = vmul.f32 %v1215, %v1463
        %v1494 = vmul.f32 %v1216, %v1467
        %v1495 = vmul.f32 %v1217, %v1471
        %v1496 = vmul.f32 %v1218, %v1459
        %v1497 = vmul.f32 %v1219, %v1463
        %v1498 = vmul.f32 %v1220, %v1467
        %v1499 = vmul.f32 %v1221, %v1471
        %v1500 = vmul.f32 %v1222, %v1459
        %v1501 = vmul.f32 %v1223, %v1463
        %v1502 = vmul.f32 %v1224, %v1467
        %v1503 = vmul.f32 %v1225, %v1471
        %v1504 = vmul.f32 %v1226, %v1459
        %v1505 = vmul.f32 %v1227, %v1463
        %v1506 = vmul.f32 %v1228, %v1467
        %v1507 = vmul.f32 %v1229, %v1471
        %v1508 = vmul.f32 %v1230, %v1459
        %v1509 = vmul.f32 %v1231, %v1463
        %v1510 = vmul.f32 %v1232, %v1467
        %v1511 = vmul.f32 %v1233, %v1471
        %v1512 = vmul.f32 %v1234, %v1459
        %v1513 = vmul.f32 %v1235, %v1463
        %v1514 = vmul.f32 %v1236, %v1467
        %v1515 = vmul.f32 %v1237, %v1471
        %v1516 = vmul.f32 %v1238, %v1459
        %v1517 = vmul.f32 %v1239, %v1463
        %v1518 = vmul.f32 %v1240, %v1467
        %v1519 = vmul.f32 %v1241, %v1471
        %v1520 = vmul.f32 %v1242, %v1459
        %v1521 = vmul.f32 %v1243, %v1463
        %v1522 = vmul.f32 %v1244, %v1467
        %v1523 = vmul.f32 %v1245, %v1471
        %v1524 = vmul.f32 %v1246, %v1459
        %v1525 = vmul.f32 %v1247, %v1463
        %v1526 = vmul.f32 %v1248, %v1467
        %v1527 = vmul.f32 %v1249, %v1471
        %v1528 = vmul.f32 %v1250, %v1459
        %v1529 = vmul.f32 %v1251, %v1463
        %v1530 = vmul.f32 %v1252, %v1467
        %v1531 = vmul.f32 %v1253, %v1471
        %v1532 = vmul.f32 %v1254, %v1459
        %v1533 = vmul.f32 %v1255, %v1463
        %v1534 = vmul.f32 %v1256, %v1467
        %v1535 = vmul.f32 %v1257, %v1471
        %v1536 = vmul.f32 %v1258, %v1459
        %v1537 = vmul.f32 %v1259, %v1463
        %v1538 = vmul.f32 %v1260, %v1467
        %v1539 = vmul.f32 %v1261, %v1471
        %v1540 = vmul.f32 %v1262, %v1459
        %v1541 = vmul.f32 %v1263, %v1463
        %v1542 = vmul.f32 %v1264, %v1467
        %v1543 = vmul.f32 %v1265, %v1471
        %v1544 = vmul.f32 %v1266, %v1459
        %v1545 = vmul.f32 %v1267, %v1463
        %v1546 = vmul.f32 %v1268, %v1467
        %v1547 = vmul.f32 %v1269, %v1471
        %v1548 = vmul.f32 %v1270, %v1459
        %v1549 = vmul.f32 %v1271, %v1463
        %v1550 = vmul.f32 %v1272, %v1467
        %v1551 = vmul.f32 %v1273, %v1471
        %v1552 = vmul.f32 %v1274, %v1459
        %v1553 = vmul.f32 %v1275, %v1463
        %v1554 = vmul.f32 %v1276, %v1467
        %v1555 = vmul.f32 %v1277, %v1471
        %v1556 = vmul.f32 %v1278, %v1459
        %v1557 = vmul.f32 %v1279, %v1463
        %v1558 = vmul.f32 %v1280, %v1467
        %v1559 = vmul.f32 %v1281, %v1471
        %v1560 = vmul.f32 %v1282, %v1459
        %v1561 = vmul.f32 %v1283, %v1463
        %v1562 = vmul.f32 %v1284, %v1467
        %v1563 = vmul.f32 %v1285, %v1471
        %v1564 = vmul.f32 %v1286, %v1459
        %v1565 = vmul.f32 %v1287, %v1463
        %v1566 = vmul.f32 %v1288, %v1467
        %v1567 = vmul.f32 %v1289, %v1471
        %v1568 = vmul.f32 %v1290, %v1459
        %v1569 = vmul.f32 %v1291, %v1463
        %v1570 = vmul.f32 %v1292, %v1467
        %v1571 = vmul.f32 %v1293, %v1471
        %v1572 = vmul.f32 %v1294, %v1459
        %v1573 = vmul.f32 %v1295, %v1463
        %v1574 = vmul.f32 %v1296, %v1467
        %v1575 = vmul.f32 %v1297, %v1471
        %v1576 = vmul.f32 %v1298, %v1459
        %v1577 = vmul.f32 %v1299, %v1463
        %v1578 = vmul.f32 %v1300, %v1467
        %v1579 = vmul.f32 %v1301, %v1471
        %v1580 = vmul.f32 %v1302, %v1459
        %v1581 = vmul.f32 %v1303, %v1463
        %v1582 = vmul.f32 %v1304, %v1467
        %v1583 = vmul.f32 %v1305, %v1471
        %v1584 = vmul.f32 %v1306, %v1459
        %v1585 = vmul.f32 %v1307, %v1463
        %v1586 = vmul.f32 %v1308, %v1467
        %v1587 = vmul.f32 %v1309, %v1471
        %v1588 = vmul.f32 %v1310, %v1459
        %v1589 = vmul.f32 %v1311, %v1463
        %v1590 = vmul.f32 %v1312, %v1467
        %v1591 = vmul.f32 %v1313, %v1471
        %v1592 = vmul.f32 %v1314, %v1459
        %v1593 = vmul.f32 %v1315, %v1463
        %v1594 = vmul.f32 %v1316, %v1467
        %v1595 = vmul.f32 %v1317, %v1471
        %v1596 = vmul.f32 %v1318, %v1459
        %v1597 = vmul.f32 %v1319, %v1463
        %v1598 = vmul.f32 %v1320, %v1467
        %v1599 = vmul.f32 %v1321, %v1471
        %v1600 = vmul.f32 %v1322, %v1459
        %v1601 = vmul.f32 %v1323, %v1463
        %v1602 = vmul.f32 %v1324, %v1467
        %v1603 = vmul.f32 %v1325, %v1471
        %v1604 = vmul.f32 %v1326, %v1459
        %v1605 = vmul.f32 %v1327, %v1463
        %v1606 = vmul.f32 %v1328, %v1467
        %v1607 = vmul.f32 %v1329, %v1471
        %v1608 = vmul.f32 %v1330, %v1459
        %v1609 = vmul.f32 %v1331, %v1463
        %v1610 = vmul.f32 %v1332, %v1467
        %v1611 = vmul.f32 %v1333, %v1471
        %v1612 = vmul.f32 %v1334, %v1459
        %v1613 = vmul.f32 %v1335, %v1463
        %v1614 = vmul.f32 %v1336, %v1467
        %v1615 = vmul.f32 %v1337, %v1471
        %v1616 = vmul.f32 %v1338, %v1459
        %v1617 = vmul.f32 %v1339, %v1463
        %v1618 = vmul.f32 %v1340, %v1467
        %v1619 = vmul.f32 %v1341, %v1471
        %v1620 = vmul.f32 %v1342, %v1459
        %v1621 = vmul.f32 %v1343, %v1463
        %v1622 = vmul.f32 %v1344, %v1467
        %v1623 = vmul.f32 %v1345, %v1471
        %v1624 = vmul.f32 %v1346, %v1459
        %v1625 = vmul.f32 %v1347, %v1463
        %v1626 = vmul.f32 %v1348, %v1467
        %v1627 = vmul.f32 %v1349, %v1471
        %v1628 = vmul.f32 %v1350, %v1459
        %v1629 = vmul.f32 %v1351, %v1463
        %v1630 = vmul.f32 %v1352, %v1467
        %v1631 = vmul.f32 %v1353, %v1471
        %v1632 = vmul.f32 %v1354, %v1459
        %v1633 = vmul.f32 %v1355, %v1463
        %v1634 = vmul.f32 %v1356, %v1467
        %v1635 = vmul.f32 %v1357, %v1471
        %v1636 = vmul.f32 %v1358, %v1459
        %v1637 = vmul.f32 %v1359, %v1463
        %v1638 = vmul.f32 %v1360, %v1467
        %v1639 = vmul.f32 %v1361, %v1471
        %v1640 = vmul.f32 %v1362, %v1459
        %v1641 = vmul.f32 %v1363, %v1463
        %v1642 = vmul.f32 %v1364, %v1467
        %v1643 = vmul.f32 %v1365, %v1471
        %v1644 = vmul.f32 %v1366, %v1459
        %v1645 = vmul.f32 %v1367, %v1463
        %v1646 = vmul.f32 %v1368, %v1467
        %v1647 = vmul.f32 %v1369, %v1471
        %v1648 = vmul.f32 %v1370, %v1459
        %v1649 = vmul.f32 %v1371, %v1463
        %v1650 = vmul.f32 %v1372, %v1467
        %v1651 = vmul.f32 %v1373, %v1471
        %v1652 = vmul.f32 %v1374, %v1459
        %v1653 = vmul.f32 %v1375, %v1463
        %v1654 = vmul.f32 %v1376, %v1467
        %v1655 = vmul.f32 %v1377, %v1471
        %v1656 = vmul.f32 %v1378, %v1459
        %v1657 = vmul.f32 %v1379, %v1463
        %v1658 = vmul.f32 %v1380, %v1467
        %v1659 = vmul.f32 %v1381, %v1471
        %v1660 = vmul.f32 %v1382, %v1459
        %v1661 = vmul.f32 %v1383, %v1463
        %v1662 = vmul.f32 %v1384, %v1467
        %v1663 = vmul.f32 %v1385, %v1471
        %v1664 = vmul.f32 %v1386, %v1459
        %v1665 = vmul.f32 %v1387, %v1463
        %v1666 = vmul.f32 %v1388, %v1467
        %v1667 = vmul.f32 %v1389, %v1471
        %v1668 = vmul.f32 %v1390, %v1459
        %v1669 = vmul.f32 %v1391, %v1463
        %v1670 = vmul.f32 %v1392, %v1467
        %v1671 = vmul.f32 %v1393, %v1471
        %v1672 = vmul.f32 %v1394, %v1459
        %v1673 = vmul.f32 %v1395, %v1463
        %v1674 = vmul.f32 %v1396, %v1467
        %v1675 = vmul.f32 %v1397, %v1471
        %v1676 = vmul.f32 %v1398, %v1459
        %v1677 = vmul.f32 %v1399, %v1463
        %v1678 = vmul.f32 %v1400, %v1467
        %v1679 = vmul.f32 %v1401, %v1471
        %v1680 = vmul.f32 %v1402, %v1459
        %v1681 = vmul.f32 %v1403, %v1463
        %v1682 = vmul.f32 %v1404, %v1467
        %v1683 = vmul.f32 %v1405, %v1471
        %v1684 = vmul.f32 %v1406, %v1459
        %v1685 = vmul.f32 %v1407, %v1463
        %v1686 = vmul.f32 %v1408, %v1467
        %v1687 = vmul.f32 %v1409, %v1471
        %v1688 = vmul.f32 %v1410, %v1459
        %v1689 = vmul.f32 %v1411, %v1463
        %v1690 = vmul.f32 %v1412, %v1467
        %v1691 = vmul.f32 %v1413, %v1471
        %v1692 = vmul.f32 %v1414, %v1459
        %v1693 = vmul.f32 %v1415, %v1463
        %v1694 = vmul.f32 %v1416, %v1467
        %v1695 = vmul.f32 %v1417, %v1471
        %v1696 = vmul.f32 %v1418, %v1459
        %v1697 = vmul.f32 %v1419, %v1463
        %v1698 = vmul.f32 %v1420, %v1467
        %v1699 = vmul.f32 %v1421, %v1471
        %v1700 = vmul.f32 %v1422, %v1459
        %v1701 = vmul.f32 %v1423, %v1463
        %v1702 = vmul.f32 %v1424, %v1467
        %v1703 = vmul.f32 %v1425, %v1471
        %v1704 = vmul.f32 %v1426, %v1459
        %v1705 = vmul.f32 %v1427, %v1463
        %v1706 = vmul.f32 %v1428, %v1467
        %v1707 = vmul.f32 %v1429, %v1471
        %v1708 = vmul.f32 %v1430, %v1459
        %v1709 = vmul.f32 %v1431, %v1463
        %v1710 = vmul.f32 %v1432, %v1467
        %v1711 = vmul.f32 %v1433, %v1471
        %v1712 = vmul.f32 %v1434, %v1459
        %v1713 = vmul.f32 %v1435, %v1463
        %v1714 = vmul.f32 %v1436, %v1467
        %v1715 = vmul.f32 %v1437, %v1471
        %v1716 = vmul.f32 %v1438, %v1459
        %v1717 = vmul.f32 %v1439, %v1463
        %v1718 = vmul.f32 %v1440, %v1467
        %v1719 = vmul.f32 %v1441, %v1471
        %v1720 = vmul.f32 %v1442, %v1459
        %v1721 = vmul.f32 %v1443, %v1463
        %v1722 = vmul.f32 %v1444, %v1467
        %v1723 = vmul.f32 %v1445, %v1471
        %v1724 = vmul.f32 %v1446, %v1459
        %v1725 = vmul.f32 %v1447, %v1463
        %v1726 = vmul.f32 %v1448, %v1467
        %v1727 = vmul.f32 %v1449, %v1471
        %v1728 = vmul.f32 %v1450, %v1459
        %v1729 = vmul.f32 %v1451, %v1463
        %v1730 = vmul.f32 %v1452, %v1467
        %v1731 = vmul.f32 %v1453, %v1471
        %v1732 = vadd.f32 %v1476, %v1477
        %v1733 = vadd.f32 %v1732, %v1478
        %v1734 = vadd.f32 %v1733, %v1479
        %1735 = vadd.xlane.f32.xlu0 %v1734
        %v1736 = vpop.xlane.xlu0 %1735
        %v1737 = vadd.f32 %v1480, %v1481
        %v1738 = vadd.f32 %v1737, %v1482
        %v1739 = vadd.f32 %v1738, %v1483
        %1740 = vadd.xlane.f32.xlu0 %v1739
        %v1741 = vpop.xlane.xlu0 %1740
        %v1742 = vadd.f32 %v1484, %v1485
        %v1743 = vadd.f32 %v1742, %v1486
        %v1744 = vadd.f32 %v1743, %v1487
        %1745 = vadd.xlane.f32.xlu0 %v1744
        %v1746 = vpop.xlane.xlu0 %1745
        %v1747 = vadd.f32 %v1488, %v1489
        %v1748 = vadd.f32 %v1747, %v1490
        %v1749 = vadd.f32 %v1748, %v1491
        %1750 = vadd.xlane.f32.xlu0 %v1749
        %v1751 = vpop.xlane.xlu0 %1750
        %v1752 = vadd.f32 %v1492, %v1493
        %v1753 = vadd.f32 %v1752, %v1494
        %v1754 = vadd.f32 %v1753, %v1495
        %1755 = vadd.xlane.f32.xlu0 %v1754
        %v1756 = vpop.xlane.xlu0 %1755
        %v1757 = vadd.f32 %v1496, %v1497
        %v1758 = vadd.f32 %v1757, %v1498
        %v1759 = vadd.f32 %v1758, %v1499
        %1760 = vadd.xlane.f32.xlu0 %v1759
        %v1761 = vpop.xlane.xlu0 %1760
        %v1762 = vadd.f32 %v1500, %v1501
        %v1763 = vadd.f32 %v1762, %v1502
        %v1764 = vadd.f32 %v1763, %v1503
        %1765 = vadd.xlane.f32.xlu0 %v1764
        %v1766 = vpop.xlane.xlu0 %1765
        %v1767 = vadd.f32 %v1504, %v1505
        %v1768 = vadd.f32 %v1767, %v1506
        %v1769 = vadd.f32 %v1768, %v1507
        %1770 = vadd.xlane.f32.xlu0 %v1769
        %v1771 = vpop.xlane.xlu0 %1770
        %v1772 = vadd.f32 %v1508, %v1509
        %v1773 = vadd.f32 %v1772, %v1510
        %v1774 = vadd.f32 %v1773, %v1511
        %1775 = vadd.xlane.f32.xlu0 %v1774
        %v1776 = vpop.xlane.xlu0 %1775
        %v1777 = vadd.f32 %v1512, %v1513
        %v1778 = vadd.f32 %v1777, %v1514
        %v1779 = vadd.f32 %v1778, %v1515
        %1780 = vadd.xlane.f32.xlu0 %v1779
        %v1781 = vpop.xlane.xlu0 %1780
        %v1782 = vadd.f32 %v1516, %v1517
        %v1783 = vadd.f32 %v1782, %v1518
        %v1784 = vadd.f32 %v1783, %v1519
        %1785 = vadd.xlane.f32.xlu0 %v1784
        %v1786 = vpop.xlane.xlu0 %1785
        %v1787 = vadd.f32 %v1520, %v1521
        %v1788 = vadd.f32 %v1787, %v1522
        %v1789 = vadd.f32 %v1788, %v1523
        %1790 = vadd.xlane.f32.xlu0 %v1789
        %v1791 = vpop.xlane.xlu0 %1790
        %v1792 = vadd.f32 %v1524, %v1525
        %v1793 = vadd.f32 %v1792, %v1526
        %v1794 = vadd.f32 %v1793, %v1527
        %1795 = vadd.xlane.f32.xlu0 %v1794
        %v1796 = vpop.xlane.xlu0 %1795
        %v1797 = vadd.f32 %v1528, %v1529
        %v1798 = vadd.f32 %v1797, %v1530
        %v1799 = vadd.f32 %v1798, %v1531
        %1800 = vadd.xlane.f32.xlu0 %v1799
        %v1801 = vpop.xlane.xlu0 %1800
        %v1802 = vadd.f32 %v1532, %v1533
        %v1803 = vadd.f32 %v1802, %v1534
        %v1804 = vadd.f32 %v1803, %v1535
        %1805 = vadd.xlane.f32.xlu0 %v1804
        %v1806 = vpop.xlane.xlu0 %1805
        %v1807 = vadd.f32 %v1536, %v1537
        %v1808 = vadd.f32 %v1807, %v1538
        %v1809 = vadd.f32 %v1808, %v1539
        %1810 = vadd.xlane.f32.xlu0 %v1809
        %v1811 = vpop.xlane.xlu0 %1810
        %v1812 = vadd.f32 %v1540, %v1541
        %v1813 = vadd.f32 %v1812, %v1542
        %v1814 = vadd.f32 %v1813, %v1543
        %1815 = vadd.xlane.f32.xlu0 %v1814
        %v1816 = vpop.xlane.xlu0 %1815
        %v1817 = vadd.f32 %v1544, %v1545
        %v1818 = vadd.f32 %v1817, %v1546
        %v1819 = vadd.f32 %v1818, %v1547
        %1820 = vadd.xlane.f32.xlu0 %v1819
        %v1821 = vpop.xlane.xlu0 %1820
        %v1822 = vadd.f32 %v1548, %v1549
        %v1823 = vadd.f32 %v1822, %v1550
        %v1824 = vadd.f32 %v1823, %v1551
        %1825 = vadd.xlane.f32.xlu0 %v1824
        %v1826 = vpop.xlane.xlu0 %1825
        %v1827 = vadd.f32 %v1552, %v1553
        %v1828 = vadd.f32 %v1827, %v1554
        %v1829 = vadd.f32 %v1828, %v1555
        %1830 = vadd.xlane.f32.xlu0 %v1829
        %v1831 = vpop.xlane.xlu0 %1830
        %v1832 = vadd.f32 %v1556, %v1557
        %v1833 = vadd.f32 %v1832, %v1558
        %v1834 = vadd.f32 %v1833, %v1559
        %1835 = vadd.xlane.f32.xlu0 %v1834
        %v1836 = vpop.xlane.xlu0 %1835
        %v1837 = vadd.f32 %v1560, %v1561
        %v1838 = vadd.f32 %v1837, %v1562
        %v1839 = vadd.f32 %v1838, %v1563
        %1840 = vadd.xlane.f32.xlu0 %v1839
        %v1841 = vpop.xlane.xlu0 %1840
        %v1842 = vadd.f32 %v1564, %v1565
        %v1843 = vadd.f32 %v1842, %v1566
        %v1844 = vadd.f32 %v1843, %v1567
        %1845 = vadd.xlane.f32.xlu0 %v1844
        %v1846 = vpop.xlane.xlu0 %1845
        %v1847 = vadd.f32 %v1568, %v1569
        %v1848 = vadd.f32 %v1847, %v1570
        %v1849 = vadd.f32 %v1848, %v1571
        %1850 = vadd.xlane.f32.xlu0 %v1849
        %v1851 = vpop.xlane.xlu0 %1850
        %v1852 = vadd.f32 %v1572, %v1573
        %v1853 = vadd.f32 %v1852, %v1574
        %v1854 = vadd.f32 %v1853, %v1575
        %1855 = vadd.xlane.f32.xlu0 %v1854
        %v1856 = vpop.xlane.xlu0 %1855
        %v1857 = vadd.f32 %v1576, %v1577
        %v1858 = vadd.f32 %v1857, %v1578
        %v1859 = vadd.f32 %v1858, %v1579
        %1860 = vadd.xlane.f32.xlu0 %v1859
        %v1861 = vpop.xlane.xlu0 %1860
        %v1862 = vadd.f32 %v1580, %v1581
        %v1863 = vadd.f32 %v1862, %v1582
        %v1864 = vadd.f32 %v1863, %v1583
        %1865 = vadd.xlane.f32.xlu0 %v1864
        %v1866 = vpop.xlane.xlu0 %1865
        %v1867 = vadd.f32 %v1584, %v1585
        %v1868 = vadd.f32 %v1867, %v1586
        %v1869 = vadd.f32 %v1868, %v1587
        %1870 = vadd.xlane.f32.xlu0 %v1869
        %v1871 = vpop.xlane.xlu0 %1870
        %v1872 = vadd.f32 %v1588, %v1589
        %v1873 = vadd.f32 %v1872, %v1590
        %v1874 = vadd.f32 %v1873, %v1591
        %1875 = vadd.xlane.f32.xlu0 %v1874
        %v1876 = vpop.xlane.xlu0 %1875
        %v1877 = vadd.f32 %v1592, %v1593
        %v1878 = vadd.f32 %v1877, %v1594
        %v1879 = vadd.f32 %v1878, %v1595
        %1880 = vadd.xlane.f32.xlu0 %v1879
        %v1881 = vpop.xlane.xlu0 %1880
        %v1882 = vadd.f32 %v1596, %v1597
        %v1883 = vadd.f32 %v1882, %v1598
        %v1884 = vadd.f32 %v1883, %v1599
        %1885 = vadd.xlane.f32.xlu0 %v1884
        %v1886 = vpop.xlane.xlu0 %1885
        %v1887 = vadd.f32 %v1600, %v1601
        %v1888 = vadd.f32 %v1887, %v1602
        %v1889 = vadd.f32 %v1888, %v1603
        %1890 = vadd.xlane.f32.xlu0 %v1889
        %v1891 = vpop.xlane.xlu0 %1890
        %v1892 = vadd.f32 %v1604, %v1605
        %v1893 = vadd.f32 %v1892, %v1606
        %v1894 = vadd.f32 %v1893, %v1607
        %1895 = vadd.xlane.f32.xlu0 %v1894
        %v1896 = vpop.xlane.xlu0 %1895
        %v1897 = vadd.f32 %v1608, %v1609
        %v1898 = vadd.f32 %v1897, %v1610
        %v1899 = vadd.f32 %v1898, %v1611
        %1900 = vadd.xlane.f32.xlu0 %v1899
        %v1901 = vpop.xlane.xlu0 %1900
        %v1902 = vadd.f32 %v1612, %v1613
        %v1903 = vadd.f32 %v1902, %v1614
        %v1904 = vadd.f32 %v1903, %v1615
        %1905 = vadd.xlane.f32.xlu0 %v1904
        %v1906 = vpop.xlane.xlu0 %1905
        %v1907 = vadd.f32 %v1616, %v1617
        %v1908 = vadd.f32 %v1907, %v1618
        %v1909 = vadd.f32 %v1908, %v1619
        %1910 = vadd.xlane.f32.xlu0 %v1909
        %v1911 = vpop.xlane.xlu0 %1910
        %v1912 = vadd.f32 %v1620, %v1621
        %v1913 = vadd.f32 %v1912, %v1622
        %v1914 = vadd.f32 %v1913, %v1623
        %1915 = vadd.xlane.f32.xlu0 %v1914
        %v1916 = vpop.xlane.xlu0 %1915
        %v1917 = vadd.f32 %v1624, %v1625
        %v1918 = vadd.f32 %v1917, %v1626
        %v1919 = vadd.f32 %v1918, %v1627
        %1920 = vadd.xlane.f32.xlu0 %v1919
        %v1921 = vpop.xlane.xlu0 %1920
        %v1922 = vadd.f32 %v1628, %v1629
        %v1923 = vadd.f32 %v1922, %v1630
        %v1924 = vadd.f32 %v1923, %v1631
        %1925 = vadd.xlane.f32.xlu0 %v1924
        %v1926 = vpop.xlane.xlu0 %1925
        %v1927 = vadd.f32 %v1632, %v1633
        %v1928 = vadd.f32 %v1927, %v1634
        %v1929 = vadd.f32 %v1928, %v1635
        %1930 = vadd.xlane.f32.xlu0 %v1929
        %v1931 = vpop.xlane.xlu0 %1930
        %v1932 = vadd.f32 %v1636, %v1637
        %v1933 = vadd.f32 %v1932, %v1638
        %v1934 = vadd.f32 %v1933, %v1639
        %1935 = vadd.xlane.f32.xlu0 %v1934
        %v1936 = vpop.xlane.xlu0 %1935
        %v1937 = vadd.f32 %v1640, %v1641
        %v1938 = vadd.f32 %v1937, %v1642
        %v1939 = vadd.f32 %v1938, %v1643
        %1940 = vadd.xlane.f32.xlu0 %v1939
        %v1941 = vpop.xlane.xlu0 %1940
        %v1942 = vadd.f32 %v1644, %v1645
        %v1943 = vadd.f32 %v1942, %v1646
        %v1944 = vadd.f32 %v1943, %v1647
        %1945 = vadd.xlane.f32.xlu0 %v1944
        %v1946 = vpop.xlane.xlu0 %1945
        %v1947 = vadd.f32 %v1648, %v1649
        %v1948 = vadd.f32 %v1947, %v1650
        %v1949 = vadd.f32 %v1948, %v1651
        %1950 = vadd.xlane.f32.xlu0 %v1949
        %v1951 = vpop.xlane.xlu0 %1950
        %v1952 = vadd.f32 %v1652, %v1653
        %v1953 = vadd.f32 %v1952, %v1654
        %v1954 = vadd.f32 %v1953, %v1655
        %1955 = vadd.xlane.f32.xlu0 %v1954
        %v1956 = vpop.xlane.xlu0 %1955
        %v1957 = vadd.f32 %v1656, %v1657
        %v1958 = vadd.f32 %v1957, %v1658
        %v1959 = vadd.f32 %v1958, %v1659
        %1960 = vadd.xlane.f32.xlu0 %v1959
        %v1961 = vpop.xlane.xlu0 %1960
        %v1962 = vadd.f32 %v1660, %v1661
        %v1963 = vadd.f32 %v1962, %v1662
        %v1964 = vadd.f32 %v1963, %v1663
        %1965 = vadd.xlane.f32.xlu0 %v1964
        %v1966 = vpop.xlane.xlu0 %1965
        %v1967 = vadd.f32 %v1664, %v1665
        %v1968 = vadd.f32 %v1967, %v1666
        %v1969 = vadd.f32 %v1968, %v1667
        %1970 = vadd.xlane.f32.xlu0 %v1969
        %v1971 = vpop.xlane.xlu0 %1970
        %v1972 = vadd.f32 %v1668, %v1669
        %v1973 = vadd.f32 %v1972, %v1670
        %v1974 = vadd.f32 %v1973, %v1671
        %1975 = vadd.xlane.f32.xlu0 %v1974
        %v1976 = vpop.xlane.xlu0 %1975
        %v1977 = vadd.f32 %v1672, %v1673
        %v1978 = vadd.f32 %v1977, %v1674
        %v1979 = vadd.f32 %v1978, %v1675
        %1980 = vadd.xlane.f32.xlu0 %v1979
        %v1981 = vpop.xlane.xlu0 %1980
        %v1982 = vadd.f32 %v1676, %v1677
        %v1983 = vadd.f32 %v1982, %v1678
        %v1984 = vadd.f32 %v1983, %v1679
        %1985 = vadd.xlane.f32.xlu0 %v1984
        %v1986 = vpop.xlane.xlu0 %1985
        %v1987 = vadd.f32 %v1680, %v1681
        %v1988 = vadd.f32 %v1987, %v1682
        %v1989 = vadd.f32 %v1988, %v1683
        %1990 = vadd.xlane.f32.xlu0 %v1989
        %v1991 = vpop.xlane.xlu0 %1990
        %v1992 = vadd.f32 %v1684, %v1685
        %v1993 = vadd.f32 %v1992, %v1686
        %v1994 = vadd.f32 %v1993, %v1687
        %1995 = vadd.xlane.f32.xlu0 %v1994
        %v1996 = vpop.xlane.xlu0 %1995
        %v1997 = vadd.f32 %v1688, %v1689
        %v1998 = vadd.f32 %v1997, %v1690
        %v1999 = vadd.f32 %v1998, %v1691
        %2000 = vadd.xlane.f32.xlu0 %v1999
        %v2001 = vpop.xlane.xlu0 %2000
        %v2002 = vadd.f32 %v1692, %v1693
        %v2003 = vadd.f32 %v2002, %v1694
        %v2004 = vadd.f32 %v2003, %v1695
        %2005 = vadd.xlane.f32.xlu0 %v2004
        %v2006 = vpop.xlane.xlu0 %2005
        %v2007 = vadd.f32 %v1696, %v1697
        %v2008 = vadd.f32 %v2007, %v1698
        %v2009 = vadd.f32 %v2008, %v1699
        %2010 = vadd.xlane.f32.xlu0 %v2009
        %v2011 = vpop.xlane.xlu0 %2010
        %v2012 = vadd.f32 %v1700, %v1701
        %v2013 = vadd.f32 %v2012, %v1702
        %v2014 = vadd.f32 %v2013, %v1703
        %2015 = vadd.xlane.f32.xlu0 %v2014
        %v2016 = vpop.xlane.xlu0 %2015
        %v2017 = vadd.f32 %v1704, %v1705
        %v2018 = vadd.f32 %v2017, %v1706
        %v2019 = vadd.f32 %v2018, %v1707
        %2020 = vadd.xlane.f32.xlu0 %v2019
        %v2021 = vpop.xlane.xlu0 %2020
        %v2022 = vadd.f32 %v1708, %v1709
        %v2023 = vadd.f32 %v2022, %v1710
        %v2024 = vadd.f32 %v2023, %v1711
        %2025 = vadd.xlane.f32.xlu0 %v2024
        %v2026 = vpop.xlane.xlu0 %2025
        %v2027 = vadd.f32 %v1712, %v1713
        %v2028 = vadd.f32 %v2027, %v1714
        %v2029 = vadd.f32 %v2028, %v1715
        %2030 = vadd.xlane.f32.xlu0 %v2029
        %v2031 = vpop.xlane.xlu0 %2030
        %v2032 = vadd.f32 %v1716, %v1717
        %v2033 = vadd.f32 %v2032, %v1718
        %v2034 = vadd.f32 %v2033, %v1719
        %2035 = vadd.xlane.f32.xlu0 %v2034
        %v2036 = vpop.xlane.xlu0 %2035
        %v2037 = vadd.f32 %v1720, %v1721
        %v2038 = vadd.f32 %v2037, %v1722
        %v2039 = vadd.f32 %v2038, %v1723
        %2040 = vadd.xlane.f32.xlu0 %v2039
        %v2041 = vpop.xlane.xlu0 %2040
        %v2042 = vadd.f32 %v1724, %v1725
        %v2043 = vadd.f32 %v2042, %v1726
        %v2044 = vadd.f32 %v2043, %v1727
        %2045 = vadd.xlane.f32.xlu0 %v2044
        %v2046 = vpop.xlane.xlu0 %2045
        %v2047 = vadd.f32 %v1728, %v1729
        %v2048 = vadd.f32 %v2047, %v1730
        %v2049 = vadd.f32 %v2048, %v1731
        %2050 = vadd.xlane.f32.xlu0 %v2049
        %v2051 = vpop.xlane.xlu0 %2050
        %v2052 = vld [vmem:[#allocation2] sm:$0x1]
        %2054 = vset.pattern.permute.xlu0 0
        %2055 = vperm.xlu0 %2054, %v2052
        %v2056 = vpop.permute.xlu0 %2055
        %v2058 = vlaneseq
        %v2059 = vshrl.u32 %v2058, 7
        %v2060 = vsub.s32 0, %v2059
        %v2061 = vrot.slane %v2056, %v2060
        %v2062 = vadd.f32 %v1736, %v2061
        %v2063 = vadd.f32 %v1741, %v2061
        %v2064 = vadd.f32 %v1746, %v2061
        %v2065 = vadd.f32 %v1751, %v2061
        %v2066 = vadd.f32 %v1756, %v2061
        %v2067 = vadd.f32 %v1761, %v2061
        %v2068 = vadd.f32 %v1766, %v2061
        %v2069 = vadd.f32 %v1771, %v2061
        %v2070 = vadd.f32 %v1776, %v2061
        %v2071 = vadd.f32 %v1781, %v2061
        %v2072 = vadd.f32 %v1786, %v2061
        %v2073 = vadd.f32 %v1791, %v2061
        %v2074 = vadd.f32 %v1796, %v2061
        %v2075 = vadd.f32 %v1801, %v2061
        %v2076 = vadd.f32 %v1806, %v2061
        %v2077 = vadd.f32 %v1811, %v2061
        %v2078 = vadd.f32 %v1816, %v2061
        %v2079 = vadd.f32 %v1821, %v2061
        %v2080 = vadd.f32 %v1826, %v2061
        %v2081 = vadd.f32 %v1831, %v2061
        %v2082 = vadd.f32 %v1836, %v2061
        %v2083 = vadd.f32 %v1841, %v2061
        %v2084 = vadd.f32 %v1846, %v2061
        %v2085 = vadd.f32 %v1851, %v2061
        %v2086 = vadd.f32 %v1856, %v2061
        %v2087 = vadd.f32 %v1861, %v2061
        %v2088 = vadd.f32 %v1866, %v2061
        %v2089 = vadd.f32 %v1871, %v2061
        %v2090 = vadd.f32 %v1876, %v2061
        %v2091 = vadd.f32 %v1881, %v2061
        %v2092 = vadd.f32 %v1886, %v2061
        %v2093 = vadd.f32 %v1891, %v2061
        %v2094 = vadd.f32 %v1896, %v2061
        %v2095 = vadd.f32 %v1901, %v2061
        %v2096 = vadd.f32 %v1906, %v2061
        %v2097 = vadd.f32 %v1911, %v2061
        %v2098 = vadd.f32 %v1916, %v2061
        %v2099 = vadd.f32 %v1921, %v2061
        %v2100 = vadd.f32 %v1926, %v2061
        %v2101 = vadd.f32 %v1931, %v2061
        %v2102 = vadd.f32 %v1936, %v2061
        %v2103 = vadd.f32 %v1941, %v2061
        %v2104 = vadd.f32 %v1946, %v2061
        %v2105 = vadd.f32 %v1951, %v2061
        %v2106 = vadd.f32 %v1956, %v2061
        %v2107 = vadd.f32 %v1961, %v2061
        %v2108 = vadd.f32 %v1966, %v2061
        %v2109 = vadd.f32 %v1971, %v2061
        %v2110 = vadd.f32 %v1976, %v2061
        %v2111 = vadd.f32 %v1981, %v2061
        %v2112 = vadd.f32 %v1986, %v2061
        %v2113 = vadd.f32 %v1991, %v2061
        %v2114 = vadd.f32 %v1996, %v2061
        %v2115 = vadd.f32 %v2001, %v2061
        %v2116 = vadd.f32 %v2006, %v2061
        %v2117 = vadd.f32 %v2011, %v2061
        %v2118 = vadd.f32 %v2016, %v2061
        %v2119 = vadd.f32 %v2021, %v2061
        %v2120 = vadd.f32 %v2026, %v2061
        %v2121 = vadd.f32 %v2031, %v2061
        %v2122 = vadd.f32 %v2036, %v2061
        %v2123 = vadd.f32 %v2041, %v2061
        %v2124 = vadd.f32 %v2046, %v2061
        %v2125 = vadd.f32 %v2051, %v2061
        %v2126 = vxor.u32 %v2062, 2147483648
        %v2127 = vxor.u32 %v2063, 2147483648
        %v2128 = vxor.u32 %v2064, 2147483648
        %v2129 = vxor.u32 %v2065, 2147483648
        %v2130 = vxor.u32 %v2066, 2147483648
        %v2131 = vxor.u32 %v2067, 2147483648
        %v2132 = vxor.u32 %v2068, 2147483648
        %v2133 = vxor.u32 %v2069, 2147483648
        %v2134 = vxor.u32 %v2070, 2147483648
        %v2135 = vxor.u32 %v2071, 2147483648
        %v2136 = vxor.u32 %v2072, 2147483648
        %v2137 = vxor.u32 %v2073, 2147483648
        %v2138 = vxor.u32 %v2074, 2147483648
        %v2139 = vxor.u32 %v2075, 2147483648
        %v2140 = vxor.u32 %v2076, 2147483648
        %v2141 = vxor.u32 %v2077, 2147483648
        %v2142 = vxor.u32 %v2078, 2147483648
        %v2143 = vxor.u32 %v2079, 2147483648
        %v2144 = vxor.u32 %v2080, 2147483648
        %v2145 = vxor.u32 %v2081, 2147483648
        %v2146 = vxor.u32 %v2082, 2147483648
        %v2147 = vxor.u32 %v2083, 2147483648
        %v2148 = vxor.u32 %v2084, 2147483648
        %v2149 = vxor.u32 %v2085, 2147483648
        %v2150 = vxor.u32 %v2086, 2147483648
        %v2151 = vxor.u32 %v2087, 2147483648
        %v2152 = vxor.u32 %v2088, 2147483648
        %v2153 = vxor.u32 %v2089, 2147483648
        %v2154 = vxor.u32 %v2090, 2147483648
        %v2155 = vxor.u32 %v2091, 2147483648
        %v2156 = vxor.u32 %v2092, 2147483648
        %v2157 = vxor.u32 %v2093, 2147483648
        %v2158 = vxor.u32 %v2094, 2147483648
        %v2159 = vxor.u32 %v2095, 2147483648
        %v2160 = vxor.u32 %v2096, 2147483648
        %v2161 = vxor.u32 %v2097, 2147483648
        %v2162 = vxor.u32 %v2098, 2147483648
        %v2163 = vxor.u32 %v2099, 2147483648
        %v2164 = vxor.u32 %v2100, 2147483648
        %v2165 = vxor.u32 %v2101, 2147483648
        %v2166 = vxor.u32 %v2102, 2147483648
        %v2167 = vxor.u32 %v2103, 2147483648
        %v2168 = vxor.u32 %v2104, 2147483648
        %v2169 = vxor.u32 %v2105, 2147483648
        %v2170 = vxor.u32 %v2106, 2147483648
        %v2171 = vxor.u32 %v2107, 2147483648
        %v2172 = vxor.u32 %v2108, 2147483648
        %v2173 = vxor.u32 %v2109, 2147483648
        %v2174 = vxor.u32 %v2110, 2147483648
        %v2175 = vxor.u32 %v2111, 2147483648
        %v2176 = vxor.u32 %v2112, 2147483648
        %v2177 = vxor.u32 %v2113, 2147483648
        %v2178 = vxor.u32 %v2114, 2147483648
        %v2179 = vxor.u32 %v2115, 2147483648
        %v2180 = vxor.u32 %v2116, 2147483648
        %v2181 = vxor.u32 %v2117, 2147483648
        %v2182 = vxor.u32 %v2118, 2147483648
        %v2183 = vxor.u32 %v2119, 2147483648
        %v2184 = vxor.u32 %v2120, 2147483648
        %v2185 = vxor.u32 %v2121, 2147483648
        %v2186 = vxor.u32 %v2122, 2147483648
        %v2187 = vxor.u32 %v2123, 2147483648
        %v2188 = vxor.u32 %v2124, 2147483648
        %v2189 = vxor.u32 %v2125, 2147483648
        %v2190 = vmul.f32 %v2126, 1.442695
        %v2191 = vpow.pop %v2190
        %v2192 = vmul.f32 %v2127, 1.442695
        %v2193 = vpow.pop %v2192
        %v2194 = vmul.f32 %v2128, 1.442695
        %v2195 = vpow.pop %v2194
        %v2196 = vmul.f32 %v2129, 1.442695
        %v2197 = vpow.pop %v2196
        %v2198 = vmul.f32 %v2130, 1.442695
        %v2199 = vpow.pop %v2198
        %v2200 = vmul.f32 %v2131, 1.442695
        %v2201 = vpow.pop %v2200
        %v2202 = vmul.f32 %v2132, 1.442695
        %v2203 = vpow.pop %v2202
        %v2204 = vmul.f32 %v2133, 1.442695
        %v2205 = vpow.pop %v2204
        %v2206 = vmul.f32 %v2134, 1.442695
        %v2207 = vpow.pop %v2206
        %v2208 = vmul.f32 %v2135, 1.442695
        %v2209 = vpow.pop %v2208
        %v2210 = vmul.f32 %v2136, 1.442695
        %v2211 = vpow.pop %v2210
        %v2212 = vmul.f32 %v2137, 1.442695
        %v2213 = vpow.pop %v2212
        %v2214 = vmul.f32 %v2138, 1.442695
        %v2215 = vpow.pop %v2214
        %v2216 = vmul.f32 %v2139, 1.442695
        %v2217 = vpow.pop %v2216
        %v2218 = vmul.f32 %v2140, 1.442695
        %v2219 = vpow.pop %v2218
        %v2220 = vmul.f32 %v2141, 1.442695
        %v2221 = vpow.pop %v2220
        %v2222 = vmul.f32 %v2142, 1.442695
        %v2223 = vpow.pop %v2222
        %v2224 = vmul.f32 %v2143, 1.442695
        %v2225 = vpow.pop %v2224
        %v2226 = vmul.f32 %v2144, 1.442695
        %v2227 = vpow.pop %v2226
        %v2228 = vmul.f32 %v2145, 1.442695
        %v2229 = vpow.pop %v2228
        %v2230 = vmul.f32 %v2146, 1.442695
        %v2231 = vpow.pop %v2230
        %v2232 = vmul.f32 %v2147, 1.442695
        %v2233 = vpow.pop %v2232
        %v2234 = vmul.f32 %v2148, 1.442695
        %v2235 = vpow.pop %v2234
        %v2236 = vmul.f32 %v2149, 1.442695
        %v2237 = vpow.pop %v2236
        %v2238 = vmul.f32 %v2150, 1.442695
        %v2239 = vpow.pop %v2238
        %v2240 = vmul.f32 %v2151, 1.442695
        %v2241 = vpow.pop %v2240
        %v2242 = vmul.f32 %v2152, 1.442695
        %v2243 = vpow.pop %v2242
        %v2244 = vmul.f32 %v2153, 1.442695
        %v2245 = vpow.pop %v2244
        %v2246 = vmul.f32 %v2154, 1.442695
        %v2247 = vpow.pop %v2246
        %v2248 = vmul.f32 %v2155, 1.442695
        %v2249 = vpow.pop %v2248
        %v2250 = vmul.f32 %v2156, 1.442695
        %v2251 = vpow.pop %v2250
        %v2252 = vmul.f32 %v2157, 1.442695
        %v2253 = vpow.pop %v2252
        %v2254 = vmul.f32 %v2158, 1.442695
        %v2255 = vpow.pop %v2254
        %v2256 = vmul.f32 %v2159, 1.442695
        %v2257 = vpow.pop %v2256
        %v2258 = vmul.f32 %v2160, 1.442695
        %v2259 = vpow.pop %v2258
        %v2260 = vmul.f32 %v2161, 1.442695
        %v2261 = vpow.pop %v2260
        %v2262 = vmul.f32 %v2162, 1.442695
        %v2263 = vpow.pop %v2262
        %v2264 = vmul.f32 %v2163, 1.442695
        %v2265 = vpow.pop %v2264
        %v2266 = vmul.f32 %v2164, 1.442695
        %v2267 = vpow.pop %v2266
        %v2268 = vmul.f32 %v2165, 1.442695
        %v2269 = vpow.pop %v2268
        %v2270 = vmul.f32 %v2166, 1.442695
        %v2271 = vpow.pop %v2270
        %v2272 = vmul.f32 %v2167, 1.442695
        %v2273 = vpow.pop %v2272
        %v2274 = vmul.f32 %v2168, 1.442695
        %v2275 = vpow.pop %v2274
        %v2276 = vmul.f32 %v2169, 1.442695
        %v2277 = vpow.pop %v2276
        %v2278 = vmul.f32 %v2170, 1.442695
        %v2279 = vpow.pop %v2278
        %v2280 = vmul.f32 %v2171, 1.442695
        %v2281 = vpow.pop %v2280
        %v2282 = vmul.f32 %v2172, 1.442695
        %v2283 = vpow.pop %v2282
        %v2284 = vmul.f32 %v2173, 1.442695
        %v2285 = vpow.pop %v2284
        %v2286 = vmul.f32 %v2174, 1.442695
        %v2287 = vpow.pop %v2286
        %v2288 = vmul.f32 %v2175, 1.442695
        %v2289 = vpow.pop %v2288
        %v2290 = vmul.f32 %v2176, 1.442695
        %v2291 = vpow.pop %v2290
        %v2292 = vmul.f32 %v2177, 1.442695
        %v2293 = vpow.pop %v2292
        %v2294 = vmul.f32 %v2178, 1.442695
        %v2295 = vpow.pop %v2294
        %v2296 = vmul.f32 %v2179, 1.442695
        %v2297 = vpow.pop %v2296
        %v2298 = vmul.f32 %v2180, 1.442695
        %v2299 = vpow.pop %v2298
        %v2300 = vmul.f32 %v2181, 1.442695
        %v2301 = vpow.pop %v2300
        %v2302 = vmul.f32 %v2182, 1.442695
        %v2303 = vpow.pop %v2302
        %v2304 = vmul.f32 %v2183, 1.442695
        %v2305 = vpow.pop %v2304
        %v2306 = vmul.f32 %v2184, 1.442695
        %v2307 = vpow.pop %v2306
        %v2308 = vmul.f32 %v2185, 1.442695
        %v2309 = vpow.pop %v2308
        %v2310 = vmul.f32 %v2186, 1.442695
        %v2311 = vpow.pop %v2310
        %v2312 = vmul.f32 %v2187, 1.442695
        %v2313 = vpow.pop %v2312
        %v2314 = vmul.f32 %v2188, 1.442695
        %v2315 = vpow.pop %v2314
        %v2316 = vmul.f32 %v2189, 1.442695
        %v2317 = vpow.pop %v2316
        %v2318 = vadd.f32 %v2191, 1.0
        %v2319 = vadd.f32 %v2193, 1.0
        %v2320 = vadd.f32 %v2195, 1.0
        %v2321 = vadd.f32 %v2197, 1.0
        %v2322 = vadd.f32 %v2199, 1.0
        %v2323 = vadd.f32 %v2201, 1.0
        %v2324 = vadd.f32 %v2203, 1.0
        %v2325 = vadd.f32 %v2205, 1.0
        %v2326 = vadd.f32 %v2207, 1.0
        %v2327 = vadd.f32 %v2209, 1.0
        %v2328 = vadd.f32 %v2211, 1.0
        %v2329 = vadd.f32 %v2213, 1.0
        %v2330 = vadd.f32 %v2215, 1.0
        %v2331 = vadd.f32 %v2217, 1.0
        %v2332 = vadd.f32 %v2219, 1.0
        %v2333 = vadd.f32 %v2221, 1.0
        %v2334 = vadd.f32 %v2223, 1.0
        %v2335 = vadd.f32 %v2225, 1.0
        %v2336 = vadd.f32 %v2227, 1.0
        %v2337 = vadd.f32 %v2229, 1.0
        %v2338 = vadd.f32 %v2231, 1.0
        %v2339 = vadd.f32 %v2233, 1.0
        %v2340 = vadd.f32 %v2235, 1.0
        %v2341 = vadd.f32 %v2237, 1.0
        %v2342 = vadd.f32 %v2239, 1.0
        %v2343 = vadd.f32 %v2241, 1.0
        %v2344 = vadd.f32 %v2243, 1.0
        %v2345 = vadd.f32 %v2245, 1.0
        %v2346 = vadd.f32 %v2247, 1.0
        %v2347 = vadd.f32 %v2249, 1.0
        %v2348 = vadd.f32 %v2251, 1.0
        %v2349 = vadd.f32 %v2253, 1.0
        %v2350 = vadd.f32 %v2255, 1.0
        %v2351 = vadd.f32 %v2257, 1.0
        %v2352 = vadd.f32 %v2259, 1.0
        %v2353 = vadd.f32 %v2261, 1.0
        %v2354 = vadd.f32 %v2263, 1.0
        %v2355 = vadd.f32 %v2265, 1.0
        %v2356 = vadd.f32 %v2267, 1.0
        %v2357 = vadd.f32 %v2269, 1.0
        %v2358 = vadd.f32 %v2271, 1.0
        %v2359 = vadd.f32 %v2273, 1.0
        %v2360 = vadd.f32 %v2275, 1.0
        %v2361 = vadd.f32 %v2277, 1.0
        %v2362 = vadd.f32 %v2279, 1.0
        %v2363 = vadd.f32 %v2281, 1.0
        %v2364 = vadd.f32 %v2283, 1.0
        %v2365 = vadd.f32 %v2285, 1.0
        %v2366 = vadd.f32 %v2287, 1.0
        %v2367 = vadd.f32 %v2289, 1.0
        %v2368 = vadd.f32 %v2291, 1.0
        %v2369 = vadd.f32 %v2293, 1.0
        %v2370 = vadd.f32 %v2295, 1.0
        %v2371 = vadd.f32 %v2297, 1.0
        %v2372 = vadd.f32 %v2299, 1.0
        %v2373 = vadd.f32 %v2301, 1.0
        %v2374 = vadd.f32 %v2303, 1.0
        %v2375 = vadd.f32 %v2305, 1.0
        %v2376 = vadd.f32 %v2307, 1.0
        %v2377 = vadd.f32 %v2309, 1.0
        %v2378 = vadd.f32 %v2311, 1.0
        %v2379 = vadd.f32 %v2313, 1.0
        %v2380 = vadd.f32 %v2315, 1.0
        %v2381 = vadd.f32 %v2317, 1.0
        %v2382 = vrcp.pop %v2318
        %v2383 = vmul.f32 1.0, %v2382
        %v2384 = vrcp.pop %v2319
        %v2385 = vmul.f32 1.0, %v2384
        %v2386 = vrcp.pop %v2320
        %v2387 = vmul.f32 1.0, %v2386
        %v2388 = vrcp.pop %v2321
        %v2389 = vmul.f32 1.0, %v2388
        %v2390 = vrcp.pop %v2322
        %v2391 = vmul.f32 1.0, %v2390
        %v2392 = vrcp.pop %v2323
        %v2393 = vmul.f32 1.0, %v2392
        %v2394 = vrcp.pop %v2324
        %v2395 = vmul.f32 1.0, %v2394
        %v2396 = vrcp.pop %v2325
        %v2397 = vmul.f32 1.0, %v2396
        %v2398 = vrcp.pop %v2326
        %v2399 = vmul.f32 1.0, %v2398
        %v2400 = vrcp.pop %v2327
        %v2401 = vmul.f32 1.0, %v2400
        %v2402 = vrcp.pop %v2328
        %v2403 = vmul.f32 1.0, %v2402
        %v2404 = vrcp.pop %v2329
        %v2405 = vmul.f32 1.0, %v2404
        %v2406 = vrcp.pop %v2330
        %v2407 = vmul.f32 1.0, %v2406
        %v2408 = vrcp.pop %v2331
        %v2409 = vmul.f32 1.0, %v2408
        %v2410 = vrcp.pop %v2332
        %v2411 = vmul.f32 1.0, %v2410
        %v2412 = vrcp.pop %v2333
        %v2413 = vmul.f32 1.0, %v2412
        %v2414 = vrcp.pop %v2334
        %v2415 = vmul.f32 1.0, %v2414
        %v2416 = vrcp.pop %v2335
        %v2417 = vmul.f32 1.0, %v2416
        %v2418 = vrcp.pop %v2336
        %v2419 = vmul.f32 1.0, %v2418
        %v2420 = vrcp.pop %v2337
        %v2421 = vmul.f32 1.0, %v2420
        %v2422 = vrcp.pop %v2338
        %v2423 = vmul.f32 1.0, %v2422
        %v2424 = vrcp.pop %v2339
        %v2425 = vmul.f32 1.0, %v2424
        %v2426 = vrcp.pop %v2340
        %v2427 = vmul.f32 1.0, %v2426
        %v2428 = vrcp.pop %v2341
        %v2429 = vmul.f32 1.0, %v2428
        %v2430 = vrcp.pop %v2342
        %v2431 = vmul.f32 1.0, %v2430
        %v2432 = vrcp.pop %v2343
        %v2433 = vmul.f32 1.0, %v2432
        %v2434 = vrcp.pop %v2344
        %v2435 = vmul.f32 1.0, %v2434
        %v2436 = vrcp.pop %v2345
        %v2437 = vmul.f32 1.0, %v2436
        %v2438 = vrcp.pop %v2346
        %v2439 = vmul.f32 1.0, %v2438
        %v2440 = vrcp.pop %v2347
        %v2441 = vmul.f32 1.0, %v2440
        %v2442 = vrcp.pop %v2348
        %v2443 = vmul.f32 1.0, %v2442
        %v2444 = vrcp.pop %v2349
        %v2445 = vmul.f32 1.0, %v2444
        %v2446 = vrcp.pop %v2350
        %v2447 = vmul.f32 1.0, %v2446
        %v2448 = vrcp.pop %v2351
        %v2449 = vmul.f32 1.0, %v2448
        %v2450 = vrcp.pop %v2352
        %v2451 = vmul.f32 1.0, %v2450
        %v2452 = vrcp.pop %v2353
        %v2453 = vmul.f32 1.0, %v2452
        %v2454 = vrcp.pop %v2354
        %v2455 = vmul.f32 1.0, %v2454
        %v2456 = vrcp.pop %v2355
        %v2457 = vmul.f32 1.0, %v2456
        %v2458 = vrcp.pop %v2356
        %v2459 = vmul.f32 1.0, %v2458
        %v2460 = vrcp.pop %v2357
        %v2461 = vmul.f32 1.0, %v2460
        %v2462 = vrcp.pop %v2358
        %v2463 = vmul.f32 1.0, %v2462
        %v2464 = vrcp.pop %v2359
        %v2465 = vmul.f32 1.0, %v2464
        %v2466 = vrcp.pop %v2360
        %v2467 = vmul.f32 1.0, %v2466
        %v2468 = vrcp.pop %v2361
        %v2469 = vmul.f32 1.0, %v2468
        %v2470 = vrcp.pop %v2362
        %v2471 = vmul.f32 1.0, %v2470
        %v2472 = vrcp.pop %v2363
        %v2473 = vmul.f32 1.0, %v2472
        %v2474 = vrcp.pop %v2364
        %v2475 = vmul.f32 1.0, %v2474
        %v2476 = vrcp.pop %v2365
        %v2477 = vmul.f32 1.0, %v2476
        %v2478 = vrcp.pop %v2366
        %v2479 = vmul.f32 1.0, %v2478
        %v2480 = vrcp.pop %v2367
        %v2481 = vmul.f32 1.0, %v2480
        %v2482 = vrcp.pop %v2368
        %v2483 = vmul.f32 1.0, %v2482
        %v2484 = vrcp.pop %v2369
        %v2485 = vmul.f32 1.0, %v2484
        %v2486 = vrcp.pop %v2370
        %v2487 = vmul.f32 1.0, %v2486
        %v2488 = vrcp.pop %v2371
        %v2489 = vmul.f32 1.0, %v2488
        %v2490 = vrcp.pop %v2372
        %v2491 = vmul.f32 1.0, %v2490
        %v2492 = vrcp.pop %v2373
        %v2493 = vmul.f32 1.0, %v2492
        %v2494 = vrcp.pop %v2374
        %v2495 = vmul.f32 1.0, %v2494
        %v2496 = vrcp.pop %v2375
        %v2497 = vmul.f32 1.0, %v2496
        %v2498 = vrcp.pop %v2376
        %v2499 = vmul.f32 1.0, %v2498
        %v2500 = vrcp.pop %v2377
        %v2501 = vmul.f32 1.0, %v2500
        %v2502 = vrcp.pop %v2378
        %v2503 = vmul.f32 1.0, %v2502
        %v2504 = vrcp.pop %v2379
        %v2505 = vmul.f32 1.0, %v2504
        %v2506 = vrcp.pop %v2380
        %v2507 = vmul.f32 1.0, %v2506
        %v2508 = vrcp.pop %v2381
        %v2509 = vmul.f32 1.0, %v2508
        %v2574 = vlaneseq
        %v2575 = vshrl.u32 %v2574, 7
        %v2576 = vsub.s32 0, %v2575
        %v2577 = vrot.slane %v2383, %v2576
        %v2578 = vlaneseq
        %v2579 = vshrl.u32 %v2578, 7
        %v2580 = vsub.s32 1, %v2579
        %v2581 = vrot.slane %v2383, %v2580
        %v2582 = vlaneseq
        %v2583 = vshrl.u32 %v2582, 7
        %v2584 = vsub.s32 2, %v2583
        %v2585 = vrot.slane %v2383, %v2584
        %v2586 = vlaneseq
        %v2587 = vshrl.u32 %v2586, 7
        %v2588 = vsub.s32 3, %v2587
        %v2589 = vrot.slane %v2383, %v2588
        %v2590 = vlaneseq
        %v2591 = vshrl.u32 %v2590, 7
        %v2592 = vsub.s32 4, %v2591
        %v2593 = vrot.slane %v2383, %v2592
        %v2594 = vlaneseq
        %v2595 = vshrl.u32 %v2594, 7
        %v2596 = vsub.s32 5, %v2595
        %v2597 = vrot.slane %v2383, %v2596
        %v2598 = vlaneseq
        %v2599 = vshrl.u32 %v2598, 7
        %v2600 = vsub.s32 6, %v2599
        %v2601 = vrot.slane %v2383, %v2600
        %v2602 = vlaneseq
        %v2603 = vshrl.u32 %v2602, 7
        %v2604 = vsub.s32 7, %v2603
        %v2605 = vrot.slane %v2383, %v2604
        %v2606 = vlaneseq
        %v2607 = vshrl.u32 %v2606, 7
        %v2608 = vsub.s32 0, %v2607
        %v2609 = vrot.slane %v2385, %v2608
        %v2610 = vlaneseq
        %v2611 = vshrl.u32 %v2610, 7
        %v2612 = vsub.s32 1, %v2611
        %v2613 = vrot.slane %v2385, %v2612
        %v2614 = vlaneseq
        %v2615 = vshrl.u32 %v2614, 7
        %v2616 = vsub.s32 2, %v2615
        %v2617 = vrot.slane %v2385, %v2616
        %v2618 = vlaneseq
        %v2619 = vshrl.u32 %v2618, 7
        %v2620 = vsub.s32 3, %v2619
        %v2621 = vrot.slane %v2385, %v2620
        %v2622 = vlaneseq
        %v2623 = vshrl.u32 %v2622, 7
        %v2624 = vsub.s32 4, %v2623
        %v2625 = vrot.slane %v2385, %v2624
        %v2626 = vlaneseq
        %v2627 = vshrl.u32 %v2626, 7
        %v2628 = vsub.s32 5, %v2627
        %v2629 = vrot.slane %v2385, %v2628
        %v2630 = vlaneseq
        %v2631 = vshrl.u32 %v2630, 7
        %v2632 = vsub.s32 6, %v2631
        %v2633 = vrot.slane %v2385, %v2632
        %v2634 = vlaneseq
        %v2635 = vshrl.u32 %v2634, 7
        %v2636 = vsub.s32 7, %v2635
        %v2637 = vrot.slane %v2385, %v2636
        %v2638 = vlaneseq
        %v2639 = vshrl.u32 %v2638, 7
        %v2640 = vsub.s32 0, %v2639
        %v2641 = vrot.slane %v2387, %v2640
        %v2642 = vlaneseq
        %v2643 = vshrl.u32 %v2642, 7
        %v2644 = vsub.s32 1, %v2643
        %v2645 = vrot.slane %v2387, %v2644
        %v2646 = vlaneseq
        %v2647 = vshrl.u32 %v2646, 7
        %v2648 = vsub.s32 2, %v2647
        %v2649 = vrot.slane %v2387, %v2648
        %v2650 = vlaneseq
        %v2651 = vshrl.u32 %v2650, 7
        %v2652 = vsub.s32 3, %v2651
        %v2653 = vrot.slane %v2387, %v2652
        %v2654 = vlaneseq
        %v2655 = vshrl.u32 %v2654, 7
        %v2656 = vsub.s32 4, %v2655
        %v2657 = vrot.slane %v2387, %v2656
        %v2658 = vlaneseq
        %v2659 = vshrl.u32 %v2658, 7
        %v2660 = vsub.s32 5, %v2659
        %v2661 = vrot.slane %v2387, %v2660
        %v2662 = vlaneseq
        %v2663 = vshrl.u32 %v2662, 7
        %v2664 = vsub.s32 6, %v2663
        %v2665 = vrot.slane %v2387, %v2664
        %v2666 = vlaneseq
        %v2667 = vshrl.u32 %v2666, 7
        %v2668 = vsub.s32 7, %v2667
        %v2669 = vrot.slane %v2387, %v2668
        %v2670 = vlaneseq
        %v2671 = vshrl.u32 %v2670, 7
        %v2672 = vsub.s32 0, %v2671
        %v2673 = vrot.slane %v2389, %v2672
        %v2674 = vlaneseq
        %v2675 = vshrl.u32 %v2674, 7
        %v2676 = vsub.s32 1, %v2675
        %v2677 = vrot.slane %v2389, %v2676
        %v2678 = vlaneseq
        %v2679 = vshrl.u32 %v2678, 7
        %v2680 = vsub.s32 2, %v2679
        %v2681 = vrot.slane %v2389, %v2680
        %v2682 = vlaneseq
        %v2683 = vshrl.u32 %v2682, 7
        %v2684 = vsub.s32 3, %v2683
        %v2685 = vrot.slane %v2389, %v2684
        %v2686 = vlaneseq
        %v2687 = vshrl.u32 %v2686, 7
        %v2688 = vsub.s32 4, %v2687
        %v2689 = vrot.slane %v2389, %v2688
        %v2690 = vlaneseq
        %v2691 = vshrl.u32 %v2690, 7
        %v2692 = vsub.s32 5, %v2691
        %v2693 = vrot.slane %v2389, %v2692
        %v2694 = vlaneseq
        %v2695 = vshrl.u32 %v2694, 7
        %v2696 = vsub.s32 6, %v2695
        %v2697 = vrot.slane %v2389, %v2696
        %v2698 = vlaneseq
        %v2699 = vshrl.u32 %v2698, 7
        %v2700 = vsub.s32 7, %v2699
        %v2701 = vrot.slane %v2389, %v2700
        %v2702 = vlaneseq
        %v2703 = vshrl.u32 %v2702, 7
        %v2704 = vsub.s32 0, %v2703
        %v2705 = vrot.slane %v2391, %v2704
        %v2706 = vlaneseq
        %v2707 = vshrl.u32 %v2706, 7
        %v2708 = vsub.s32 1, %v2707
        %v2709 = vrot.slane %v2391, %v2708
        %v2710 = vlaneseq
        %v2711 = vshrl.u32 %v2710, 7
        %v2712 = vsub.s32 2, %v2711
        %v2713 = vrot.slane %v2391, %v2712
        %v2714 = vlaneseq
        %v2715 = vshrl.u32 %v2714, 7
        %v2716 = vsub.s32 3, %v2715
        %v2717 = vrot.slane %v2391, %v2716
        %v2718 = vlaneseq
        %v2719 = vshrl.u32 %v2718, 7
        %v2720 = vsub.s32 4, %v2719
        %v2721 = vrot.slane %v2391, %v2720
        %v2722 = vlaneseq
        %v2723 = vshrl.u32 %v2722, 7
        %v2724 = vsub.s32 5, %v2723
        %v2725 = vrot.slane %v2391, %v2724
        %v2726 = vlaneseq
        %v2727 = vshrl.u32 %v2726, 7
        %v2728 = vsub.s32 6, %v2727
        %v2729 = vrot.slane %v2391, %v2728
        %v2730 = vlaneseq
        %v2731 = vshrl.u32 %v2730, 7
        %v2732 = vsub.s32 7, %v2731
        %v2733 = vrot.slane %v2391, %v2732
        %v2734 = vlaneseq
        %v2735 = vshrl.u32 %v2734, 7
        %v2736 = vsub.s32 0, %v2735
        %v2737 = vrot.slane %v2393, %v2736
        %v2738 = vlaneseq
        %v2739 = vshrl.u32 %v2738, 7
        %v2740 = vsub.s32 1, %v2739
        %v2741 = vrot.slane %v2393, %v2740
        %v2742 = vlaneseq
        %v2743 = vshrl.u32 %v2742, 7
        %v2744 = vsub.s32 2, %v2743
        %v2745 = vrot.slane %v2393, %v2744
        %v2746 = vlaneseq
        %v2747 = vshrl.u32 %v2746, 7
        %v2748 = vsub.s32 3, %v2747
        %v2749 = vrot.slane %v2393, %v2748
        %v2750 = vlaneseq
        %v2751 = vshrl.u32 %v2750, 7
        %v2752 = vsub.s32 4, %v2751
        %v2753 = vrot.slane %v2393, %v2752
        %v2754 = vlaneseq
        %v2755 = vshrl.u32 %v2754, 7
        %v2756 = vsub.s32 5, %v2755
        %v2757 = vrot.slane %v2393, %v2756
        %v2758 = vlaneseq
        %v2759 = vshrl.u32 %v2758, 7
        %v2760 = vsub.s32 6, %v2759
        %v2761 = vrot.slane %v2393, %v2760
        %v2762 = vlaneseq
        %v2763 = vshrl.u32 %v2762, 7
        %v2764 = vsub.s32 7, %v2763
        %v2765 = vrot.slane %v2393, %v2764
        %v2766 = vlaneseq
        %v2767 = vshrl.u32 %v2766, 7
        %v2768 = vsub.s32 0, %v2767
        %v2769 = vrot.slane %v2395, %v2768
        %v2770 = vlaneseq
        %v2771 = vshrl.u32 %v2770, 7
        %v2772 = vsub.s32 1, %v2771
        %v2773 = vrot.slane %v2395, %v2772
        %v2774 = vlaneseq
        %v2775 = vshrl.u32 %v2774, 7
        %v2776 = vsub.s32 2, %v2775
        %v2777 = vrot.slane %v2395, %v2776
        %v2778 = vlaneseq
        %v2779 = vshrl.u32 %v2778, 7
        %v2780 = vsub.s32 3, %v2779
        %v2781 = vrot.slane %v2395, %v2780
        %v2782 = vlaneseq
        %v2783 = vshrl.u32 %v2782, 7
        %v2784 = vsub.s32 4, %v2783
        %v2785 = vrot.slane %v2395, %v2784
        %v2786 = vlaneseq
        %v2787 = vshrl.u32 %v2786, 7
        %v2788 = vsub.s32 5, %v2787
        %v2789 = vrot.slane %v2395, %v2788
        %v2790 = vlaneseq
        %v2791 = vshrl.u32 %v2790, 7
        %v2792 = vsub.s32 6, %v2791
        %v2793 = vrot.slane %v2395, %v2792
        %v2794 = vlaneseq
        %v2795 = vshrl.u32 %v2794, 7
        %v2796 = vsub.s32 7, %v2795
        %v2797 = vrot.slane %v2395, %v2796
        %v2798 = vlaneseq
        %v2799 = vshrl.u32 %v2798, 7
        %v2800 = vsub.s32 0, %v2799
        %v2801 = vrot.slane %v2397, %v2800
        %v2802 = vlaneseq
        %v2803 = vshrl.u32 %v2802, 7
        %v2804 = vsub.s32 1, %v2803
        %v2805 = vrot.slane %v2397, %v2804
        %v2806 = vlaneseq
        %v2807 = vshrl.u32 %v2806, 7
        %v2808 = vsub.s32 2, %v2807
        %v2809 = vrot.slane %v2397, %v2808
        %v2810 = vlaneseq
        %v2811 = vshrl.u32 %v2810, 7
        %v2812 = vsub.s32 3, %v2811
        %v2813 = vrot.slane %v2397, %v2812
        %v2814 = vlaneseq
        %v2815 = vshrl.u32 %v2814, 7
        %v2816 = vsub.s32 4, %v2815
        %v2817 = vrot.slane %v2397, %v2816
        %v2818 = vlaneseq
        %v2819 = vshrl.u32 %v2818, 7
        %v2820 = vsub.s32 5, %v2819
        %v2821 = vrot.slane %v2397, %v2820
        %v2822 = vlaneseq
        %v2823 = vshrl.u32 %v2822, 7
        %v2824 = vsub.s32 6, %v2823
        %v2825 = vrot.slane %v2397, %v2824
        %v2826 = vlaneseq
        %v2827 = vshrl.u32 %v2826, 7
        %v2828 = vsub.s32 7, %v2827
        %v2829 = vrot.slane %v2397, %v2828
        %v2830 = vlaneseq
        %v2831 = vshrl.u32 %v2830, 7
        %v2832 = vsub.s32 0, %v2831
        %v2833 = vrot.slane %v2399, %v2832
        %v2834 = vlaneseq
        %v2835 = vshrl.u32 %v2834, 7
        %v2836 = vsub.s32 1, %v2835
        %v2837 = vrot.slane %v2399, %v2836
        %v2838 = vlaneseq
        %v2839 = vshrl.u32 %v2838, 7
        %v2840 = vsub.s32 2, %v2839
        %v2841 = vrot.slane %v2399, %v2840
        %v2842 = vlaneseq
        %v2843 = vshrl.u32 %v2842, 7
        %v2844 = vsub.s32 3, %v2843
        %v2845 = vrot.slane %v2399, %v2844
        %v2846 = vlaneseq
        %v2847 = vshrl.u32 %v2846, 7
        %v2848 = vsub.s32 4, %v2847
        %v2849 = vrot.slane %v2399, %v2848
        %v2850 = vlaneseq
        %v2851 = vshrl.u32 %v2850, 7
        %v2852 = vsub.s32 5, %v2851
        %v2853 = vrot.slane %v2399, %v2852
        %v2854 = vlaneseq
        %v2855 = vshrl.u32 %v2854, 7
        %v2856 = vsub.s32 6, %v2855
        %v2857 = vrot.slane %v2399, %v2856
        %v2858 = vlaneseq
        %v2859 = vshrl.u32 %v2858, 7
        %v2860 = vsub.s32 7, %v2859
        %v2861 = vrot.slane %v2399, %v2860
        %v2862 = vlaneseq
        %v2863 = vshrl.u32 %v2862, 7
        %v2864 = vsub.s32 0, %v2863
        %v2865 = vrot.slane %v2401, %v2864
        %v2866 = vlaneseq
        %v2867 = vshrl.u32 %v2866, 7
        %v2868 = vsub.s32 1, %v2867
        %v2869 = vrot.slane %v2401, %v2868
        %v2870 = vlaneseq
        %v2871 = vshrl.u32 %v2870, 7
        %v2872 = vsub.s32 2, %v2871
        %v2873 = vrot.slane %v2401, %v2872
        %v2874 = vlaneseq
        %v2875 = vshrl.u32 %v2874, 7
        %v2876 = vsub.s32 3, %v2875
        %v2877 = vrot.slane %v2401, %v2876
        %v2878 = vlaneseq
        %v2879 = vshrl.u32 %v2878, 7
        %v2880 = vsub.s32 4, %v2879
        %v2881 = vrot.slane %v2401, %v2880
        %v2882 = vlaneseq
        %v2883 = vshrl.u32 %v2882, 7
        %v2884 = vsub.s32 5, %v2883
        %v2885 = vrot.slane %v2401, %v2884
        %v2886 = vlaneseq
        %v2887 = vshrl.u32 %v2886, 7
        %v2888 = vsub.s32 6, %v2887
        %v2889 = vrot.slane %v2401, %v2888
        %v2890 = vlaneseq
        %v2891 = vshrl.u32 %v2890, 7
        %v2892 = vsub.s32 7, %v2891
        %v2893 = vrot.slane %v2401, %v2892
        %v2894 = vlaneseq
        %v2895 = vshrl.u32 %v2894, 7
        %v2896 = vsub.s32 0, %v2895
        %v2897 = vrot.slane %v2403, %v2896
        %v2898 = vlaneseq
        %v2899 = vshrl.u32 %v2898, 7
        %v2900 = vsub.s32 1, %v2899
        %v2901 = vrot.slane %v2403, %v2900
        %v2902 = vlaneseq
        %v2903 = vshrl.u32 %v2902, 7
        %v2904 = vsub.s32 2, %v2903
        %v2905 = vrot.slane %v2403, %v2904
        %v2906 = vlaneseq
        %v2907 = vshrl.u32 %v2906, 7
        %v2908 = vsub.s32 3, %v2907
        %v2909 = vrot.slane %v2403, %v2908
        %v2910 = vlaneseq
        %v2911 = vshrl.u32 %v2910, 7
        %v2912 = vsub.s32 4, %v2911
        %v2913 = vrot.slane %v2403, %v2912
        %v2914 = vlaneseq
        %v2915 = vshrl.u32 %v2914, 7
        %v2916 = vsub.s32 5, %v2915
        %v2917 = vrot.slane %v2403, %v2916
        %v2918 = vlaneseq
        %v2919 = vshrl.u32 %v2918, 7
        %v2920 = vsub.s32 6, %v2919
        %v2921 = vrot.slane %v2403, %v2920
        %v2922 = vlaneseq
        %v2923 = vshrl.u32 %v2922, 7
        %v2924 = vsub.s32 7, %v2923
        %v2925 = vrot.slane %v2403, %v2924
        %v2926 = vlaneseq
        %v2927 = vshrl.u32 %v2926, 7
        %v2928 = vsub.s32 0, %v2927
        %v2929 = vrot.slane %v2405, %v2928
        %v2930 = vlaneseq
        %v2931 = vshrl.u32 %v2930, 7
        %v2932 = vsub.s32 1, %v2931
        %v2933 = vrot.slane %v2405, %v2932
        %v2934 = vlaneseq
        %v2935 = vshrl.u32 %v2934, 7
        %v2936 = vsub.s32 2, %v2935
        %v2937 = vrot.slane %v2405, %v2936
        %v2938 = vlaneseq
        %v2939 = vshrl.u32 %v2938, 7
        %v2940 = vsub.s32 3, %v2939
        %v2941 = vrot.slane %v2405, %v2940
        %v2942 = vlaneseq
        %v2943 = vshrl.u32 %v2942, 7
        %v2944 = vsub.s32 4, %v2943
        %v2945 = vrot.slane %v2405, %v2944
        %v2946 = vlaneseq
        %v2947 = vshrl.u32 %v2946, 7
        %v2948 = vsub.s32 5, %v2947
        %v2949 = vrot.slane %v2405, %v2948
        %v2950 = vlaneseq
        %v2951 = vshrl.u32 %v2950, 7
        %v2952 = vsub.s32 6, %v2951
        %v2953 = vrot.slane %v2405, %v2952
        %v2954 = vlaneseq
        %v2955 = vshrl.u32 %v2954, 7
        %v2956 = vsub.s32 7, %v2955
        %v2957 = vrot.slane %v2405, %v2956
        %v2958 = vlaneseq
        %v2959 = vshrl.u32 %v2958, 7
        %v2960 = vsub.s32 0, %v2959
        %v2961 = vrot.slane %v2407, %v2960
        %v2962 = vlaneseq
        %v2963 = vshrl.u32 %v2962, 7
        %v2964 = vsub.s32 1, %v2963
        %v2965 = vrot.slane %v2407, %v2964
        %v2966 = vlaneseq
        %v2967 = vshrl.u32 %v2966, 7
        %v2968 = vsub.s32 2, %v2967
        %v2969 = vrot.slane %v2407, %v2968
        %v2970 = vlaneseq
        %v2971 = vshrl.u32 %v2970, 7
        %v2972 = vsub.s32 3, %v2971
        %v2973 = vrot.slane %v2407, %v2972
        %v2974 = vlaneseq
        %v2975 = vshrl.u32 %v2974, 7
        %v2976 = vsub.s32 4, %v2975
        %v2977 = vrot.slane %v2407, %v2976
        %v2978 = vlaneseq
        %v2979 = vshrl.u32 %v2978, 7
        %v2980 = vsub.s32 5, %v2979
        %v2981 = vrot.slane %v2407, %v2980
        %v2982 = vlaneseq
        %v2983 = vshrl.u32 %v2982, 7
        %v2984 = vsub.s32 6, %v2983
        %v2985 = vrot.slane %v2407, %v2984
        %v2986 = vlaneseq
        %v2987 = vshrl.u32 %v2986, 7
        %v2988 = vsub.s32 7, %v2987
        %v2989 = vrot.slane %v2407, %v2988
        %v2990 = vlaneseq
        %v2991 = vshrl.u32 %v2990, 7
        %v2992 = vsub.s32 0, %v2991
        %v2993 = vrot.slane %v2409, %v2992
        %v2994 = vlaneseq
        %v2995 = vshrl.u32 %v2994, 7
        %v2996 = vsub.s32 1, %v2995
        %v2997 = vrot.slane %v2409, %v2996
        %v2998 = vlaneseq
        %v2999 = vshrl.u32 %v2998, 7
        %v3000 = vsub.s32 2, %v2999
        %v3001 = vrot.slane %v2409, %v3000
        %v3002 = vlaneseq
        %v3003 = vshrl.u32 %v3002, 7
        %v3004 = vsub.s32 3, %v3003
        %v3005 = vrot.slane %v2409, %v3004
        %v3006 = vlaneseq
        %v3007 = vshrl.u32 %v3006, 7
        %v3008 = vsub.s32 4, %v3007
        %v3009 = vrot.slane %v2409, %v3008
        %v3010 = vlaneseq
        %v3011 = vshrl.u32 %v3010, 7
        %v3012 = vsub.s32 5, %v3011
        %v3013 = vrot.slane %v2409, %v3012
        %v3014 = vlaneseq
        %v3015 = vshrl.u32 %v3014, 7
        %v3016 = vsub.s32 6, %v3015
        %v3017 = vrot.slane %v2409, %v3016
        %v3018 = vlaneseq
        %v3019 = vshrl.u32 %v3018, 7
        %v3020 = vsub.s32 7, %v3019
        %v3021 = vrot.slane %v2409, %v3020
        %v3022 = vlaneseq
        %v3023 = vshrl.u32 %v3022, 7
        %v3024 = vsub.s32 0, %v3023
        %v3025 = vrot.slane %v2411, %v3024
        %v3026 = vlaneseq
        %v3027 = vshrl.u32 %v3026, 7
        %v3028 = vsub.s32 1, %v3027
        %v3029 = vrot.slane %v2411, %v3028
        %v3030 = vlaneseq
        %v3031 = vshrl.u32 %v3030, 7
        %v3032 = vsub.s32 2, %v3031
        %v3033 = vrot.slane %v2411, %v3032
        %v3034 = vlaneseq
        %v3035 = vshrl.u32 %v3034, 7
        %v3036 = vsub.s32 3, %v3035
        %v3037 = vrot.slane %v2411, %v3036
        %v3038 = vlaneseq
        %v3039 = vshrl.u32 %v3038, 7
        %v3040 = vsub.s32 4, %v3039
        %v3041 = vrot.slane %v2411, %v3040
        %v3042 = vlaneseq
        %v3043 = vshrl.u32 %v3042, 7
        %v3044 = vsub.s32 5, %v3043
        %v3045 = vrot.slane %v2411, %v3044
        %v3046 = vlaneseq
        %v3047 = vshrl.u32 %v3046, 7
        %v3048 = vsub.s32 6, %v3047
        %v3049 = vrot.slane %v2411, %v3048
        %v3050 = vlaneseq
        %v3051 = vshrl.u32 %v3050, 7
        %v3052 = vsub.s32 7, %v3051
        %v3053 = vrot.slane %v2411, %v3052
        %v3054 = vlaneseq
        %v3055 = vshrl.u32 %v3054, 7
        %v3056 = vsub.s32 0, %v3055
        %v3057 = vrot.slane %v2413, %v3056
        %v3058 = vlaneseq
        %v3059 = vshrl.u32 %v3058, 7
        %v3060 = vsub.s32 1, %v3059
        %v3061 = vrot.slane %v2413, %v3060
        %v3062 = vlaneseq
        %v3063 = vshrl.u32 %v3062, 7
        %v3064 = vsub.s32 2, %v3063
        %v3065 = vrot.slane %v2413, %v3064
        %v3066 = vlaneseq
        %v3067 = vshrl.u32 %v3066, 7
        %v3068 = vsub.s32 3, %v3067
        %v3069 = vrot.slane %v2413, %v3068
        %v3070 = vlaneseq
        %v3071 = vshrl.u32 %v3070, 7
        %v3072 = vsub.s32 4, %v3071
        %v3073 = vrot.slane %v2413, %v3072
        %v3074 = vlaneseq
        %v3075 = vshrl.u32 %v3074, 7
        %v3076 = vsub.s32 5, %v3075
        %v3077 = vrot.slane %v2413, %v3076
        %v3078 = vlaneseq
        %v3079 = vshrl.u32 %v3078, 7
        %v3080 = vsub.s32 6, %v3079
        %v3081 = vrot.slane %v2413, %v3080
        %v3082 = vlaneseq
        %v3083 = vshrl.u32 %v3082, 7
        %v3084 = vsub.s32 7, %v3083
        %v3085 = vrot.slane %v2413, %v3084
        %v3086 = vlaneseq
        %v3087 = vshrl.u32 %v3086, 7
        %v3088 = vsub.s32 0, %v3087
        %v3089 = vrot.slane %v2415, %v3088
        %v3090 = vlaneseq
        %v3091 = vshrl.u32 %v3090, 7
        %v3092 = vsub.s32 1, %v3091
        %v3093 = vrot.slane %v2415, %v3092
        %v3094 = vlaneseq
        %v3095 = vshrl.u32 %v3094, 7
        %v3096 = vsub.s32 2, %v3095
        %v3097 = vrot.slane %v2415, %v3096
        %v3098 = vlaneseq
        %v3099 = vshrl.u32 %v3098, 7
        %v3100 = vsub.s32 3, %v3099
        %v3101 = vrot.slane %v2415, %v3100
        %v3102 = vlaneseq
        %v3103 = vshrl.u32 %v3102, 7
        %v3104 = vsub.s32 4, %v3103
        %v3105 = vrot.slane %v2415, %v3104
        %v3106 = vlaneseq
        %v3107 = vshrl.u32 %v3106, 7
        %v3108 = vsub.s32 5, %v3107
        %v3109 = vrot.slane %v2415, %v3108
        %v3110 = vlaneseq
        %v3111 = vshrl.u32 %v3110, 7
        %v3112 = vsub.s32 6, %v3111
        %v3113 = vrot.slane %v2415, %v3112
        %v3114 = vlaneseq
        %v3115 = vshrl.u32 %v3114, 7
        %v3116 = vsub.s32 7, %v3115
        %v3117 = vrot.slane %v2415, %v3116
        %v3118 = vlaneseq
        %v3119 = vshrl.u32 %v3118, 7
        %v3120 = vsub.s32 0, %v3119
        %v3121 = vrot.slane %v2417, %v3120
        %v3122 = vlaneseq
        %v3123 = vshrl.u32 %v3122, 7
        %v3124 = vsub.s32 1, %v3123
        %v3125 = vrot.slane %v2417, %v3124
        %v3126 = vlaneseq
        %v3127 = vshrl.u32 %v3126, 7
        %v3128 = vsub.s32 2, %v3127
        %v3129 = vrot.slane %v2417, %v3128
        %v3130 = vlaneseq
        %v3131 = vshrl.u32 %v3130, 7
        %v3132 = vsub.s32 3, %v3131
        %v3133 = vrot.slane %v2417, %v3132
        %v3134 = vlaneseq
        %v3135 = vshrl.u32 %v3134, 7
        %v3136 = vsub.s32 4, %v3135
        %v3137 = vrot.slane %v2417, %v3136
        %v3138 = vlaneseq
        %v3139 = vshrl.u32 %v3138, 7
        %v3140 = vsub.s32 5, %v3139
        %v3141 = vrot.slane %v2417, %v3140
        %v3142 = vlaneseq
        %v3143 = vshrl.u32 %v3142, 7
        %v3144 = vsub.s32 6, %v3143
        %v3145 = vrot.slane %v2417, %v3144
        %v3146 = vlaneseq
        %v3147 = vshrl.u32 %v3146, 7
        %v3148 = vsub.s32 7, %v3147
        %v3149 = vrot.slane %v2417, %v3148
        %v3150 = vlaneseq
        %v3151 = vshrl.u32 %v3150, 7
        %v3152 = vsub.s32 0, %v3151
        %v3153 = vrot.slane %v2419, %v3152
        %v3154 = vlaneseq
        %v3155 = vshrl.u32 %v3154, 7
        %v3156 = vsub.s32 1, %v3155
        %v3157 = vrot.slane %v2419, %v3156
        %v3158 = vlaneseq
        %v3159 = vshrl.u32 %v3158, 7
        %v3160 = vsub.s32 2, %v3159
        %v3161 = vrot.slane %v2419, %v3160
        %v3162 = vlaneseq
        %v3163 = vshrl.u32 %v3162, 7
        %v3164 = vsub.s32 3, %v3163
        %v3165 = vrot.slane %v2419, %v3164
        %v3166 = vlaneseq
        %v3167 = vshrl.u32 %v3166, 7
        %v3168 = vsub.s32 4, %v3167
        %v3169 = vrot.slane %v2419, %v3168
        %v3170 = vlaneseq
        %v3171 = vshrl.u32 %v3170, 7
        %v3172 = vsub.s32 5, %v3171
        %v3173 = vrot.slane %v2419, %v3172
        %v3174 = vlaneseq
        %v3175 = vshrl.u32 %v3174, 7
        %v3176 = vsub.s32 6, %v3175
        %v3177 = vrot.slane %v2419, %v3176
        %v3178 = vlaneseq
        %v3179 = vshrl.u32 %v3178, 7
        %v3180 = vsub.s32 7, %v3179
        %v3181 = vrot.slane %v2419, %v3180
        %v3182 = vlaneseq
        %v3183 = vshrl.u32 %v3182, 7
        %v3184 = vsub.s32 0, %v3183
        %v3185 = vrot.slane %v2421, %v3184
        %v3186 = vlaneseq
        %v3187 = vshrl.u32 %v3186, 7
        %v3188 = vsub.s32 1, %v3187
        %v3189 = vrot.slane %v2421, %v3188
        %v3190 = vlaneseq
        %v3191 = vshrl.u32 %v3190, 7
        %v3192 = vsub.s32 2, %v3191
        %v3193 = vrot.slane %v2421, %v3192
        %v3194 = vlaneseq
        %v3195 = vshrl.u32 %v3194, 7
        %v3196 = vsub.s32 3, %v3195
        %v3197 = vrot.slane %v2421, %v3196
        %v3198 = vlaneseq
        %v3199 = vshrl.u32 %v3198, 7
        %v3200 = vsub.s32 4, %v3199
        %v3201 = vrot.slane %v2421, %v3200
        %v3202 = vlaneseq
        %v3203 = vshrl.u32 %v3202, 7
        %v3204 = vsub.s32 5, %v3203
        %v3205 = vrot.slane %v2421, %v3204
        %v3206 = vlaneseq
        %v3207 = vshrl.u32 %v3206, 7
        %v3208 = vsub.s32 6, %v3207
        %v3209 = vrot.slane %v2421, %v3208
        %v3210 = vlaneseq
        %v3211 = vshrl.u32 %v3210, 7
        %v3212 = vsub.s32 7, %v3211
        %v3213 = vrot.slane %v2421, %v3212
        %v3214 = vlaneseq
        %v3215 = vshrl.u32 %v3214, 7
        %v3216 = vsub.s32 0, %v3215
        %v3217 = vrot.slane %v2423, %v3216
        %v3218 = vlaneseq
        %v3219 = vshrl.u32 %v3218, 7
        %v3220 = vsub.s32 1, %v3219
        %v3221 = vrot.slane %v2423, %v3220
        %v3222 = vlaneseq
        %v3223 = vshrl.u32 %v3222, 7
        %v3224 = vsub.s32 2, %v3223
        %v3225 = vrot.slane %v2423, %v3224
        %v3226 = vlaneseq
        %v3227 = vshrl.u32 %v3226, 7
        %v3228 = vsub.s32 3, %v3227
        %v3229 = vrot.slane %v2423, %v3228
        %v3230 = vlaneseq
        %v3231 = vshrl.u32 %v3230, 7
        %v3232 = vsub.s32 4, %v3231
        %v3233 = vrot.slane %v2423, %v3232
        %v3234 = vlaneseq
        %v3235 = vshrl.u32 %v3234, 7
        %v3236 = vsub.s32 5, %v3235
        %v3237 = vrot.slane %v2423, %v3236
        %v3238 = vlaneseq
        %v3239 = vshrl.u32 %v3238, 7
        %v3240 = vsub.s32 6, %v3239
        %v3241 = vrot.slane %v2423, %v3240
        %v3242 = vlaneseq
        %v3243 = vshrl.u32 %v3242, 7
        %v3244 = vsub.s32 7, %v3243
        %v3245 = vrot.slane %v2423, %v3244
        %v3246 = vlaneseq
        %v3247 = vshrl.u32 %v3246, 7
        %v3248 = vsub.s32 0, %v3247
        %v3249 = vrot.slane %v2425, %v3248
        %v3250 = vlaneseq
        %v3251 = vshrl.u32 %v3250, 7
        %v3252 = vsub.s32 1, %v3251
        %v3253 = vrot.slane %v2425, %v3252
        %v3254 = vlaneseq
        %v3255 = vshrl.u32 %v3254, 7
        %v3256 = vsub.s32 2, %v3255
        %v3257 = vrot.slane %v2425, %v3256
        %v3258 = vlaneseq
        %v3259 = vshrl.u32 %v3258, 7
        %v3260 = vsub.s32 3, %v3259
        %v3261 = vrot.slane %v2425, %v3260
        %v3262 = vlaneseq
        %v3263 = vshrl.u32 %v3262, 7
        %v3264 = vsub.s32 4, %v3263
        %v3265 = vrot.slane %v2425, %v3264
        %v3266 = vlaneseq
        %v3267 = vshrl.u32 %v3266, 7
        %v3268 = vsub.s32 5, %v3267
        %v3269 = vrot.slane %v2425, %v3268
        %v3270 = vlaneseq
        %v3271 = vshrl.u32 %v3270, 7
        %v3272 = vsub.s32 6, %v3271
        %v3273 = vrot.slane %v2425, %v3272
        %v3274 = vlaneseq
        %v3275 = vshrl.u32 %v3274, 7
        %v3276 = vsub.s32 7, %v3275
        %v3277 = vrot.slane %v2425, %v3276
        %v3278 = vlaneseq
        %v3279 = vshrl.u32 %v3278, 7
        %v3280 = vsub.s32 0, %v3279
        %v3281 = vrot.slane %v2427, %v3280
        %v3282 = vlaneseq
        %v3283 = vshrl.u32 %v3282, 7
        %v3284 = vsub.s32 1, %v3283
        %v3285 = vrot.slane %v2427, %v3284
        %v3286 = vlaneseq
        %v3287 = vshrl.u32 %v3286, 7
        %v3288 = vsub.s32 2, %v3287
        %v3289 = vrot.slane %v2427, %v3288
        %v3290 = vlaneseq
        %v3291 = vshrl.u32 %v3290, 7
        %v3292 = vsub.s32 3, %v3291
        %v3293 = vrot.slane %v2427, %v3292
        %v3294 = vlaneseq
        %v3295 = vshrl.u32 %v3294, 7
        %v3296 = vsub.s32 4, %v3295
        %v3297 = vrot.slane %v2427, %v3296
        %v3298 = vlaneseq
        %v3299 = vshrl.u32 %v3298, 7
        %v3300 = vsub.s32 5, %v3299
        %v3301 = vrot.slane %v2427, %v3300
        %v3302 = vlaneseq
        %v3303 = vshrl.u32 %v3302, 7
        %v3304 = vsub.s32 6, %v3303
        %v3305 = vrot.slane %v2427, %v3304
        %v3306 = vlaneseq
        %v3307 = vshrl.u32 %v3306, 7
        %v3308 = vsub.s32 7, %v3307
        %v3309 = vrot.slane %v2427, %v3308
        %v3310 = vlaneseq
        %v3311 = vshrl.u32 %v3310, 7
        %v3312 = vsub.s32 0, %v3311
        %v3313 = vrot.slane %v2429, %v3312
        %v3314 = vlaneseq
        %v3315 = vshrl.u32 %v3314, 7
        %v3316 = vsub.s32 1, %v3315
        %v3317 = vrot.slane %v2429, %v3316
        %v3318 = vlaneseq
        %v3319 = vshrl.u32 %v3318, 7
        %v3320 = vsub.s32 2, %v3319
        %v3321 = vrot.slane %v2429, %v3320
        %v3322 = vlaneseq
        %v3323 = vshrl.u32 %v3322, 7
        %v3324 = vsub.s32 3, %v3323
        %v3325 = vrot.slane %v2429, %v3324
        %v3326 = vlaneseq
        %v3327 = vshrl.u32 %v3326, 7
        %v3328 = vsub.s32 4, %v3327
        %v3329 = vrot.slane %v2429, %v3328
        %v3330 = vlaneseq
        %v3331 = vshrl.u32 %v3330, 7
        %v3332 = vsub.s32 5, %v3331
        %v3333 = vrot.slane %v2429, %v3332
        %v3334 = vlaneseq
        %v3335 = vshrl.u32 %v3334, 7
        %v3336 = vsub.s32 6, %v3335
        %v3337 = vrot.slane %v2429, %v3336
        %v3338 = vlaneseq
        %v3339 = vshrl.u32 %v3338, 7
        %v3340 = vsub.s32 7, %v3339
        %v3341 = vrot.slane %v2429, %v3340
        %v3342 = vlaneseq
        %v3343 = vshrl.u32 %v3342, 7
        %v3344 = vsub.s32 0, %v3343
        %v3345 = vrot.slane %v2431, %v3344
        %v3346 = vlaneseq
        %v3347 = vshrl.u32 %v3346, 7
        %v3348 = vsub.s32 1, %v3347
        %v3349 = vrot.slane %v2431, %v3348
        %v3350 = vlaneseq
        %v3351 = vshrl.u32 %v3350, 7
        %v3352 = vsub.s32 2, %v3351
        %v3353 = vrot.slane %v2431, %v3352
        %v3354 = vlaneseq
        %v3355 = vshrl.u32 %v3354, 7
        %v3356 = vsub.s32 3, %v3355
        %v3357 = vrot.slane %v2431, %v3356
        %v3358 = vlaneseq
        %v3359 = vshrl.u32 %v3358, 7
        %v3360 = vsub.s32 4, %v3359
        %v3361 = vrot.slane %v2431, %v3360
        %v3362 = vlaneseq
        %v3363 = vshrl.u32 %v3362, 7
        %v3364 = vsub.s32 5, %v3363
        %v3365 = vrot.slane %v2431, %v3364
        %v3366 = vlaneseq
        %v3367 = vshrl.u32 %v3366, 7
        %v3368 = vsub.s32 6, %v3367
        %v3369 = vrot.slane %v2431, %v3368
        %v3370 = vlaneseq
        %v3371 = vshrl.u32 %v3370, 7
        %v3372 = vsub.s32 7, %v3371
        %v3373 = vrot.slane %v2431, %v3372
        %v3374 = vlaneseq
        %v3375 = vshrl.u32 %v3374, 7
        %v3376 = vsub.s32 0, %v3375
        %v3377 = vrot.slane %v2433, %v3376
        %v3378 = vlaneseq
        %v3379 = vshrl.u32 %v3378, 7
        %v3380 = vsub.s32 1, %v3379
        %v3381 = vrot.slane %v2433, %v3380
        %v3382 = vlaneseq
        %v3383 = vshrl.u32 %v3382, 7
        %v3384 = vsub.s32 2, %v3383
        %v3385 = vrot.slane %v2433, %v3384
        %v3386 = vlaneseq
        %v3387 = vshrl.u32 %v3386, 7
        %v3388 = vsub.s32 3, %v3387
        %v3389 = vrot.slane %v2433, %v3388
        %v3390 = vlaneseq
        %v3391 = vshrl.u32 %v3390, 7
        %v3392 = vsub.s32 4, %v3391
        %v3393 = vrot.slane %v2433, %v3392
        %v3394 = vlaneseq
        %v3395 = vshrl.u32 %v3394, 7
        %v3396 = vsub.s32 5, %v3395
        %v3397 = vrot.slane %v2433, %v3396
        %v3398 = vlaneseq
        %v3399 = vshrl.u32 %v3398, 7
        %v3400 = vsub.s32 6, %v3399
        %v3401 = vrot.slane %v2433, %v3400
        %v3402 = vlaneseq
        %v3403 = vshrl.u32 %v3402, 7
        %v3404 = vsub.s32 7, %v3403
        %v3405 = vrot.slane %v2433, %v3404
        %v3406 = vlaneseq
        %v3407 = vshrl.u32 %v3406, 7
        %v3408 = vsub.s32 0, %v3407
        %v3409 = vrot.slane %v2435, %v3408
        %v3410 = vlaneseq
        %v3411 = vshrl.u32 %v3410, 7
        %v3412 = vsub.s32 1, %v3411
        %v3413 = vrot.slane %v2435, %v3412
        %v3414 = vlaneseq
        %v3415 = vshrl.u32 %v3414, 7
        %v3416 = vsub.s32 2, %v3415
        %v3417 = vrot.slane %v2435, %v3416
        %v3418 = vlaneseq
        %v3419 = vshrl.u32 %v3418, 7
        %v3420 = vsub.s32 3, %v3419
        %v3421 = vrot.slane %v2435, %v3420
        %v3422 = vlaneseq
        %v3423 = vshrl.u32 %v3422, 7
        %v3424 = vsub.s32 4, %v3423
        %v3425 = vrot.slane %v2435, %v3424
        %v3426 = vlaneseq
        %v3427 = vshrl.u32 %v3426, 7
        %v3428 = vsub.s32 5, %v3427
        %v3429 = vrot.slane %v2435, %v3428
        %v3430 = vlaneseq
        %v3431 = vshrl.u32 %v3430, 7
        %v3432 = vsub.s32 6, %v3431
        %v3433 = vrot.slane %v2435, %v3432
        %v3434 = vlaneseq
        %v3435 = vshrl.u32 %v3434, 7
        %v3436 = vsub.s32 7, %v3435
        %v3437 = vrot.slane %v2435, %v3436
        %v3438 = vlaneseq
        %v3439 = vshrl.u32 %v3438, 7
        %v3440 = vsub.s32 0, %v3439
        %v3441 = vrot.slane %v2437, %v3440
        %v3442 = vlaneseq
        %v3443 = vshrl.u32 %v3442, 7
        %v3444 = vsub.s32 1, %v3443
        %v3445 = vrot.slane %v2437, %v3444
        %v3446 = vlaneseq
        %v3447 = vshrl.u32 %v3446, 7
        %v3448 = vsub.s32 2, %v3447
        %v3449 = vrot.slane %v2437, %v3448
        %v3450 = vlaneseq
        %v3451 = vshrl.u32 %v3450, 7
        %v3452 = vsub.s32 3, %v3451
        %v3453 = vrot.slane %v2437, %v3452
        %v3454 = vlaneseq
        %v3455 = vshrl.u32 %v3454, 7
        %v3456 = vsub.s32 4, %v3455
        %v3457 = vrot.slane %v2437, %v3456
        %v3458 = vlaneseq
        %v3459 = vshrl.u32 %v3458, 7
        %v3460 = vsub.s32 5, %v3459
        %v3461 = vrot.slane %v2437, %v3460
        %v3462 = vlaneseq
        %v3463 = vshrl.u32 %v3462, 7
        %v3464 = vsub.s32 6, %v3463
        %v3465 = vrot.slane %v2437, %v3464
        %v3466 = vlaneseq
        %v3467 = vshrl.u32 %v3466, 7
        %v3468 = vsub.s32 7, %v3467
        %v3469 = vrot.slane %v2437, %v3468
        %v3470 = vlaneseq
        %v3471 = vshrl.u32 %v3470, 7
        %v3472 = vsub.s32 0, %v3471
        %v3473 = vrot.slane %v2439, %v3472
        %v3474 = vlaneseq
        %v3475 = vshrl.u32 %v3474, 7
        %v3476 = vsub.s32 1, %v3475
        %v3477 = vrot.slane %v2439, %v3476
        %v3478 = vlaneseq
        %v3479 = vshrl.u32 %v3478, 7
        %v3480 = vsub.s32 2, %v3479
        %v3481 = vrot.slane %v2439, %v3480
        %v3482 = vlaneseq
        %v3483 = vshrl.u32 %v3482, 7
        %v3484 = vsub.s32 3, %v3483
        %v3485 = vrot.slane %v2439, %v3484
        %v3486 = vlaneseq
        %v3487 = vshrl.u32 %v3486, 7
        %v3488 = vsub.s32 4, %v3487
        %v3489 = vrot.slane %v2439, %v3488
        %v3490 = vlaneseq
        %v3491 = vshrl.u32 %v3490, 7
        %v3492 = vsub.s32 5, %v3491
        %v3493 = vrot.slane %v2439, %v3492
        %v3494 = vlaneseq
        %v3495 = vshrl.u32 %v3494, 7
        %v3496 = vsub.s32 6, %v3495
        %v3497 = vrot.slane %v2439, %v3496
        %v3498 = vlaneseq
        %v3499 = vshrl.u32 %v3498, 7
        %v3500 = vsub.s32 7, %v3499
        %v3501 = vrot.slane %v2439, %v3500
        %v3502 = vlaneseq
        %v3503 = vshrl.u32 %v3502, 7
        %v3504 = vsub.s32 0, %v3503
        %v3505 = vrot.slane %v2441, %v3504
        %v3506 = vlaneseq
        %v3507 = vshrl.u32 %v3506, 7
        %v3508 = vsub.s32 1, %v3507
        %v3509 = vrot.slane %v2441, %v3508
        %v3510 = vlaneseq
        %v3511 = vshrl.u32 %v3510, 7
        %v3512 = vsub.s32 2, %v3511
        %v3513 = vrot.slane %v2441, %v3512
        %v3514 = vlaneseq
        %v3515 = vshrl.u32 %v3514, 7
        %v3516 = vsub.s32 3, %v3515
        %v3517 = vrot.slane %v2441, %v3516
        %v3518 = vlaneseq
        %v3519 = vshrl.u32 %v3518, 7
        %v3520 = vsub.s32 4, %v3519
        %v3521 = vrot.slane %v2441, %v3520
        %v3522 = vlaneseq
        %v3523 = vshrl.u32 %v3522, 7
        %v3524 = vsub.s32 5, %v3523
        %v3525 = vrot.slane %v2441, %v3524
        %v3526 = vlaneseq
        %v3527 = vshrl.u32 %v3526, 7
        %v3528 = vsub.s32 6, %v3527
        %v3529 = vrot.slane %v2441, %v3528
        %v3530 = vlaneseq
        %v3531 = vshrl.u32 %v3530, 7
        %v3532 = vsub.s32 7, %v3531
        %v3533 = vrot.slane %v2441, %v3532
        %v3534 = vlaneseq
        %v3535 = vshrl.u32 %v3534, 7
        %v3536 = vsub.s32 0, %v3535
        %v3537 = vrot.slane %v2443, %v3536
        %v3538 = vlaneseq
        %v3539 = vshrl.u32 %v3538, 7
        %v3540 = vsub.s32 1, %v3539
        %v3541 = vrot.slane %v2443, %v3540
        %v3542 = vlaneseq
        %v3543 = vshrl.u32 %v3542, 7
        %v3544 = vsub.s32 2, %v3543
        %v3545 = vrot.slane %v2443, %v3544
        %v3546 = vlaneseq
        %v3547 = vshrl.u32 %v3546, 7
        %v3548 = vsub.s32 3, %v3547
        %v3549 = vrot.slane %v2443, %v3548
        %v3550 = vlaneseq
        %v3551 = vshrl.u32 %v3550, 7
        %v3552 = vsub.s32 4, %v3551
        %v3553 = vrot.slane %v2443, %v3552
        %v3554 = vlaneseq
        %v3555 = vshrl.u32 %v3554, 7
        %v3556 = vsub.s32 5, %v3555
        %v3557 = vrot.slane %v2443, %v3556
        %v3558 = vlaneseq
        %v3559 = vshrl.u32 %v3558, 7
        %v3560 = vsub.s32 6, %v3559
        %v3561 = vrot.slane %v2443, %v3560
        %v3562 = vlaneseq
        %v3563 = vshrl.u32 %v3562, 7
        %v3564 = vsub.s32 7, %v3563
        %v3565 = vrot.slane %v2443, %v3564
        %v3566 = vlaneseq
        %v3567 = vshrl.u32 %v3566, 7
        %v3568 = vsub.s32 0, %v3567
        %v3569 = vrot.slane %v2445, %v3568
        %v3570 = vlaneseq
        %v3571 = vshrl.u32 %v3570, 7
        %v3572 = vsub.s32 1, %v3571
        %v3573 = vrot.slane %v2445, %v3572
        %v3574 = vlaneseq
        %v3575 = vshrl.u32 %v3574, 7
        %v3576 = vsub.s32 2, %v3575
        %v3577 = vrot.slane %v2445, %v3576
        %v3578 = vlaneseq
        %v3579 = vshrl.u32 %v3578, 7
        %v3580 = vsub.s32 3, %v3579
        %v3581 = vrot.slane %v2445, %v3580
        %v3582 = vlaneseq
        %v3583 = vshrl.u32 %v3582, 7
        %v3584 = vsub.s32 4, %v3583
        %v3585 = vrot.slane %v2445, %v3584
        %v3586 = vlaneseq
        %v3587 = vshrl.u32 %v3586, 7
        %v3588 = vsub.s32 5, %v3587
        %v3589 = vrot.slane %v2445, %v3588
        %v3590 = vlaneseq
        %v3591 = vshrl.u32 %v3590, 7
        %v3592 = vsub.s32 6, %v3591
        %v3593 = vrot.slane %v2445, %v3592
        %v3594 = vlaneseq
        %v3595 = vshrl.u32 %v3594, 7
        %v3596 = vsub.s32 7, %v3595
        %v3597 = vrot.slane %v2445, %v3596
        %v3598 = vlaneseq
        %v3599 = vshrl.u32 %v3598, 7
        %v3600 = vsub.s32 0, %v3599
        %v3601 = vrot.slane %v2447, %v3600
        %v3602 = vlaneseq
        %v3603 = vshrl.u32 %v3602, 7
        %v3604 = vsub.s32 1, %v3603
        %v3605 = vrot.slane %v2447, %v3604
        %v3606 = vlaneseq
        %v3607 = vshrl.u32 %v3606, 7
        %v3608 = vsub.s32 2, %v3607
        %v3609 = vrot.slane %v2447, %v3608
        %v3610 = vlaneseq
        %v3611 = vshrl.u32 %v3610, 7
        %v3612 = vsub.s32 3, %v3611
        %v3613 = vrot.slane %v2447, %v3612
        %v3614 = vlaneseq
        %v3615 = vshrl.u32 %v3614, 7
        %v3616 = vsub.s32 4, %v3615
        %v3617 = vrot.slane %v2447, %v3616
        %v3618 = vlaneseq
        %v3619 = vshrl.u32 %v3618, 7
        %v3620 = vsub.s32 5, %v3619
        %v3621 = vrot.slane %v2447, %v3620
        %v3622 = vlaneseq
        %v3623 = vshrl.u32 %v3622, 7
        %v3624 = vsub.s32 6, %v3623
        %v3625 = vrot.slane %v2447, %v3624
        %v3626 = vlaneseq
        %v3627 = vshrl.u32 %v3626, 7
        %v3628 = vsub.s32 7, %v3627
        %v3629 = vrot.slane %v2447, %v3628
        %v3630 = vlaneseq
        %v3631 = vshrl.u32 %v3630, 7
        %v3632 = vsub.s32 0, %v3631
        %v3633 = vrot.slane %v2449, %v3632
        %v3634 = vlaneseq
        %v3635 = vshrl.u32 %v3634, 7
        %v3636 = vsub.s32 1, %v3635
        %v3637 = vrot.slane %v2449, %v3636
        %v3638 = vlaneseq
        %v3639 = vshrl.u32 %v3638, 7
        %v3640 = vsub.s32 2, %v3639
        %v3641 = vrot.slane %v2449, %v3640
        %v3642 = vlaneseq
        %v3643 = vshrl.u32 %v3642, 7
        %v3644 = vsub.s32 3, %v3643
        %v3645 = vrot.slane %v2449, %v3644
        %v3646 = vlaneseq
        %v3647 = vshrl.u32 %v3646, 7
        %v3648 = vsub.s32 4, %v3647
        %v3649 = vrot.slane %v2449, %v3648
        %v3650 = vlaneseq
        %v3651 = vshrl.u32 %v3650, 7
        %v3652 = vsub.s32 5, %v3651
        %v3653 = vrot.slane %v2449, %v3652
        %v3654 = vlaneseq
        %v3655 = vshrl.u32 %v3654, 7
        %v3656 = vsub.s32 6, %v3655
        %v3657 = vrot.slane %v2449, %v3656
        %v3658 = vlaneseq
        %v3659 = vshrl.u32 %v3658, 7
        %v3660 = vsub.s32 7, %v3659
        %v3661 = vrot.slane %v2449, %v3660
        %v3662 = vlaneseq
        %v3663 = vshrl.u32 %v3662, 7
        %v3664 = vsub.s32 0, %v3663
        %v3665 = vrot.slane %v2451, %v3664
        %v3666 = vlaneseq
        %v3667 = vshrl.u32 %v3666, 7
        %v3668 = vsub.s32 1, %v3667
        %v3669 = vrot.slane %v2451, %v3668
        %v3670 = vlaneseq
        %v3671 = vshrl.u32 %v3670, 7
        %v3672 = vsub.s32 2, %v3671
        %v3673 = vrot.slane %v2451, %v3672
        %v3674 = vlaneseq
        %v3675 = vshrl.u32 %v3674, 7
        %v3676 = vsub.s32 3, %v3675
        %v3677 = vrot.slane %v2451, %v3676
        %v3678 = vlaneseq
        %v3679 = vshrl.u32 %v3678, 7
        %v3680 = vsub.s32 4, %v3679
        %v3681 = vrot.slane %v2451, %v3680
        %v3682 = vlaneseq
        %v3683 = vshrl.u32 %v3682, 7
        %v3684 = vsub.s32 5, %v3683
        %v3685 = vrot.slane %v2451, %v3684
        %v3686 = vlaneseq
        %v3687 = vshrl.u32 %v3686, 7
        %v3688 = vsub.s32 6, %v3687
        %v3689 = vrot.slane %v2451, %v3688
        %v3690 = vlaneseq
        %v3691 = vshrl.u32 %v3690, 7
        %v3692 = vsub.s32 7, %v3691
        %v3693 = vrot.slane %v2451, %v3692
        %v3694 = vlaneseq
        %v3695 = vshrl.u32 %v3694, 7
        %v3696 = vsub.s32 0, %v3695
        %v3697 = vrot.slane %v2453, %v3696
        %v3698 = vlaneseq
        %v3699 = vshrl.u32 %v3698, 7
        %v3700 = vsub.s32 1, %v3699
        %v3701 = vrot.slane %v2453, %v3700
        %v3702 = vlaneseq
        %v3703 = vshrl.u32 %v3702, 7
        %v3704 = vsub.s32 2, %v3703
        %v3705 = vrot.slane %v2453, %v3704
        %v3706 = vlaneseq
        %v3707 = vshrl.u32 %v3706, 7
        %v3708 = vsub.s32 3, %v3707
        %v3709 = vrot.slane %v2453, %v3708
        %v3710 = vlaneseq
        %v3711 = vshrl.u32 %v3710, 7
        %v3712 = vsub.s32 4, %v3711
        %v3713 = vrot.slane %v2453, %v3712
        %v3714 = vlaneseq
        %v3715 = vshrl.u32 %v3714, 7
        %v3716 = vsub.s32 5, %v3715
        %v3717 = vrot.slane %v2453, %v3716
        %v3718 = vlaneseq
        %v3719 = vshrl.u32 %v3718, 7
        %v3720 = vsub.s32 6, %v3719
        %v3721 = vrot.slane %v2453, %v3720
        %v3722 = vlaneseq
        %v3723 = vshrl.u32 %v3722, 7
        %v3724 = vsub.s32 7, %v3723
        %v3725 = vrot.slane %v2453, %v3724
        %v3726 = vlaneseq
        %v3727 = vshrl.u32 %v3726, 7
        %v3728 = vsub.s32 0, %v3727
        %v3729 = vrot.slane %v2455, %v3728
        %v3730 = vlaneseq
        %v3731 = vshrl.u32 %v3730, 7
        %v3732 = vsub.s32 1, %v3731
        %v3733 = vrot.slane %v2455, %v3732
        %v3734 = vlaneseq
        %v3735 = vshrl.u32 %v3734, 7
        %v3736 = vsub.s32 2, %v3735
        %v3737 = vrot.slane %v2455, %v3736
        %v3738 = vlaneseq
        %v3739 = vshrl.u32 %v3738, 7
        %v3740 = vsub.s32 3, %v3739
        %v3741 = vrot.slane %v2455, %v3740
        %v3742 = vlaneseq
        %v3743 = vshrl.u32 %v3742, 7
        %v3744 = vsub.s32 4, %v3743
        %v3745 = vrot.slane %v2455, %v3744
        %v3746 = vlaneseq
        %v3747 = vshrl.u32 %v3746, 7
        %v3748 = vsub.s32 5, %v3747
        %v3749 = vrot.slane %v2455, %v3748
        %v3750 = vlaneseq
        %v3751 = vshrl.u32 %v3750, 7
        %v3752 = vsub.s32 6, %v3751
        %v3753 = vrot.slane %v2455, %v3752
        %v3754 = vlaneseq
        %v3755 = vshrl.u32 %v3754, 7
        %v3756 = vsub.s32 7, %v3755
        %v3757 = vrot.slane %v2455, %v3756
        %v3758 = vlaneseq
        %v3759 = vshrl.u32 %v3758, 7
        %v3760 = vsub.s32 0, %v3759
        %v3761 = vrot.slane %v2457, %v3760
        %v3762 = vlaneseq
        %v3763 = vshrl.u32 %v3762, 7
        %v3764 = vsub.s32 1, %v3763
        %v3765 = vrot.slane %v2457, %v3764
        %v3766 = vlaneseq
        %v3767 = vshrl.u32 %v3766, 7
        %v3768 = vsub.s32 2, %v3767
        %v3769 = vrot.slane %v2457, %v3768
        %v3770 = vlaneseq
        %v3771 = vshrl.u32 %v3770, 7
        %v3772 = vsub.s32 3, %v3771
        %v3773 = vrot.slane %v2457, %v3772
        %v3774 = vlaneseq
        %v3775 = vshrl.u32 %v3774, 7
        %v3776 = vsub.s32 4, %v3775
        %v3777 = vrot.slane %v2457, %v3776
        %v3778 = vlaneseq
        %v3779 = vshrl.u32 %v3778, 7
        %v3780 = vsub.s32 5, %v3779
        %v3781 = vrot.slane %v2457, %v3780
        %v3782 = vlaneseq
        %v3783 = vshrl.u32 %v3782, 7
        %v3784 = vsub.s32 6, %v3783
        %v3785 = vrot.slane %v2457, %v3784
        %v3786 = vlaneseq
        %v3787 = vshrl.u32 %v3786, 7
        %v3788 = vsub.s32 7, %v3787
        %v3789 = vrot.slane %v2457, %v3788
        %v3790 = vlaneseq
        %v3791 = vshrl.u32 %v3790, 7
        %v3792 = vsub.s32 0, %v3791
        %v3793 = vrot.slane %v2459, %v3792
        %v3794 = vlaneseq
        %v3795 = vshrl.u32 %v3794, 7
        %v3796 = vsub.s32 1, %v3795
        %v3797 = vrot.slane %v2459, %v3796
        %v3798 = vlaneseq
        %v3799 = vshrl.u32 %v3798, 7
        %v3800 = vsub.s32 2, %v3799
        %v3801 = vrot.slane %v2459, %v3800
        %v3802 = vlaneseq
        %v3803 = vshrl.u32 %v3802, 7
        %v3804 = vsub.s32 3, %v3803
        %v3805 = vrot.slane %v2459, %v3804
        %v3806 = vlaneseq
        %v3807 = vshrl.u32 %v3806, 7
        %v3808 = vsub.s32 4, %v3807
        %v3809 = vrot.slane %v2459, %v3808
        %v3810 = vlaneseq
        %v3811 = vshrl.u32 %v3810, 7
        %v3812 = vsub.s32 5, %v3811
        %v3813 = vrot.slane %v2459, %v3812
        %v3814 = vlaneseq
        %v3815 = vshrl.u32 %v3814, 7
        %v3816 = vsub.s32 6, %v3815
        %v3817 = vrot.slane %v2459, %v3816
        %v3818 = vlaneseq
        %v3819 = vshrl.u32 %v3818, 7
        %v3820 = vsub.s32 7, %v3819
        %v3821 = vrot.slane %v2459, %v3820
        %v3822 = vlaneseq
        %v3823 = vshrl.u32 %v3822, 7
        %v3824 = vsub.s32 0, %v3823
        %v3825 = vrot.slane %v2461, %v3824
        %v3826 = vlaneseq
        %v3827 = vshrl.u32 %v3826, 7
        %v3828 = vsub.s32 1, %v3827
        %v3829 = vrot.slane %v2461, %v3828
        %v3830 = vlaneseq
        %v3831 = vshrl.u32 %v3830, 7
        %v3832 = vsub.s32 2, %v3831
        %v3833 = vrot.slane %v2461, %v3832
        %v3834 = vlaneseq
        %v3835 = vshrl.u32 %v3834, 7
        %v3836 = vsub.s32 3, %v3835
        %v3837 = vrot.slane %v2461, %v3836
        %v3838 = vlaneseq
        %v3839 = vshrl.u32 %v3838, 7
        %v3840 = vsub.s32 4, %v3839
        %v3841 = vrot.slane %v2461, %v3840
        %v3842 = vlaneseq
        %v3843 = vshrl.u32 %v3842, 7
        %v3844 = vsub.s32 5, %v3843
        %v3845 = vrot.slane %v2461, %v3844
        %v3846 = vlaneseq
        %v3847 = vshrl.u32 %v3846, 7
        %v3848 = vsub.s32 6, %v3847
        %v3849 = vrot.slane %v2461, %v3848
        %v3850 = vlaneseq
        %v3851 = vshrl.u32 %v3850, 7
        %v3852 = vsub.s32 7, %v3851
        %v3853 = vrot.slane %v2461, %v3852
        %v3854 = vlaneseq
        %v3855 = vshrl.u32 %v3854, 7
        %v3856 = vsub.s32 0, %v3855
        %v3857 = vrot.slane %v2463, %v3856
        %v3858 = vlaneseq
        %v3859 = vshrl.u32 %v3858, 7
        %v3860 = vsub.s32 1, %v3859
        %v3861 = vrot.slane %v2463, %v3860
        %v3862 = vlaneseq
        %v3863 = vshrl.u32 %v3862, 7
        %v3864 = vsub.s32 2, %v3863
        %v3865 = vrot.slane %v2463, %v3864
        %v3866 = vlaneseq
        %v3867 = vshrl.u32 %v3866, 7
        %v3868 = vsub.s32 3, %v3867
        %v3869 = vrot.slane %v2463, %v3868
        %v3870 = vlaneseq
        %v3871 = vshrl.u32 %v3870, 7
        %v3872 = vsub.s32 4, %v3871
        %v3873 = vrot.slane %v2463, %v3872
        %v3874 = vlaneseq
        %v3875 = vshrl.u32 %v3874, 7
        %v3876 = vsub.s32 5, %v3875
        %v3877 = vrot.slane %v2463, %v3876
        %v3878 = vlaneseq
        %v3879 = vshrl.u32 %v3878, 7
        %v3880 = vsub.s32 6, %v3879
        %v3881 = vrot.slane %v2463, %v3880
        %v3882 = vlaneseq
        %v3883 = vshrl.u32 %v3882, 7
        %v3884 = vsub.s32 7, %v3883
        %v3885 = vrot.slane %v2463, %v3884
        %v3886 = vlaneseq
        %v3887 = vshrl.u32 %v3886, 7
        %v3888 = vsub.s32 0, %v3887
        %v3889 = vrot.slane %v2465, %v3888
        %v3890 = vlaneseq
        %v3891 = vshrl.u32 %v3890, 7
        %v3892 = vsub.s32 1, %v3891
        %v3893 = vrot.slane %v2465, %v3892
        %v3894 = vlaneseq
        %v3895 = vshrl.u32 %v3894, 7
        %v3896 = vsub.s32 2, %v3895
        %v3897 = vrot.slane %v2465, %v3896
        %v3898 = vlaneseq
        %v3899 = vshrl.u32 %v3898, 7
        %v3900 = vsub.s32 3, %v3899
        %v3901 = vrot.slane %v2465, %v3900
        %v3902 = vlaneseq
        %v3903 = vshrl.u32 %v3902, 7
        %v3904 = vsub.s32 4, %v3903
        %v3905 = vrot.slane %v2465, %v3904
        %v3906 = vlaneseq
        %v3907 = vshrl.u32 %v3906, 7
        %v3908 = vsub.s32 5, %v3907
        %v3909 = vrot.slane %v2465, %v3908
        %v3910 = vlaneseq
        %v3911 = vshrl.u32 %v3910, 7
        %v3912 = vsub.s32 6, %v3911
        %v3913 = vrot.slane %v2465, %v3912
        %v3914 = vlaneseq
        %v3915 = vshrl.u32 %v3914, 7
        %v3916 = vsub.s32 7, %v3915
        %v3917 = vrot.slane %v2465, %v3916
        %v3918 = vlaneseq
        %v3919 = vshrl.u32 %v3918, 7
        %v3920 = vsub.s32 0, %v3919
        %v3921 = vrot.slane %v2467, %v3920
        %v3922 = vlaneseq
        %v3923 = vshrl.u32 %v3922, 7
        %v3924 = vsub.s32 1, %v3923
        %v3925 = vrot.slane %v2467, %v3924
        %v3926 = vlaneseq
        %v3927 = vshrl.u32 %v3926, 7
        %v3928 = vsub.s32 2, %v3927
        %v3929 = vrot.slane %v2467, %v3928
        %v3930 = vlaneseq
        %v3931 = vshrl.u32 %v3930, 7
        %v3932 = vsub.s32 3, %v3931
        %v3933 = vrot.slane %v2467, %v3932
        %v3934 = vlaneseq
        %v3935 = vshrl.u32 %v3934, 7
        %v3936 = vsub.s32 4, %v3935
        %v3937 = vrot.slane %v2467, %v3936
        %v3938 = vlaneseq
        %v3939 = vshrl.u32 %v3938, 7
        %v3940 = vsub.s32 5, %v3939
        %v3941 = vrot.slane %v2467, %v3940
        %v3942 = vlaneseq
        %v3943 = vshrl.u32 %v3942, 7
        %v3944 = vsub.s32 6, %v3943
        %v3945 = vrot.slane %v2467, %v3944
        %v3946 = vlaneseq
        %v3947 = vshrl.u32 %v3946, 7
        %v3948 = vsub.s32 7, %v3947
        %v3949 = vrot.slane %v2467, %v3948
        %v3950 = vlaneseq
        %v3951 = vshrl.u32 %v3950, 7
        %v3952 = vsub.s32 0, %v3951
        %v3953 = vrot.slane %v2469, %v3952
        %v3954 = vlaneseq
        %v3955 = vshrl.u32 %v3954, 7
        %v3956 = vsub.s32 1, %v3955
        %v3957 = vrot.slane %v2469, %v3956
        %v3958 = vlaneseq
        %v3959 = vshrl.u32 %v3958, 7
        %v3960 = vsub.s32 2, %v3959
        %v3961 = vrot.slane %v2469, %v3960
        %v3962 = vlaneseq
        %v3963 = vshrl.u32 %v3962, 7
        %v3964 = vsub.s32 3, %v3963
        %v3965 = vrot.slane %v2469, %v3964
        %v3966 = vlaneseq
        %v3967 = vshrl.u32 %v3966, 7
        %v3968 = vsub.s32 4, %v3967
        %v3969 = vrot.slane %v2469, %v3968
        %v3970 = vlaneseq
        %v3971 = vshrl.u32 %v3970, 7
        %v3972 = vsub.s32 5, %v3971
        %v3973 = vrot.slane %v2469, %v3972
        %v3974 = vlaneseq
        %v3975 = vshrl.u32 %v3974, 7
        %v3976 = vsub.s32 6, %v3975
        %v3977 = vrot.slane %v2469, %v3976
        %v3978 = vlaneseq
        %v3979 = vshrl.u32 %v3978, 7
        %v3980 = vsub.s32 7, %v3979
        %v3981 = vrot.slane %v2469, %v3980
        %v3982 = vlaneseq
        %v3983 = vshrl.u32 %v3982, 7
        %v3984 = vsub.s32 0, %v3983
        %v3985 = vrot.slane %v2471, %v3984
        %v3986 = vlaneseq
        %v3987 = vshrl.u32 %v3986, 7
        %v3988 = vsub.s32 1, %v3987
        %v3989 = vrot.slane %v2471, %v3988
        %v3990 = vlaneseq
        %v3991 = vshrl.u32 %v3990, 7
        %v3992 = vsub.s32 2, %v3991
        %v3993 = vrot.slane %v2471, %v3992
        %v3994 = vlaneseq
        %v3995 = vshrl.u32 %v3994, 7
        %v3996 = vsub.s32 3, %v3995
        %v3997 = vrot.slane %v2471, %v3996
        %v3998 = vlaneseq
        %v3999 = vshrl.u32 %v3998, 7
        %v4000 = vsub.s32 4, %v3999
        %v4001 = vrot.slane %v2471, %v4000
        %v4002 = vlaneseq
        %v4003 = vshrl.u32 %v4002, 7
        %v4004 = vsub.s32 5, %v4003
        %v4005 = vrot.slane %v2471, %v4004
        %v4006 = vlaneseq
        %v4007 = vshrl.u32 %v4006, 7
        %v4008 = vsub.s32 6, %v4007
        %v4009 = vrot.slane %v2471, %v4008
        %v4010 = vlaneseq
        %v4011 = vshrl.u32 %v4010, 7
        %v4012 = vsub.s32 7, %v4011
        %v4013 = vrot.slane %v2471, %v4012
        %v4014 = vlaneseq
        %v4015 = vshrl.u32 %v4014, 7
        %v4016 = vsub.s32 0, %v4015
        %v4017 = vrot.slane %v2473, %v4016
        %v4018 = vlaneseq
        %v4019 = vshrl.u32 %v4018, 7
        %v4020 = vsub.s32 1, %v4019
        %v4021 = vrot.slane %v2473, %v4020
        %v4022 = vlaneseq
        %v4023 = vshrl.u32 %v4022, 7
        %v4024 = vsub.s32 2, %v4023
        %v4025 = vrot.slane %v2473, %v4024
        %v4026 = vlaneseq
        %v4027 = vshrl.u32 %v4026, 7
        %v4028 = vsub.s32 3, %v4027
        %v4029 = vrot.slane %v2473, %v4028
        %v4030 = vlaneseq
        %v4031 = vshrl.u32 %v4030, 7
        %v4032 = vsub.s32 4, %v4031
        %v4033 = vrot.slane %v2473, %v4032
        %v4034 = vlaneseq
        %v4035 = vshrl.u32 %v4034, 7
        %v4036 = vsub.s32 5, %v4035
        %v4037 = vrot.slane %v2473, %v4036
        %v4038 = vlaneseq
        %v4039 = vshrl.u32 %v4038, 7
        %v4040 = vsub.s32 6, %v4039
        %v4041 = vrot.slane %v2473, %v4040
        %v4042 = vlaneseq
        %v4043 = vshrl.u32 %v4042, 7
        %v4044 = vsub.s32 7, %v4043
        %v4045 = vrot.slane %v2473, %v4044
        %v4046 = vlaneseq
        %v4047 = vshrl.u32 %v4046, 7
        %v4048 = vsub.s32 0, %v4047
        %v4049 = vrot.slane %v2475, %v4048
        %v4050 = vlaneseq
        %v4051 = vshrl.u32 %v4050, 7
        %v4052 = vsub.s32 1, %v4051
        %v4053 = vrot.slane %v2475, %v4052
        %v4054 = vlaneseq
        %v4055 = vshrl.u32 %v4054, 7
        %v4056 = vsub.s32 2, %v4055
        %v4057 = vrot.slane %v2475, %v4056
        %v4058 = vlaneseq
        %v4059 = vshrl.u32 %v4058, 7
        %v4060 = vsub.s32 3, %v4059
        %v4061 = vrot.slane %v2475, %v4060
        %v4062 = vlaneseq
        %v4063 = vshrl.u32 %v4062, 7
        %v4064 = vsub.s32 4, %v4063
        %v4065 = vrot.slane %v2475, %v4064
        %v4066 = vlaneseq
        %v4067 = vshrl.u32 %v4066, 7
        %v4068 = vsub.s32 5, %v4067
        %v4069 = vrot.slane %v2475, %v4068
        %v4070 = vlaneseq
        %v4071 = vshrl.u32 %v4070, 7
        %v4072 = vsub.s32 6, %v4071
        %v4073 = vrot.slane %v2475, %v4072
        %v4074 = vlaneseq
        %v4075 = vshrl.u32 %v4074, 7
        %v4076 = vsub.s32 7, %v4075
        %v4077 = vrot.slane %v2475, %v4076
        %v4078 = vlaneseq
        %v4079 = vshrl.u32 %v4078, 7
        %v4080 = vsub.s32 0, %v4079
        %v4081 = vrot.slane %v2477, %v4080
        %v4082 = vlaneseq
        %v4083 = vshrl.u32 %v4082, 7
        %v4084 = vsub.s32 1, %v4083
        %v4085 = vrot.slane %v2477, %v4084
        %v4086 = vlaneseq
        %v4087 = vshrl.u32 %v4086, 7
        %v4088 = vsub.s32 2, %v4087
        %v4089 = vrot.slane %v2477, %v4088
        %v4090 = vlaneseq
        %v4091 = vshrl.u32 %v4090, 7
        %v4092 = vsub.s32 3, %v4091
        %v4093 = vrot.slane %v2477, %v4092
        %v4094 = vlaneseq
        %v4095 = vshrl.u32 %v4094, 7
        %v4096 = vsub.s32 4, %v4095
        %v4097 = vrot.slane %v2477, %v4096
        %v4098 = vlaneseq
        %v4099 = vshrl.u32 %v4098, 7
        %v4100 = vsub.s32 5, %v4099
        %v4101 = vrot.slane %v2477, %v4100
        %v4102 = vlaneseq
        %v4103 = vshrl.u32 %v4102, 7
        %v4104 = vsub.s32 6, %v4103
        %v4105 = vrot.slane %v2477, %v4104
        %v4106 = vlaneseq
        %v4107 = vshrl.u32 %v4106, 7
        %v4108 = vsub.s32 7, %v4107
        %v4109 = vrot.slane %v2477, %v4108
        %v4110 = vlaneseq
        %v4111 = vshrl.u32 %v4110, 7
        %v4112 = vsub.s32 0, %v4111
        %v4113 = vrot.slane %v2479, %v4112
        %v4114 = vlaneseq
        %v4115 = vshrl.u32 %v4114, 7
        %v4116 = vsub.s32 1, %v4115
        %v4117 = vrot.slane %v2479, %v4116
        %v4118 = vlaneseq
        %v4119 = vshrl.u32 %v4118, 7
        %v4120 = vsub.s32 2, %v4119
        %v4121 = vrot.slane %v2479, %v4120
        %v4122 = vlaneseq
        %v4123 = vshrl.u32 %v4122, 7
        %v4124 = vsub.s32 3, %v4123
        %v4125 = vrot.slane %v2479, %v4124
        %v4126 = vlaneseq
        %v4127 = vshrl.u32 %v4126, 7
        %v4128 = vsub.s32 4, %v4127
        %v4129 = vrot.slane %v2479, %v4128
        %v4130 = vlaneseq
        %v4131 = vshrl.u32 %v4130, 7
        %v4132 = vsub.s32 5, %v4131
        %v4133 = vrot.slane %v2479, %v4132
        %v4134 = vlaneseq
        %v4135 = vshrl.u32 %v4134, 7
        %v4136 = vsub.s32 6, %v4135
        %v4137 = vrot.slane %v2479, %v4136
        %v4138 = vlaneseq
        %v4139 = vshrl.u32 %v4138, 7
        %v4140 = vsub.s32 7, %v4139
        %v4141 = vrot.slane %v2479, %v4140
        %v4142 = vlaneseq
        %v4143 = vshrl.u32 %v4142, 7
        %v4144 = vsub.s32 0, %v4143
        %v4145 = vrot.slane %v2481, %v4144
        %v4146 = vlaneseq
        %v4147 = vshrl.u32 %v4146, 7
        %v4148 = vsub.s32 1, %v4147
        %v4149 = vrot.slane %v2481, %v4148
        %v4150 = vlaneseq
        %v4151 = vshrl.u32 %v4150, 7
        %v4152 = vsub.s32 2, %v4151
        %v4153 = vrot.slane %v2481, %v4152
        %v4154 = vlaneseq
        %v4155 = vshrl.u32 %v4154, 7
        %v4156 = vsub.s32 3, %v4155
        %v4157 = vrot.slane %v2481, %v4156
        %v4158 = vlaneseq
        %v4159 = vshrl.u32 %v4158, 7
        %v4160 = vsub.s32 4, %v4159
        %v4161 = vrot.slane %v2481, %v4160
        %v4162 = vlaneseq
        %v4163 = vshrl.u32 %v4162, 7
        %v4164 = vsub.s32 5, %v4163
        %v4165 = vrot.slane %v2481, %v4164
        %v4166 = vlaneseq
        %v4167 = vshrl.u32 %v4166, 7
        %v4168 = vsub.s32 6, %v4167
        %v4169 = vrot.slane %v2481, %v4168
        %v4170 = vlaneseq
        %v4171 = vshrl.u32 %v4170, 7
        %v4172 = vsub.s32 7, %v4171
        %v4173 = vrot.slane %v2481, %v4172
        %v4174 = vlaneseq
        %v4175 = vshrl.u32 %v4174, 7
        %v4176 = vsub.s32 0, %v4175
        %v4177 = vrot.slane %v2483, %v4176
        %v4178 = vlaneseq
        %v4179 = vshrl.u32 %v4178, 7
        %v4180 = vsub.s32 1, %v4179
        %v4181 = vrot.slane %v2483, %v4180
        %v4182 = vlaneseq
        %v4183 = vshrl.u32 %v4182, 7
        %v4184 = vsub.s32 2, %v4183
        %v4185 = vrot.slane %v2483, %v4184
        %v4186 = vlaneseq
        %v4187 = vshrl.u32 %v4186, 7
        %v4188 = vsub.s32 3, %v4187
        %v4189 = vrot.slane %v2483, %v4188
        %v4190 = vlaneseq
        %v4191 = vshrl.u32 %v4190, 7
        %v4192 = vsub.s32 4, %v4191
        %v4193 = vrot.slane %v2483, %v4192
        %v4194 = vlaneseq
        %v4195 = vshrl.u32 %v4194, 7
        %v4196 = vsub.s32 5, %v4195
        %v4197 = vrot.slane %v2483, %v4196
        %v4198 = vlaneseq
        %v4199 = vshrl.u32 %v4198, 7
        %v4200 = vsub.s32 6, %v4199
        %v4201 = vrot.slane %v2483, %v4200
        %v4202 = vlaneseq
        %v4203 = vshrl.u32 %v4202, 7
        %v4204 = vsub.s32 7, %v4203
        %v4205 = vrot.slane %v2483, %v4204
        %v4206 = vlaneseq
        %v4207 = vshrl.u32 %v4206, 7
        %v4208 = vsub.s32 0, %v4207
        %v4209 = vrot.slane %v2485, %v4208
        %v4210 = vlaneseq
        %v4211 = vshrl.u32 %v4210, 7
        %v4212 = vsub.s32 1, %v4211
        %v4213 = vrot.slane %v2485, %v4212
        %v4214 = vlaneseq
        %v4215 = vshrl.u32 %v4214, 7
        %v4216 = vsub.s32 2, %v4215
        %v4217 = vrot.slane %v2485, %v4216
        %v4218 = vlaneseq
        %v4219 = vshrl.u32 %v4218, 7
        %v4220 = vsub.s32 3, %v4219
        %v4221 = vrot.slane %v2485, %v4220
        %v4222 = vlaneseq
        %v4223 = vshrl.u32 %v4222, 7
        %v4224 = vsub.s32 4, %v4223
        %v4225 = vrot.slane %v2485, %v4224
        %v4226 = vlaneseq
        %v4227 = vshrl.u32 %v4226, 7
        %v4228 = vsub.s32 5, %v4227
        %v4229 = vrot.slane %v2485, %v4228
        %v4230 = vlaneseq
        %v4231 = vshrl.u32 %v4230, 7
        %v4232 = vsub.s32 6, %v4231
        %v4233 = vrot.slane %v2485, %v4232
        %v4234 = vlaneseq
        %v4235 = vshrl.u32 %v4234, 7
        %v4236 = vsub.s32 7, %v4235
        %v4237 = vrot.slane %v2485, %v4236
        %v4238 = vlaneseq
        %v4239 = vshrl.u32 %v4238, 7
        %v4240 = vsub.s32 0, %v4239
        %v4241 = vrot.slane %v2487, %v4240
        %v4242 = vlaneseq
        %v4243 = vshrl.u32 %v4242, 7
        %v4244 = vsub.s32 1, %v4243
        %v4245 = vrot.slane %v2487, %v4244
        %v4246 = vlaneseq
        %v4247 = vshrl.u32 %v4246, 7
        %v4248 = vsub.s32 2, %v4247
        %v4249 = vrot.slane %v2487, %v4248
        %v4250 = vlaneseq
        %v4251 = vshrl.u32 %v4250, 7
        %v4252 = vsub.s32 3, %v4251
        %v4253 = vrot.slane %v2487, %v4252
        %v4254 = vlaneseq
        %v4255 = vshrl.u32 %v4254, 7
        %v4256 = vsub.s32 4, %v4255
        %v4257 = vrot.slane %v2487, %v4256
        %v4258 = vlaneseq
        %v4259 = vshrl.u32 %v4258, 7
        %v4260 = vsub.s32 5, %v4259
        %v4261 = vrot.slane %v2487, %v4260
        %v4262 = vlaneseq
        %v4263 = vshrl.u32 %v4262, 7
        %v4264 = vsub.s32 6, %v4263
        %v4265 = vrot.slane %v2487, %v4264
        %v4266 = vlaneseq
        %v4267 = vshrl.u32 %v4266, 7
        %v4268 = vsub.s32 7, %v4267
        %v4269 = vrot.slane %v2487, %v4268
        %v4270 = vlaneseq
        %v4271 = vshrl.u32 %v4270, 7
        %v4272 = vsub.s32 0, %v4271
        %v4273 = vrot.slane %v2489, %v4272
        %v4274 = vlaneseq
        %v4275 = vshrl.u32 %v4274, 7
        %v4276 = vsub.s32 1, %v4275
        %v4277 = vrot.slane %v2489, %v4276
        %v4278 = vlaneseq
        %v4279 = vshrl.u32 %v4278, 7
        %v4280 = vsub.s32 2, %v4279
        %v4281 = vrot.slane %v2489, %v4280
        %v4282 = vlaneseq
        %v4283 = vshrl.u32 %v4282, 7
        %v4284 = vsub.s32 3, %v4283
        %v4285 = vrot.slane %v2489, %v4284
        %v4286 = vlaneseq
        %v4287 = vshrl.u32 %v4286, 7
        %v4288 = vsub.s32 4, %v4287
        %v4289 = vrot.slane %v2489, %v4288
        %v4290 = vlaneseq
        %v4291 = vshrl.u32 %v4290, 7
        %v4292 = vsub.s32 5, %v4291
        %v4293 = vrot.slane %v2489, %v4292
        %v4294 = vlaneseq
        %v4295 = vshrl.u32 %v4294, 7
        %v4296 = vsub.s32 6, %v4295
        %v4297 = vrot.slane %v2489, %v4296
        %v4298 = vlaneseq
        %v4299 = vshrl.u32 %v4298, 7
        %v4300 = vsub.s32 7, %v4299
        %v4301 = vrot.slane %v2489, %v4300
        %v4302 = vlaneseq
        %v4303 = vshrl.u32 %v4302, 7
        %v4304 = vsub.s32 0, %v4303
        %v4305 = vrot.slane %v2491, %v4304
        %v4306 = vlaneseq
        %v4307 = vshrl.u32 %v4306, 7
        %v4308 = vsub.s32 1, %v4307
        %v4309 = vrot.slane %v2491, %v4308
        %v4310 = vlaneseq
        %v4311 = vshrl.u32 %v4310, 7
        %v4312 = vsub.s32 2, %v4311
        %v4313 = vrot.slane %v2491, %v4312
        %v4314 = vlaneseq
        %v4315 = vshrl.u32 %v4314, 7
        %v4316 = vsub.s32 3, %v4315
        %v4317 = vrot.slane %v2491, %v4316
        %v4318 = vlaneseq
        %v4319 = vshrl.u32 %v4318, 7
        %v4320 = vsub.s32 4, %v4319
        %v4321 = vrot.slane %v2491, %v4320
        %v4322 = vlaneseq
        %v4323 = vshrl.u32 %v4322, 7
        %v4324 = vsub.s32 5, %v4323
        %v4325 = vrot.slane %v2491, %v4324
        %v4326 = vlaneseq
        %v4327 = vshrl.u32 %v4326, 7
        %v4328 = vsub.s32 6, %v4327
        %v4329 = vrot.slane %v2491, %v4328
        %v4330 = vlaneseq
        %v4331 = vshrl.u32 %v4330, 7
        %v4332 = vsub.s32 7, %v4331
        %v4333 = vrot.slane %v2491, %v4332
        %v4334 = vlaneseq
        %v4335 = vshrl.u32 %v4334, 7
        %v4336 = vsub.s32 0, %v4335
        %v4337 = vrot.slane %v2493, %v4336
        %v4338 = vlaneseq
        %v4339 = vshrl.u32 %v4338, 7
        %v4340 = vsub.s32 1, %v4339
        %v4341 = vrot.slane %v2493, %v4340
        %v4342 = vlaneseq
        %v4343 = vshrl.u32 %v4342, 7
        %v4344 = vsub.s32 2, %v4343
        %v4345 = vrot.slane %v2493, %v4344
        %v4346 = vlaneseq
        %v4347 = vshrl.u32 %v4346, 7
        %v4348 = vsub.s32 3, %v4347
        %v4349 = vrot.slane %v2493, %v4348
        %v4350 = vlaneseq
        %v4351 = vshrl.u32 %v4350, 7
        %v4352 = vsub.s32 4, %v4351
        %v4353 = vrot.slane %v2493, %v4352
        %v4354 = vlaneseq
        %v4355 = vshrl.u32 %v4354, 7
        %v4356 = vsub.s32 5, %v4355
        %v4357 = vrot.slane %v2493, %v4356
        %v4358 = vlaneseq
        %v4359 = vshrl.u32 %v4358, 7
        %v4360 = vsub.s32 6, %v4359
        %v4361 = vrot.slane %v2493, %v4360
        %v4362 = vlaneseq
        %v4363 = vshrl.u32 %v4362, 7
        %v4364 = vsub.s32 7, %v4363
        %v4365 = vrot.slane %v2493, %v4364
        %v4366 = vlaneseq
        %v4367 = vshrl.u32 %v4366, 7
        %v4368 = vsub.s32 0, %v4367
        %v4369 = vrot.slane %v2495, %v4368
        %v4370 = vlaneseq
        %v4371 = vshrl.u32 %v4370, 7
        %v4372 = vsub.s32 1, %v4371
        %v4373 = vrot.slane %v2495, %v4372
        %v4374 = vlaneseq
        %v4375 = vshrl.u32 %v4374, 7
        %v4376 = vsub.s32 2, %v4375
        %v4377 = vrot.slane %v2495, %v4376
        %v4378 = vlaneseq
        %v4379 = vshrl.u32 %v4378, 7
        %v4380 = vsub.s32 3, %v4379
        %v4381 = vrot.slane %v2495, %v4380
        %v4382 = vlaneseq
        %v4383 = vshrl.u32 %v4382, 7
        %v4384 = vsub.s32 4, %v4383
        %v4385 = vrot.slane %v2495, %v4384
        %v4386 = vlaneseq
        %v4387 = vshrl.u32 %v4386, 7
        %v4388 = vsub.s32 5, %v4387
        %v4389 = vrot.slane %v2495, %v4388
        %v4390 = vlaneseq
        %v4391 = vshrl.u32 %v4390, 7
        %v4392 = vsub.s32 6, %v4391
        %v4393 = vrot.slane %v2495, %v4392
        %v4394 = vlaneseq
        %v4395 = vshrl.u32 %v4394, 7
        %v4396 = vsub.s32 7, %v4395
        %v4397 = vrot.slane %v2495, %v4396
        %v4398 = vlaneseq
        %v4399 = vshrl.u32 %v4398, 7
        %v4400 = vsub.s32 0, %v4399
        %v4401 = vrot.slane %v2497, %v4400
        %v4402 = vlaneseq
        %v4403 = vshrl.u32 %v4402, 7
        %v4404 = vsub.s32 1, %v4403
        %v4405 = vrot.slane %v2497, %v4404
        %v4406 = vlaneseq
        %v4407 = vshrl.u32 %v4406, 7
        %v4408 = vsub.s32 2, %v4407
        %v4409 = vrot.slane %v2497, %v4408
        %v4410 = vlaneseq
        %v4411 = vshrl.u32 %v4410, 7
        %v4412 = vsub.s32 3, %v4411
        %v4413 = vrot.slane %v2497, %v4412
        %v4414 = vlaneseq
        %v4415 = vshrl.u32 %v4414, 7
        %v4416 = vsub.s32 4, %v4415
        %v4417 = vrot.slane %v2497, %v4416
        %v4418 = vlaneseq
        %v4419 = vshrl.u32 %v4418, 7
        %v4420 = vsub.s32 5, %v4419
        %v4421 = vrot.slane %v2497, %v4420
        %v4422 = vlaneseq
        %v4423 = vshrl.u32 %v4422, 7
        %v4424 = vsub.s32 6, %v4423
        %v4425 = vrot.slane %v2497, %v4424
        %v4426 = vlaneseq
        %v4427 = vshrl.u32 %v4426, 7
        %v4428 = vsub.s32 7, %v4427
        %v4429 = vrot.slane %v2497, %v4428
        %v4430 = vlaneseq
        %v4431 = vshrl.u32 %v4430, 7
        %v4432 = vsub.s32 0, %v4431
        %v4433 = vrot.slane %v2499, %v4432
        %v4434 = vlaneseq
        %v4435 = vshrl.u32 %v4434, 7
        %v4436 = vsub.s32 1, %v4435
        %v4437 = vrot.slane %v2499, %v4436
        %v4438 = vlaneseq
        %v4439 = vshrl.u32 %v4438, 7
        %v4440 = vsub.s32 2, %v4439
        %v4441 = vrot.slane %v2499, %v4440
        %v4442 = vlaneseq
        %v4443 = vshrl.u32 %v4442, 7
        %v4444 = vsub.s32 3, %v4443
        %v4445 = vrot.slane %v2499, %v4444
        %v4446 = vlaneseq
        %v4447 = vshrl.u32 %v4446, 7
        %v4448 = vsub.s32 4, %v4447
        %v4449 = vrot.slane %v2499, %v4448
        %v4450 = vlaneseq
        %v4451 = vshrl.u32 %v4450, 7
        %v4452 = vsub.s32 5, %v4451
        %v4453 = vrot.slane %v2499, %v4452
        %v4454 = vlaneseq
        %v4455 = vshrl.u32 %v4454, 7
        %v4456 = vsub.s32 6, %v4455
        %v4457 = vrot.slane %v2499, %v4456
        %v4458 = vlaneseq
        %v4459 = vshrl.u32 %v4458, 7
        %v4460 = vsub.s32 7, %v4459
        %v4461 = vrot.slane %v2499, %v4460
        %v4462 = vlaneseq
        %v4463 = vshrl.u32 %v4462, 7
        %v4464 = vsub.s32 0, %v4463
        %v4465 = vrot.slane %v2501, %v4464
        %v4466 = vlaneseq
        %v4467 = vshrl.u32 %v4466, 7
        %v4468 = vsub.s32 1, %v4467
        %v4469 = vrot.slane %v2501, %v4468
        %v4470 = vlaneseq
        %v4471 = vshrl.u32 %v4470, 7
        %v4472 = vsub.s32 2, %v4471
        %v4473 = vrot.slane %v2501, %v4472
        %v4474 = vlaneseq
        %v4475 = vshrl.u32 %v4474, 7
        %v4476 = vsub.s32 3, %v4475
        %v4477 = vrot.slane %v2501, %v4476
        %v4478 = vlaneseq
        %v4479 = vshrl.u32 %v4478, 7
        %v4480 = vsub.s32 4, %v4479
        %v4481 = vrot.slane %v2501, %v4480
        %v4482 = vlaneseq
        %v4483 = vshrl.u32 %v4482, 7
        %v4484 = vsub.s32 5, %v4483
        %v4485 = vrot.slane %v2501, %v4484
        %v4486 = vlaneseq
        %v4487 = vshrl.u32 %v4486, 7
        %v4488 = vsub.s32 6, %v4487
        %v4489 = vrot.slane %v2501, %v4488
        %v4490 = vlaneseq
        %v4491 = vshrl.u32 %v4490, 7
        %v4492 = vsub.s32 7, %v4491
        %v4493 = vrot.slane %v2501, %v4492
        %v4494 = vlaneseq
        %v4495 = vshrl.u32 %v4494, 7
        %v4496 = vsub.s32 0, %v4495
        %v4497 = vrot.slane %v2503, %v4496
        %v4498 = vlaneseq
        %v4499 = vshrl.u32 %v4498, 7
        %v4500 = vsub.s32 1, %v4499
        %v4501 = vrot.slane %v2503, %v4500
        %v4502 = vlaneseq
        %v4503 = vshrl.u32 %v4502, 7
        %v4504 = vsub.s32 2, %v4503
        %v4505 = vrot.slane %v2503, %v4504
        %v4506 = vlaneseq
        %v4507 = vshrl.u32 %v4506, 7
        %v4508 = vsub.s32 3, %v4507
        %v4509 = vrot.slane %v2503, %v4508
        %v4510 = vlaneseq
        %v4511 = vshrl.u32 %v4510, 7
        %v4512 = vsub.s32 4, %v4511
        %v4513 = vrot.slane %v2503, %v4512
        %v4514 = vlaneseq
        %v4515 = vshrl.u32 %v4514, 7
        %v4516 = vsub.s32 5, %v4515
        %v4517 = vrot.slane %v2503, %v4516
        %v4518 = vlaneseq
        %v4519 = vshrl.u32 %v4518, 7
        %v4520 = vsub.s32 6, %v4519
        %v4521 = vrot.slane %v2503, %v4520
        %v4522 = vlaneseq
        %v4523 = vshrl.u32 %v4522, 7
        %v4524 = vsub.s32 7, %v4523
        %v4525 = vrot.slane %v2503, %v4524
        %v4526 = vlaneseq
        %v4527 = vshrl.u32 %v4526, 7
        %v4528 = vsub.s32 0, %v4527
        %v4529 = vrot.slane %v2505, %v4528
        %v4530 = vlaneseq
        %v4531 = vshrl.u32 %v4530, 7
        %v4532 = vsub.s32 1, %v4531
        %v4533 = vrot.slane %v2505, %v4532
        %v4534 = vlaneseq
        %v4535 = vshrl.u32 %v4534, 7
        %v4536 = vsub.s32 2, %v4535
        %v4537 = vrot.slane %v2505, %v4536
        %v4538 = vlaneseq
        %v4539 = vshrl.u32 %v4538, 7
        %v4540 = vsub.s32 3, %v4539
        %v4541 = vrot.slane %v2505, %v4540
        %v4542 = vlaneseq
        %v4543 = vshrl.u32 %v4542, 7
        %v4544 = vsub.s32 4, %v4543
        %v4545 = vrot.slane %v2505, %v4544
        %v4546 = vlaneseq
        %v4547 = vshrl.u32 %v4546, 7
        %v4548 = vsub.s32 5, %v4547
        %v4549 = vrot.slane %v2505, %v4548
        %v4550 = vlaneseq
        %v4551 = vshrl.u32 %v4550, 7
        %v4552 = vsub.s32 6, %v4551
        %v4553 = vrot.slane %v2505, %v4552
        %v4554 = vlaneseq
        %v4555 = vshrl.u32 %v4554, 7
        %v4556 = vsub.s32 7, %v4555
        %v4557 = vrot.slane %v2505, %v4556
        %v4558 = vlaneseq
        %v4559 = vshrl.u32 %v4558, 7
        %v4560 = vsub.s32 0, %v4559
        %v4561 = vrot.slane %v2507, %v4560
        %v4562 = vlaneseq
        %v4563 = vshrl.u32 %v4562, 7
        %v4564 = vsub.s32 1, %v4563
        %v4565 = vrot.slane %v2507, %v4564
        %v4566 = vlaneseq
        %v4567 = vshrl.u32 %v4566, 7
        %v4568 = vsub.s32 2, %v4567
        %v4569 = vrot.slane %v2507, %v4568
        %v4570 = vlaneseq
        %v4571 = vshrl.u32 %v4570, 7
        %v4572 = vsub.s32 3, %v4571
        %v4573 = vrot.slane %v2507, %v4572
        %v4574 = vlaneseq
        %v4575 = vshrl.u32 %v4574, 7
        %v4576 = vsub.s32 4, %v4575
        %v4577 = vrot.slane %v2507, %v4576
        %v4578 = vlaneseq
        %v4579 = vshrl.u32 %v4578, 7
        %v4580 = vsub.s32 5, %v4579
        %v4581 = vrot.slane %v2507, %v4580
        %v4582 = vlaneseq
        %v4583 = vshrl.u32 %v4582, 7
        %v4584 = vsub.s32 6, %v4583
        %v4585 = vrot.slane %v2507, %v4584
        %v4586 = vlaneseq
        %v4587 = vshrl.u32 %v4586, 7
        %v4588 = vsub.s32 7, %v4587
        %v4589 = vrot.slane %v2507, %v4588
        %v4590 = vlaneseq
        %v4591 = vshrl.u32 %v4590, 7
        %v4592 = vsub.s32 0, %v4591
        %v4593 = vrot.slane %v2509, %v4592
        %v4594 = vlaneseq
        %v4595 = vshrl.u32 %v4594, 7
        %v4596 = vsub.s32 1, %v4595
        %v4597 = vrot.slane %v2509, %v4596
        %v4598 = vlaneseq
        %v4599 = vshrl.u32 %v4598, 7
        %v4600 = vsub.s32 2, %v4599
        %v4601 = vrot.slane %v2509, %v4600
        %v4602 = vlaneseq
        %v4603 = vshrl.u32 %v4602, 7
        %v4604 = vsub.s32 3, %v4603
        %v4605 = vrot.slane %v2509, %v4604
        %v4606 = vlaneseq
        %v4607 = vshrl.u32 %v4606, 7
        %v4608 = vsub.s32 4, %v4607
        %v4609 = vrot.slane %v2509, %v4608
        %v4610 = vlaneseq
        %v4611 = vshrl.u32 %v4610, 7
        %v4612 = vsub.s32 5, %v4611
        %v4613 = vrot.slane %v2509, %v4612
        %v4614 = vlaneseq
        %v4615 = vshrl.u32 %v4614, 7
        %v4616 = vsub.s32 6, %v4615
        %v4617 = vrot.slane %v2509, %v4616
        %v4618 = vlaneseq
        %v4619 = vshrl.u32 %v4618, 7
        %v4620 = vsub.s32 7, %v4619
        %v4621 = vrot.slane %v2509, %v4620
        %v4622 = vcombine.low %v2577, %v2581
        %v4623 = vcombine.low %v2585, %v2589
        %v4624 = vcombine.low %v2593, %v2597
        %v4625 = vcombine.low %v2601, %v2605
        %v4627 = vunpack.c.l.s4 1966171168
        %v4628 = vunpack.c.0.s8 %v4627
        %v4629 = vlaneseq
        %v4630 = vshrl.u32 %v4629, 7
        %v4631 = vsub.s32 %v4628, %v4630
        %v4632 = vrot.slane %v4622, %v4631
        %v4634 = vunpack.c.l.s4 1966171168
        %v4635 = vunpack.c.0.s8 %v4634
        %v4636 = vlaneseq
        %v4637 = vshrl.u32 %v4636, 7
        %v4638 = vsub.s32 %v4635, %v4637
        %v4639 = vrot.slane %v4623, %v4638
        %v4641 = vunpack.c.l.s4 1966171168
        %v4642 = vunpack.c.0.s8 %v4641
        %v4643 = vlaneseq
        %v4644 = vshrl.u32 %v4643, 7
        %v4645 = vsub.s32 %v4642, %v4644
        %v4646 = vrot.slane %v4624, %v4645
        %v4648 = vunpack.c.l.s4 1966171168
        %v4649 = vunpack.c.0.s8 %v4648
        %v4650 = vlaneseq
        %v4651 = vshrl.u32 %v4650, 7
        %v4652 = vsub.s32 %v4649, %v4651
        %v4653 = vrot.slane %v4625, %v4652
        %v4654 = vcombine.low %v4632, %v4639
        %v4655 = vcombine.low %v4646, %v4653
        %v4657 = vunpack.c.l.s4 1966171168
        %v4658 = vunpack.c.0.s8 %v4657
        %v4659 = vlaneseq
        %v4660 = vshrl.u32 %v4659, 7
        %v4661 = vsub.s32 %v4658, %v4660
        %v4662 = vrot.slane %v4654, %v4661
        %v4664 = vunpack.c.l.s4 1966171168
        %v4665 = vunpack.c.0.s8 %v4664
        %v4666 = vlaneseq
        %v4667 = vshrl.u32 %v4666, 7
        %v4668 = vsub.s32 %v4665, %v4667
        %v4669 = vrot.slane %v4655, %v4668
        %v4670 = vcombine.low %v4662, %v4669
        %v4671 = vcombine.low %v2609, %v2613
        %v4672 = vcombine.low %v2617, %v2621
        %v4673 = vcombine.low %v2625, %v2629
        %v4674 = vcombine.low %v2633, %v2637
        %v4676 = vunpack.c.l.s4 1966171168
        %v4677 = vunpack.c.0.s8 %v4676
        %v4678 = vlaneseq
        %v4679 = vshrl.u32 %v4678, 7
        %v4680 = vsub.s32 %v4677, %v4679
        %v4681 = vrot.slane %v4671, %v4680
        %v4683 = vunpack.c.l.s4 1966171168
        %v4684 = vunpack.c.0.s8 %v4683
        %v4685 = vlaneseq
        %v4686 = vshrl.u32 %v4685, 7
        %v4687 = vsub.s32 %v4684, %v4686
        %v4688 = vrot.slane %v4672, %v4687
        %v4690 = vunpack.c.l.s4 1966171168
        %v4691 = vunpack.c.0.s8 %v4690
        %v4692 = vlaneseq
        %v4693 = vshrl.u32 %v4692, 7
        %v4694 = vsub.s32 %v4691, %v4693
        %v4695 = vrot.slane %v4673, %v4694
        %v4697 = vunpack.c.l.s4 1966171168
        %v4698 = vunpack.c.0.s8 %v4697
        %v4699 = vlaneseq
        %v4700 = vshrl.u32 %v4699, 7
        %v4701 = vsub.s32 %v4698, %v4700
        %v4702 = vrot.slane %v4674, %v4701
        %v4703 = vcombine.low %v4681, %v4688
        %v4704 = vcombine.low %v4695, %v4702
        %v4706 = vunpack.c.l.s4 1966171168
        %v4707 = vunpack.c.0.s8 %v4706
        %v4708 = vlaneseq
        %v4709 = vshrl.u32 %v4708, 7
        %v4710 = vsub.s32 %v4707, %v4709
        %v4711 = vrot.slane %v4703, %v4710
        %v4713 = vunpack.c.l.s4 1966171168
        %v4714 = vunpack.c.0.s8 %v4713
        %v4715 = vlaneseq
        %v4716 = vshrl.u32 %v4715, 7
        %v4717 = vsub.s32 %v4714, %v4716
        %v4718 = vrot.slane %v4704, %v4717
        %v4719 = vcombine.low %v4711, %v4718
        %v4720 = vcombine.low %v2641, %v2645
        %v4721 = vcombine.low %v2649, %v2653
        %v4722 = vcombine.low %v2657, %v2661
        %v4723 = vcombine.low %v2665, %v2669
        %v4725 = vunpack.c.l.s4 1966171168
        %v4726 = vunpack.c.0.s8 %v4725
        %v4727 = vlaneseq
        %v4728 = vshrl.u32 %v4727, 7
        %v4729 = vsub.s32 %v4726, %v4728
        %v4730 = vrot.slane %v4720, %v4729
        %v4732 = vunpack.c.l.s4 1966171168
        %v4733 = vunpack.c.0.s8 %v4732
        %v4734 = vlaneseq
        %v4735 = vshrl.u32 %v4734, 7
        %v4736 = vsub.s32 %v4733, %v4735
        %v4737 = vrot.slane %v4721, %v4736
        %v4739 = vunpack.c.l.s4 1966171168
        %v4740 = vunpack.c.0.s8 %v4739
        %v4741 = vlaneseq
        %v4742 = vshrl.u32 %v4741, 7
        %v4743 = vsub.s32 %v4740, %v4742
        %v4744 = vrot.slane %v4722, %v4743
        %v4746 = vunpack.c.l.s4 1966171168
        %v4747 = vunpack.c.0.s8 %v4746
        %v4748 = vlaneseq
        %v4749 = vshrl.u32 %v4748, 7
        %v4750 = vsub.s32 %v4747, %v4749
        %v4751 = vrot.slane %v4723, %v4750
        %v4752 = vcombine.low %v4730, %v4737
        %v4753 = vcombine.low %v4744, %v4751
        %v4755 = vunpack.c.l.s4 1966171168
        %v4756 = vunpack.c.0.s8 %v4755
        %v4757 = vlaneseq
        %v4758 = vshrl.u32 %v4757, 7
        %v4759 = vsub.s32 %v4756, %v4758
        %v4760 = vrot.slane %v4752, %v4759
        %v4762 = vunpack.c.l.s4 1966171168
        %v4763 = vunpack.c.0.s8 %v4762
        %v4764 = vlaneseq
        %v4765 = vshrl.u32 %v4764, 7
        %v4766 = vsub.s32 %v4763, %v4765
        %v4767 = vrot.slane %v4753, %v4766
        %v4768 = vcombine.low %v4760, %v4767
        %v4769 = vcombine.low %v2673, %v2677
        %v4770 = vcombine.low %v2681, %v2685
        %v4771 = vcombine.low %v2689, %v2693
        %v4772 = vcombine.low %v2697, %v2701
        %v4774 = vunpack.c.l.s4 1966171168
        %v4775 = vunpack.c.0.s8 %v4774
        %v4776 = vlaneseq
        %v4777 = vshrl.u32 %v4776, 7
        %v4778 = vsub.s32 %v4775, %v4777
        %v4779 = vrot.slane %v4769, %v4778
        %v4781 = vunpack.c.l.s4 1966171168
        %v4782 = vunpack.c.0.s8 %v4781
        %v4783 = vlaneseq
        %v4784 = vshrl.u32 %v4783, 7
        %v4785 = vsub.s32 %v4782, %v4784
        %v4786 = vrot.slane %v4770, %v4785
        %v4788 = vunpack.c.l.s4 1966171168
        %v4789 = vunpack.c.0.s8 %v4788
        %v4790 = vlaneseq
        %v4791 = vshrl.u32 %v4790, 7
        %v4792 = vsub.s32 %v4789, %v4791
        %v4793 = vrot.slane %v4771, %v4792
        %v4795 = vunpack.c.l.s4 1966171168
        %v4796 = vunpack.c.0.s8 %v4795
        %v4797 = vlaneseq
        %v4798 = vshrl.u32 %v4797, 7
        %v4799 = vsub.s32 %v4796, %v4798
        %v4800 = vrot.slane %v4772, %v4799
        %v4801 = vcombine.low %v4779, %v4786
        %v4802 = vcombine.low %v4793, %v4800
        %v4804 = vunpack.c.l.s4 1966171168
        %v4805 = vunpack.c.0.s8 %v4804
        %v4806 = vlaneseq
        %v4807 = vshrl.u32 %v4806, 7
        %v4808 = vsub.s32 %v4805, %v4807
        %v4809 = vrot.slane %v4801, %v4808
        %v4811 = vunpack.c.l.s4 1966171168
        %v4812 = vunpack.c.0.s8 %v4811
        %v4813 = vlaneseq
        %v4814 = vshrl.u32 %v4813, 7
        %v4815 = vsub.s32 %v4812, %v4814
        %v4816 = vrot.slane %v4802, %v4815
        %v4817 = vcombine.low %v4809, %v4816
        %v4818 = vcombine.low %v2705, %v2709
        %v4819 = vcombine.low %v2713, %v2717
        %v4820 = vcombine.low %v2721, %v2725
        %v4821 = vcombine.low %v2729, %v2733
        %v4823 = vunpack.c.l.s4 1966171168
        %v4824 = vunpack.c.0.s8 %v4823
        %v4825 = vlaneseq
        %v4826 = vshrl.u32 %v4825, 7
        %v4827 = vsub.s32 %v4824, %v4826
        %v4828 = vrot.slane %v4818, %v4827
        %v4830 = vunpack.c.l.s4 1966171168
        %v4831 = vunpack.c.0.s8 %v4830
        %v4832 = vlaneseq
        %v4833 = vshrl.u32 %v4832, 7
        %v4834 = vsub.s32 %v4831, %v4833
        %v4835 = vrot.slane %v4819, %v4834
        %v4837 = vunpack.c.l.s4 1966171168
        %v4838 = vunpack.c.0.s8 %v4837
        %v4839 = vlaneseq
        %v4840 = vshrl.u32 %v4839, 7
        %v4841 = vsub.s32 %v4838, %v4840
        %v4842 = vrot.slane %v4820, %v4841
        %v4844 = vunpack.c.l.s4 1966171168
        %v4845 = vunpack.c.0.s8 %v4844
        %v4846 = vlaneseq
        %v4847 = vshrl.u32 %v4846, 7
        %v4848 = vsub.s32 %v4845, %v4847
        %v4849 = vrot.slane %v4821, %v4848
        %v4850 = vcombine.low %v4828, %v4835
        %v4851 = vcombine.low %v4842, %v4849
        %v4853 = vunpack.c.l.s4 1966171168
        %v4854 = vunpack.c.0.s8 %v4853
        %v4855 = vlaneseq
        %v4856 = vshrl.u32 %v4855, 7
        %v4857 = vsub.s32 %v4854, %v4856
        %v4858 = vrot.slane %v4850, %v4857
        %v4860 = vunpack.c.l.s4 1966171168
        %v4861 = vunpack.c.0.s8 %v4860
        %v4862 = vlaneseq
        %v4863 = vshrl.u32 %v4862, 7
        %v4864 = vsub.s32 %v4861, %v4863
        %v4865 = vrot.slane %v4851, %v4864
        %v4866 = vcombine.low %v4858, %v4865
        %v4867 = vcombine.low %v2737, %v2741
        %v4868 = vcombine.low %v2745, %v2749
        %v4869 = vcombine.low %v2753, %v2757
        %v4870 = vcombine.low %v2761, %v2765
        %v4872 = vunpack.c.l.s4 1966171168
        %v4873 = vunpack.c.0.s8 %v4872
        %v4874 = vlaneseq
        %v4875 = vshrl.u32 %v4874, 7
        %v4876 = vsub.s32 %v4873, %v4875
        %v4877 = vrot.slane %v4867, %v4876
        %v4879 = vunpack.c.l.s4 1966171168
        %v4880 = vunpack.c.0.s8 %v4879
        %v4881 = vlaneseq
        %v4882 = vshrl.u32 %v4881, 7
        %v4883 = vsub.s32 %v4880, %v4882
        %v4884 = vrot.slane %v4868, %v4883
        %v4886 = vunpack.c.l.s4 1966171168
        %v4887 = vunpack.c.0.s8 %v4886
        %v4888 = vlaneseq
        %v4889 = vshrl.u32 %v4888, 7
        %v4890 = vsub.s32 %v4887, %v4889
        %v4891 = vrot.slane %v4869, %v4890
        %v4893 = vunpack.c.l.s4 1966171168
        %v4894 = vunpack.c.0.s8 %v4893
        %v4895 = vlaneseq
        %v4896 = vshrl.u32 %v4895, 7
        %v4897 = vsub.s32 %v4894, %v4896
        %v4898 = vrot.slane %v4870, %v4897
        %v4899 = vcombine.low %v4877, %v4884
        %v4900 = vcombine.low %v4891, %v4898
        %v4902 = vunpack.c.l.s4 1966171168
        %v4903 = vunpack.c.0.s8 %v4902
        %v4904 = vlaneseq
        %v4905 = vshrl.u32 %v4904, 7
        %v4906 = vsub.s32 %v4903, %v4905
        %v4907 = vrot.slane %v4899, %v4906
        %v4909 = vunpack.c.l.s4 1966171168
        %v4910 = vunpack.c.0.s8 %v4909
        %v4911 = vlaneseq
        %v4912 = vshrl.u32 %v4911, 7
        %v4913 = vsub.s32 %v4910, %v4912
        %v4914 = vrot.slane %v4900, %v4913
        %v4915 = vcombine.low %v4907, %v4914
        %v4916 = vcombine.low %v2769, %v2773
        %v4917 = vcombine.low %v2777, %v2781
        %v4918 = vcombine.low %v2785, %v2789
        %v4919 = vcombine.low %v2793, %v2797
        %v4921 = vunpack.c.l.s4 1966171168
        %v4922 = vunpack.c.0.s8 %v4921
        %v4923 = vlaneseq
        %v4924 = vshrl.u32 %v4923, 7
        %v4925 = vsub.s32 %v4922, %v4924
        %v4926 = vrot.slane %v4916, %v4925
        %v4928 = vunpack.c.l.s4 1966171168
        %v4929 = vunpack.c.0.s8 %v4928
        %v4930 = vlaneseq
        %v4931 = vshrl.u32 %v4930, 7
        %v4932 = vsub.s32 %v4929, %v4931
        %v4933 = vrot.slane %v4917, %v4932
        %v4935 = vunpack.c.l.s4 1966171168
        %v4936 = vunpack.c.0.s8 %v4935
        %v4937 = vlaneseq
        %v4938 = vshrl.u32 %v4937, 7
        %v4939 = vsub.s32 %v4936, %v4938
        %v4940 = vrot.slane %v4918, %v4939
        %v4942 = vunpack.c.l.s4 1966171168
        %v4943 = vunpack.c.0.s8 %v4942
        %v4944 = vlaneseq
        %v4945 = vshrl.u32 %v4944, 7
        %v4946 = vsub.s32 %v4943, %v4945
        %v4947 = vrot.slane %v4919, %v4946
        %v4948 = vcombine.low %v4926, %v4933
        %v4949 = vcombine.low %v4940, %v4947
        %v4951 = vunpack.c.l.s4 1966171168
        %v4952 = vunpack.c.0.s8 %v4951
        %v4953 = vlaneseq
        %v4954 = vshrl.u32 %v4953, 7
        %v4955 = vsub.s32 %v4952, %v4954
        %v4956 = vrot.slane %v4948, %v4955
        %v4958 = vunpack.c.l.s4 1966171168
        %v4959 = vunpack.c.0.s8 %v4958
        %v4960 = vlaneseq
        %v4961 = vshrl.u32 %v4960, 7
        %v4962 = vsub.s32 %v4959, %v4961
        %v4963 = vrot.slane %v4949, %v4962
        %v4964 = vcombine.low %v4956, %v4963
        %v4965 = vcombine.low %v2801, %v2805
        %v4966 = vcombine.low %v2809, %v2813
        %v4967 = vcombine.low %v2817, %v2821
        %v4968 = vcombine.low %v2825, %v2829
        %v4970 = vunpack.c.l.s4 1966171168
        %v4971 = vunpack.c.0.s8 %v4970
        %v4972 = vlaneseq
        %v4973 = vshrl.u32 %v4972, 7
        %v4974 = vsub.s32 %v4971, %v4973
        %v4975 = vrot.slane %v4965, %v4974
        %v4977 = vunpack.c.l.s4 1966171168
        %v4978 = vunpack.c.0.s8 %v4977
        %v4979 = vlaneseq
        %v4980 = vshrl.u32 %v4979, 7
        %v4981 = vsub.s32 %v4978, %v4980
        %v4982 = vrot.slane %v4966, %v4981
        %v4984 = vunpack.c.l.s4 1966171168
        %v4985 = vunpack.c.0.s8 %v4984
        %v4986 = vlaneseq
        %v4987 = vshrl.u32 %v4986, 7
        %v4988 = vsub.s32 %v4985, %v4987
        %v4989 = vrot.slane %v4967, %v4988
        %v4991 = vunpack.c.l.s4 1966171168
        %v4992 = vunpack.c.0.s8 %v4991
        %v4993 = vlaneseq
        %v4994 = vshrl.u32 %v4993, 7
        %v4995 = vsub.s32 %v4992, %v4994
        %v4996 = vrot.slane %v4968, %v4995
        %v4997 = vcombine.low %v4975, %v4982
        %v4998 = vcombine.low %v4989, %v4996
        %v5000 = vunpack.c.l.s4 1966171168
        %v5001 = vunpack.c.0.s8 %v5000
        %v5002 = vlaneseq
        %v5003 = vshrl.u32 %v5002, 7
        %v5004 = vsub.s32 %v5001, %v5003
        %v5005 = vrot.slane %v4997, %v5004
        %v5007 = vunpack.c.l.s4 1966171168
        %v5008 = vunpack.c.0.s8 %v5007
        %v5009 = vlaneseq
        %v5010 = vshrl.u32 %v5009, 7
        %v5011 = vsub.s32 %v5008, %v5010
        %v5012 = vrot.slane %v4998, %v5011
        %v5013 = vcombine.low %v5005, %v5012
        %v5014 = vcombine.low %v2833, %v2837
        %v5015 = vcombine.low %v2841, %v2845
        %v5016 = vcombine.low %v2849, %v2853
        %v5017 = vcombine.low %v2857, %v2861
        %v5019 = vunpack.c.l.s4 1966171168
        %v5020 = vunpack.c.0.s8 %v5019
        %v5021 = vlaneseq
        %v5022 = vshrl.u32 %v5021, 7
        %v5023 = vsub.s32 %v5020, %v5022
        %v5024 = vrot.slane %v5014, %v5023
        %v5026 = vunpack.c.l.s4 1966171168
        %v5027 = vunpack.c.0.s8 %v5026
        %v5028 = vlaneseq
        %v5029 = vshrl.u32 %v5028, 7
        %v5030 = vsub.s32 %v5027, %v5029
        %v5031 = vrot.slane %v5015, %v5030
        %v5033 = vunpack.c.l.s4 1966171168
        %v5034 = vunpack.c.0.s8 %v5033
        %v5035 = vlaneseq
        %v5036 = vshrl.u32 %v5035, 7
        %v5037 = vsub.s32 %v5034, %v5036
        %v5038 = vrot.slane %v5016, %v5037
        %v5040 = vunpack.c.l.s4 1966171168
        %v5041 = vunpack.c.0.s8 %v5040
        %v5042 = vlaneseq
        %v5043 = vshrl.u32 %v5042, 7
        %v5044 = vsub.s32 %v5041, %v5043
        %v5045 = vrot.slane %v5017, %v5044
        %v5046 = vcombine.low %v5024, %v5031
        %v5047 = vcombine.low %v5038, %v5045
        %v5049 = vunpack.c.l.s4 1966171168
        %v5050 = vunpack.c.0.s8 %v5049
        %v5051 = vlaneseq
        %v5052 = vshrl.u32 %v5051, 7
        %v5053 = vsub.s32 %v5050, %v5052
        %v5054 = vrot.slane %v5046, %v5053
        %v5056 = vunpack.c.l.s4 1966171168
        %v5057 = vunpack.c.0.s8 %v5056
        %v5058 = vlaneseq
        %v5059 = vshrl.u32 %v5058, 7
        %v5060 = vsub.s32 %v5057, %v5059
        %v5061 = vrot.slane %v5047, %v5060
        %v5062 = vcombine.low %v5054, %v5061
        %v5063 = vcombine.low %v2865, %v2869
        %v5064 = vcombine.low %v2873, %v2877
        %v5065 = vcombine.low %v2881, %v2885
        %v5066 = vcombine.low %v2889, %v2893
        %v5068 = vunpack.c.l.s4 1966171168
        %v5069 = vunpack.c.0.s8 %v5068
        %v5070 = vlaneseq
        %v5071 = vshrl.u32 %v5070, 7
        %v5072 = vsub.s32 %v5069, %v5071
        %v5073 = vrot.slane %v5063, %v5072
        %v5075 = vunpack.c.l.s4 1966171168
        %v5076 = vunpack.c.0.s8 %v5075
        %v5077 = vlaneseq
        %v5078 = vshrl.u32 %v5077, 7
        %v5079 = vsub.s32 %v5076, %v5078
        %v5080 = vrot.slane %v5064, %v5079
        %v5082 = vunpack.c.l.s4 1966171168
        %v5083 = vunpack.c.0.s8 %v5082
        %v5084 = vlaneseq
        %v5085 = vshrl.u32 %v5084, 7
        %v5086 = vsub.s32 %v5083, %v5085
        %v5087 = vrot.slane %v5065, %v5086
        %v5089 = vunpack.c.l.s4 1966171168
        %v5090 = vunpack.c.0.s8 %v5089
        %v5091 = vlaneseq
        %v5092 = vshrl.u32 %v5091, 7
        %v5093 = vsub.s32 %v5090, %v5092
        %v5094 = vrot.slane %v5066, %v5093
        %v5095 = vcombine.low %v5073, %v5080
        %v5096 = vcombine.low %v5087, %v5094
        %v5098 = vunpack.c.l.s4 1966171168
        %v5099 = vunpack.c.0.s8 %v5098
        %v5100 = vlaneseq
        %v5101 = vshrl.u32 %v5100, 7
        %v5102 = vsub.s32 %v5099, %v5101
        %v5103 = vrot.slane %v5095, %v5102
        %v5105 = vunpack.c.l.s4 1966171168
        %v5106 = vunpack.c.0.s8 %v5105
        %v5107 = vlaneseq
        %v5108 = vshrl.u32 %v5107, 7
        %v5109 = vsub.s32 %v5106, %v5108
        %v5110 = vrot.slane %v5096, %v5109
        %v5111 = vcombine.low %v5103, %v5110
        %v5112 = vcombine.low %v2897, %v2901
        %v5113 = vcombine.low %v2905, %v2909
        %v5114 = vcombine.low %v2913, %v2917
        %v5115 = vcombine.low %v2921, %v2925
        %v5117 = vunpack.c.l.s4 1966171168
        %v5118 = vunpack.c.0.s8 %v5117
        %v5119 = vlaneseq
        %v5120 = vshrl.u32 %v5119, 7
        %v5121 = vsub.s32 %v5118, %v5120
        %v5122 = vrot.slane %v5112, %v5121
        %v5124 = vunpack.c.l.s4 1966171168
        %v5125 = vunpack.c.0.s8 %v5124
        %v5126 = vlaneseq
        %v5127 = vshrl.u32 %v5126, 7
        %v5128 = vsub.s32 %v5125, %v5127
        %v5129 = vrot.slane %v5113, %v5128
        %v5131 = vunpack.c.l.s4 1966171168
        %v5132 = vunpack.c.0.s8 %v5131
        %v5133 = vlaneseq
        %v5134 = vshrl.u32 %v5133, 7
        %v5135 = vsub.s32 %v5132, %v5134
        %v5136 = vrot.slane %v5114, %v5135
        %v5138 = vunpack.c.l.s4 1966171168
        %v5139 = vunpack.c.0.s8 %v5138
        %v5140 = vlaneseq
        %v5141 = vshrl.u32 %v5140, 7
        %v5142 = vsub.s32 %v5139, %v5141
        %v5143 = vrot.slane %v5115, %v5142
        %v5144 = vcombine.low %v5122, %v5129
        %v5145 = vcombine.low %v5136, %v5143
        %v5147 = vunpack.c.l.s4 1966171168
        %v5148 = vunpack.c.0.s8 %v5147
        %v5149 = vlaneseq
        %v5150 = vshrl.u32 %v5149, 7
        %v5151 = vsub.s32 %v5148, %v5150
        %v5152 = vrot.slane %v5144, %v5151
        %v5154 = vunpack.c.l.s4 1966171168
        %v5155 = vunpack.c.0.s8 %v5154
        %v5156 = vlaneseq
        %v5157 = vshrl.u32 %v5156, 7
        %v5158 = vsub.s32 %v5155, %v5157
        %v5159 = vrot.slane %v5145, %v5158
        %v5160 = vcombine.low %v5152, %v5159
        %v5161 = vcombine.low %v2929, %v2933
        %v5162 = vcombine.low %v2937, %v2941
        %v5163 = vcombine.low %v2945, %v2949
        %v5164 = vcombine.low %v2953, %v2957
        %v5166 = vunpack.c.l.s4 1966171168
        %v5167 = vunpack.c.0.s8 %v5166
        %v5168 = vlaneseq
        %v5169 = vshrl.u32 %v5168, 7
        %v5170 = vsub.s32 %v5167, %v5169
        %v5171 = vrot.slane %v5161, %v5170
        %v5173 = vunpack.c.l.s4 1966171168
        %v5174 = vunpack.c.0.s8 %v5173
        %v5175 = vlaneseq
        %v5176 = vshrl.u32 %v5175, 7
        %v5177 = vsub.s32 %v5174, %v5176
        %v5178 = vrot.slane %v5162, %v5177
        %v5180 = vunpack.c.l.s4 1966171168
        %v5181 = vunpack.c.0.s8 %v5180
        %v5182 = vlaneseq
        %v5183 = vshrl.u32 %v5182, 7
        %v5184 = vsub.s32 %v5181, %v5183
        %v5185 = vrot.slane %v5163, %v5184
        %v5187 = vunpack.c.l.s4 1966171168
        %v5188 = vunpack.c.0.s8 %v5187
        %v5189 = vlaneseq
        %v5190 = vshrl.u32 %v5189, 7
        %v5191 = vsub.s32 %v5188, %v5190
        %v5192 = vrot.slane %v5164, %v5191
        %v5193 = vcombine.low %v5171, %v5178
        %v5194 = vcombine.low %v5185, %v5192
        %v5196 = vunpack.c.l.s4 1966171168
        %v5197 = vunpack.c.0.s8 %v5196
        %v5198 = vlaneseq
        %v5199 = vshrl.u32 %v5198, 7
        %v5200 = vsub.s32 %v5197, %v5199
        %v5201 = vrot.slane %v5193, %v5200
        %v5203 = vunpack.c.l.s4 1966171168
        %v5204 = vunpack.c.0.s8 %v5203
        %v5205 = vlaneseq
        %v5206 = vshrl.u32 %v5205, 7
        %v5207 = vsub.s32 %v5204, %v5206
        %v5208 = vrot.slane %v5194, %v5207
        %v5209 = vcombine.low %v5201, %v5208
        %v5210 = vcombine.low %v2961, %v2965
        %v5211 = vcombine.low %v2969, %v2973
        %v5212 = vcombine.low %v2977, %v2981
        %v5213 = vcombine.low %v2985, %v2989
        %v5215 = vunpack.c.l.s4 1966171168
        %v5216 = vunpack.c.0.s8 %v5215
        %v5217 = vlaneseq
        %v5218 = vshrl.u32 %v5217, 7
        %v5219 = vsub.s32 %v5216, %v5218
        %v5220 = vrot.slane %v5210, %v5219
        %v5222 = vunpack.c.l.s4 1966171168
        %v5223 = vunpack.c.0.s8 %v5222
        %v5224 = vlaneseq
        %v5225 = vshrl.u32 %v5224, 7
        %v5226 = vsub.s32 %v5223, %v5225
        %v5227 = vrot.slane %v5211, %v5226
        %v5229 = vunpack.c.l.s4 1966171168
        %v5230 = vunpack.c.0.s8 %v5229
        %v5231 = vlaneseq
        %v5232 = vshrl.u32 %v5231, 7
        %v5233 = vsub.s32 %v5230, %v5232
        %v5234 = vrot.slane %v5212, %v5233
        %v5236 = vunpack.c.l.s4 1966171168
        %v5237 = vunpack.c.0.s8 %v5236
        %v5238 = vlaneseq
        %v5239 = vshrl.u32 %v5238, 7
        %v5240 = vsub.s32 %v5237, %v5239
        %v5241 = vrot.slane %v5213, %v5240
        %v5242 = vcombine.low %v5220, %v5227
        %v5243 = vcombine.low %v5234, %v5241
        %v5245 = vunpack.c.l.s4 1966171168
        %v5246 = vunpack.c.0.s8 %v5245
        %v5247 = vlaneseq
        %v5248 = vshrl.u32 %v5247, 7
        %v5249 = vsub.s32 %v5246, %v5248
        %v5250 = vrot.slane %v5242, %v5249
        %v5252 = vunpack.c.l.s4 1966171168
        %v5253 = vunpack.c.0.s8 %v5252
        %v5254 = vlaneseq
        %v5255 = vshrl.u32 %v5254, 7
        %v5256 = vsub.s32 %v5253, %v5255
        %v5257 = vrot.slane %v5243, %v5256
        %v5258 = vcombine.low %v5250, %v5257
        %v5259 = vcombine.low %v2993, %v2997
        %v5260 = vcombine.low %v3001, %v3005
        %v5261 = vcombine.low %v3009, %v3013
        %v5262 = vcombine.low %v3017, %v3021
        %v5264 = vunpack.c.l.s4 1966171168
        %v5265 = vunpack.c.0.s8 %v5264
        %v5266 = vlaneseq
        %v5267 = vshrl.u32 %v5266, 7
        %v5268 = vsub.s32 %v5265, %v5267
        %v5269 = vrot.slane %v5259, %v5268
        %v5271 = vunpack.c.l.s4 1966171168
        %v5272 = vunpack.c.0.s8 %v5271
        %v5273 = vlaneseq
        %v5274 = vshrl.u32 %v5273, 7
        %v5275 = vsub.s32 %v5272, %v5274
        %v5276 = vrot.slane %v5260, %v5275
        %v5278 = vunpack.c.l.s4 1966171168
        %v5279 = vunpack.c.0.s8 %v5278
        %v5280 = vlaneseq
        %v5281 = vshrl.u32 %v5280, 7
        %v5282 = vsub.s32 %v5279, %v5281
        %v5283 = vrot.slane %v5261, %v5282
        %v5285 = vunpack.c.l.s4 1966171168
        %v5286 = vunpack.c.0.s8 %v5285
        %v5287 = vlaneseq
        %v5288 = vshrl.u32 %v5287, 7
        %v5289 = vsub.s32 %v5286, %v5288
        %v5290 = vrot.slane %v5262, %v5289
        %v5291 = vcombine.low %v5269, %v5276
        %v5292 = vcombine.low %v5283, %v5290
        %v5294 = vunpack.c.l.s4 1966171168
        %v5295 = vunpack.c.0.s8 %v5294
        %v5296 = vlaneseq
        %v5297 = vshrl.u32 %v5296, 7
        %v5298 = vsub.s32 %v5295, %v5297
        %v5299 = vrot.slane %v5291, %v5298
        %v5301 = vunpack.c.l.s4 1966171168
        %v5302 = vunpack.c.0.s8 %v5301
        %v5303 = vlaneseq
        %v5304 = vshrl.u32 %v5303, 7
        %v5305 = vsub.s32 %v5302, %v5304
        %v5306 = vrot.slane %v5292, %v5305
        %v5307 = vcombine.low %v5299, %v5306
        %v5308 = vcombine.low %v3025, %v3029
        %v5309 = vcombine.low %v3033, %v3037
        %v5310 = vcombine.low %v3041, %v3045
        %v5311 = vcombine.low %v3049, %v3053
        %v5313 = vunpack.c.l.s4 1966171168
        %v5314 = vunpack.c.0.s8 %v5313
        %v5315 = vlaneseq
        %v5316 = vshrl.u32 %v5315, 7
        %v5317 = vsub.s32 %v5314, %v5316
        %v5318 = vrot.slane %v5308, %v5317
        %v5320 = vunpack.c.l.s4 1966171168
        %v5321 = vunpack.c.0.s8 %v5320
        %v5322 = vlaneseq
        %v5323 = vshrl.u32 %v5322, 7
        %v5324 = vsub.s32 %v5321, %v5323
        %v5325 = vrot.slane %v5309, %v5324
        %v5327 = vunpack.c.l.s4 1966171168
        %v5328 = vunpack.c.0.s8 %v5327
        %v5329 = vlaneseq
        %v5330 = vshrl.u32 %v5329, 7
        %v5331 = vsub.s32 %v5328, %v5330
        %v5332 = vrot.slane %v5310, %v5331
        %v5334 = vunpack.c.l.s4 1966171168
        %v5335 = vunpack.c.0.s8 %v5334
        %v5336 = vlaneseq
        %v5337 = vshrl.u32 %v5336, 7
        %v5338 = vsub.s32 %v5335, %v5337
        %v5339 = vrot.slane %v5311, %v5338
        %v5340 = vcombine.low %v5318, %v5325
        %v5341 = vcombine.low %v5332, %v5339
        %v5343 = vunpack.c.l.s4 1966171168
        %v5344 = vunpack.c.0.s8 %v5343
        %v5345 = vlaneseq
        %v5346 = vshrl.u32 %v5345, 7
        %v5347 = vsub.s32 %v5344, %v5346
        %v5348 = vrot.slane %v5340, %v5347
        %v5350 = vunpack.c.l.s4 1966171168
        %v5351 = vunpack.c.0.s8 %v5350
        %v5352 = vlaneseq
        %v5353 = vshrl.u32 %v5352, 7
        %v5354 = vsub.s32 %v5351, %v5353
        %v5355 = vrot.slane %v5341, %v5354
        %v5356 = vcombine.low %v5348, %v5355
        %v5357 = vcombine.low %v3057, %v3061
        %v5358 = vcombine.low %v3065, %v3069
        %v5359 = vcombine.low %v3073, %v3077
        %v5360 = vcombine.low %v3081, %v3085
        %v5362 = vunpack.c.l.s4 1966171168
        %v5363 = vunpack.c.0.s8 %v5362
        %v5364 = vlaneseq
        %v5365 = vshrl.u32 %v5364, 7
        %v5366 = vsub.s32 %v5363, %v5365
        %v5367 = vrot.slane %v5357, %v5366
        %v5369 = vunpack.c.l.s4 1966171168
        %v5370 = vunpack.c.0.s8 %v5369
        %v5371 = vlaneseq
        %v5372 = vshrl.u32 %v5371, 7
        %v5373 = vsub.s32 %v5370, %v5372
        %v5374 = vrot.slane %v5358, %v5373
        %v5376 = vunpack.c.l.s4 1966171168
        %v5377 = vunpack.c.0.s8 %v5376
        %v5378 = vlaneseq
        %v5379 = vshrl.u32 %v5378, 7
        %v5380 = vsub.s32 %v5377, %v5379
        %v5381 = vrot.slane %v5359, %v5380
        %v5383 = vunpack.c.l.s4 1966171168
        %v5384 = vunpack.c.0.s8 %v5383
        %v5385 = vlaneseq
        %v5386 = vshrl.u32 %v5385, 7
        %v5387 = vsub.s32 %v5384, %v5386
        %v5388 = vrot.slane %v5360, %v5387
        %v5389 = vcombine.low %v5367, %v5374
        %v5390 = vcombine.low %v5381, %v5388
        %v5392 = vunpack.c.l.s4 1966171168
        %v5393 = vunpack.c.0.s8 %v5392
        %v5394 = vlaneseq
        %v5395 = vshrl.u32 %v5394, 7
        %v5396 = vsub.s32 %v5393, %v5395
        %v5397 = vrot.slane %v5389, %v5396
        %v5399 = vunpack.c.l.s4 1966171168
        %v5400 = vunpack.c.0.s8 %v5399
        %v5401 = vlaneseq
        %v5402 = vshrl.u32 %v5401, 7
        %v5403 = vsub.s32 %v5400, %v5402
        %v5404 = vrot.slane %v5390, %v5403
        %v5405 = vcombine.low %v5397, %v5404
        %v5406 = vcombine.low %v3089, %v3093
        %v5407 = vcombine.low %v3097, %v3101
        %v5408 = vcombine.low %v3105, %v3109
        %v5409 = vcombine.low %v3113, %v3117
        %v5411 = vunpack.c.l.s4 1966171168
        %v5412 = vunpack.c.0.s8 %v5411
        %v5413 = vlaneseq
        %v5414 = vshrl.u32 %v5413, 7
        %v5415 = vsub.s32 %v5412, %v5414
        %v5416 = vrot.slane %v5406, %v5415
        %v5418 = vunpack.c.l.s4 1966171168
        %v5419 = vunpack.c.0.s8 %v5418
        %v5420 = vlaneseq
        %v5421 = vshrl.u32 %v5420, 7
        %v5422 = vsub.s32 %v5419, %v5421
        %v5423 = vrot.slane %v5407, %v5422
        %v5425 = vunpack.c.l.s4 1966171168
        %v5426 = vunpack.c.0.s8 %v5425
        %v5427 = vlaneseq
        %v5428 = vshrl.u32 %v5427, 7
        %v5429 = vsub.s32 %v5426, %v5428
        %v5430 = vrot.slane %v5408, %v5429
        %v5432 = vunpack.c.l.s4 1966171168
        %v5433 = vunpack.c.0.s8 %v5432
        %v5434 = vlaneseq
        %v5435 = vshrl.u32 %v5434, 7
        %v5436 = vsub.s32 %v5433, %v5435
        %v5437 = vrot.slane %v5409, %v5436
        %v5438 = vcombine.low %v5416, %v5423
        %v5439 = vcombine.low %v5430, %v5437
        %v5441 = vunpack.c.l.s4 1966171168
        %v5442 = vunpack.c.0.s8 %v5441
        %v5443 = vlaneseq
        %v5444 = vshrl.u32 %v5443, 7
        %v5445 = vsub.s32 %v5442, %v5444
        %v5446 = vrot.slane %v5438, %v5445
        %v5448 = vunpack.c.l.s4 1966171168
        %v5449 = vunpack.c.0.s8 %v5448
        %v5450 = vlaneseq
        %v5451 = vshrl.u32 %v5450, 7
        %v5452 = vsub.s32 %v5449, %v5451
        %v5453 = vrot.slane %v5439, %v5452
        %v5454 = vcombine.low %v5446, %v5453
        %v5455 = vcombine.low %v3121, %v3125
        %v5456 = vcombine.low %v3129, %v3133
        %v5457 = vcombine.low %v3137, %v3141
        %v5458 = vcombine.low %v3145, %v3149
        %v5460 = vunpack.c.l.s4 1966171168
        %v5461 = vunpack.c.0.s8 %v5460
        %v5462 = vlaneseq
        %v5463 = vshrl.u32 %v5462, 7
        %v5464 = vsub.s32 %v5461, %v5463
        %v5465 = vrot.slane %v5455, %v5464
        %v5467 = vunpack.c.l.s4 1966171168
        %v5468 = vunpack.c.0.s8 %v5467
        %v5469 = vlaneseq
        %v5470 = vshrl.u32 %v5469, 7
        %v5471 = vsub.s32 %v5468, %v5470
        %v5472 = vrot.slane %v5456, %v5471
        %v5474 = vunpack.c.l.s4 1966171168
        %v5475 = vunpack.c.0.s8 %v5474
        %v5476 = vlaneseq
        %v5477 = vshrl.u32 %v5476, 7
        %v5478 = vsub.s32 %v5475, %v5477
        %v5479 = vrot.slane %v5457, %v5478
        %v5481 = vunpack.c.l.s4 1966171168
        %v5482 = vunpack.c.0.s8 %v5481
        %v5483 = vlaneseq
        %v5484 = vshrl.u32 %v5483, 7
        %v5485 = vsub.s32 %v5482, %v5484
        %v5486 = vrot.slane %v5458, %v5485
        %v5487 = vcombine.low %v5465, %v5472
        %v5488 = vcombine.low %v5479, %v5486
        %v5490 = vunpack.c.l.s4 1966171168
        %v5491 = vunpack.c.0.s8 %v5490
        %v5492 = vlaneseq
        %v5493 = vshrl.u32 %v5492, 7
        %v5494 = vsub.s32 %v5491, %v5493
        %v5495 = vrot.slane %v5487, %v5494
        %v5497 = vunpack.c.l.s4 1966171168
        %v5498 = vunpack.c.0.s8 %v5497
        %v5499 = vlaneseq
        %v5500 = vshrl.u32 %v5499, 7
        %v5501 = vsub.s32 %v5498, %v5500
        %v5502 = vrot.slane %v5488, %v5501
        %v5503 = vcombine.low %v5495, %v5502
        %v5504 = vcombine.low %v3153, %v3157
        %v5505 = vcombine.low %v3161, %v3165
        %v5506 = vcombine.low %v3169, %v3173
        %v5507 = vcombine.low %v3177, %v3181
        %v5509 = vunpack.c.l.s4 1966171168
        %v5510 = vunpack.c.0.s8 %v5509
        %v5511 = vlaneseq
        %v5512 = vshrl.u32 %v5511, 7
        %v5513 = vsub.s32 %v5510, %v5512
        %v5514 = vrot.slane %v5504, %v5513
        %v5516 = vunpack.c.l.s4 1966171168
        %v5517 = vunpack.c.0.s8 %v5516
        %v5518 = vlaneseq
        %v5519 = vshrl.u32 %v5518, 7
        %v5520 = vsub.s32 %v5517, %v5519
        %v5521 = vrot.slane %v5505, %v5520
        %v5523 = vunpack.c.l.s4 1966171168
        %v5524 = vunpack.c.0.s8 %v5523
        %v5525 = vlaneseq
        %v5526 = vshrl.u32 %v5525, 7
        %v5527 = vsub.s32 %v5524, %v5526
        %v5528 = vrot.slane %v5506, %v5527
        %v5530 = vunpack.c.l.s4 1966171168
        %v5531 = vunpack.c.0.s8 %v5530
        %v5532 = vlaneseq
        %v5533 = vshrl.u32 %v5532, 7
        %v5534 = vsub.s32 %v5531, %v5533
        %v5535 = vrot.slane %v5507, %v5534
        %v5536 = vcombine.low %v5514, %v5521
        %v5537 = vcombine.low %v5528, %v5535
        %v5539 = vunpack.c.l.s4 1966171168
        %v5540 = vunpack.c.0.s8 %v5539
        %v5541 = vlaneseq
        %v5542 = vshrl.u32 %v5541, 7
        %v5543 = vsub.s32 %v5540, %v5542
        %v5544 = vrot.slane %v5536, %v5543
        %v5546 = vunpack.c.l.s4 1966171168
        %v5547 = vunpack.c.0.s8 %v5546
        %v5548 = vlaneseq
        %v5549 = vshrl.u32 %v5548, 7
        %v5550 = vsub.s32 %v5547, %v5549
        %v5551 = vrot.slane %v5537, %v5550
        %v5552 = vcombine.low %v5544, %v5551
        %v5553 = vcombine.low %v3185, %v3189
        %v5554 = vcombine.low %v3193, %v3197
        %v5555 = vcombine.low %v3201, %v3205
        %v5556 = vcombine.low %v3209, %v3213
        %v5558 = vunpack.c.l.s4 1966171168
        %v5559 = vunpack.c.0.s8 %v5558
        %v5560 = vlaneseq
        %v5561 = vshrl.u32 %v5560, 7
        %v5562 = vsub.s32 %v5559, %v5561
        %v5563 = vrot.slane %v5553, %v5562
        %v5565 = vunpack.c.l.s4 1966171168
        %v5566 = vunpack.c.0.s8 %v5565
        %v5567 = vlaneseq
        %v5568 = vshrl.u32 %v5567, 7
        %v5569 = vsub.s32 %v5566, %v5568
        %v5570 = vrot.slane %v5554, %v5569
        %v5572 = vunpack.c.l.s4 1966171168
        %v5573 = vunpack.c.0.s8 %v5572
        %v5574 = vlaneseq
        %v5575 = vshrl.u32 %v5574, 7
        %v5576 = vsub.s32 %v5573, %v5575
        %v5577 = vrot.slane %v5555, %v5576
        %v5579 = vunpack.c.l.s4 1966171168
        %v5580 = vunpack.c.0.s8 %v5579
        %v5581 = vlaneseq
        %v5582 = vshrl.u32 %v5581, 7
        %v5583 = vsub.s32 %v5580, %v5582
        %v5584 = vrot.slane %v5556, %v5583
        %v5585 = vcombine.low %v5563, %v5570
        %v5586 = vcombine.low %v5577, %v5584
        %v5588 = vunpack.c.l.s4 1966171168
        %v5589 = vunpack.c.0.s8 %v5588
        %v5590 = vlaneseq
        %v5591 = vshrl.u32 %v5590, 7
        %v5592 = vsub.s32 %v5589, %v5591
        %v5593 = vrot.slane %v5585, %v5592
        %v5595 = vunpack.c.l.s4 1966171168
        %v5596 = vunpack.c.0.s8 %v5595
        %v5597 = vlaneseq
        %v5598 = vshrl.u32 %v5597, 7
        %v5599 = vsub.s32 %v5596, %v5598
        %v5600 = vrot.slane %v5586, %v5599
        %v5601 = vcombine.low %v5593, %v5600
        %v5602 = vcombine.low %v3217, %v3221
        %v5603 = vcombine.low %v3225, %v3229
        %v5604 = vcombine.low %v3233, %v3237
        %v5605 = vcombine.low %v3241, %v3245
        %v5607 = vunpack.c.l.s4 1966171168
        %v5608 = vunpack.c.0.s8 %v5607
        %v5609 = vlaneseq
        %v5610 = vshrl.u32 %v5609, 7
        %v5611 = vsub.s32 %v5608, %v5610
        %v5612 = vrot.slane %v5602, %v5611
        %v5614 = vunpack.c.l.s4 1966171168
        %v5615 = vunpack.c.0.s8 %v5614
        %v5616 = vlaneseq
        %v5617 = vshrl.u32 %v5616, 7
        %v5618 = vsub.s32 %v5615, %v5617
        %v5619 = vrot.slane %v5603, %v5618
        %v5621 = vunpack.c.l.s4 1966171168
        %v5622 = vunpack.c.0.s8 %v5621
        %v5623 = vlaneseq
        %v5624 = vshrl.u32 %v5623, 7
        %v5625 = vsub.s32 %v5622, %v5624
        %v5626 = vrot.slane %v5604, %v5625
        %v5628 = vunpack.c.l.s4 1966171168
        %v5629 = vunpack.c.0.s8 %v5628
        %v5630 = vlaneseq
        %v5631 = vshrl.u32 %v5630, 7
        %v5632 = vsub.s32 %v5629, %v5631
        %v5633 = vrot.slane %v5605, %v5632
        %v5634 = vcombine.low %v5612, %v5619
        %v5635 = vcombine.low %v5626, %v5633
        %v5637 = vunpack.c.l.s4 1966171168
        %v5638 = vunpack.c.0.s8 %v5637
        %v5639 = vlaneseq
        %v5640 = vshrl.u32 %v5639, 7
        %v5641 = vsub.s32 %v5638, %v5640
        %v5642 = vrot.slane %v5634, %v5641
        %v5644 = vunpack.c.l.s4 1966171168
        %v5645 = vunpack.c.0.s8 %v5644
        %v5646 = vlaneseq
        %v5647 = vshrl.u32 %v5646, 7
        %v5648 = vsub.s32 %v5645, %v5647
        %v5649 = vrot.slane %v5635, %v5648
        %v5650 = vcombine.low %v5642, %v5649
        %v5651 = vcombine.low %v3249, %v3253
        %v5652 = vcombine.low %v3257, %v3261
        %v5653 = vcombine.low %v3265, %v3269
        %v5654 = vcombine.low %v3273, %v3277
        %v5656 = vunpack.c.l.s4 1966171168
        %v5657 = vunpack.c.0.s8 %v5656
        %v5658 = vlaneseq
        %v5659 = vshrl.u32 %v5658, 7
        %v5660 = vsub.s32 %v5657, %v5659
        %v5661 = vrot.slane %v5651, %v5660
        %v5663 = vunpack.c.l.s4 1966171168
        %v5664 = vunpack.c.0.s8 %v5663
        %v5665 = vlaneseq
        %v5666 = vshrl.u32 %v5665, 7
        %v5667 = vsub.s32 %v5664, %v5666
        %v5668 = vrot.slane %v5652, %v5667
        %v5670 = vunpack.c.l.s4 1966171168
        %v5671 = vunpack.c.0.s8 %v5670
        %v5672 = vlaneseq
        %v5673 = vshrl.u32 %v5672, 7
        %v5674 = vsub.s32 %v5671, %v5673
        %v5675 = vrot.slane %v5653, %v5674
        %v5677 = vunpack.c.l.s4 1966171168
        %v5678 = vunpack.c.0.s8 %v5677
        %v5679 = vlaneseq
        %v5680 = vshrl.u32 %v5679, 7
        %v5681 = vsub.s32 %v5678, %v5680
        %v5682 = vrot.slane %v5654, %v5681
        %v5683 = vcombine.low %v5661, %v5668
        %v5684 = vcombine.low %v5675, %v5682
        %v5686 = vunpack.c.l.s4 1966171168
        %v5687 = vunpack.c.0.s8 %v5686
        %v5688 = vlaneseq
        %v5689 = vshrl.u32 %v5688, 7
        %v5690 = vsub.s32 %v5687, %v5689
        %v5691 = vrot.slane %v5683, %v5690
        %v5693 = vunpack.c.l.s4 1966171168
        %v5694 = vunpack.c.0.s8 %v5693
        %v5695 = vlaneseq
        %v5696 = vshrl.u32 %v5695, 7
        %v5697 = vsub.s32 %v5694, %v5696
        %v5698 = vrot.slane %v5684, %v5697
        %v5699 = vcombine.low %v5691, %v5698
        %v5700 = vcombine.low %v3281, %v3285
        %v5701 = vcombine.low %v3289, %v3293
        %v5702 = vcombine.low %v3297, %v3301
        %v5703 = vcombine.low %v3305, %v3309
        %v5705 = vunpack.c.l.s4 1966171168
        %v5706 = vunpack.c.0.s8 %v5705
        %v5707 = vlaneseq
        %v5708 = vshrl.u32 %v5707, 7
        %v5709 = vsub.s32 %v5706, %v5708
        %v5710 = vrot.slane %v5700, %v5709
        %v5712 = vunpack.c.l.s4 1966171168
        %v5713 = vunpack.c.0.s8 %v5712
        %v5714 = vlaneseq
        %v5715 = vshrl.u32 %v5714, 7
        %v5716 = vsub.s32 %v5713, %v5715
        %v5717 = vrot.slane %v5701, %v5716
        %v5719 = vunpack.c.l.s4 1966171168
        %v5720 = vunpack.c.0.s8 %v5719
        %v5721 = vlaneseq
        %v5722 = vshrl.u32 %v5721, 7
        %v5723 = vsub.s32 %v5720, %v5722
        %v5724 = vrot.slane %v5702, %v5723
        %v5726 = vunpack.c.l.s4 1966171168
        %v5727 = vunpack.c.0.s8 %v5726
        %v5728 = vlaneseq
        %v5729 = vshrl.u32 %v5728, 7
        %v5730 = vsub.s32 %v5727, %v5729
        %v5731 = vrot.slane %v5703, %v5730
        %v5732 = vcombine.low %v5710, %v5717
        %v5733 = vcombine.low %v5724, %v5731
        %v5735 = vunpack.c.l.s4 1966171168
        %v5736 = vunpack.c.0.s8 %v5735
        %v5737 = vlaneseq
        %v5738 = vshrl.u32 %v5737, 7
        %v5739 = vsub.s32 %v5736, %v5738
        %v5740 = vrot.slane %v5732, %v5739
        %v5742 = vunpack.c.l.s4 1966171168
        %v5743 = vunpack.c.0.s8 %v5742
        %v5744 = vlaneseq
        %v5745 = vshrl.u32 %v5744, 7
        %v5746 = vsub.s32 %v5743, %v5745
        %v5747 = vrot.slane %v5733, %v5746
        %v5748 = vcombine.low %v5740, %v5747
        %v5749 = vcombine.low %v3313, %v3317
        %v5750 = vcombine.low %v3321, %v3325
        %v5751 = vcombine.low %v3329, %v3333
        %v5752 = vcombine.low %v3337, %v3341
        %v5754 = vunpack.c.l.s4 1966171168
        %v5755 = vunpack.c.0.s8 %v5754
        %v5756 = vlaneseq
        %v5757 = vshrl.u32 %v5756, 7
        %v5758 = vsub.s32 %v5755, %v5757
        %v5759 = vrot.slane %v5749, %v5758
        %v5761 = vunpack.c.l.s4 1966171168
        %v5762 = vunpack.c.0.s8 %v5761
        %v5763 = vlaneseq
        %v5764 = vshrl.u32 %v5763, 7
        %v5765 = vsub.s32 %v5762, %v5764
        %v5766 = vrot.slane %v5750, %v5765
        %v5768 = vunpack.c.l.s4 1966171168
        %v5769 = vunpack.c.0.s8 %v5768
        %v5770 = vlaneseq
        %v5771 = vshrl.u32 %v5770, 7
        %v5772 = vsub.s32 %v5769, %v5771
        %v5773 = vrot.slane %v5751, %v5772
        %v5775 = vunpack.c.l.s4 1966171168
        %v5776 = vunpack.c.0.s8 %v5775
        %v5777 = vlaneseq
        %v5778 = vshrl.u32 %v5777, 7
        %v5779 = vsub.s32 %v5776, %v5778
        %v5780 = vrot.slane %v5752, %v5779
        %v5781 = vcombine.low %v5759, %v5766
        %v5782 = vcombine.low %v5773, %v5780
        %v5784 = vunpack.c.l.s4 1966171168
        %v5785 = vunpack.c.0.s8 %v5784
        %v5786 = vlaneseq
        %v5787 = vshrl.u32 %v5786, 7
        %v5788 = vsub.s32 %v5785, %v5787
        %v5789 = vrot.slane %v5781, %v5788
        %v5791 = vunpack.c.l.s4 1966171168
        %v5792 = vunpack.c.0.s8 %v5791
        %v5793 = vlaneseq
        %v5794 = vshrl.u32 %v5793, 7
        %v5795 = vsub.s32 %v5792, %v5794
        %v5796 = vrot.slane %v5782, %v5795
        %v5797 = vcombine.low %v5789, %v5796
        %v5798 = vcombine.low %v3345, %v3349
        %v5799 = vcombine.low %v3353, %v3357
        %v5800 = vcombine.low %v3361, %v3365
        %v5801 = vcombine.low %v3369, %v3373
        %v5803 = vunpack.c.l.s4 1966171168
        %v5804 = vunpack.c.0.s8 %v5803
        %v5805 = vlaneseq
        %v5806 = vshrl.u32 %v5805, 7
        %v5807 = vsub.s32 %v5804, %v5806
        %v5808 = vrot.slane %v5798, %v5807
        %v5810 = vunpack.c.l.s4 1966171168
        %v5811 = vunpack.c.0.s8 %v5810
        %v5812 = vlaneseq
        %v5813 = vshrl.u32 %v5812, 7
        %v5814 = vsub.s32 %v5811, %v5813
        %v5815 = vrot.slane %v5799, %v5814
        %v5817 = vunpack.c.l.s4 1966171168
        %v5818 = vunpack.c.0.s8 %v5817
        %v5819 = vlaneseq
        %v5820 = vshrl.u32 %v5819, 7
        %v5821 = vsub.s32 %v5818, %v5820
        %v5822 = vrot.slane %v5800, %v5821
        %v5824 = vunpack.c.l.s4 1966171168
        %v5825 = vunpack.c.0.s8 %v5824
        %v5826 = vlaneseq
        %v5827 = vshrl.u32 %v5826, 7
        %v5828 = vsub.s32 %v5825, %v5827
        %v5829 = vrot.slane %v5801, %v5828
        %v5830 = vcombine.low %v5808, %v5815
        %v5831 = vcombine.low %v5822, %v5829
        %v5833 = vunpack.c.l.s4 1966171168
        %v5834 = vunpack.c.0.s8 %v5833
        %v5835 = vlaneseq
        %v5836 = vshrl.u32 %v5835, 7
        %v5837 = vsub.s32 %v5834, %v5836
        %v5838 = vrot.slane %v5830, %v5837
        %v5840 = vunpack.c.l.s4 1966171168
        %v5841 = vunpack.c.0.s8 %v5840
        %v5842 = vlaneseq
        %v5843 = vshrl.u32 %v5842, 7
        %v5844 = vsub.s32 %v5841, %v5843
        %v5845 = vrot.slane %v5831, %v5844
        %v5846 = vcombine.low %v5838, %v5845
        %v5847 = vcombine.low %v3377, %v3381
        %v5848 = vcombine.low %v3385, %v3389
        %v5849 = vcombine.low %v3393, %v3397
        %v5850 = vcombine.low %v3401, %v3405
        %v5852 = vunpack.c.l.s4 1966171168
        %v5853 = vunpack.c.0.s8 %v5852
        %v5854 = vlaneseq
        %v5855 = vshrl.u32 %v5854, 7
        %v5856 = vsub.s32 %v5853, %v5855
        %v5857 = vrot.slane %v5847, %v5856
        %v5859 = vunpack.c.l.s4 1966171168
        %v5860 = vunpack.c.0.s8 %v5859
        %v5861 = vlaneseq
        %v5862 = vshrl.u32 %v5861, 7
        %v5863 = vsub.s32 %v5860, %v5862
        %v5864 = vrot.slane %v5848, %v5863
        %v5866 = vunpack.c.l.s4 1966171168
        %v5867 = vunpack.c.0.s8 %v5866
        %v5868 = vlaneseq
        %v5869 = vshrl.u32 %v5868, 7
        %v5870 = vsub.s32 %v5867, %v5869
        %v5871 = vrot.slane %v5849, %v5870
        %v5873 = vunpack.c.l.s4 1966171168
        %v5874 = vunpack.c.0.s8 %v5873
        %v5875 = vlaneseq
        %v5876 = vshrl.u32 %v5875, 7
        %v5877 = vsub.s32 %v5874, %v5876
        %v5878 = vrot.slane %v5850, %v5877
        %v5879 = vcombine.low %v5857, %v5864
        %v5880 = vcombine.low %v5871, %v5878
        %v5882 = vunpack.c.l.s4 1966171168
        %v5883 = vunpack.c.0.s8 %v5882
        %v5884 = vlaneseq
        %v5885 = vshrl.u32 %v5884, 7
        %v5886 = vsub.s32 %v5883, %v5885
        %v5887 = vrot.slane %v5879, %v5886
        %v5889 = vunpack.c.l.s4 1966171168
        %v5890 = vunpack.c.0.s8 %v5889
        %v5891 = vlaneseq
        %v5892 = vshrl.u32 %v5891, 7
        %v5893 = vsub.s32 %v5890, %v5892
        %v5894 = vrot.slane %v5880, %v5893
        %v5895 = vcombine.low %v5887, %v5894
        %v5896 = vcombine.low %v3409, %v3413
        %v5897 = vcombine.low %v3417, %v3421
        %v5898 = vcombine.low %v3425, %v3429
        %v5899 = vcombine.low %v3433, %v3437
        %v5901 = vunpack.c.l.s4 1966171168
        %v5902 = vunpack.c.0.s8 %v5901
        %v5903 = vlaneseq
        %v5904 = vshrl.u32 %v5903, 7
        %v5905 = vsub.s32 %v5902, %v5904
        %v5906 = vrot.slane %v5896, %v5905
        %v5908 = vunpack.c.l.s4 1966171168
        %v5909 = vunpack.c.0.s8 %v5908
        %v5910 = vlaneseq
        %v5911 = vshrl.u32 %v5910, 7
        %v5912 = vsub.s32 %v5909, %v5911
        %v5913 = vrot.slane %v5897, %v5912
        %v5915 = vunpack.c.l.s4 1966171168
        %v5916 = vunpack.c.0.s8 %v5915
        %v5917 = vlaneseq
        %v5918 = vshrl.u32 %v5917, 7
        %v5919 = vsub.s32 %v5916, %v5918
        %v5920 = vrot.slane %v5898, %v5919
        %v5922 = vunpack.c.l.s4 1966171168
        %v5923 = vunpack.c.0.s8 %v5922
        %v5924 = vlaneseq
        %v5925 = vshrl.u32 %v5924, 7
        %v5926 = vsub.s32 %v5923, %v5925
        %v5927 = vrot.slane %v5899, %v5926
        %v5928 = vcombine.low %v5906, %v5913
        %v5929 = vcombine.low %v5920, %v5927
        %v5931 = vunpack.c.l.s4 1966171168
        %v5932 = vunpack.c.0.s8 %v5931
        %v5933 = vlaneseq
        %v5934 = vshrl.u32 %v5933, 7
        %v5935 = vsub.s32 %v5932, %v5934
        %v5936 = vrot.slane %v5928, %v5935
        %v5938 = vunpack.c.l.s4 1966171168
        %v5939 = vunpack.c.0.s8 %v5938
        %v5940 = vlaneseq
        %v5941 = vshrl.u32 %v5940, 7
        %v5942 = vsub.s32 %v5939, %v5941
        %v5943 = vrot.slane %v5929, %v5942
        %v5944 = vcombine.low %v5936, %v5943
        %v5945 = vcombine.low %v3441, %v3445
        %v5946 = vcombine.low %v3449, %v3453
        %v5947 = vcombine.low %v3457, %v3461
        %v5948 = vcombine.low %v3465, %v3469
        %v5950 = vunpack.c.l.s4 1966171168
        %v5951 = vunpack.c.0.s8 %v5950
        %v5952 = vlaneseq
        %v5953 = vshrl.u32 %v5952, 7
        %v5954 = vsub.s32 %v5951, %v5953
        %v5955 = vrot.slane %v5945, %v5954
        %v5957 = vunpack.c.l.s4 1966171168
        %v5958 = vunpack.c.0.s8 %v5957
        %v5959 = vlaneseq
        %v5960 = vshrl.u32 %v5959, 7
        %v5961 = vsub.s32 %v5958, %v5960
        %v5962 = vrot.slane %v5946, %v5961
        %v5964 = vunpack.c.l.s4 1966171168
        %v5965 = vunpack.c.0.s8 %v5964
        %v5966 = vlaneseq
        %v5967 = vshrl.u32 %v5966, 7
        %v5968 = vsub.s32 %v5965, %v5967
        %v5969 = vrot.slane %v5947, %v5968
        %v5971 = vunpack.c.l.s4 1966171168
        %v5972 = vunpack.c.0.s8 %v5971
        %v5973 = vlaneseq
        %v5974 = vshrl.u32 %v5973, 7
        %v5975 = vsub.s32 %v5972, %v5974
        %v5976 = vrot.slane %v5948, %v5975
        %v5977 = vcombine.low %v5955, %v5962
        %v5978 = vcombine.low %v5969, %v5976
        %v5980 = vunpack.c.l.s4 1966171168
        %v5981 = vunpack.c.0.s8 %v5980
        %v5982 = vlaneseq
        %v5983 = vshrl.u32 %v5982, 7
        %v5984 = vsub.s32 %v5981, %v5983
        %v5985 = vrot.slane %v5977, %v5984
        %v5987 = vunpack.c.l.s4 1966171168
        %v5988 = vunpack.c.0.s8 %v5987
        %v5989 = vlaneseq
        %v5990 = vshrl.u32 %v5989, 7
        %v5991 = vsub.s32 %v5988, %v5990
        %v5992 = vrot.slane %v5978, %v5991
        %v5993 = vcombine.low %v5985, %v5992
        %v5994 = vcombine.low %v3473, %v3477
        %v5995 = vcombine.low %v3481, %v3485
        %v5996 = vcombine.low %v3489, %v3493
        %v5997 = vcombine.low %v3497, %v3501
        %v5999 = vunpack.c.l.s4 1966171168
        %v6000 = vunpack.c.0.s8 %v5999
        %v6001 = vlaneseq
        %v6002 = vshrl.u32 %v6001, 7
        %v6003 = vsub.s32 %v6000, %v6002
        %v6004 = vrot.slane %v5994, %v6003
        %v6006 = vunpack.c.l.s4 1966171168
        %v6007 = vunpack.c.0.s8 %v6006
        %v6008 = vlaneseq
        %v6009 = vshrl.u32 %v6008, 7
        %v6010 = vsub.s32 %v6007, %v6009
        %v6011 = vrot.slane %v5995, %v6010
        %v6013 = vunpack.c.l.s4 1966171168
        %v6014 = vunpack.c.0.s8 %v6013
        %v6015 = vlaneseq
        %v6016 = vshrl.u32 %v6015, 7
        %v6017 = vsub.s32 %v6014, %v6016
        %v6018 = vrot.slane %v5996, %v6017
        %v6020 = vunpack.c.l.s4 1966171168
        %v6021 = vunpack.c.0.s8 %v6020
        %v6022 = vlaneseq
        %v6023 = vshrl.u32 %v6022, 7
        %v6024 = vsub.s32 %v6021, %v6023
        %v6025 = vrot.slane %v5997, %v6024
        %v6026 = vcombine.low %v6004, %v6011
        %v6027 = vcombine.low %v6018, %v6025
        %v6029 = vunpack.c.l.s4 1966171168
        %v6030 = vunpack.c.0.s8 %v6029
        %v6031 = vlaneseq
        %v6032 = vshrl.u32 %v6031, 7
        %v6033 = vsub.s32 %v6030, %v6032
        %v6034 = vrot.slane %v6026, %v6033
        %v6036 = vunpack.c.l.s4 1966171168
        %v6037 = vunpack.c.0.s8 %v6036
        %v6038 = vlaneseq
        %v6039 = vshrl.u32 %v6038, 7
        %v6040 = vsub.s32 %v6037, %v6039
        %v6041 = vrot.slane %v6027, %v6040
        %v6042 = vcombine.low %v6034, %v6041
        %v6043 = vcombine.low %v3505, %v3509
        %v6044 = vcombine.low %v3513, %v3517
        %v6045 = vcombine.low %v3521, %v3525
        %v6046 = vcombine.low %v3529, %v3533
        %v6048 = vunpack.c.l.s4 1966171168
        %v6049 = vunpack.c.0.s8 %v6048
        %v6050 = vlaneseq
        %v6051 = vshrl.u32 %v6050, 7
        %v6052 = vsub.s32 %v6049, %v6051
        %v6053 = vrot.slane %v6043, %v6052
        %v6055 = vunpack.c.l.s4 1966171168
        %v6056 = vunpack.c.0.s8 %v6055
        %v6057 = vlaneseq
        %v6058 = vshrl.u32 %v6057, 7
        %v6059 = vsub.s32 %v6056, %v6058
        %v6060 = vrot.slane %v6044, %v6059
        %v6062 = vunpack.c.l.s4 1966171168
        %v6063 = vunpack.c.0.s8 %v6062
        %v6064 = vlaneseq
        %v6065 = vshrl.u32 %v6064, 7
        %v6066 = vsub.s32 %v6063, %v6065
        %v6067 = vrot.slane %v6045, %v6066
        %v6069 = vunpack.c.l.s4 1966171168
        %v6070 = vunpack.c.0.s8 %v6069
        %v6071 = vlaneseq
        %v6072 = vshrl.u32 %v6071, 7
        %v6073 = vsub.s32 %v6070, %v6072
        %v6074 = vrot.slane %v6046, %v6073
        %v6075 = vcombine.low %v6053, %v6060
        %v6076 = vcombine.low %v6067, %v6074
        %v6078 = vunpack.c.l.s4 1966171168
        %v6079 = vunpack.c.0.s8 %v6078
        %v6080 = vlaneseq
        %v6081 = vshrl.u32 %v6080, 7
        %v6082 = vsub.s32 %v6079, %v6081
        %v6083 = vrot.slane %v6075, %v6082
        %v6085 = vunpack.c.l.s4 1966171168
        %v6086 = vunpack.c.0.s8 %v6085
        %v6087 = vlaneseq
        %v6088 = vshrl.u32 %v6087, 7
        %v6089 = vsub.s32 %v6086, %v6088
        %v6090 = vrot.slane %v6076, %v6089
        %v6091 = vcombine.low %v6083, %v6090
        %v6092 = vcombine.low %v3537, %v3541
        %v6093 = vcombine.low %v3545, %v3549
        %v6094 = vcombine.low %v3553, %v3557
        %v6095 = vcombine.low %v3561, %v3565
        %v6097 = vunpack.c.l.s4 1966171168
        %v6098 = vunpack.c.0.s8 %v6097
        %v6099 = vlaneseq
        %v6100 = vshrl.u32 %v6099, 7
        %v6101 = vsub.s32 %v6098, %v6100
        %v6102 = vrot.slane %v6092, %v6101
        %v6104 = vunpack.c.l.s4 1966171168
        %v6105 = vunpack.c.0.s8 %v6104
        %v6106 = vlaneseq
        %v6107 = vshrl.u32 %v6106, 7
        %v6108 = vsub.s32 %v6105, %v6107
        %v6109 = vrot.slane %v6093, %v6108
        %v6111 = vunpack.c.l.s4 1966171168
        %v6112 = vunpack.c.0.s8 %v6111
        %v6113 = vlaneseq
        %v6114 = vshrl.u32 %v6113, 7
        %v6115 = vsub.s32 %v6112, %v6114
        %v6116 = vrot.slane %v6094, %v6115
        %v6118 = vunpack.c.l.s4 1966171168
        %v6119 = vunpack.c.0.s8 %v6118
        %v6120 = vlaneseq
        %v6121 = vshrl.u32 %v6120, 7
        %v6122 = vsub.s32 %v6119, %v6121
        %v6123 = vrot.slane %v6095, %v6122
        %v6124 = vcombine.low %v6102, %v6109
        %v6125 = vcombine.low %v6116, %v6123
        %v6127 = vunpack.c.l.s4 1966171168
        %v6128 = vunpack.c.0.s8 %v6127
        %v6129 = vlaneseq
        %v6130 = vshrl.u32 %v6129, 7
        %v6131 = vsub.s32 %v6128, %v6130
        %v6132 = vrot.slane %v6124, %v6131
        %v6134 = vunpack.c.l.s4 1966171168
        %v6135 = vunpack.c.0.s8 %v6134
        %v6136 = vlaneseq
        %v6137 = vshrl.u32 %v6136, 7
        %v6138 = vsub.s32 %v6135, %v6137
        %v6139 = vrot.slane %v6125, %v6138
        %v6140 = vcombine.low %v6132, %v6139
        %v6141 = vcombine.low %v3569, %v3573
        %v6142 = vcombine.low %v3577, %v3581
        %v6143 = vcombine.low %v3585, %v3589
        %v6144 = vcombine.low %v3593, %v3597
        %v6146 = vunpack.c.l.s4 1966171168
        %v6147 = vunpack.c.0.s8 %v6146
        %v6148 = vlaneseq
        %v6149 = vshrl.u32 %v6148, 7
        %v6150 = vsub.s32 %v6147, %v6149
        %v6151 = vrot.slane %v6141, %v6150
        %v6153 = vunpack.c.l.s4 1966171168
        %v6154 = vunpack.c.0.s8 %v6153
        %v6155 = vlaneseq
        %v6156 = vshrl.u32 %v6155, 7
        %v6157 = vsub.s32 %v6154, %v6156
        %v6158 = vrot.slane %v6142, %v6157
        %v6160 = vunpack.c.l.s4 1966171168
        %v6161 = vunpack.c.0.s8 %v6160
        %v6162 = vlaneseq
        %v6163 = vshrl.u32 %v6162, 7
        %v6164 = vsub.s32 %v6161, %v6163
        %v6165 = vrot.slane %v6143, %v6164
        %v6167 = vunpack.c.l.s4 1966171168
        %v6168 = vunpack.c.0.s8 %v6167
        %v6169 = vlaneseq
        %v6170 = vshrl.u32 %v6169, 7
        %v6171 = vsub.s32 %v6168, %v6170
        %v6172 = vrot.slane %v6144, %v6171
        %v6173 = vcombine.low %v6151, %v6158
        %v6174 = vcombine.low %v6165, %v6172
        %v6176 = vunpack.c.l.s4 1966171168
        %v6177 = vunpack.c.0.s8 %v6176
        %v6178 = vlaneseq
        %v6179 = vshrl.u32 %v6178, 7
        %v6180 = vsub.s32 %v6177, %v6179
        %v6181 = vrot.slane %v6173, %v6180
        %v6183 = vunpack.c.l.s4 1966171168
        %v6184 = vunpack.c.0.s8 %v6183
        %v6185 = vlaneseq
        %v6186 = vshrl.u32 %v6185, 7
        %v6187 = vsub.s32 %v6184, %v6186
        %v6188 = vrot.slane %v6174, %v6187
        %v6189 = vcombine.low %v6181, %v6188
        %v6190 = vcombine.low %v3601, %v3605
        %v6191 = vcombine.low %v3609, %v3613
        %v6192 = vcombine.low %v3617, %v3621
        %v6193 = vcombine.low %v3625, %v3629
        %v6195 = vunpack.c.l.s4 1966171168
        %v6196 = vunpack.c.0.s8 %v6195
        %v6197 = vlaneseq
        %v6198 = vshrl.u32 %v6197, 7
        %v6199 = vsub.s32 %v6196, %v6198
        %v6200 = vrot.slane %v6190, %v6199
        %v6202 = vunpack.c.l.s4 1966171168
        %v6203 = vunpack.c.0.s8 %v6202
        %v6204 = vlaneseq
        %v6205 = vshrl.u32 %v6204, 7
        %v6206 = vsub.s32 %v6203, %v6205
        %v6207 = vrot.slane %v6191, %v6206
        %v6209 = vunpack.c.l.s4 1966171168
        %v6210 = vunpack.c.0.s8 %v6209
        %v6211 = vlaneseq
        %v6212 = vshrl.u32 %v6211, 7
        %v6213 = vsub.s32 %v6210, %v6212
        %v6214 = vrot.slane %v6192, %v6213
        %v6216 = vunpack.c.l.s4 1966171168
        %v6217 = vunpack.c.0.s8 %v6216
        %v6218 = vlaneseq
        %v6219 = vshrl.u32 %v6218, 7
        %v6220 = vsub.s32 %v6217, %v6219
        %v6221 = vrot.slane %v6193, %v6220
        %v6222 = vcombine.low %v6200, %v6207
        %v6223 = vcombine.low %v6214, %v6221
        %v6225 = vunpack.c.l.s4 1966171168
        %v6226 = vunpack.c.0.s8 %v6225
        %v6227 = vlaneseq
        %v6228 = vshrl.u32 %v6227, 7
        %v6229 = vsub.s32 %v6226, %v6228
        %v6230 = vrot.slane %v6222, %v6229
        %v6232 = vunpack.c.l.s4 1966171168
        %v6233 = vunpack.c.0.s8 %v6232
        %v6234 = vlaneseq
        %v6235 = vshrl.u32 %v6234, 7
        %v6236 = vsub.s32 %v6233, %v6235
        %v6237 = vrot.slane %v6223, %v6236
        %v6238 = vcombine.low %v6230, %v6237
        %v6239 = vcombine.low %v3633, %v3637
        %v6240 = vcombine.low %v3641, %v3645
        %v6241 = vcombine.low %v3649, %v3653
        %v6242 = vcombine.low %v3657, %v3661
        %v6244 = vunpack.c.l.s4 1966171168
        %v6245 = vunpack.c.0.s8 %v6244
        %v6246 = vlaneseq
        %v6247 = vshrl.u32 %v6246, 7
        %v6248 = vsub.s32 %v6245, %v6247
        %v6249 = vrot.slane %v6239, %v6248
        %v6251 = vunpack.c.l.s4 1966171168
        %v6252 = vunpack.c.0.s8 %v6251
        %v6253 = vlaneseq
        %v6254 = vshrl.u32 %v6253, 7
        %v6255 = vsub.s32 %v6252, %v6254
        %v6256 = vrot.slane %v6240, %v6255
        %v6258 = vunpack.c.l.s4 1966171168
        %v6259 = vunpack.c.0.s8 %v6258
        %v6260 = vlaneseq
        %v6261 = vshrl.u32 %v6260, 7
        %v6262 = vsub.s32 %v6259, %v6261
        %v6263 = vrot.slane %v6241, %v6262
        %v6265 = vunpack.c.l.s4 1966171168
        %v6266 = vunpack.c.0.s8 %v6265
        %v6267 = vlaneseq
        %v6268 = vshrl.u32 %v6267, 7
        %v6269 = vsub.s32 %v6266, %v6268
        %v6270 = vrot.slane %v6242, %v6269
        %v6271 = vcombine.low %v6249, %v6256
        %v6272 = vcombine.low %v6263, %v6270
        %v6274 = vunpack.c.l.s4 1966171168
        %v6275 = vunpack.c.0.s8 %v6274
        %v6276 = vlaneseq
        %v6277 = vshrl.u32 %v6276, 7
        %v6278 = vsub.s32 %v6275, %v6277
        %v6279 = vrot.slane %v6271, %v6278
        %v6281 = vunpack.c.l.s4 1966171168
        %v6282 = vunpack.c.0.s8 %v6281
        %v6283 = vlaneseq
        %v6284 = vshrl.u32 %v6283, 7
        %v6285 = vsub.s32 %v6282, %v6284
        %v6286 = vrot.slane %v6272, %v6285
        %v6287 = vcombine.low %v6279, %v6286
        %v6288 = vcombine.low %v3665, %v3669
        %v6289 = vcombine.low %v3673, %v3677
        %v6290 = vcombine.low %v3681, %v3685
        %v6291 = vcombine.low %v3689, %v3693
        %v6293 = vunpack.c.l.s4 1966171168
        %v6294 = vunpack.c.0.s8 %v6293
        %v6295 = vlaneseq
        %v6296 = vshrl.u32 %v6295, 7
        %v6297 = vsub.s32 %v6294, %v6296
        %v6298 = vrot.slane %v6288, %v6297
        %v6300 = vunpack.c.l.s4 1966171168
        %v6301 = vunpack.c.0.s8 %v6300
        %v6302 = vlaneseq
        %v6303 = vshrl.u32 %v6302, 7
        %v6304 = vsub.s32 %v6301, %v6303
        %v6305 = vrot.slane %v6289, %v6304
        %v6307 = vunpack.c.l.s4 1966171168
        %v6308 = vunpack.c.0.s8 %v6307
        %v6309 = vlaneseq
        %v6310 = vshrl.u32 %v6309, 7
        %v6311 = vsub.s32 %v6308, %v6310
        %v6312 = vrot.slane %v6290, %v6311
        %v6314 = vunpack.c.l.s4 1966171168
        %v6315 = vunpack.c.0.s8 %v6314
        %v6316 = vlaneseq
        %v6317 = vshrl.u32 %v6316, 7
        %v6318 = vsub.s32 %v6315, %v6317
        %v6319 = vrot.slane %v6291, %v6318
        %v6320 = vcombine.low %v6298, %v6305
        %v6321 = vcombine.low %v6312, %v6319
        %v6323 = vunpack.c.l.s4 1966171168
        %v6324 = vunpack.c.0.s8 %v6323
        %v6325 = vlaneseq
        %v6326 = vshrl.u32 %v6325, 7
        %v6327 = vsub.s32 %v6324, %v6326
        %v6328 = vrot.slane %v6320, %v6327
        %v6330 = vunpack.c.l.s4 1966171168
        %v6331 = vunpack.c.0.s8 %v6330
        %v6332 = vlaneseq
        %v6333 = vshrl.u32 %v6332, 7
        %v6334 = vsub.s32 %v6331, %v6333
        %v6335 = vrot.slane %v6321, %v6334
        %v6336 = vcombine.low %v6328, %v6335
        %v6337 = vcombine.low %v3697, %v3701
        %v6338 = vcombine.low %v3705, %v3709
        %v6339 = vcombine.low %v3713, %v3717
        %v6340 = vcombine.low %v3721, %v3725
        %v6342 = vunpack.c.l.s4 1966171168
        %v6343 = vunpack.c.0.s8 %v6342
        %v6344 = vlaneseq
        %v6345 = vshrl.u32 %v6344, 7
        %v6346 = vsub.s32 %v6343, %v6345
        %v6347 = vrot.slane %v6337, %v6346
        %v6349 = vunpack.c.l.s4 1966171168
        %v6350 = vunpack.c.0.s8 %v6349
        %v6351 = vlaneseq
        %v6352 = vshrl.u32 %v6351, 7
        %v6353 = vsub.s32 %v6350, %v6352
        %v6354 = vrot.slane %v6338, %v6353
        %v6356 = vunpack.c.l.s4 1966171168
        %v6357 = vunpack.c.0.s8 %v6356
        %v6358 = vlaneseq
        %v6359 = vshrl.u32 %v6358, 7
        %v6360 = vsub.s32 %v6357, %v6359
        %v6361 = vrot.slane %v6339, %v6360
        %v6363 = vunpack.c.l.s4 1966171168
        %v6364 = vunpack.c.0.s8 %v6363
        %v6365 = vlaneseq
        %v6366 = vshrl.u32 %v6365, 7
        %v6367 = vsub.s32 %v6364, %v6366
        %v6368 = vrot.slane %v6340, %v6367
        %v6369 = vcombine.low %v6347, %v6354
        %v6370 = vcombine.low %v6361, %v6368
        %v6372 = vunpack.c.l.s4 1966171168
        %v6373 = vunpack.c.0.s8 %v6372
        %v6374 = vlaneseq
        %v6375 = vshrl.u32 %v6374, 7
        %v6376 = vsub.s32 %v6373, %v6375
        %v6377 = vrot.slane %v6369, %v6376
        %v6379 = vunpack.c.l.s4 1966171168
        %v6380 = vunpack.c.0.s8 %v6379
        %v6381 = vlaneseq
        %v6382 = vshrl.u32 %v6381, 7
        %v6383 = vsub.s32 %v6380, %v6382
        %v6384 = vrot.slane %v6370, %v6383
        %v6385 = vcombine.low %v6377, %v6384
        %v6386 = vcombine.low %v3729, %v3733
        %v6387 = vcombine.low %v3737, %v3741
        %v6388 = vcombine.low %v3745, %v3749
        %v6389 = vcombine.low %v3753, %v3757
        %v6391 = vunpack.c.l.s4 1966171168
        %v6392 = vunpack.c.0.s8 %v6391
        %v6393 = vlaneseq
        %v6394 = vshrl.u32 %v6393, 7
        %v6395 = vsub.s32 %v6392, %v6394
        %v6396 = vrot.slane %v6386, %v6395
        %v6398 = vunpack.c.l.s4 1966171168
        %v6399 = vunpack.c.0.s8 %v6398
        %v6400 = vlaneseq
        %v6401 = vshrl.u32 %v6400, 7
        %v6402 = vsub.s32 %v6399, %v6401
        %v6403 = vrot.slane %v6387, %v6402
        %v6405 = vunpack.c.l.s4 1966171168
        %v6406 = vunpack.c.0.s8 %v6405
        %v6407 = vlaneseq
        %v6408 = vshrl.u32 %v6407, 7
        %v6409 = vsub.s32 %v6406, %v6408
        %v6410 = vrot.slane %v6388, %v6409
        %v6412 = vunpack.c.l.s4 1966171168
        %v6413 = vunpack.c.0.s8 %v6412
        %v6414 = vlaneseq
        %v6415 = vshrl.u32 %v6414, 7
        %v6416 = vsub.s32 %v6413, %v6415
        %v6417 = vrot.slane %v6389, %v6416
        %v6418 = vcombine.low %v6396, %v6403
        %v6419 = vcombine.low %v6410, %v6417
        %v6421 = vunpack.c.l.s4 1966171168
        %v6422 = vunpack.c.0.s8 %v6421
        %v6423 = vlaneseq
        %v6424 = vshrl.u32 %v6423, 7
        %v6425 = vsub.s32 %v6422, %v6424
        %v6426 = vrot.slane %v6418, %v6425
        %v6428 = vunpack.c.l.s4 1966171168
        %v6429 = vunpack.c.0.s8 %v6428
        %v6430 = vlaneseq
        %v6431 = vshrl.u32 %v6430, 7
        %v6432 = vsub.s32 %v6429, %v6431
        %v6433 = vrot.slane %v6419, %v6432
        %v6434 = vcombine.low %v6426, %v6433
        %v6435 = vcombine.low %v3761, %v3765
        %v6436 = vcombine.low %v3769, %v3773
        %v6437 = vcombine.low %v3777, %v3781
        %v6438 = vcombine.low %v3785, %v3789
        %v6440 = vunpack.c.l.s4 1966171168
        %v6441 = vunpack.c.0.s8 %v6440
        %v6442 = vlaneseq
        %v6443 = vshrl.u32 %v6442, 7
        %v6444 = vsub.s32 %v6441, %v6443
        %v6445 = vrot.slane %v6435, %v6444
        %v6447 = vunpack.c.l.s4 1966171168
        %v6448 = vunpack.c.0.s8 %v6447
        %v6449 = vlaneseq
        %v6450 = vshrl.u32 %v6449, 7
        %v6451 = vsub.s32 %v6448, %v6450
        %v6452 = vrot.slane %v6436, %v6451
        %v6454 = vunpack.c.l.s4 1966171168
        %v6455 = vunpack.c.0.s8 %v6454
        %v6456 = vlaneseq
        %v6457 = vshrl.u32 %v6456, 7
        %v6458 = vsub.s32 %v6455, %v6457
        %v6459 = vrot.slane %v6437, %v6458
        %v6461 = vunpack.c.l.s4 1966171168
        %v6462 = vunpack.c.0.s8 %v6461
        %v6463 = vlaneseq
        %v6464 = vshrl.u32 %v6463, 7
        %v6465 = vsub.s32 %v6462, %v6464
        %v6466 = vrot.slane %v6438, %v6465
        %v6467 = vcombine.low %v6445, %v6452
        %v6468 = vcombine.low %v6459, %v6466
        %v6470 = vunpack.c.l.s4 1966171168
        %v6471 = vunpack.c.0.s8 %v6470
        %v6472 = vlaneseq
        %v6473 = vshrl.u32 %v6472, 7
        %v6474 = vsub.s32 %v6471, %v6473
        %v6475 = vrot.slane %v6467, %v6474
        %v6477 = vunpack.c.l.s4 1966171168
        %v6478 = vunpack.c.0.s8 %v6477
        %v6479 = vlaneseq
        %v6480 = vshrl.u32 %v6479, 7
        %v6481 = vsub.s32 %v6478, %v6480
        %v6482 = vrot.slane %v6468, %v6481
        %v6483 = vcombine.low %v6475, %v6482
        %v6484 = vcombine.low %v3793, %v3797
        %v6485 = vcombine.low %v3801, %v3805
        %v6486 = vcombine.low %v3809, %v3813
        %v6487 = vcombine.low %v3817, %v3821
        %v6489 = vunpack.c.l.s4 1966171168
        %v6490 = vunpack.c.0.s8 %v6489
        %v6491 = vlaneseq
        %v6492 = vshrl.u32 %v6491, 7
        %v6493 = vsub.s32 %v6490, %v6492
        %v6494 = vrot.slane %v6484, %v6493
        %v6496 = vunpack.c.l.s4 1966171168
        %v6497 = vunpack.c.0.s8 %v6496
        %v6498 = vlaneseq
        %v6499 = vshrl.u32 %v6498, 7
        %v6500 = vsub.s32 %v6497, %v6499
        %v6501 = vrot.slane %v6485, %v6500
        %v6503 = vunpack.c.l.s4 1966171168
        %v6504 = vunpack.c.0.s8 %v6503
        %v6505 = vlaneseq
        %v6506 = vshrl.u32 %v6505, 7
        %v6507 = vsub.s32 %v6504, %v6506
        %v6508 = vrot.slane %v6486, %v6507
        %v6510 = vunpack.c.l.s4 1966171168
        %v6511 = vunpack.c.0.s8 %v6510
        %v6512 = vlaneseq
        %v6513 = vshrl.u32 %v6512, 7
        %v6514 = vsub.s32 %v6511, %v6513
        %v6515 = vrot.slane %v6487, %v6514
        %v6516 = vcombine.low %v6494, %v6501
        %v6517 = vcombine.low %v6508, %v6515
        %v6519 = vunpack.c.l.s4 1966171168
        %v6520 = vunpack.c.0.s8 %v6519
        %v6521 = vlaneseq
        %v6522 = vshrl.u32 %v6521, 7
        %v6523 = vsub.s32 %v6520, %v6522
        %v6524 = vrot.slane %v6516, %v6523
        %v6526 = vunpack.c.l.s4 1966171168
        %v6527 = vunpack.c.0.s8 %v6526
        %v6528 = vlaneseq
        %v6529 = vshrl.u32 %v6528, 7
        %v6530 = vsub.s32 %v6527, %v6529
        %v6531 = vrot.slane %v6517, %v6530
        %v6532 = vcombine.low %v6524, %v6531
        %v6533 = vcombine.low %v3825, %v3829
        %v6534 = vcombine.low %v3833, %v3837
        %v6535 = vcombine.low %v3841, %v3845
        %v6536 = vcombine.low %v3849, %v3853
        %v6538 = vunpack.c.l.s4 1966171168
        %v6539 = vunpack.c.0.s8 %v6538
        %v6540 = vlaneseq
        %v6541 = vshrl.u32 %v6540, 7
        %v6542 = vsub.s32 %v6539, %v6541
        %v6543 = vrot.slane %v6533, %v6542
        %v6545 = vunpack.c.l.s4 1966171168
        %v6546 = vunpack.c.0.s8 %v6545
        %v6547 = vlaneseq
        %v6548 = vshrl.u32 %v6547, 7
        %v6549 = vsub.s32 %v6546, %v6548
        %v6550 = vrot.slane %v6534, %v6549
        %v6552 = vunpack.c.l.s4 1966171168
        %v6553 = vunpack.c.0.s8 %v6552
        %v6554 = vlaneseq
        %v6555 = vshrl.u32 %v6554, 7
        %v6556 = vsub.s32 %v6553, %v6555
        %v6557 = vrot.slane %v6535, %v6556
        %v6559 = vunpack.c.l.s4 1966171168
        %v6560 = vunpack.c.0.s8 %v6559
        %v6561 = vlaneseq
        %v6562 = vshrl.u32 %v6561, 7
        %v6563 = vsub.s32 %v6560, %v6562
        %v6564 = vrot.slane %v6536, %v6563
        %v6565 = vcombine.low %v6543, %v6550
        %v6566 = vcombine.low %v6557, %v6564
        %v6568 = vunpack.c.l.s4 1966171168
        %v6569 = vunpack.c.0.s8 %v6568
        %v6570 = vlaneseq
        %v6571 = vshrl.u32 %v6570, 7
        %v6572 = vsub.s32 %v6569, %v6571
        %v6573 = vrot.slane %v6565, %v6572
        %v6575 = vunpack.c.l.s4 1966171168
        %v6576 = vunpack.c.0.s8 %v6575
        %v6577 = vlaneseq
        %v6578 = vshrl.u32 %v6577, 7
        %v6579 = vsub.s32 %v6576, %v6578
        %v6580 = vrot.slane %v6566, %v6579
        %v6581 = vcombine.low %v6573, %v6580
        %v6582 = vcombine.low %v3857, %v3861
        %v6583 = vcombine.low %v3865, %v3869
        %v6584 = vcombine.low %v3873, %v3877
        %v6585 = vcombine.low %v3881, %v3885
        %v6587 = vunpack.c.l.s4 1966171168
        %v6588 = vunpack.c.0.s8 %v6587
        %v6589 = vlaneseq
        %v6590 = vshrl.u32 %v6589, 7
        %v6591 = vsub.s32 %v6588, %v6590
        %v6592 = vrot.slane %v6582, %v6591
        %v6594 = vunpack.c.l.s4 1966171168
        %v6595 = vunpack.c.0.s8 %v6594
        %v6596 = vlaneseq
        %v6597 = vshrl.u32 %v6596, 7
        %v6598 = vsub.s32 %v6595, %v6597
        %v6599 = vrot.slane %v6583, %v6598
        %v6601 = vunpack.c.l.s4 1966171168
        %v6602 = vunpack.c.0.s8 %v6601
        %v6603 = vlaneseq
        %v6604 = vshrl.u32 %v6603, 7
        %v6605 = vsub.s32 %v6602, %v6604
        %v6606 = vrot.slane %v6584, %v6605
        %v6608 = vunpack.c.l.s4 1966171168
        %v6609 = vunpack.c.0.s8 %v6608
        %v6610 = vlaneseq
        %v6611 = vshrl.u32 %v6610, 7
        %v6612 = vsub.s32 %v6609, %v6611
        %v6613 = vrot.slane %v6585, %v6612
        %v6614 = vcombine.low %v6592, %v6599
        %v6615 = vcombine.low %v6606, %v6613
        %v6617 = vunpack.c.l.s4 1966171168
        %v6618 = vunpack.c.0.s8 %v6617
        %v6619 = vlaneseq
        %v6620 = vshrl.u32 %v6619, 7
        %v6621 = vsub.s32 %v6618, %v6620
        %v6622 = vrot.slane %v6614, %v6621
        %v6624 = vunpack.c.l.s4 1966171168
        %v6625 = vunpack.c.0.s8 %v6624
        %v6626 = vlaneseq
        %v6627 = vshrl.u32 %v6626, 7
        %v6628 = vsub.s32 %v6625, %v6627
        %v6629 = vrot.slane %v6615, %v6628
        %v6630 = vcombine.low %v6622, %v6629
        %v6631 = vcombine.low %v3889, %v3893
        %v6632 = vcombine.low %v3897, %v3901
        %v6633 = vcombine.low %v3905, %v3909
        %v6634 = vcombine.low %v3913, %v3917
        %v6636 = vunpack.c.l.s4 1966171168
        %v6637 = vunpack.c.0.s8 %v6636
        %v6638 = vlaneseq
        %v6639 = vshrl.u32 %v6638, 7
        %v6640 = vsub.s32 %v6637, %v6639
        %v6641 = vrot.slane %v6631, %v6640
        %v6643 = vunpack.c.l.s4 1966171168
        %v6644 = vunpack.c.0.s8 %v6643
        %v6645 = vlaneseq
        %v6646 = vshrl.u32 %v6645, 7
        %v6647 = vsub.s32 %v6644, %v6646
        %v6648 = vrot.slane %v6632, %v6647
        %v6650 = vunpack.c.l.s4 1966171168
        %v6651 = vunpack.c.0.s8 %v6650
        %v6652 = vlaneseq
        %v6653 = vshrl.u32 %v6652, 7
        %v6654 = vsub.s32 %v6651, %v6653
        %v6655 = vrot.slane %v6633, %v6654
        %v6657 = vunpack.c.l.s4 1966171168
        %v6658 = vunpack.c.0.s8 %v6657
        %v6659 = vlaneseq
        %v6660 = vshrl.u32 %v6659, 7
        %v6661 = vsub.s32 %v6658, %v6660
        %v6662 = vrot.slane %v6634, %v6661
        %v6663 = vcombine.low %v6641, %v6648
        %v6664 = vcombine.low %v6655, %v6662
        %v6666 = vunpack.c.l.s4 1966171168
        %v6667 = vunpack.c.0.s8 %v6666
        %v6668 = vlaneseq
        %v6669 = vshrl.u32 %v6668, 7
        %v6670 = vsub.s32 %v6667, %v6669
        %v6671 = vrot.slane %v6663, %v6670
        %v6673 = vunpack.c.l.s4 1966171168
        %v6674 = vunpack.c.0.s8 %v6673
        %v6675 = vlaneseq
        %v6676 = vshrl.u32 %v6675, 7
        %v6677 = vsub.s32 %v6674, %v6676
        %v6678 = vrot.slane %v6664, %v6677
        %v6679 = vcombine.low %v6671, %v6678
        %v6680 = vcombine.low %v3921, %v3925
        %v6681 = vcombine.low %v3929, %v3933
        %v6682 = vcombine.low %v3937, %v3941
        %v6683 = vcombine.low %v3945, %v3949
        %v6685 = vunpack.c.l.s4 1966171168
        %v6686 = vunpack.c.0.s8 %v6685
        %v6687 = vlaneseq
        %v6688 = vshrl.u32 %v6687, 7
        %v6689 = vsub.s32 %v6686, %v6688
        %v6690 = vrot.slane %v6680, %v6689
        %v6692 = vunpack.c.l.s4 1966171168
        %v6693 = vunpack.c.0.s8 %v6692
        %v6694 = vlaneseq
        %v6695 = vshrl.u32 %v6694, 7
        %v6696 = vsub.s32 %v6693, %v6695
        %v6697 = vrot.slane %v6681, %v6696
        %v6699 = vunpack.c.l.s4 1966171168
        %v6700 = vunpack.c.0.s8 %v6699
        %v6701 = vlaneseq
        %v6702 = vshrl.u32 %v6701, 7
        %v6703 = vsub.s32 %v6700, %v6702
        %v6704 = vrot.slane %v6682, %v6703
        %v6706 = vunpack.c.l.s4 1966171168
        %v6707 = vunpack.c.0.s8 %v6706
        %v6708 = vlaneseq
        %v6709 = vshrl.u32 %v6708, 7
        %v6710 = vsub.s32 %v6707, %v6709
        %v6711 = vrot.slane %v6683, %v6710
        %v6712 = vcombine.low %v6690, %v6697
        %v6713 = vcombine.low %v6704, %v6711
        %v6715 = vunpack.c.l.s4 1966171168
        %v6716 = vunpack.c.0.s8 %v6715
        %v6717 = vlaneseq
        %v6718 = vshrl.u32 %v6717, 7
        %v6719 = vsub.s32 %v6716, %v6718
        %v6720 = vrot.slane %v6712, %v6719
        %v6722 = vunpack.c.l.s4 1966171168
        %v6723 = vunpack.c.0.s8 %v6722
        %v6724 = vlaneseq
        %v6725 = vshrl.u32 %v6724, 7
        %v6726 = vsub.s32 %v6723, %v6725
        %v6727 = vrot.slane %v6713, %v6726
        %v6728 = vcombine.low %v6720, %v6727
        %v6729 = vcombine.low %v3953, %v3957
        %v6730 = vcombine.low %v3961, %v3965
        %v6731 = vcombine.low %v3969, %v3973
        %v6732 = vcombine.low %v3977, %v3981
        %v6734 = vunpack.c.l.s4 1966171168
        %v6735 = vunpack.c.0.s8 %v6734
        %v6736 = vlaneseq
        %v6737 = vshrl.u32 %v6736, 7
        %v6738 = vsub.s32 %v6735, %v6737
        %v6739 = vrot.slane %v6729, %v6738
        %v6741 = vunpack.c.l.s4 1966171168
        %v6742 = vunpack.c.0.s8 %v6741
        %v6743 = vlaneseq
        %v6744 = vshrl.u32 %v6743, 7
        %v6745 = vsub.s32 %v6742, %v6744
        %v6746 = vrot.slane %v6730, %v6745
        %v6748 = vunpack.c.l.s4 1966171168
        %v6749 = vunpack.c.0.s8 %v6748
        %v6750 = vlaneseq
        %v6751 = vshrl.u32 %v6750, 7
        %v6752 = vsub.s32 %v6749, %v6751
        %v6753 = vrot.slane %v6731, %v6752
        %v6755 = vunpack.c.l.s4 1966171168
        %v6756 = vunpack.c.0.s8 %v6755
        %v6757 = vlaneseq
        %v6758 = vshrl.u32 %v6757, 7
        %v6759 = vsub.s32 %v6756, %v6758
        %v6760 = vrot.slane %v6732, %v6759
        %v6761 = vcombine.low %v6739, %v6746
        %v6762 = vcombine.low %v6753, %v6760
        %v6764 = vunpack.c.l.s4 1966171168
        %v6765 = vunpack.c.0.s8 %v6764
        %v6766 = vlaneseq
        %v6767 = vshrl.u32 %v6766, 7
        %v6768 = vsub.s32 %v6765, %v6767
        %v6769 = vrot.slane %v6761, %v6768
        %v6771 = vunpack.c.l.s4 1966171168
        %v6772 = vunpack.c.0.s8 %v6771
        %v6773 = vlaneseq
        %v6774 = vshrl.u32 %v6773, 7
        %v6775 = vsub.s32 %v6772, %v6774
        %v6776 = vrot.slane %v6762, %v6775
        %v6777 = vcombine.low %v6769, %v6776
        %v6778 = vcombine.low %v3985, %v3989
        %v6779 = vcombine.low %v3993, %v3997
        %v6780 = vcombine.low %v4001, %v4005
        %v6781 = vcombine.low %v4009, %v4013
        %v6783 = vunpack.c.l.s4 1966171168
        %v6784 = vunpack.c.0.s8 %v6783
        %v6785 = vlaneseq
        %v6786 = vshrl.u32 %v6785, 7
        %v6787 = vsub.s32 %v6784, %v6786
        %v6788 = vrot.slane %v6778, %v6787
        %v6790 = vunpack.c.l.s4 1966171168
        %v6791 = vunpack.c.0.s8 %v6790
        %v6792 = vlaneseq
        %v6793 = vshrl.u32 %v6792, 7
        %v6794 = vsub.s32 %v6791, %v6793
        %v6795 = vrot.slane %v6779, %v6794
        %v6797 = vunpack.c.l.s4 1966171168
        %v6798 = vunpack.c.0.s8 %v6797
        %v6799 = vlaneseq
        %v6800 = vshrl.u32 %v6799, 7
        %v6801 = vsub.s32 %v6798, %v6800
        %v6802 = vrot.slane %v6780, %v6801
        %v6804 = vunpack.c.l.s4 1966171168
        %v6805 = vunpack.c.0.s8 %v6804
        %v6806 = vlaneseq
        %v6807 = vshrl.u32 %v6806, 7
        %v6808 = vsub.s32 %v6805, %v6807
        %v6809 = vrot.slane %v6781, %v6808
        %v6810 = vcombine.low %v6788, %v6795
        %v6811 = vcombine.low %v6802, %v6809
        %v6813 = vunpack.c.l.s4 1966171168
        %v6814 = vunpack.c.0.s8 %v6813
        %v6815 = vlaneseq
        %v6816 = vshrl.u32 %v6815, 7
        %v6817 = vsub.s32 %v6814, %v6816
        %v6818 = vrot.slane %v6810, %v6817
        %v6820 = vunpack.c.l.s4 1966171168
        %v6821 = vunpack.c.0.s8 %v6820
        %v6822 = vlaneseq
        %v6823 = vshrl.u32 %v6822, 7
        %v6824 = vsub.s32 %v6821, %v6823
        %v6825 = vrot.slane %v6811, %v6824
        %v6826 = vcombine.low %v6818, %v6825
        %v6827 = vcombine.low %v4017, %v4021
        %v6828 = vcombine.low %v4025, %v4029
        %v6829 = vcombine.low %v4033, %v4037
        %v6830 = vcombine.low %v4041, %v4045
        %v6832 = vunpack.c.l.s4 1966171168
        %v6833 = vunpack.c.0.s8 %v6832
        %v6834 = vlaneseq
        %v6835 = vshrl.u32 %v6834, 7
        %v6836 = vsub.s32 %v6833, %v6835
        %v6837 = vrot.slane %v6827, %v6836
        %v6839 = vunpack.c.l.s4 1966171168
        %v6840 = vunpack.c.0.s8 %v6839
        %v6841 = vlaneseq
        %v6842 = vshrl.u32 %v6841, 7
        %v6843 = vsub.s32 %v6840, %v6842
        %v6844 = vrot.slane %v6828, %v6843
        %v6846 = vunpack.c.l.s4 1966171168
        %v6847 = vunpack.c.0.s8 %v6846
        %v6848 = vlaneseq
        %v6849 = vshrl.u32 %v6848, 7
        %v6850 = vsub.s32 %v6847, %v6849
        %v6851 = vrot.slane %v6829, %v6850
        %v6853 = vunpack.c.l.s4 1966171168
        %v6854 = vunpack.c.0.s8 %v6853
        %v6855 = vlaneseq
        %v6856 = vshrl.u32 %v6855, 7
        %v6857 = vsub.s32 %v6854, %v6856
        %v6858 = vrot.slane %v6830, %v6857
        %v6859 = vcombine.low %v6837, %v6844
        %v6860 = vcombine.low %v6851, %v6858
        %v6862 = vunpack.c.l.s4 1966171168
        %v6863 = vunpack.c.0.s8 %v6862
        %v6864 = vlaneseq
        %v6865 = vshrl.u32 %v6864, 7
        %v6866 = vsub.s32 %v6863, %v6865
        %v6867 = vrot.slane %v6859, %v6866
        %v6869 = vunpack.c.l.s4 1966171168
        %v6870 = vunpack.c.0.s8 %v6869
        %v6871 = vlaneseq
        %v6872 = vshrl.u32 %v6871, 7
        %v6873 = vsub.s32 %v6870, %v6872
        %v6874 = vrot.slane %v6860, %v6873
        %v6875 = vcombine.low %v6867, %v6874
        %v6876 = vcombine.low %v4049, %v4053
        %v6877 = vcombine.low %v4057, %v4061
        %v6878 = vcombine.low %v4065, %v4069
        %v6879 = vcombine.low %v4073, %v4077
        %v6881 = vunpack.c.l.s4 1966171168
        %v6882 = vunpack.c.0.s8 %v6881
        %v6883 = vlaneseq
        %v6884 = vshrl.u32 %v6883, 7
        %v6885 = vsub.s32 %v6882, %v6884
        %v6886 = vrot.slane %v6876, %v6885
        %v6888 = vunpack.c.l.s4 1966171168
        %v6889 = vunpack.c.0.s8 %v6888
        %v6890 = vlaneseq
        %v6891 = vshrl.u32 %v6890, 7
        %v6892 = vsub.s32 %v6889, %v6891
        %v6893 = vrot.slane %v6877, %v6892
        %v6895 = vunpack.c.l.s4 1966171168
        %v6896 = vunpack.c.0.s8 %v6895
        %v6897 = vlaneseq
        %v6898 = vshrl.u32 %v6897, 7
        %v6899 = vsub.s32 %v6896, %v6898
        %v6900 = vrot.slane %v6878, %v6899
        %v6902 = vunpack.c.l.s4 1966171168
        %v6903 = vunpack.c.0.s8 %v6902
        %v6904 = vlaneseq
        %v6905 = vshrl.u32 %v6904, 7
        %v6906 = vsub.s32 %v6903, %v6905
        %v6907 = vrot.slane %v6879, %v6906
        %v6908 = vcombine.low %v6886, %v6893
        %v6909 = vcombine.low %v6900, %v6907
        %v6911 = vunpack.c.l.s4 1966171168
        %v6912 = vunpack.c.0.s8 %v6911
        %v6913 = vlaneseq
        %v6914 = vshrl.u32 %v6913, 7
        %v6915 = vsub.s32 %v6912, %v6914
        %v6916 = vrot.slane %v6908, %v6915
        %v6918 = vunpack.c.l.s4 1966171168
        %v6919 = vunpack.c.0.s8 %v6918
        %v6920 = vlaneseq
        %v6921 = vshrl.u32 %v6920, 7
        %v6922 = vsub.s32 %v6919, %v6921
        %v6923 = vrot.slane %v6909, %v6922
        %v6924 = vcombine.low %v6916, %v6923
        %v6925 = vcombine.low %v4081, %v4085
        %v6926 = vcombine.low %v4089, %v4093
        %v6927 = vcombine.low %v4097, %v4101
        %v6928 = vcombine.low %v4105, %v4109
        %v6930 = vunpack.c.l.s4 1966171168
        %v6931 = vunpack.c.0.s8 %v6930
        %v6932 = vlaneseq
        %v6933 = vshrl.u32 %v6932, 7
        %v6934 = vsub.s32 %v6931, %v6933
        %v6935 = vrot.slane %v6925, %v6934
        %v6937 = vunpack.c.l.s4 1966171168
        %v6938 = vunpack.c.0.s8 %v6937
        %v6939 = vlaneseq
        %v6940 = vshrl.u32 %v6939, 7
        %v6941 = vsub.s32 %v6938, %v6940
        %v6942 = vrot.slane %v6926, %v6941
        %v6944 = vunpack.c.l.s4 1966171168
        %v6945 = vunpack.c.0.s8 %v6944
        %v6946 = vlaneseq
        %v6947 = vshrl.u32 %v6946, 7
        %v6948 = vsub.s32 %v6945, %v6947
        %v6949 = vrot.slane %v6927, %v6948
        %v6951 = vunpack.c.l.s4 1966171168
        %v6952 = vunpack.c.0.s8 %v6951
        %v6953 = vlaneseq
        %v6954 = vshrl.u32 %v6953, 7
        %v6955 = vsub.s32 %v6952, %v6954
        %v6956 = vrot.slane %v6928, %v6955
        %v6957 = vcombine.low %v6935, %v6942
        %v6958 = vcombine.low %v6949, %v6956
        %v6960 = vunpack.c.l.s4 1966171168
        %v6961 = vunpack.c.0.s8 %v6960
        %v6962 = vlaneseq
        %v6963 = vshrl.u32 %v6962, 7
        %v6964 = vsub.s32 %v6961, %v6963
        %v6965 = vrot.slane %v6957, %v6964
        %v6967 = vunpack.c.l.s4 1966171168
        %v6968 = vunpack.c.0.s8 %v6967
        %v6969 = vlaneseq
        %v6970 = vshrl.u32 %v6969, 7
        %v6971 = vsub.s32 %v6968, %v6970
        %v6972 = vrot.slane %v6958, %v6971
        %v6973 = vcombine.low %v6965, %v6972
        %v6974 = vcombine.low %v4113, %v4117
        %v6975 = vcombine.low %v4121, %v4125
        %v6976 = vcombine.low %v4129, %v4133
        %v6977 = vcombine.low %v4137, %v4141
        %v6979 = vunpack.c.l.s4 1966171168
        %v6980 = vunpack.c.0.s8 %v6979
        %v6981 = vlaneseq
        %v6982 = vshrl.u32 %v6981, 7
        %v6983 = vsub.s32 %v6980, %v6982
        %v6984 = vrot.slane %v6974, %v6983
        %v6986 = vunpack.c.l.s4 1966171168
        %v6987 = vunpack.c.0.s8 %v6986
        %v6988 = vlaneseq
        %v6989 = vshrl.u32 %v6988, 7
        %v6990 = vsub.s32 %v6987, %v6989
        %v6991 = vrot.slane %v6975, %v6990
        %v6993 = vunpack.c.l.s4 1966171168
        %v6994 = vunpack.c.0.s8 %v6993
        %v6995 = vlaneseq
        %v6996 = vshrl.u32 %v6995, 7
        %v6997 = vsub.s32 %v6994, %v6996
        %v6998 = vrot.slane %v6976, %v6997
        %v7000 = vunpack.c.l.s4 1966171168
        %v7001 = vunpack.c.0.s8 %v7000
        %v7002 = vlaneseq
        %v7003 = vshrl.u32 %v7002, 7
        %v7004 = vsub.s32 %v7001, %v7003
        %v7005 = vrot.slane %v6977, %v7004
        %v7006 = vcombine.low %v6984, %v6991
        %v7007 = vcombine.low %v6998, %v7005
        %v7009 = vunpack.c.l.s4 1966171168
        %v7010 = vunpack.c.0.s8 %v7009
        %v7011 = vlaneseq
        %v7012 = vshrl.u32 %v7011, 7
        %v7013 = vsub.s32 %v7010, %v7012
        %v7014 = vrot.slane %v7006, %v7013
        %v7016 = vunpack.c.l.s4 1966171168
        %v7017 = vunpack.c.0.s8 %v7016
        %v7018 = vlaneseq
        %v7019 = vshrl.u32 %v7018, 7
        %v7020 = vsub.s32 %v7017, %v7019
        %v7021 = vrot.slane %v7007, %v7020
        %v7022 = vcombine.low %v7014, %v7021
        %v7023 = vcombine.low %v4145, %v4149
        %v7024 = vcombine.low %v4153, %v4157
        %v7025 = vcombine.low %v4161, %v4165
        %v7026 = vcombine.low %v4169, %v4173
        %v7028 = vunpack.c.l.s4 1966171168
        %v7029 = vunpack.c.0.s8 %v7028
        %v7030 = vlaneseq
        %v7031 = vshrl.u32 %v7030, 7
        %v7032 = vsub.s32 %v7029, %v7031
        %v7033 = vrot.slane %v7023, %v7032
        %v7035 = vunpack.c.l.s4 1966171168
        %v7036 = vunpack.c.0.s8 %v7035
        %v7037 = vlaneseq
        %v7038 = vshrl.u32 %v7037, 7
        %v7039 = vsub.s32 %v7036, %v7038
        %v7040 = vrot.slane %v7024, %v7039
        %v7042 = vunpack.c.l.s4 1966171168
        %v7043 = vunpack.c.0.s8 %v7042
        %v7044 = vlaneseq
        %v7045 = vshrl.u32 %v7044, 7
        %v7046 = vsub.s32 %v7043, %v7045
        %v7047 = vrot.slane %v7025, %v7046
        %v7049 = vunpack.c.l.s4 1966171168
        %v7050 = vunpack.c.0.s8 %v7049
        %v7051 = vlaneseq
        %v7052 = vshrl.u32 %v7051, 7
        %v7053 = vsub.s32 %v7050, %v7052
        %v7054 = vrot.slane %v7026, %v7053
        %v7055 = vcombine.low %v7033, %v7040
        %v7056 = vcombine.low %v7047, %v7054
        %v7058 = vunpack.c.l.s4 1966171168
        %v7059 = vunpack.c.0.s8 %v7058
        %v7060 = vlaneseq
        %v7061 = vshrl.u32 %v7060, 7
        %v7062 = vsub.s32 %v7059, %v7061
        %v7063 = vrot.slane %v7055, %v7062
        %v7065 = vunpack.c.l.s4 1966171168
        %v7066 = vunpack.c.0.s8 %v7065
        %v7067 = vlaneseq
        %v7068 = vshrl.u32 %v7067, 7
        %v7069 = vsub.s32 %v7066, %v7068
        %v7070 = vrot.slane %v7056, %v7069
        %v7071 = vcombine.low %v7063, %v7070
        %v7072 = vcombine.low %v4177, %v4181
        %v7073 = vcombine.low %v4185, %v4189
        %v7074 = vcombine.low %v4193, %v4197
        %v7075 = vcombine.low %v4201, %v4205
        %v7077 = vunpack.c.l.s4 1966171168
        %v7078 = vunpack.c.0.s8 %v7077
        %v7079 = vlaneseq
        %v7080 = vshrl.u32 %v7079, 7
        %v7081 = vsub.s32 %v7078, %v7080
        %v7082 = vrot.slane %v7072, %v7081
        %v7084 = vunpack.c.l.s4 1966171168
        %v7085 = vunpack.c.0.s8 %v7084
        %v7086 = vlaneseq
        %v7087 = vshrl.u32 %v7086, 7
        %v7088 = vsub.s32 %v7085, %v7087
        %v7089 = vrot.slane %v7073, %v7088
        %v7091 = vunpack.c.l.s4 1966171168
        %v7092 = vunpack.c.0.s8 %v7091
        %v7093 = vlaneseq
        %v7094 = vshrl.u32 %v7093, 7
        %v7095 = vsub.s32 %v7092, %v7094
        %v7096 = vrot.slane %v7074, %v7095
        %v7098 = vunpack.c.l.s4 1966171168
        %v7099 = vunpack.c.0.s8 %v7098
        %v7100 = vlaneseq
        %v7101 = vshrl.u32 %v7100, 7
        %v7102 = vsub.s32 %v7099, %v7101
        %v7103 = vrot.slane %v7075, %v7102
        %v7104 = vcombine.low %v7082, %v7089
        %v7105 = vcombine.low %v7096, %v7103
        %v7107 = vunpack.c.l.s4 1966171168
        %v7108 = vunpack.c.0.s8 %v7107
        %v7109 = vlaneseq
        %v7110 = vshrl.u32 %v7109, 7
        %v7111 = vsub.s32 %v7108, %v7110
        %v7112 = vrot.slane %v7104, %v7111
        %v7114 = vunpack.c.l.s4 1966171168
        %v7115 = vunpack.c.0.s8 %v7114
        %v7116 = vlaneseq
        %v7117 = vshrl.u32 %v7116, 7
        %v7118 = vsub.s32 %v7115, %v7117
        %v7119 = vrot.slane %v7105, %v7118
        %v7120 = vcombine.low %v7112, %v7119
        %v7121 = vcombine.low %v4209, %v4213
        %v7122 = vcombine.low %v4217, %v4221
        %v7123 = vcombine.low %v4225, %v4229
        %v7124 = vcombine.low %v4233, %v4237
        %v7126 = vunpack.c.l.s4 1966171168
        %v7127 = vunpack.c.0.s8 %v7126
        %v7128 = vlaneseq
        %v7129 = vshrl.u32 %v7128, 7
        %v7130 = vsub.s32 %v7127, %v7129
        %v7131 = vrot.slane %v7121, %v7130
        %v7133 = vunpack.c.l.s4 1966171168
        %v7134 = vunpack.c.0.s8 %v7133
        %v7135 = vlaneseq
        %v7136 = vshrl.u32 %v7135, 7
        %v7137 = vsub.s32 %v7134, %v7136
        %v7138 = vrot.slane %v7122, %v7137
        %v7140 = vunpack.c.l.s4 1966171168
        %v7141 = vunpack.c.0.s8 %v7140
        %v7142 = vlaneseq
        %v7143 = vshrl.u32 %v7142, 7
        %v7144 = vsub.s32 %v7141, %v7143
        %v7145 = vrot.slane %v7123, %v7144
        %v7147 = vunpack.c.l.s4 1966171168
        %v7148 = vunpack.c.0.s8 %v7147
        %v7149 = vlaneseq
        %v7150 = vshrl.u32 %v7149, 7
        %v7151 = vsub.s32 %v7148, %v7150
        %v7152 = vrot.slane %v7124, %v7151
        %v7153 = vcombine.low %v7131, %v7138
        %v7154 = vcombine.low %v7145, %v7152
        %v7156 = vunpack.c.l.s4 1966171168
        %v7157 = vunpack.c.0.s8 %v7156
        %v7158 = vlaneseq
        %v7159 = vshrl.u32 %v7158, 7
        %v7160 = vsub.s32 %v7157, %v7159
        %v7161 = vrot.slane %v7153, %v7160
        %v7163 = vunpack.c.l.s4 1966171168
        %v7164 = vunpack.c.0.s8 %v7163
        %v7165 = vlaneseq
        %v7166 = vshrl.u32 %v7165, 7
        %v7167 = vsub.s32 %v7164, %v7166
        %v7168 = vrot.slane %v7154, %v7167
        %v7169 = vcombine.low %v7161, %v7168
        %v7170 = vcombine.low %v4241, %v4245
        %v7171 = vcombine.low %v4249, %v4253
        %v7172 = vcombine.low %v4257, %v4261
        %v7173 = vcombine.low %v4265, %v4269
        %v7175 = vunpack.c.l.s4 1966171168
        %v7176 = vunpack.c.0.s8 %v7175
        %v7177 = vlaneseq
        %v7178 = vshrl.u32 %v7177, 7
        %v7179 = vsub.s32 %v7176, %v7178
        %v7180 = vrot.slane %v7170, %v7179
        %v7182 = vunpack.c.l.s4 1966171168
        %v7183 = vunpack.c.0.s8 %v7182
        %v7184 = vlaneseq
        %v7185 = vshrl.u32 %v7184, 7
        %v7186 = vsub.s32 %v7183, %v7185
        %v7187 = vrot.slane %v7171, %v7186
        %v7189 = vunpack.c.l.s4 1966171168
        %v7190 = vunpack.c.0.s8 %v7189
        %v7191 = vlaneseq
        %v7192 = vshrl.u32 %v7191, 7
        %v7193 = vsub.s32 %v7190, %v7192
        %v7194 = vrot.slane %v7172, %v7193
        %v7196 = vunpack.c.l.s4 1966171168
        %v7197 = vunpack.c.0.s8 %v7196
        %v7198 = vlaneseq
        %v7199 = vshrl.u32 %v7198, 7
        %v7200 = vsub.s32 %v7197, %v7199
        %v7201 = vrot.slane %v7173, %v7200
        %v7202 = vcombine.low %v7180, %v7187
        %v7203 = vcombine.low %v7194, %v7201
        %v7205 = vunpack.c.l.s4 1966171168
        %v7206 = vunpack.c.0.s8 %v7205
        %v7207 = vlaneseq
        %v7208 = vshrl.u32 %v7207, 7
        %v7209 = vsub.s32 %v7206, %v7208
        %v7210 = vrot.slane %v7202, %v7209
        %v7212 = vunpack.c.l.s4 1966171168
        %v7213 = vunpack.c.0.s8 %v7212
        %v7214 = vlaneseq
        %v7215 = vshrl.u32 %v7214, 7
        %v7216 = vsub.s32 %v7213, %v7215
        %v7217 = vrot.slane %v7203, %v7216
        %v7218 = vcombine.low %v7210, %v7217
        %v7219 = vcombine.low %v4273, %v4277
        %v7220 = vcombine.low %v4281, %v4285
        %v7221 = vcombine.low %v4289, %v4293
        %v7222 = vcombine.low %v4297, %v4301
        %v7224 = vunpack.c.l.s4 1966171168
        %v7225 = vunpack.c.0.s8 %v7224
        %v7226 = vlaneseq
        %v7227 = vshrl.u32 %v7226, 7
        %v7228 = vsub.s32 %v7225, %v7227
        %v7229 = vrot.slane %v7219, %v7228
        %v7231 = vunpack.c.l.s4 1966171168
        %v7232 = vunpack.c.0.s8 %v7231
        %v7233 = vlaneseq
        %v7234 = vshrl.u32 %v7233, 7
        %v7235 = vsub.s32 %v7232, %v7234
        %v7236 = vrot.slane %v7220, %v7235
        %v7238 = vunpack.c.l.s4 1966171168
        %v7239 = vunpack.c.0.s8 %v7238
        %v7240 = vlaneseq
        %v7241 = vshrl.u32 %v7240, 7
        %v7242 = vsub.s32 %v7239, %v7241
        %v7243 = vrot.slane %v7221, %v7242
        %v7245 = vunpack.c.l.s4 1966171168
        %v7246 = vunpack.c.0.s8 %v7245
        %v7247 = vlaneseq
        %v7248 = vshrl.u32 %v7247, 7
        %v7249 = vsub.s32 %v7246, %v7248
        %v7250 = vrot.slane %v7222, %v7249
        %v7251 = vcombine.low %v7229, %v7236
        %v7252 = vcombine.low %v7243, %v7250
        %v7254 = vunpack.c.l.s4 1966171168
        %v7255 = vunpack.c.0.s8 %v7254
        %v7256 = vlaneseq
        %v7257 = vshrl.u32 %v7256, 7
        %v7258 = vsub.s32 %v7255, %v7257
        %v7259 = vrot.slane %v7251, %v7258
        %v7261 = vunpack.c.l.s4 1966171168
        %v7262 = vunpack.c.0.s8 %v7261
        %v7263 = vlaneseq
        %v7264 = vshrl.u32 %v7263, 7
        %v7265 = vsub.s32 %v7262, %v7264
        %v7266 = vrot.slane %v7252, %v7265
        %v7267 = vcombine.low %v7259, %v7266
        %v7268 = vcombine.low %v4305, %v4309
        %v7269 = vcombine.low %v4313, %v4317
        %v7270 = vcombine.low %v4321, %v4325
        %v7271 = vcombine.low %v4329, %v4333
        %v7273 = vunpack.c.l.s4 1966171168
        %v7274 = vunpack.c.0.s8 %v7273
        %v7275 = vlaneseq
        %v7276 = vshrl.u32 %v7275, 7
        %v7277 = vsub.s32 %v7274, %v7276
        %v7278 = vrot.slane %v7268, %v7277
        %v7280 = vunpack.c.l.s4 1966171168
        %v7281 = vunpack.c.0.s8 %v7280
        %v7282 = vlaneseq
        %v7283 = vshrl.u32 %v7282, 7
        %v7284 = vsub.s32 %v7281, %v7283
        %v7285 = vrot.slane %v7269, %v7284
        %v7287 = vunpack.c.l.s4 1966171168
        %v7288 = vunpack.c.0.s8 %v7287
        %v7289 = vlaneseq
        %v7290 = vshrl.u32 %v7289, 7
        %v7291 = vsub.s32 %v7288, %v7290
        %v7292 = vrot.slane %v7270, %v7291
        %v7294 = vunpack.c.l.s4 1966171168
        %v7295 = vunpack.c.0.s8 %v7294
        %v7296 = vlaneseq
        %v7297 = vshrl.u32 %v7296, 7
        %v7298 = vsub.s32 %v7295, %v7297
        %v7299 = vrot.slane %v7271, %v7298
        %v7300 = vcombine.low %v7278, %v7285
        %v7301 = vcombine.low %v7292, %v7299
        %v7303 = vunpack.c.l.s4 1966171168
        %v7304 = vunpack.c.0.s8 %v7303
        %v7305 = vlaneseq
        %v7306 = vshrl.u32 %v7305, 7
        %v7307 = vsub.s32 %v7304, %v7306
        %v7308 = vrot.slane %v7300, %v7307
        %v7310 = vunpack.c.l.s4 1966171168
        %v7311 = vunpack.c.0.s8 %v7310
        %v7312 = vlaneseq
        %v7313 = vshrl.u32 %v7312, 7
        %v7314 = vsub.s32 %v7311, %v7313
        %v7315 = vrot.slane %v7301, %v7314
        %v7316 = vcombine.low %v7308, %v7315
        %v7317 = vcombine.low %v4337, %v4341
        %v7318 = vcombine.low %v4345, %v4349
        %v7319 = vcombine.low %v4353, %v4357
        %v7320 = vcombine.low %v4361, %v4365
        %v7322 = vunpack.c.l.s4 1966171168
        %v7323 = vunpack.c.0.s8 %v7322
        %v7324 = vlaneseq
        %v7325 = vshrl.u32 %v7324, 7
        %v7326 = vsub.s32 %v7323, %v7325
        %v7327 = vrot.slane %v7317, %v7326
        %v7329 = vunpack.c.l.s4 1966171168
        %v7330 = vunpack.c.0.s8 %v7329
        %v7331 = vlaneseq
        %v7332 = vshrl.u32 %v7331, 7
        %v7333 = vsub.s32 %v7330, %v7332
        %v7334 = vrot.slane %v7318, %v7333
        %v7336 = vunpack.c.l.s4 1966171168
        %v7337 = vunpack.c.0.s8 %v7336
        %v7338 = vlaneseq
        %v7339 = vshrl.u32 %v7338, 7
        %v7340 = vsub.s32 %v7337, %v7339
        %v7341 = vrot.slane %v7319, %v7340
        %v7343 = vunpack.c.l.s4 1966171168
        %v7344 = vunpack.c.0.s8 %v7343
        %v7345 = vlaneseq
        %v7346 = vshrl.u32 %v7345, 7
        %v7347 = vsub.s32 %v7344, %v7346
        %v7348 = vrot.slane %v7320, %v7347
        %v7349 = vcombine.low %v7327, %v7334
        %v7350 = vcombine.low %v7341, %v7348
        %v7352 = vunpack.c.l.s4 1966171168
        %v7353 = vunpack.c.0.s8 %v7352
        %v7354 = vlaneseq
        %v7355 = vshrl.u32 %v7354, 7
        %v7356 = vsub.s32 %v7353, %v7355
        %v7357 = vrot.slane %v7349, %v7356
        %v7359 = vunpack.c.l.s4 1966171168
        %v7360 = vunpack.c.0.s8 %v7359
        %v7361 = vlaneseq
        %v7362 = vshrl.u32 %v7361, 7
        %v7363 = vsub.s32 %v7360, %v7362
        %v7364 = vrot.slane %v7350, %v7363
        %v7365 = vcombine.low %v7357, %v7364
        %v7366 = vcombine.low %v4369, %v4373
        %v7367 = vcombine.low %v4377, %v4381
        %v7368 = vcombine.low %v4385, %v4389
        %v7369 = vcombine.low %v4393, %v4397
        %v7371 = vunpack.c.l.s4 1966171168
        %v7372 = vunpack.c.0.s8 %v7371
        %v7373 = vlaneseq
        %v7374 = vshrl.u32 %v7373, 7
        %v7375 = vsub.s32 %v7372, %v7374
        %v7376 = vrot.slane %v7366, %v7375
        %v7378 = vunpack.c.l.s4 1966171168
        %v7379 = vunpack.c.0.s8 %v7378
        %v7380 = vlaneseq
        %v7381 = vshrl.u32 %v7380, 7
        %v7382 = vsub.s32 %v7379, %v7381
        %v7383 = vrot.slane %v7367, %v7382
        %v7385 = vunpack.c.l.s4 1966171168
        %v7386 = vunpack.c.0.s8 %v7385
        %v7387 = vlaneseq
        %v7388 = vshrl.u32 %v7387, 7
        %v7389 = vsub.s32 %v7386, %v7388
        %v7390 = vrot.slane %v7368, %v7389
        %v7392 = vunpack.c.l.s4 1966171168
        %v7393 = vunpack.c.0.s8 %v7392
        %v7394 = vlaneseq
        %v7395 = vshrl.u32 %v7394, 7
        %v7396 = vsub.s32 %v7393, %v7395
        %v7397 = vrot.slane %v7369, %v7396
        %v7398 = vcombine.low %v7376, %v7383
        %v7399 = vcombine.low %v7390, %v7397
        %v7401 = vunpack.c.l.s4 1966171168
        %v7402 = vunpack.c.0.s8 %v7401
        %v7403 = vlaneseq
        %v7404 = vshrl.u32 %v7403, 7
        %v7405 = vsub.s32 %v7402, %v7404
        %v7406 = vrot.slane %v7398, %v7405
        %v7408 = vunpack.c.l.s4 1966171168
        %v7409 = vunpack.c.0.s8 %v7408
        %v7410 = vlaneseq
        %v7411 = vshrl.u32 %v7410, 7
        %v7412 = vsub.s32 %v7409, %v7411
        %v7413 = vrot.slane %v7399, %v7412
        %v7414 = vcombine.low %v7406, %v7413
        %v7415 = vcombine.low %v4401, %v4405
        %v7416 = vcombine.low %v4409, %v4413
        %v7417 = vcombine.low %v4417, %v4421
        %v7418 = vcombine.low %v4425, %v4429
        %v7420 = vunpack.c.l.s4 1966171168
        %v7421 = vunpack.c.0.s8 %v7420
        %v7422 = vlaneseq
        %v7423 = vshrl.u32 %v7422, 7
        %v7424 = vsub.s32 %v7421, %v7423
        %v7425 = vrot.slane %v7415, %v7424
        %v7427 = vunpack.c.l.s4 1966171168
        %v7428 = vunpack.c.0.s8 %v7427
        %v7429 = vlaneseq
        %v7430 = vshrl.u32 %v7429, 7
        %v7431 = vsub.s32 %v7428, %v7430
        %v7432 = vrot.slane %v7416, %v7431
        %v7434 = vunpack.c.l.s4 1966171168
        %v7435 = vunpack.c.0.s8 %v7434
        %v7436 = vlaneseq
        %v7437 = vshrl.u32 %v7436, 7
        %v7438 = vsub.s32 %v7435, %v7437
        %v7439 = vrot.slane %v7417, %v7438
        %v7441 = vunpack.c.l.s4 1966171168
        %v7442 = vunpack.c.0.s8 %v7441
        %v7443 = vlaneseq
        %v7444 = vshrl.u32 %v7443, 7
        %v7445 = vsub.s32 %v7442, %v7444
        %v7446 = vrot.slane %v7418, %v7445
        %v7447 = vcombine.low %v7425, %v7432
        %v7448 = vcombine.low %v7439, %v7446
        %v7450 = vunpack.c.l.s4 1966171168
        %v7451 = vunpack.c.0.s8 %v7450
        %v7452 = vlaneseq
        %v7453 = vshrl.u32 %v7452, 7
        %v7454 = vsub.s32 %v7451, %v7453
        %v7455 = vrot.slane %v7447, %v7454
        %v7457 = vunpack.c.l.s4 1966171168
        %v7458 = vunpack.c.0.s8 %v7457
        %v7459 = vlaneseq
        %v7460 = vshrl.u32 %v7459, 7
        %v7461 = vsub.s32 %v7458, %v7460
        %v7462 = vrot.slane %v7448, %v7461
        %v7463 = vcombine.low %v7455, %v7462
        %v7464 = vcombine.low %v4433, %v4437
        %v7465 = vcombine.low %v4441, %v4445
        %v7466 = vcombine.low %v4449, %v4453
        %v7467 = vcombine.low %v4457, %v4461
        %v7469 = vunpack.c.l.s4 1966171168
        %v7470 = vunpack.c.0.s8 %v7469
        %v7471 = vlaneseq
        %v7472 = vshrl.u32 %v7471, 7
        %v7473 = vsub.s32 %v7470, %v7472
        %v7474 = vrot.slane %v7464, %v7473
        %v7476 = vunpack.c.l.s4 1966171168
        %v7477 = vunpack.c.0.s8 %v7476
        %v7478 = vlaneseq
        %v7479 = vshrl.u32 %v7478, 7
        %v7480 = vsub.s32 %v7477, %v7479
        %v7481 = vrot.slane %v7465, %v7480
        %v7483 = vunpack.c.l.s4 1966171168
        %v7484 = vunpack.c.0.s8 %v7483
        %v7485 = vlaneseq
        %v7486 = vshrl.u32 %v7485, 7
        %v7487 = vsub.s32 %v7484, %v7486
        %v7488 = vrot.slane %v7466, %v7487
        %v7490 = vunpack.c.l.s4 1966171168
        %v7491 = vunpack.c.0.s8 %v7490
        %v7492 = vlaneseq
        %v7493 = vshrl.u32 %v7492, 7
        %v7494 = vsub.s32 %v7491, %v7493
        %v7495 = vrot.slane %v7467, %v7494
        %v7496 = vcombine.low %v7474, %v7481
        %v7497 = vcombine.low %v7488, %v7495
        %v7499 = vunpack.c.l.s4 1966171168
        %v7500 = vunpack.c.0.s8 %v7499
        %v7501 = vlaneseq
        %v7502 = vshrl.u32 %v7501, 7
        %v7503 = vsub.s32 %v7500, %v7502
        %v7504 = vrot.slane %v7496, %v7503
        %v7506 = vunpack.c.l.s4 1966171168
        %v7507 = vunpack.c.0.s8 %v7506
        %v7508 = vlaneseq
        %v7509 = vshrl.u32 %v7508, 7
        %v7510 = vsub.s32 %v7507, %v7509
        %v7511 = vrot.slane %v7497, %v7510
        %v7512 = vcombine.low %v7504, %v7511
        %v7513 = vcombine.low %v4465, %v4469
        %v7514 = vcombine.low %v4473, %v4477
        %v7515 = vcombine.low %v4481, %v4485
        %v7516 = vcombine.low %v4489, %v4493
        %v7518 = vunpack.c.l.s4 1966171168
        %v7519 = vunpack.c.0.s8 %v7518
        %v7520 = vlaneseq
        %v7521 = vshrl.u32 %v7520, 7
        %v7522 = vsub.s32 %v7519, %v7521
        %v7523 = vrot.slane %v7513, %v7522
        %v7525 = vunpack.c.l.s4 1966171168
        %v7526 = vunpack.c.0.s8 %v7525
        %v7527 = vlaneseq
        %v7528 = vshrl.u32 %v7527, 7
        %v7529 = vsub.s32 %v7526, %v7528
        %v7530 = vrot.slane %v7514, %v7529
        %v7532 = vunpack.c.l.s4 1966171168
        %v7533 = vunpack.c.0.s8 %v7532
        %v7534 = vlaneseq
        %v7535 = vshrl.u32 %v7534, 7
        %v7536 = vsub.s32 %v7533, %v7535
        %v7537 = vrot.slane %v7515, %v7536
        %v7539 = vunpack.c.l.s4 1966171168
        %v7540 = vunpack.c.0.s8 %v7539
        %v7541 = vlaneseq
        %v7542 = vshrl.u32 %v7541, 7
        %v7543 = vsub.s32 %v7540, %v7542
        %v7544 = vrot.slane %v7516, %v7543
        %v7545 = vcombine.low %v7523, %v7530
        %v7546 = vcombine.low %v7537, %v7544
        %v7548 = vunpack.c.l.s4 1966171168
        %v7549 = vunpack.c.0.s8 %v7548
        %v7550 = vlaneseq
        %v7551 = vshrl.u32 %v7550, 7
        %v7552 = vsub.s32 %v7549, %v7551
        %v7553 = vrot.slane %v7545, %v7552
        %v7555 = vunpack.c.l.s4 1966171168
        %v7556 = vunpack.c.0.s8 %v7555
        %v7557 = vlaneseq
        %v7558 = vshrl.u32 %v7557, 7
        %v7559 = vsub.s32 %v7556, %v7558
        %v7560 = vrot.slane %v7546, %v7559
        %v7561 = vcombine.low %v7553, %v7560
        %v7562 = vcombine.low %v4497, %v4501
        %v7563 = vcombine.low %v4505, %v4509
        %v7564 = vcombine.low %v4513, %v4517
        %v7565 = vcombine.low %v4521, %v4525
        %v7567 = vunpack.c.l.s4 1966171168
        %v7568 = vunpack.c.0.s8 %v7567
        %v7569 = vlaneseq
        %v7570 = vshrl.u32 %v7569, 7
        %v7571 = vsub.s32 %v7568, %v7570
        %v7572 = vrot.slane %v7562, %v7571
        %v7574 = vunpack.c.l.s4 1966171168
        %v7575 = vunpack.c.0.s8 %v7574
        %v7576 = vlaneseq
        %v7577 = vshrl.u32 %v7576, 7
        %v7578 = vsub.s32 %v7575, %v7577
        %v7579 = vrot.slane %v7563, %v7578
        %v7581 = vunpack.c.l.s4 1966171168
        %v7582 = vunpack.c.0.s8 %v7581
        %v7583 = vlaneseq
        %v7584 = vshrl.u32 %v7583, 7
        %v7585 = vsub.s32 %v7582, %v7584
        %v7586 = vrot.slane %v7564, %v7585
        %v7588 = vunpack.c.l.s4 1966171168
        %v7589 = vunpack.c.0.s8 %v7588
        %v7590 = vlaneseq
        %v7591 = vshrl.u32 %v7590, 7
        %v7592 = vsub.s32 %v7589, %v7591
        %v7593 = vrot.slane %v7565, %v7592
        %v7594 = vcombine.low %v7572, %v7579
        %v7595 = vcombine.low %v7586, %v7593
        %v7597 = vunpack.c.l.s4 1966171168
        %v7598 = vunpack.c.0.s8 %v7597
        %v7599 = vlaneseq
        %v7600 = vshrl.u32 %v7599, 7
        %v7601 = vsub.s32 %v7598, %v7600
        %v7602 = vrot.slane %v7594, %v7601
        %v7604 = vunpack.c.l.s4 1966171168
        %v7605 = vunpack.c.0.s8 %v7604
        %v7606 = vlaneseq
        %v7607 = vshrl.u32 %v7606, 7
        %v7608 = vsub.s32 %v7605, %v7607
        %v7609 = vrot.slane %v7595, %v7608
        %v7610 = vcombine.low %v7602, %v7609
        %v7611 = vcombine.low %v4529, %v4533
        %v7612 = vcombine.low %v4537, %v4541
        %v7613 = vcombine.low %v4545, %v4549
        %v7614 = vcombine.low %v4553, %v4557
        %v7616 = vunpack.c.l.s4 1966171168
        %v7617 = vunpack.c.0.s8 %v7616
        %v7618 = vlaneseq
        %v7619 = vshrl.u32 %v7618, 7
        %v7620 = vsub.s32 %v7617, %v7619
        %v7621 = vrot.slane %v7611, %v7620
        %v7623 = vunpack.c.l.s4 1966171168
        %v7624 = vunpack.c.0.s8 %v7623
        %v7625 = vlaneseq
        %v7626 = vshrl.u32 %v7625, 7
        %v7627 = vsub.s32 %v7624, %v7626
        %v7628 = vrot.slane %v7612, %v7627
        %v7630 = vunpack.c.l.s4 1966171168
        %v7631 = vunpack.c.0.s8 %v7630
        %v7632 = vlaneseq
        %v7633 = vshrl.u32 %v7632, 7
        %v7634 = vsub.s32 %v7631, %v7633
        %v7635 = vrot.slane %v7613, %v7634
        %v7637 = vunpack.c.l.s4 1966171168
        %v7638 = vunpack.c.0.s8 %v7637
        %v7639 = vlaneseq
        %v7640 = vshrl.u32 %v7639, 7
        %v7641 = vsub.s32 %v7638, %v7640
        %v7642 = vrot.slane %v7614, %v7641
        %v7643 = vcombine.low %v7621, %v7628
        %v7644 = vcombine.low %v7635, %v7642
        %v7646 = vunpack.c.l.s4 1966171168
        %v7647 = vunpack.c.0.s8 %v7646
        %v7648 = vlaneseq
        %v7649 = vshrl.u32 %v7648, 7
        %v7650 = vsub.s32 %v7647, %v7649
        %v7651 = vrot.slane %v7643, %v7650
        %v7653 = vunpack.c.l.s4 1966171168
        %v7654 = vunpack.c.0.s8 %v7653
        %v7655 = vlaneseq
        %v7656 = vshrl.u32 %v7655, 7
        %v7657 = vsub.s32 %v7654, %v7656
        %v7658 = vrot.slane %v7644, %v7657
        %v7659 = vcombine.low %v7651, %v7658
        %v7660 = vcombine.low %v4561, %v4565
        %v7661 = vcombine.low %v4569, %v4573
        %v7662 = vcombine.low %v4577, %v4581
        %v7663 = vcombine.low %v4585, %v4589
        %v7665 = vunpack.c.l.s4 1966171168
        %v7666 = vunpack.c.0.s8 %v7665
        %v7667 = vlaneseq
        %v7668 = vshrl.u32 %v7667, 7
        %v7669 = vsub.s32 %v7666, %v7668
        %v7670 = vrot.slane %v7660, %v7669
        %v7672 = vunpack.c.l.s4 1966171168
        %v7673 = vunpack.c.0.s8 %v7672
        %v7674 = vlaneseq
        %v7675 = vshrl.u32 %v7674, 7
        %v7676 = vsub.s32 %v7673, %v7675
        %v7677 = vrot.slane %v7661, %v7676
        %v7679 = vunpack.c.l.s4 1966171168
        %v7680 = vunpack.c.0.s8 %v7679
        %v7681 = vlaneseq
        %v7682 = vshrl.u32 %v7681, 7
        %v7683 = vsub.s32 %v7680, %v7682
        %v7684 = vrot.slane %v7662, %v7683
        %v7686 = vunpack.c.l.s4 1966171168
        %v7687 = vunpack.c.0.s8 %v7686
        %v7688 = vlaneseq
        %v7689 = vshrl.u32 %v7688, 7
        %v7690 = vsub.s32 %v7687, %v7689
        %v7691 = vrot.slane %v7663, %v7690
        %v7692 = vcombine.low %v7670, %v7677
        %v7693 = vcombine.low %v7684, %v7691
        %v7695 = vunpack.c.l.s4 1966171168
        %v7696 = vunpack.c.0.s8 %v7695
        %v7697 = vlaneseq
        %v7698 = vshrl.u32 %v7697, 7
        %v7699 = vsub.s32 %v7696, %v7698
        %v7700 = vrot.slane %v7692, %v7699
        %v7702 = vunpack.c.l.s4 1966171168
        %v7703 = vunpack.c.0.s8 %v7702
        %v7704 = vlaneseq
        %v7705 = vshrl.u32 %v7704, 7
        %v7706 = vsub.s32 %v7703, %v7705
        %v7707 = vrot.slane %v7693, %v7706
        %v7708 = vcombine.low %v7700, %v7707
        %v7709 = vcombine.low %v4593, %v4597
        %v7710 = vcombine.low %v4601, %v4605
        %v7711 = vcombine.low %v4609, %v4613
        %v7712 = vcombine.low %v4617, %v4621
        %v7714 = vunpack.c.l.s4 1966171168
        %v7715 = vunpack.c.0.s8 %v7714
        %v7716 = vlaneseq
        %v7717 = vshrl.u32 %v7716, 7
        %v7718 = vsub.s32 %v7715, %v7717
        %v7719 = vrot.slane %v7709, %v7718
        %v7721 = vunpack.c.l.s4 1966171168
        %v7722 = vunpack.c.0.s8 %v7721
        %v7723 = vlaneseq
        %v7724 = vshrl.u32 %v7723, 7
        %v7725 = vsub.s32 %v7722, %v7724
        %v7726 = vrot.slane %v7710, %v7725
        %v7728 = vunpack.c.l.s4 1966171168
        %v7729 = vunpack.c.0.s8 %v7728
        %v7730 = vlaneseq
        %v7731 = vshrl.u32 %v7730, 7
        %v7732 = vsub.s32 %v7729, %v7731
        %v7733 = vrot.slane %v7711, %v7732
        %v7735 = vunpack.c.l.s4 1966171168
        %v7736 = vunpack.c.0.s8 %v7735
        %v7737 = vlaneseq
        %v7738 = vshrl.u32 %v7737, 7
        %v7739 = vsub.s32 %v7736, %v7738
        %v7740 = vrot.slane %v7712, %v7739
        %v7741 = vcombine.low %v7719, %v7726
        %v7742 = vcombine.low %v7733, %v7740
        %v7744 = vunpack.c.l.s4 1966171168
        %v7745 = vunpack.c.0.s8 %v7744
        %v7746 = vlaneseq
        %v7747 = vshrl.u32 %v7746, 7
        %v7748 = vsub.s32 %v7745, %v7747
        %v7749 = vrot.slane %v7741, %v7748
        %v7751 = vunpack.c.l.s4 1966171168
        %v7752 = vunpack.c.0.s8 %v7751
        %v7753 = vlaneseq
        %v7754 = vshrl.u32 %v7753, 7
        %v7755 = vsub.s32 %v7752, %v7754
        %v7756 = vrot.slane %v7742, %v7755
        %v7757 = vcombine.low %v7749, %v7756
        %7758 = vset.pattern.permute.xlu0 0
        %7759 = vperm.xlu0 %7758, %v4670
        %v7760 = vpop.permute.xlu0 %7759
        %7761 = vset.pattern.permute.xlu0 0
        %7762 = vperm.xlu0 %7761, %v4719
        %v7763 = vpop.permute.xlu0 %7762
        %7764 = vset.pattern.permute.xlu0 0
        %7765 = vperm.xlu0 %7764, %v4768
        %v7766 = vpop.permute.xlu0 %7765
        %7767 = vset.pattern.permute.xlu0 0
        %7768 = vperm.xlu0 %7767, %v4817
        %v7769 = vpop.permute.xlu0 %7768
        %7770 = vset.pattern.permute.xlu0 0
        %7771 = vperm.xlu0 %7770, %v4866
        %v7772 = vpop.permute.xlu0 %7771
        %7773 = vset.pattern.permute.xlu0 0
        %7774 = vperm.xlu0 %7773, %v4915
        %v7775 = vpop.permute.xlu0 %7774
        %7776 = vset.pattern.permute.xlu0 0
        %7777 = vperm.xlu0 %7776, %v4964
        %v7778 = vpop.permute.xlu0 %7777
        %7779 = vset.pattern.permute.xlu0 0
        %7780 = vperm.xlu0 %7779, %v5013
        %v7781 = vpop.permute.xlu0 %7780
        %7782 = vset.pattern.permute.xlu0 0
        %7783 = vperm.xlu0 %7782, %v5062
        %v7784 = vpop.permute.xlu0 %7783
        %7785 = vset.pattern.permute.xlu0 0
        %7786 = vperm.xlu0 %7785, %v5111
        %v7787 = vpop.permute.xlu0 %7786
        %7788 = vset.pattern.permute.xlu0 0
        %7789 = vperm.xlu0 %7788, %v5160
        %v7790 = vpop.permute.xlu0 %7789
        %7791 = vset.pattern.permute.xlu0 0
        %7792 = vperm.xlu0 %7791, %v5209
        %v7793 = vpop.permute.xlu0 %7792
        %7794 = vset.pattern.permute.xlu0 0
        %7795 = vperm.xlu0 %7794, %v5258
        %v7796 = vpop.permute.xlu0 %7795
        %7797 = vset.pattern.permute.xlu0 0
        %7798 = vperm.xlu0 %7797, %v5307
        %v7799 = vpop.permute.xlu0 %7798
        %7800 = vset.pattern.permute.xlu0 0
        %7801 = vperm.xlu0 %7800, %v5356
        %v7802 = vpop.permute.xlu0 %7801
        %7803 = vset.pattern.permute.xlu0 0
        %7804 = vperm.xlu0 %7803, %v5405
        %v7805 = vpop.permute.xlu0 %7804
        %7806 = vset.pattern.permute.xlu0 0
        %7807 = vperm.xlu0 %7806, %v5454
        %v7808 = vpop.permute.xlu0 %7807
        %7809 = vset.pattern.permute.xlu0 0
        %7810 = vperm.xlu0 %7809, %v5503
        %v7811 = vpop.permute.xlu0 %7810
        %7812 = vset.pattern.permute.xlu0 0
        %7813 = vperm.xlu0 %7812, %v5552
        %v7814 = vpop.permute.xlu0 %7813
        %7815 = vset.pattern.permute.xlu0 0
        %7816 = vperm.xlu0 %7815, %v5601
        %v7817 = vpop.permute.xlu0 %7816
        %7818 = vset.pattern.permute.xlu0 0
        %7819 = vperm.xlu0 %7818, %v5650
        %v7820 = vpop.permute.xlu0 %7819
        %7821 = vset.pattern.permute.xlu0 0
        %7822 = vperm.xlu0 %7821, %v5699
        %v7823 = vpop.permute.xlu0 %7822
        %7824 = vset.pattern.permute.xlu0 0
        %7825 = vperm.xlu0 %7824, %v5748
        %v7826 = vpop.permute.xlu0 %7825
        %7827 = vset.pattern.permute.xlu0 0
        %7828 = vperm.xlu0 %7827, %v5797
        %v7829 = vpop.permute.xlu0 %7828
        %7830 = vset.pattern.permute.xlu0 0
        %7831 = vperm.xlu0 %7830, %v5846
        %v7832 = vpop.permute.xlu0 %7831
        %7833 = vset.pattern.permute.xlu0 0
        %7834 = vperm.xlu0 %7833, %v5895
        %v7835 = vpop.permute.xlu0 %7834
        %7836 = vset.pattern.permute.xlu0 0
        %7837 = vperm.xlu0 %7836, %v5944
        %v7838 = vpop.permute.xlu0 %7837
        %7839 = vset.pattern.permute.xlu0 0
        %7840 = vperm.xlu0 %7839, %v5993
        %v7841 = vpop.permute.xlu0 %7840
        %7842 = vset.pattern.permute.xlu0 0
        %7843 = vperm.xlu0 %7842, %v6042
        %v7844 = vpop.permute.xlu0 %7843
        %7845 = vset.pattern.permute.xlu0 0
        %7846 = vperm.xlu0 %7845, %v6091
        %v7847 = vpop.permute.xlu0 %7846
        %7848 = vset.pattern.permute.xlu0 0
        %7849 = vperm.xlu0 %7848, %v6140
        %v7850 = vpop.permute.xlu0 %7849
        %7851 = vset.pattern.permute.xlu0 0
        %7852 = vperm.xlu0 %7851, %v6189
        %v7853 = vpop.permute.xlu0 %7852
        %7854 = vset.pattern.permute.xlu0 0
        %7855 = vperm.xlu0 %7854, %v6238
        %v7856 = vpop.permute.xlu0 %7855
        %7857 = vset.pattern.permute.xlu0 0
        %7858 = vperm.xlu0 %7857, %v6287
        %v7859 = vpop.permute.xlu0 %7858
        %7860 = vset.pattern.permute.xlu0 0
        %7861 = vperm.xlu0 %7860, %v6336
        %v7862 = vpop.permute.xlu0 %7861
        %7863 = vset.pattern.permute.xlu0 0
        %7864 = vperm.xlu0 %7863, %v6385
        %v7865 = vpop.permute.xlu0 %7864
        %7866 = vset.pattern.permute.xlu0 0
        %7867 = vperm.xlu0 %7866, %v6434
        %v7868 = vpop.permute.xlu0 %7867
        %7869 = vset.pattern.permute.xlu0 0
        %7870 = vperm.xlu0 %7869, %v6483
        %v7871 = vpop.permute.xlu0 %7870
        %7872 = vset.pattern.permute.xlu0 0
        %7873 = vperm.xlu0 %7872, %v6532
        %v7874 = vpop.permute.xlu0 %7873
        %7875 = vset.pattern.permute.xlu0 0
        %7876 = vperm.xlu0 %7875, %v6581
        %v7877 = vpop.permute.xlu0 %7876
        %7878 = vset.pattern.permute.xlu0 0
        %7879 = vperm.xlu0 %7878, %v6630
        %v7880 = vpop.permute.xlu0 %7879
        %7881 = vset.pattern.permute.xlu0 0
        %7882 = vperm.xlu0 %7881, %v6679
        %v7883 = vpop.permute.xlu0 %7882
        %7884 = vset.pattern.permute.xlu0 0
        %7885 = vperm.xlu0 %7884, %v6728
        %v7886 = vpop.permute.xlu0 %7885
        %7887 = vset.pattern.permute.xlu0 0
        %7888 = vperm.xlu0 %7887, %v6777
        %v7889 = vpop.permute.xlu0 %7888
        %7890 = vset.pattern.permute.xlu0 0
        %7891 = vperm.xlu0 %7890, %v6826
        %v7892 = vpop.permute.xlu0 %7891
        %7893 = vset.pattern.permute.xlu0 0
        %7894 = vperm.xlu0 %7893, %v6875
        %v7895 = vpop.permute.xlu0 %7894
        %7896 = vset.pattern.permute.xlu0 0
        %7897 = vperm.xlu0 %7896, %v6924
        %v7898 = vpop.permute.xlu0 %7897
        %7899 = vset.pattern.permute.xlu0 0
        %7900 = vperm.xlu0 %7899, %v6973
        %v7901 = vpop.permute.xlu0 %7900
        %7902 = vset.pattern.permute.xlu0 0
        %7903 = vperm.xlu0 %7902, %v7022
        %v7904 = vpop.permute.xlu0 %7903
        %7905 = vset.pattern.permute.xlu0 0
        %7906 = vperm.xlu0 %7905, %v7071
        %v7907 = vpop.permute.xlu0 %7906
        %7908 = vset.pattern.permute.xlu0 0
        %7909 = vperm.xlu0 %7908, %v7120
        %v7910 = vpop.permute.xlu0 %7909
        %7911 = vset.pattern.permute.xlu0 0
        %7912 = vperm.xlu0 %7911, %v7169
        %v7913 = vpop.permute.xlu0 %7912
        %7914 = vset.pattern.permute.xlu0 0
        %7915 = vperm.xlu0 %7914, %v7218
        %v7916 = vpop.permute.xlu0 %7915
        %7917 = vset.pattern.permute.xlu0 0
        %7918 = vperm.xlu0 %7917, %v7267
        %v7919 = vpop.permute.xlu0 %7918
        %7920 = vset.pattern.permute.xlu0 0
        %7921 = vperm.xlu0 %7920, %v7316
        %v7922 = vpop.permute.xlu0 %7921
        %7923 = vset.pattern.permute.xlu0 0
        %7924 = vperm.xlu0 %7923, %v7365
        %v7925 = vpop.permute.xlu0 %7924
        %7926 = vset.pattern.permute.xlu0 0
        %7927 = vperm.xlu0 %7926, %v7414
        %v7928 = vpop.permute.xlu0 %7927
        %7929 = vset.pattern.permute.xlu0 0
        %7930 = vperm.xlu0 %7929, %v7463
        %v7931 = vpop.permute.xlu0 %7930
        %7932 = vset.pattern.permute.xlu0 0
        %7933 = vperm.xlu0 %7932, %v7512
        %v7934 = vpop.permute.xlu0 %7933
        %7935 = vset.pattern.permute.xlu0 0
        %7936 = vperm.xlu0 %7935, %v7561
        %v7937 = vpop.permute.xlu0 %7936
        %7938 = vset.pattern.permute.xlu0 0
        %7939 = vperm.xlu0 %7938, %v7610
        %v7940 = vpop.permute.xlu0 %7939
        %7941 = vset.pattern.permute.xlu0 0
        %7942 = vperm.xlu0 %7941, %v7659
        %v7943 = vpop.permute.xlu0 %7942
        %7944 = vset.pattern.permute.xlu0 0
        %7945 = vperm.xlu0 %7944, %v7708
        %v7946 = vpop.permute.xlu0 %7945
        %7947 = vset.pattern.permute.xlu0 0
        %7948 = vperm.xlu0 %7947, %v7757
        %v7949 = vpop.permute.xlu0 %7948
        %v7950 = vlaneseq
        %v7951 = vand.u32 %v7950, 127
        %v7952 = vlaneseq
        %v7953 = vshrl.u32 %v7952, 7
        %v7954 = vsub.s32 %v7951, %v7953
        %v7955 = vrot.slane %v7760, %v7954
        %v7956 = vadd.s32 %v7951, 4294967288
        %v7957 = vlaneseq
        %v7958 = vshrl.u32 %v7957, 7
        %v7959 = vsub.s32 %v7956, %v7958
        %v7960 = vrot.slane %v7763, %v7959
        %vm7961 = vcmask 130112
        %v7962 = vsel %vm7961, %v7960, %v7955
        %v7963 = vadd.s32 %v7951, 4294967280
        %v7964 = vlaneseq
        %v7965 = vshrl.u32 %v7964, 7
        %v7966 = vsub.s32 %v7963, %v7965
        %v7967 = vrot.slane %v7766, %v7966
        %vm7968 = vcmask 195712
        %v7969 = vsel %vm7968, %v7967, %v7962
        %v7970 = vadd.s32 %v7951, 4294967272
        %v7971 = vlaneseq
        %v7972 = vshrl.u32 %v7971, 7
        %v7973 = vsub.s32 %v7970, %v7972
        %v7974 = vrot.slane %v7769, %v7973
        %vm7975 = vcmask 261312
        %v7976 = vsel %vm7975, %v7974, %v7969
        %v7977 = vadd.s32 %v7951, 4294967264
        %v7978 = vlaneseq
        %v7979 = vshrl.u32 %v7978, 7
        %v7980 = vsub.s32 %v7977, %v7979
        %v7981 = vrot.slane %v7772, %v7980
        %vm7982 = vcmask 326912
        %v7983 = vsel %vm7982, %v7981, %v7976
        %v7984 = vadd.s32 %v7951, 4294967256
        %v7985 = vlaneseq
        %v7986 = vshrl.u32 %v7985, 7
        %v7987 = vsub.s32 %v7984, %v7986
        %v7988 = vrot.slane %v7775, %v7987
        %vm7989 = vcmask 392512
        %v7990 = vsel %vm7989, %v7988, %v7983
        %v7991 = vadd.s32 %v7951, 4294967248
        %v7992 = vlaneseq
        %v7993 = vshrl.u32 %v7992, 7
        %v7994 = vsub.s32 %v7991, %v7993
        %v7995 = vrot.slane %v7778, %v7994
        %vm7996 = vcmask 458112
        %v7997 = vsel %vm7996, %v7995, %v7990
        %v7998 = vadd.s32 %v7951, 4294967240
        %v7999 = vlaneseq
        %v8000 = vshrl.u32 %v7999, 7
        %v8001 = vsub.s32 %v7998, %v8000
        %v8002 = vrot.slane %v7781, %v8001
        %vm8003 = vcmask 523712
        %v8004 = vsel %vm8003, %v8002, %v7997
        %v8005 = vadd.s32 %v7951, 4294967232
        %v8006 = vlaneseq
        %v8007 = vshrl.u32 %v8006, 7
        %v8008 = vsub.s32 %v8005, %v8007
        %v8009 = vrot.slane %v7784, %v8008
        %vm8010 = vcmask 589312
        %v8011 = vsel %vm8010, %v8009, %v8004
        %v8012 = vadd.s32 %v7951, 4294967224
        %v8013 = vlaneseq
        %v8014 = vshrl.u32 %v8013, 7
        %v8015 = vsub.s32 %v8012, %v8014
        %v8016 = vrot.slane %v7787, %v8015
        %vm8017 = vcmask 654912
        %v8018 = vsel %vm8017, %v8016, %v8011
        %v8019 = vadd.s32 %v7951, 4294967216
        %v8020 = vlaneseq
        %v8021 = vshrl.u32 %v8020, 7
        %v8022 = vsub.s32 %v8019, %v8021
        %v8023 = vrot.slane %v7790, %v8022
        %vm8024 = vcmask 720512
        %v8025 = vsel %vm8024, %v8023, %v8018
        %v8026 = vadd.s32 %v7951, 4294967208
        %v8027 = vlaneseq
        %v8028 = vshrl.u32 %v8027, 7
        %v8029 = vsub.s32 %v8026, %v8028
        %v8030 = vrot.slane %v7793, %v8029
        %vm8031 = vcmask 786112
        %v8032 = vsel %vm8031, %v8030, %v8025
        %v8033 = vadd.s32 %v7951, 4294967200
        %v8034 = vlaneseq
        %v8035 = vshrl.u32 %v8034, 7
        %v8036 = vsub.s32 %v8033, %v8035
        %v8037 = vrot.slane %v7796, %v8036
        %vm8038 = vcmask 851712
        %v8039 = vsel %vm8038, %v8037, %v8032
        %v8040 = vadd.s32 %v7951, 4294967192
        %v8041 = vlaneseq
        %v8042 = vshrl.u32 %v8041, 7
        %v8043 = vsub.s32 %v8040, %v8042
        %v8044 = vrot.slane %v7799, %v8043
        %vm8045 = vcmask 917312
        %v8046 = vsel %vm8045, %v8044, %v8039
        %v8047 = vadd.s32 %v7951, 4294967184
        %v8048 = vlaneseq
        %v8049 = vshrl.u32 %v8048, 7
        %v8050 = vsub.s32 %v8047, %v8049
        %v8051 = vrot.slane %v7802, %v8050
        %vm8052 = vcmask 982912
        %v8053 = vsel %vm8052, %v8051, %v8046
        %v8054 = vadd.s32 %v7951, 4294967176
        %v8055 = vlaneseq
        %v8056 = vshrl.u32 %v8055, 7
        %v8057 = vsub.s32 %v8054, %v8056
        %v8058 = vrot.slane %v7805, %v8057
        %vm8059 = vcmask 1048512
        %v8060 = vsel %vm8059, %v8058, %v8053
        %v8061 = vlaneseq
        %v8062 = vshrl.u32 %v8061, 7
        %v8063 = vsub.s32 %v7951, %v8062
        %v8064 = vrot.slane %v7808, %v8063
        %v8065 = vlaneseq
        %v8066 = vshrl.u32 %v8065, 7
        %v8067 = vsub.s32 %v7956, %v8066
        %v8068 = vrot.slane %v7811, %v8067
        %v8069 = vsel %vm7961, %v8068, %v8064
        %v8070 = vlaneseq
        %v8071 = vshrl.u32 %v8070, 7
        %v8072 = vsub.s32 %v7963, %v8071
        %v8073 = vrot.slane %v7814, %v8072
        %v8074 = vsel %vm7968, %v8073, %v8069
        %v8075 = vlaneseq
        %v8076 = vshrl.u32 %v8075, 7
        %v8077 = vsub.s32 %v7970, %v8076
        %v8078 = vrot.slane %v7817, %v8077
        %v8079 = vsel %vm7975, %v8078, %v8074
        %v8080 = vlaneseq
        %v8081 = vshrl.u32 %v8080, 7
        %v8082 = vsub.s32 %v7977, %v8081
        %v8083 = vrot.slane %v7820, %v8082
        %v8084 = vsel %vm7982, %v8083, %v8079
        %v8085 = vlaneseq
        %v8086 = vshrl.u32 %v8085, 7
        %v8087 = vsub.s32 %v7984, %v8086
        %v8088 = vrot.slane %v7823, %v8087
        %v8089 = vsel %vm7989, %v8088, %v8084
        %v8090 = vlaneseq
        %v8091 = vshrl.u32 %v8090, 7
        %v8092 = vsub.s32 %v7991, %v8091
        %v8093 = vrot.slane %v7826, %v8092
        %v8094 = vsel %vm7996, %v8093, %v8089
        %v8095 = vlaneseq
        %v8096 = vshrl.u32 %v8095, 7
        %v8097 = vsub.s32 %v7998, %v8096
        %v8098 = vrot.slane %v7829, %v8097
        %v8099 = vsel %vm8003, %v8098, %v8094
        %v8100 = vlaneseq
        %v8101 = vshrl.u32 %v8100, 7
        %v8102 = vsub.s32 %v8005, %v8101
        %v8103 = vrot.slane %v7832, %v8102
        %v8104 = vsel %vm8010, %v8103, %v8099
        %v8105 = vlaneseq
        %v8106 = vshrl.u32 %v8105, 7
        %v8107 = vsub.s32 %v8012, %v8106
        %v8108 = vrot.slane %v7835, %v8107
        %v8109 = vsel %vm8017, %v8108, %v8104
        %v8110 = vlaneseq
        %v8111 = vshrl.u32 %v8110, 7
        %v8112 = vsub.s32 %v8019, %v8111
        %v8113 = vrot.slane %v7838, %v8112
        %v8114 = vsel %vm8024, %v8113, %v8109
        %v8115 = vlaneseq
        %v8116 = vshrl.u32 %v8115, 7
        %v8117 = vsub.s32 %v8026, %v8116
        %v8118 = vrot.slane %v7841, %v8117
        %v8119 = vsel %vm8031, %v8118, %v8114
        %v8120 = vlaneseq
        %v8121 = vshrl.u32 %v8120, 7
        %v8122 = vsub.s32 %v8033, %v8121
        %v8123 = vrot.slane %v7844, %v8122
        %v8124 = vsel %vm8038, %v8123, %v8119
        %v8125 = vlaneseq
        %v8126 = vshrl.u32 %v8125, 7
        %v8127 = vsub.s32 %v8040, %v8126
        %v8128 = vrot.slane %v7847, %v8127
        %v8129 = vsel %vm8045, %v8128, %v8124
        %v8130 = vlaneseq
        %v8131 = vshrl.u32 %v8130, 7
        %v8132 = vsub.s32 %v8047, %v8131
        %v8133 = vrot.slane %v7850, %v8132
        %v8134 = vsel %vm8052, %v8133, %v8129
        %v8135 = vlaneseq
        %v8136 = vshrl.u32 %v8135, 7
        %v8137 = vsub.s32 %v8054, %v8136
        %v8138 = vrot.slane %v7853, %v8137
        %v8139 = vsel %vm8059, %v8138, %v8134
        %v8140 = vlaneseq
        %v8141 = vshrl.u32 %v8140, 7
        %v8142 = vsub.s32 %v7951, %v8141
        %v8143 = vrot.slane %v7856, %v8142
        %v8144 = vlaneseq
        %v8145 = vshrl.u32 %v8144, 7
        %v8146 = vsub.s32 %v7956, %v8145
        %v8147 = vrot.slane %v7859, %v8146
        %v8148 = vsel %vm7961, %v8147, %v8143
        %v8149 = vlaneseq
        %v8150 = vshrl.u32 %v8149, 7
        %v8151 = vsub.s32 %v7963, %v8150
        %v8152 = vrot.slane %v7862, %v8151
        %v8153 = vsel %vm7968, %v8152, %v8148
        %v8154 = vlaneseq
        %v8155 = vshrl.u32 %v8154, 7
        %v8156 = vsub.s32 %v7970, %v8155
        %v8157 = vrot.slane %v7865, %v8156
        %v8158 = vsel %vm7975, %v8157, %v8153
        %v8159 = vlaneseq
        %v8160 = vshrl.u32 %v8159, 7
        %v8161 = vsub.s32 %v7977, %v8160
        %v8162 = vrot.slane %v7868, %v8161
        %v8163 = vsel %vm7982, %v8162, %v8158
        %v8164 = vlaneseq
        %v8165 = vshrl.u32 %v8164, 7
        %v8166 = vsub.s32 %v7984, %v8165
        %v8167 = vrot.slane %v7871, %v8166
        %v8168 = vsel %vm7989, %v8167, %v8163
        %v8169 = vlaneseq
        %v8170 = vshrl.u32 %v8169, 7
        %v8171 = vsub.s32 %v7991, %v8170
        %v8172 = vrot.slane %v7874, %v8171
        %v8173 = vsel %vm7996, %v8172, %v8168
        %v8174 = vlaneseq
        %v8175 = vshrl.u32 %v8174, 7
        %v8176 = vsub.s32 %v7998, %v8175
        %v8177 = vrot.slane %v7877, %v8176
        %v8178 = vsel %vm8003, %v8177, %v8173
        %v8179 = vlaneseq
        %v8180 = vshrl.u32 %v8179, 7
        %v8181 = vsub.s32 %v8005, %v8180
        %v8182 = vrot.slane %v7880, %v8181
        %v8183 = vsel %vm8010, %v8182, %v8178
        %v8184 = vlaneseq
        %v8185 = vshrl.u32 %v8184, 7
        %v8186 = vsub.s32 %v8012, %v8185
        %v8187 = vrot.slane %v7883, %v8186
        %v8188 = vsel %vm8017, %v8187, %v8183
        %v8189 = vlaneseq
        %v8190 = vshrl.u32 %v8189, 7
        %v8191 = vsub.s32 %v8019, %v8190
        %v8192 = vrot.slane %v7886, %v8191
        %v8193 = vsel %vm8024, %v8192, %v8188
        %v8194 = vlaneseq
        %v8195 = vshrl.u32 %v8194, 7
        %v8196 = vsub.s32 %v8026, %v8195
        %v8197 = vrot.slane %v7889, %v8196
        %v8198 = vsel %vm8031, %v8197, %v8193
        %v8199 = vlaneseq
        %v8200 = vshrl.u32 %v8199, 7
        %v8201 = vsub.s32 %v8033, %v8200
        %v8202 = vrot.slane %v7892, %v8201
        %v8203 = vsel %vm8038, %v8202, %v8198
        %v8204 = vlaneseq
        %v8205 = vshrl.u32 %v8204, 7
        %v8206 = vsub.s32 %v8040, %v8205
        %v8207 = vrot.slane %v7895, %v8206
        %v8208 = vsel %vm8045, %v8207, %v8203
        %v8209 = vlaneseq
        %v8210 = vshrl.u32 %v8209, 7
        %v8211 = vsub.s32 %v8047, %v8210
        %v8212 = vrot.slane %v7898, %v8211
        %v8213 = vsel %vm8052, %v8212, %v8208
        %v8214 = vlaneseq
        %v8215 = vshrl.u32 %v8214, 7
        %v8216 = vsub.s32 %v8054, %v8215
        %v8217 = vrot.slane %v7901, %v8216
        %v8218 = vsel %vm8059, %v8217, %v8213
        %v8219 = vlaneseq
        %v8220 = vshrl.u32 %v8219, 7
        %v8221 = vsub.s32 %v7951, %v8220
        %v8222 = vrot.slane %v7904, %v8221
        %v8223 = vlaneseq
        %v8224 = vshrl.u32 %v8223, 7
        %v8225 = vsub.s32 %v7956, %v8224
        %v8226 = vrot.slane %v7907, %v8225
        %v8227 = vsel %vm7961, %v8226, %v8222
        %v8228 = vlaneseq
        %v8229 = vshrl.u32 %v8228, 7
        %v8230 = vsub.s32 %v7963, %v8229
        %v8231 = vrot.slane %v7910, %v8230
        %v8232 = vsel %vm7968, %v8231, %v8227
        %v8233 = vlaneseq
        %v8234 = vshrl.u32 %v8233, 7
        %v8235 = vsub.s32 %v7970, %v8234
        %v8236 = vrot.slane %v7913, %v8235
        %v8237 = vsel %vm7975, %v8236, %v8232
        %v8238 = vlaneseq
        %v8239 = vshrl.u32 %v8238, 7
        %v8240 = vsub.s32 %v7977, %v8239
        %v8241 = vrot.slane %v7916, %v8240
        %v8242 = vsel %vm7982, %v8241, %v8237
        %v8243 = vlaneseq
        %v8244 = vshrl.u32 %v8243, 7
        %v8245 = vsub.s32 %v7984, %v8244
        %v8246 = vrot.slane %v7919, %v8245
        %v8247 = vsel %vm7989, %v8246, %v8242
        %v8248 = vlaneseq
        %v8249 = vshrl.u32 %v8248, 7
        %v8250 = vsub.s32 %v7991, %v8249
        %v8251 = vrot.slane %v7922, %v8250
        %v8252 = vsel %vm7996, %v8251, %v8247
        %v8253 = vlaneseq
        %v8254 = vshrl.u32 %v8253, 7
        %v8255 = vsub.s32 %v7998, %v8254
        %v8256 = vrot.slane %v7925, %v8255
        %v8257 = vsel %vm8003, %v8256, %v8252
        %v8258 = vlaneseq
        %v8259 = vshrl.u32 %v8258, 7
        %v8260 = vsub.s32 %v8005, %v8259
        %v8261 = vrot.slane %v7928, %v8260
        %v8262 = vsel %vm8010, %v8261, %v8257
        %v8263 = vlaneseq
        %v8264 = vshrl.u32 %v8263, 7
        %v8265 = vsub.s32 %v8012, %v8264
        %v8266 = vrot.slane %v7931, %v8265
        %v8267 = vsel %vm8017, %v8266, %v8262
        %v8268 = vlaneseq
        %v8269 = vshrl.u32 %v8268, 7
        %v8270 = vsub.s32 %v8019, %v8269
        %v8271 = vrot.slane %v7934, %v8270
        %v8272 = vsel %vm8024, %v8271, %v8267
        %v8273 = vlaneseq
        %v8274 = vshrl.u32 %v8273, 7
        %v8275 = vsub.s32 %v8026, %v8274
        %v8276 = vrot.slane %v7937, %v8275
        %v8277 = vsel %vm8031, %v8276, %v8272
        %v8278 = vlaneseq
        %v8279 = vshrl.u32 %v8278, 7
        %v8280 = vsub.s32 %v8033, %v8279
        %v8281 = vrot.slane %v7940, %v8280
        %v8282 = vsel %vm8038, %v8281, %v8277
        %v8283 = vlaneseq
        %v8284 = vshrl.u32 %v8283, 7
        %v8285 = vsub.s32 %v8040, %v8284
        %v8286 = vrot.slane %v7943, %v8285
        %v8287 = vsel %vm8045, %v8286, %v8282
        %v8288 = vlaneseq
        %v8289 = vshrl.u32 %v8288, 7
        %v8290 = vsub.s32 %v8047, %v8289
        %v8291 = vrot.slane %v7946, %v8290
        %v8292 = vsel %vm8052, %v8291, %v8287
        %v8293 = vlaneseq
        %v8294 = vshrl.u32 %v8293, 7
        %v8295 = vsub.s32 %v8054, %v8294
        %v8296 = vrot.slane %v7949, %v8295
        %v8297 = vsel %vm8059, %v8296, %v8292
        %v8298 = vcombine.low %v8060, %v8139
        %v8299 = vcombine.low %v8218, %v8297
        %v8301 = vunpack.c.l.s4 1966171168
        %v8302 = vunpack.c.0.s8 %v8301
        %v8303 = vlaneseq
        %v8304 = vshrl.u32 %v8303, 7
        %v8305 = vsub.s32 %v8302, %v8304
        %v8306 = vrot.slane %v8298, %v8305
        %v8308 = vunpack.c.l.s4 1966171168
        %v8309 = vunpack.c.0.s8 %v8308
        %v8310 = vlaneseq
        %v8311 = vshrl.u32 %v8310, 7
        %v8312 = vsub.s32 %v8309, %v8311
        %v8313 = vrot.slane %v8299, %v8312
        %v8314 = vcombine.low %v8306, %v8313
        %v8316 = vunpack.c.l.s4 1966171168
        %v8317 = vunpack.c.0.s8 %v8316
        %v8318 = vlaneseq
        %v8319 = vshrl.u32 %v8318, 7
        %v8320 = vsub.s32 %v8317, %v8319
        %v8321 = vrot.slane %v8314, %v8320
        %v8323 = vlaneseq
        %vm8324 = vcmp.ge.s32.totalorder %v8323, 0
        %vm8325 = vcmp.lt.s32.totalorder %v8323, 512
        %vm8326 = vmand %vm8324, %vm8325
        %8327 = vst.msk [vmem:[%s220] sm:$0xf] %vm8326, %v8321
        %s8328 = sand.u32 %s139, 1
        %s8329 = scalar_lea.sflag [#allocation4], %s8328
        %s8330 = sand.u32 %s139, 1
        %s8331 = smul.addr %s8330, 4
        %s8332 = scalar_lea.vmem [#allocation3], %s8331
        // Predicated region
        $region41: #{tpu_custom_call.1} parent=39 // pred_check
          %p8333 = pneg %p149
        $region42: #{tpu_custom_call.1} parent=39 // pred_check_branch
          %8335 = sbr.rel (%p8333) target = $region44
        $region43: #{tpu_custom_call.1} parent=39 // pred_region
          %s8336 = smul.u32 4, %s21
          %s8338 = ssub.s32 64, 64
          %8339 = vsyncadd %s8329, %s8338
          %s8340 = smul.addr %s8336, 16
          %s8341 = scalar_lea.hbm %s5, %s8340
          %s8343 = sshll.u32 %s8332, 4
          %s8344 = int_to_ptr.vmem [resolvable:$true] %s8343
          %8346 = dma.vmem_to_hbm [thread:$0]  %s8344, 64, %s8341, %s8329
        $region44: #{tpu_custom_call.1} parent=39 // pred_fallthru
          _
      $region40: #{tpu_custom_call.1} parent=5 // pred_fallthru
        _
      %p8347 = scmp.le.s32.totalorder 2, %s16
      // Predicated region
      $region45: #{tpu_custom_call.1} parent=5 // pred_check
        %p8348 = pneg %p8347
      $region46: #{tpu_custom_call.1} parent=5 // pred_check_branch
        %8350 = sbr.rel (%p8348) target = $region48
      $region47: #{tpu_custom_call.1} parent=5 // pred_region
        %s8351 = ssub.s32 %s16, 2
        // Predicated region
        $region49: #{tpu_custom_call.1} parent=47 // pred_check
          %p8352 = pneg %p155
        $region50: #{tpu_custom_call.1} parent=47 // pred_check_branch
          %8354 = sbr.rel (%p8352) target = $region52
        $region51: #{tpu_custom_call.1} parent=47 // pred_region
          %s8355 = sand.u32 %s140, 1
          %s8356 = scalar_lea.sflag [#allocation4], %s8355
          %s8357 = sand.u32 %s140, 1
          %s8358 = smul.addr %s8357, 4
          %s8359 = scalar_lea.vmem [#allocation3], %s8358
          %8360 = dma.done %s8356, 64
        $region52: #{tpu_custom_call.1} parent=47 // pred_fallthru
          _
      $region48: #{tpu_custom_call.1} parent=5 // pred_fallthru
        _
    $region6: #{tpu_custom_call.1} parent=1 // loop_footer
      %s20 = sadd.s32 1, %s16
    $region7: #{tpu_custom_call.1} parent=1 // loop_footer_branch
      %15 = sbr.rel target = $region3
    $region8: #{tpu_custom_call.1} parent=1 // loop_exit
      _
    %8361 = vsyncpa [#allocation4], 1
    %s8362 = scalar_lea.sflag [#allocation4], 1
    %8363 = vsyncpa %s8362, 1

</llo_original>
